<compile_context>
chip_gen: v6e
topology: v6e:2x2x1
jax: 0.10.0
libtpu: 0.0.40
codegen_flags: <defaults>
</compile_context>

<pallas_src>
import functools
import math

import jax
import jax.numpy as jnp
import numpy as np
from jax.experimental import pallas as pl
from jax.experimental.pallas import tpu as pltpu


def _pe_kernel(scale_ref, bias_ref, o_ref):
    """o_ref[r, l] = sin(r_global * scale[l] + bias[l]) for a (tile_rows, W) tile."""
    tile_rows = o_ref.shape[0]
    r0 = pl.program_id(0) * tile_rows
    r = (r0 + jax.lax.broadcasted_iota(jnp.int32, o_ref.shape, 0)).astype(jnp.float32)
    # (1, W) constants broadcast along sublanes; single EUP sin per element.
    o_ref[...] = jnp.sin(r * scale_ref[...] + bias_ref[...])


def _choose_tile_rows(n_rows: int, width: int) -> int:
    """Row tile: multiple of 8, <= ~8 MiB per buffer, >= 2 grid steps when possible."""
    if n_rows <= 8:
        return n_rows  # single full-extent block
    bytes_per_row = width * 4
    max_rows = max(8, ((8 * 1024 * 1024) // bytes_per_row) // 8 * 8)
    target = ((-(-n_rows // 2)) + 7) // 8 * 8  # round_up(cdiv(n_rows, 2), 8)
    return max(8, min(target, max_rows, 2048))


@functools.lru_cache(maxsize=None)
def _pe_table(d_model: int, max_len: int = 5000):
    """Build the full (max_len, d_model) sinusoidal table once (register_buffer analog)."""
    assert d_model % 2 == 0, "d_model must be even (implicit PyTorch-module constraint)"

    # Lane packing: put `rpr` consecutive positions side by side so the output
    # row width W = d_model * rpr is a multiple of 128 lanes (dense stores).
    rpr = 128 // math.gcd(d_model, 128)
    if rpr == 1 or max_len % rpr != 0:
        rpr = 1
    W = d_model * rpr
    n_rows = max_len // rpr

    # Per-lane affine constants (float64 on host, cast once).
    lane = np.arange(W)
    col = lane % d_model
    off = lane // d_model
    inv_freq = np.exp(-(2.0 * (col // 2)) * (math.log(10000.0) / d_model))
    phase = np.where(col % 2 == 1, np.pi / 2.0, 0.0)  # cos(x) == sin(x + pi/2)
    scale = (rpr * inv_freq).astype(np.float32).reshape(1, W)
    bias = (off * inv_freq + phase).astype(np.float32).reshape(1, W)

    tile_rows = _choose_tile_rows(n_rows, W)
    grid = (pl.cdiv(n_rows, tile_rows),)

    packed = pl.pallas_call(
        _pe_kernel,
        out_shape=jax.ShapeDtypeStruct((n_rows, W), jnp.float32),
        grid=grid,
        in_specs=[
            pl.BlockSpec((1, W), lambda i: (0, 0)),  # scale: VMEM-resident per-lane const
            pl.BlockSpec((1, W), lambda i: (0, 0)),  # bias:  VMEM-resident per-lane const
        ],
        out_specs=pl.BlockSpec((tile_rows, W), lambda i: (i, 0)),
        compiler_params=pltpu.CompilerParams(
            dimension_semantics=("parallel",),  # independent row tiles (v7x: both TCs)
        ),
    )(jnp.asarray(scale), jnp.asarray(bias))

    # Free row-major reshape: (max_len//rpr, d_model*rpr) -> (max_len, d_model).
    return packed.reshape(max_len, d_model)


def positional_embedding(x, d_model, max_len=5000):
    """Forward of PositionalEmbedding: pe[:, :x.shape[1]] of shape (1, L, d_model)."""
    L = x.shape[1]
    assert L <= max_len, "sequence length exceeds max_len"
    pe = _pe_table(d_model, max_len)  # cached across calls, like register_buffer
    return pe[None, :L, :]


def _reference(L, d_model):
    """NumPy reference mirroring the PyTorch buffer construction + slice."""
    position = np.arange(L, dtype=np.float32)[:, None]
    div_term = np.exp(
        np.arange(0, d_model, 2, dtype=np.float32) * -(math.log(10000.0) / d_model)
    )
    pe = np.zeros((L, d_model), np.float32)
    pe[:, 0::2] = np.sin(position * div_term)
    pe[:, 1::2] = np.cos(position * div_term)
    return pe[None]


if __name__ == "__main__":
    key = jax.random.PRNGKey(0)

    # Small shapes matching the module's forward contract.
    B, L, d_model = 2, 8, 32
    x = jax.random.normal(key, (B, L, d_model), jnp.float32)
    pe = jax.block_until_ready(positional_embedding(x, d_model=d_model))
    pe_ref = _reference(L, d_model)
    assert pe.shape == (1, L, d_model), f"bad shape {pe.shape}"
    assert np.allclose(np.asarray(pe), pe_ref, atol=1e-4, rtol=1e-4), "mismatch vs reference"

    # Second check: different d_model exercising lane packing, multi-step grid,
    # and a partial (masked) last block.
    L2, d2 = 300, 64
    x2 = jax.random.normal(key, (B, L2, d2), jnp.float32)
    pe2 = jax.block_until_ready(positional_embedding(x2, d_model=d2))
    pe2_ref = _reference(L2, d2)
    assert pe2.shape == (1, L2, d2), f"bad shape {pe2.shape}"
    assert np.allclose(np.asarray(pe2), pe2_ref, atol=1e-3, rtol=1e-3), "mismatch vs reference (L=300)"

    print("KERNEL_OK")
</pallas_src>

<mosaic_0001>
module attributes {stable_mosaic.version = 11 : i64} {
  func.func @_pe_kernel(%arg0: i32, %arg1: memref<1x128xf32, #tpu.memory_space<vmem>>, %arg2: memref<1x128xf32, #tpu.memory_space<vmem>>, %arg3: memref<632x128xf32, #tpu.memory_space<vmem>>) attributes {dimension_semantics = [#tpu.dimension_semantics<parallel>], iteration_bounds = array<i64: 2>, scalar_prefetch = 0 : i64, scratch_operands = 0 : i64, tpu.core_type = #tpu.core_type<tc>, window_params = [{pipeline_mode = #tpu.pipeline_mode<synchronous>, transform_indices = @transform_0, window_bounds = array<i64: 1, 128>}, {pipeline_mode = #tpu.pipeline_mode<synchronous>, transform_indices = @transform_1, window_bounds = array<i64: 1, 128>}, {transform_indices = @transform_2, window_bounds = array<i64: 632, 128>}]} {
    %c632_i32 = arith.constant 632 : i32
    %0 = arith.muli %arg0, %c632_i32 : i32
    %1 = tpu.iota {dimensions = array<i32: 0>} : vector<632x128xi32>
    %2 = vector.broadcast %0 : i32 to vector<632x128xi32>
    %3 = arith.addi %2, %1 : vector<632x128xi32>
    %4 = arith.sitofp %3 : vector<632x128xi32> to vector<632x128xf32>
    %c0 = arith.constant 0 : index
    %c0_0 = arith.constant 0 : index
    %5 = vector.load %arg1[%c0, %c0_0] : memref<1x128xf32, #tpu.memory_space<vmem>>, vector<1x128xf32>
    %6 = vector.broadcast %5 : vector<1x128xf32> to vector<632x128xf32>
    %7 = arith.mulf %4, %6 : vector<632x128xf32>
    %c0_1 = arith.constant 0 : index
    %c0_2 = arith.constant 0 : index
    %8 = vector.load %arg2[%c0_1, %c0_2] : memref<1x128xf32, #tpu.memory_space<vmem>>, vector<1x128xf32>
    %9 = vector.broadcast %8 : vector<1x128xf32> to vector<632x128xf32>
    %10 = arith.addf %7, %9 : vector<632x128xf32>
    %11 = math.sin %10 : vector<632x128xf32>
    %c0_3 = arith.constant 0 : index
    %c0_4 = arith.constant 0 : index
    %12 = vector.load %arg3[%c0_3, %c0_4] : memref<632x128xf32, #tpu.memory_space<vmem>>, vector<632x128xf32>
    tpu.vector_store %arg3[%c0_3, %c0_4], %11 {strides = array<i32>} : memref<632x128xf32, #tpu.memory_space<vmem>>, vector<632x128xf32>,
    return
  }
  func.func @transform_0(%arg0: i32) -> (i32, i32) {
    %c0_i32 = arith.constant 0 : i32
    %c0_i32_0 = arith.constant 0 : i32
    %c0_i32_1 = arith.constant 0 : i32
    return %c0_i32, %c0_i32_0 : i32, i32
  }
  func.func @transform_1(%arg0: i32) -> (i32, i32) {
    %c0_i32 = arith.constant 0 : i32
    %c0_i32_0 = arith.constant 0 : i32
    %c0_i32_1 = arith.constant 0 : i32
    return %c0_i32, %c0_i32_0 : i32, i32
  }
  func.func @transform_2(%arg0: i32) -> (i32, i32) {
    %c0_i32 = arith.constant 0 : i32
    %c0_i32_0 = arith.constant 0 : i32
    return %arg0, %c0_i32 : i32, i32
  }
}

</mosaic_0001>

<llo_original>
// kernel: tpu_custom_call.1
$region0: #{tpu_custom_call.1}
  #allocation0 [shape = 'u32[]', space=smem, size = 0x4, offset = 0x4, fixed_abs, tag = 'smem constant byte address 0x4 - core index']
  #allocation1 [shape = 'u32[144,128]{1,0:T(1,128)}', space=vmem, size = 0x12000, scoped, tag = 'internal scratch']
  %s0 = inlined_call_operand.hbm [shape: f32[1,128], index: 0, kind: input, shape index: {}]
  %s1 = inlined_call_operand.vmem [shape: f32[1,128], index: 1, kind: input, shape index: {}]
  %s2 = inlined_call_operand.hbm [shape: f32[1250,128], index: 2, kind: output, shape index: {}]
  %s3 = sld [smem:[#allocation0]]
  $region45: #{tpu_custom_call.1} parent=0
    _
  %s5 = ssub.s32 1, %s3
  %s6 = scalar_select 0, %s5, %s3
  $region1: #{tpu_custom_call.1} parent=0
    #allocation2 [shape = 'u8[512]{0}', space=vmem, size = 0x400, scoped, tag = 'input window, operand 0, single buffered']
    #allocation3 [shape = 's32[2]{0}', space=sflag, size = 0x8, scoped, tag = 'scoped memory for tpu_custom_call.1']
    #allocation4 [shape = 's32[2]{0}', space=sflag, size = 0x8, scoped, tag = 'scoped memory for tpu_custom_call.1']
    #allocation5 [shape = 'u8[647168]{0}', space=vmem, size = 0x9e000, scoped, tag = 'output window, operand 0']
    %7 = vsyncpa [#allocation3], 0
    %8 = vsyncpa [#allocation4], 0
    %s9 = scalar_lea.sflag [#allocation4], 1
    %10 = vsyncpa %s9, 0
    loop: start=0, step=1, limit=4
    $region2: #{tpu_custom_call.1} parent=1 // loop_pre_header
      _
    $region3: #{tpu_custom_call.1} parent=1 // loop_header
      %s12 = sphi 0, %s16
      %p13 = scmp.ge.s32.totalorder %s12, 4
      %s20 = sphi 0, %s20
      %s22 = sphi 0, %s20
      %s23 = sphi 0, %s22
      %s37 = sphi 0, %s23
      %s41 = sphi 0, %s41
      %s43 = sphi 0, %s41
      %s44 = sphi 0, %s43
      %s58 = sphi 0, %s44
      %s64 = sphi 0, %s66
      %s67 = sphi 0, %s64
      %s68 = sphi 0, %s67
      %s84 = sphi 0, %s68
    $region4: #{tpu_custom_call.1} parent=1 // loop_header_branch
      %15 = sbr.rel (%p13) target = $region8
    $region5: #{tpu_custom_call.1} parent=1 // loop_body
      %s17 = ssub.s32 %s12, 1
      %s18 = ssub.s32 %s12, 2
      %s19 = sadd.s32 %s12, 1
      %s21 = sadd.s32 %s20, 1
      %p24 = scmp.eq.s32.totalorder %s12, 1
      %p25 = scmp.ne.s32.totalorder %s20, %s22
      %p26 = scmp.eq.s32.totalorder %s12, 0
      %p27 = por %p25, %p26
      %p28 = scmp.ne.s32.totalorder %s20, %s22
      %p29 = scmp.eq.s32.totalorder %s17, 1
      %p30 = por %p28, %p29
      %p31 = scmp.ne.s32.totalorder %s22, %s23
      %p32 = scmp.eq.s32.totalorder %s17, 0
      %p33 = por %p31, %p32
      %p34 = scmp.ne.s32.totalorder %s22, %s23
      %p35 = scmp.eq.s32.totalorder %s18, 1
      %p36 = por %p34, %p35
      %p38 = scmp.ne.s32.totalorder %s23, %s37
      %p39 = scmp.eq.s32.totalorder %s18, 0
      %p40 = por %p38, %p39
      %s42 = sadd.s32 %s41, 1
      %p45 = scmp.eq.s32.totalorder %s12, 1
      %p46 = scmp.ne.s32.totalorder %s41, %s43
      %p47 = scmp.eq.s32.totalorder %s12, 0
      %p48 = por %p46, %p47
      %p49 = scmp.ne.s32.totalorder %s41, %s43
      %p50 = scmp.eq.s32.totalorder %s17, 1
      %p51 = por %p49, %p50
      %p52 = scmp.ne.s32.totalorder %s43, %s44
      %p53 = scmp.eq.s32.totalorder %s17, 0
      %p54 = por %p52, %p53
      %p55 = scmp.ne.s32.totalorder %s43, %s44
      %p56 = scmp.eq.s32.totalorder %s18, 1
      %p57 = por %p55, %p56
      %p59 = scmp.ne.s32.totalorder %s44, %s58
      %p60 = scmp.eq.s32.totalorder %s18, 0
      %p61 = por %p59, %p60
      %s62 = ssub.s32 %s12, %s19
      %p63 = scmp.eq.s32.totalorder %s62, 0
      %s65 = sadd.s32 %s64, 1
      %s66 = scalar_select %p63, %s64, %s65
      %p69 = pneg %p63
      %p70 = scmp.eq.s32.totalorder %s12, 1
      %p71 = por %p69, %p70
      %p72 = scmp.ne.s32.totalorder %s64, %s67
      %p73 = scmp.eq.s32.totalorder %s12, 0
      %p74 = por %p72, %p73
      %p75 = scmp.ne.s32.totalorder %s64, %s67
      %p76 = scmp.eq.s32.totalorder %s17, 1
      %p77 = por %p75, %p76
      %p78 = scmp.ne.s32.totalorder %s67, %s68
      %p79 = scmp.eq.s32.totalorder %s17, 0
      %p80 = por %p78, %p79
      %p81 = scmp.ne.s32.totalorder %s67, %s68
      %p82 = scmp.eq.s32.totalorder %s18, 1
      %p83 = por %p81, %p82
      %p85 = scmp.ne.s32.totalorder %s68, %s84
      %p86 = scmp.eq.s32.totalorder %s18, 0
      %p87 = por %p85, %p86
      %p88 = scmp.le.s32.totalorder 1, %s12
      %p89 = scmp.lt.s32.totalorder %s12, 3
      %p90 = pnand %p88, %p89
      %p91 = pneg %p90
      // Predicated region
      $region9: #{tpu_custom_call.1} parent=5 // pred_check
        _
      $region10: #{tpu_custom_call.1} parent=5 // pred_check_branch
        %93 = sbr.rel (%p90) target = $region12
      $region11: #{tpu_custom_call.1} parent=5 // pred_region
        %s94 = ssub.s32 %s12, 1
        // Predicated region
        $region13: #{tpu_custom_call.1} parent=11 // pred_check
          %p95 = pneg %p33
        $region14: #{tpu_custom_call.1} parent=11 // pred_check_branch
          %97 = sbr.rel (%p95) target = $region16
        $region15: #{tpu_custom_call.1} parent=11 // pred_region
          %s99 = ssub.s32 16, 16
          %100 = vsyncadd [#allocation3], %s99
          %s102 = sshll.u32 [#allocation2], 4
          %s103 = int_to_ptr.vmem [resolvable:$true] %s102
          %105 = dma.hbm_to_vmem [thread:$0]  %s0, 16, %s103, [#allocation3]
        $region16: #{tpu_custom_call.1} parent=11 // pred_fallthru
          _
        // Predicated region
        $region17: #{tpu_custom_call.1} parent=11 // pred_check
          %p106 = pneg %p54
        $region18: #{tpu_custom_call.1} parent=11 // pred_check_branch
          %108 = sbr.rel (%p106) target = $region20
        $region19: #{tpu_custom_call.1} parent=11 // pred_region
          _
        $region20: #{tpu_custom_call.1} parent=11 // pred_fallthru
          _
      $region12: #{tpu_custom_call.1} parent=5 // pred_fallthru
        _
      %p109 = scmp.lt.s32.totalorder %s12, 2
      // Predicated region
      $region21: #{tpu_custom_call.1} parent=5 // pred_check
        %p110 = pneg %p109
      $region22: #{tpu_custom_call.1} parent=5 // pred_check_branch
        %112 = sbr.rel (%p110) target = $region24
      $region23: #{tpu_custom_call.1} parent=5 // pred_region
        _
      $region24: #{tpu_custom_call.1} parent=5 // pred_fallthru
        _
      %p113 = scmp.le.s32.totalorder 1, %s12
      %p114 = scmp.lt.s32.totalorder %s12, 3
      %p115 = pnand %p113, %p114
      %p116 = pneg %p115
      // Predicated region
      $region25: #{tpu_custom_call.1} parent=5 // pred_check
        _
      $region26: #{tpu_custom_call.1} parent=5 // pred_check_branch
        %118 = sbr.rel (%p115) target = $region28
      $region27: #{tpu_custom_call.1} parent=5 // pred_region
        %s119 = ssub.s32 %s12, 1
        // Predicated region
        $region29: #{tpu_custom_call.1} parent=27 // pred_check
          %p120 = pneg %p33
        $region30: #{tpu_custom_call.1} parent=27 // pred_check_branch
          %122 = sbr.rel (%p120) target = $region32
        $region31: #{tpu_custom_call.1} parent=27 // pred_region
          %123 = dma.done [#allocation3], 16
        $region32: #{tpu_custom_call.1} parent=27 // pred_fallthru
          _
        %p124 = pneg %p33
        %p125 = pneg %p30
        %p126 = pneg %p54
        %p127 = pneg %p51
        %p128 = pneg %p80
        %p129 = pneg %p77
        %s130 = sand.u32 %s67, 1
        %s131 = scalar_lea.sflag [#allocation4], %s130
        %s132 = sand.u32 %s67, 1
        %s133 = smul.addr %s132, 632
        %s134 = scalar_lea.vmem [#allocation5], %s133
        %s135 = smul.u32 79, %s17
        %s136 = ssub.s32 157, %s135
        %p137 = scmp.lt.s32.totalorder %s136, 79
        %s138 = scalar_select %p137, %s136, 79
        %s139 = smul.u32 128, %s138
        %s140 = smul.u32 %s17, 632
        %v141 = vlaneseq
        %v142 = vshrl.u32 %v141, 7
        %v143 = vadd.s32 %v142, 8
        %v144 = vadd.s32 %v142, 16
        %v145 = vadd.s32 %v142, 24
        %v146 = vadd.s32 %v142, 32
        %v147 = vadd.s32 %v142, 40
        %v148 = vadd.s32 %v142, 48
        %v149 = vadd.s32 %v142, 56
        %v150 = vadd.s32 %v142, 64
        %v151 = vadd.s32 %v142, 72
        %v152 = vadd.s32 %v142, 80
        %v153 = vadd.s32 %v142, 88
        %v154 = vadd.s32 %v142, 96
        %v155 = vadd.s32 %v142, 104
        %v156 = vadd.s32 %v142, 112
        %v157 = vadd.s32 %v142, 120
        %v158 = vadd.s32 %v142, 128
        %v159 = vadd.s32 %v142, 136
        %v160 = vadd.s32 %v142, 144
        %v161 = vadd.s32 %v142, 152
        %v162 = vadd.s32 %v142, 160
        %v163 = vadd.s32 %v142, 168
        %v164 = vadd.s32 %v142, 176
        %v165 = vadd.s32 %v142, 184
        %v166 = vadd.s32 %v142, 192
        %v167 = vadd.s32 %v142, 200
        %v168 = vadd.s32 %v142, 208
        %v169 = vadd.s32 %v142, 216
        %v170 = vadd.s32 %v142, 224
        %v171 = vadd.s32 %v142, 232
        %v172 = vadd.s32 %v142, 240
        %v173 = vadd.s32 %v142, 248
        %v174 = vadd.s32 %v142, 256
        %v175 = vadd.s32 %v142, 264
        %v176 = vadd.s32 %v142, 272
        %v177 = vadd.s32 %v142, 280
        %v178 = vadd.s32 %v142, 288
        %v179 = vadd.s32 %v142, 296
        %v180 = vadd.s32 %v142, 304
        %v181 = vadd.s32 %v142, 312
        %v182 = vadd.s32 %v142, 320
        %v183 = vadd.s32 %v142, 328
        %v184 = vadd.s32 %v142, 336
        %v185 = vadd.s32 %v142, 344
        %v186 = vadd.s32 %v142, 352
        %v187 = vadd.s32 %v142, 360
        %v188 = vadd.s32 %v142, 368
        %v189 = vadd.s32 %v142, 376
        %v190 = vadd.s32 %v142, 384
        %v191 = vadd.s32 %v142, 392
        %v192 = vadd.s32 %v142, 400
        %v193 = vadd.s32 %v142, 408
        %v194 = vadd.s32 %v142, 416
        %v195 = vadd.s32 %v142, 424
        %v196 = vadd.s32 %v142, 432
        %v197 = vadd.s32 %v142, 440
        %v198 = vadd.s32 %v142, 448
        %v199 = vadd.s32 %v142, 456
        %v200 = vadd.s32 %v142, 464
        %v201 = vadd.s32 %v142, 472
        %v202 = vadd.s32 %v142, 480
        %v203 = vadd.s32 %v142, 488
        %v204 = vadd.s32 %v142, 496
        %v205 = vadd.s32 %v142, 504
        %v206 = vadd.s32 %v142, 512
        %v207 = vadd.s32 %v142, 520
        %v208 = vadd.s32 %v142, 528
        %v209 = vadd.s32 %v142, 536
        %v210 = vadd.s32 %v142, 544
        %v211 = vadd.s32 %v142, 552
        %v212 = vadd.s32 %v142, 560
        %v213 = vadd.s32 %v142, 568
        %v214 = vadd.s32 %v142, 576
        %v215 = vadd.s32 %v142, 584
        %v216 = vadd.s32 %v142, 592
        %v217 = vadd.s32 %v142, 600
        %v218 = vadd.s32 %v142, 608
        %v219 = vadd.s32 %v142, 616
        %v220 = vadd.s32 %v142, 624
        %v221 = vstv %s140
        %v222 = vadd.s32 %v221, %v142
        %v223 = vadd.s32 %v221, %v143
        %v224 = vadd.s32 %v221, %v144
        %v225 = vadd.s32 %v221, %v145
        %v226 = vadd.s32 %v221, %v146
        %v227 = vadd.s32 %v221, %v147
        %v228 = vadd.s32 %v221, %v148
        %v229 = vadd.s32 %v221, %v149
        %v230 = vadd.s32 %v221, %v150
        %v231 = vadd.s32 %v221, %v151
        %v232 = vadd.s32 %v221, %v152
        %v233 = vadd.s32 %v221, %v153
        %v234 = vadd.s32 %v221, %v154
        %v235 = vadd.s32 %v221, %v155
        %v236 = vadd.s32 %v221, %v156
        %v237 = vadd.s32 %v221, %v157
        %v238 = vadd.s32 %v221, %v158
        %v239 = vadd.s32 %v221, %v159
        %v240 = vadd.s32 %v221, %v160
        %v241 = vadd.s32 %v221, %v161
        %v242 = vadd.s32 %v221, %v162
        %v243 = vadd.s32 %v221, %v163
        %v244 = vadd.s32 %v221, %v164
        %v245 = vadd.s32 %v221, %v165
        %v246 = vadd.s32 %v221, %v166
        %v247 = vadd.s32 %v221, %v167
        %v248 = vadd.s32 %v221, %v168
        %v249 = vadd.s32 %v221, %v169
        %v250 = vadd.s32 %v221, %v170
        %v251 = vadd.s32 %v221, %v171
        %v252 = vadd.s32 %v221, %v172
        %v253 = vadd.s32 %v221, %v173
        %v254 = vadd.s32 %v221, %v174
        %v255 = vadd.s32 %v221, %v175
        %v256 = vadd.s32 %v221, %v176
        %v257 = vadd.s32 %v221, %v177
        %v258 = vadd.s32 %v221, %v178
        %v259 = vadd.s32 %v221, %v179
        %v260 = vadd.s32 %v221, %v180
        %v261 = vadd.s32 %v221, %v181
        %v262 = vadd.s32 %v221, %v182
        %v263 = vadd.s32 %v221, %v183
        %v264 = vadd.s32 %v221, %v184
        %v265 = vadd.s32 %v221, %v185
        %v266 = vadd.s32 %v221, %v186
        %v267 = vadd.s32 %v221, %v187
        %v268 = vadd.s32 %v221, %v188
        %v269 = vadd.s32 %v221, %v189
        %v270 = vadd.s32 %v221, %v190
        %v271 = vadd.s32 %v221, %v191
        %v272 = vadd.s32 %v221, %v192
        %v273 = vadd.s32 %v221, %v193
        %v274 = vadd.s32 %v221, %v194
        %v275 = vadd.s32 %v221, %v195
        %v276 = vadd.s32 %v221, %v196
        %v277 = vadd.s32 %v221, %v197
        %v278 = vadd.s32 %v221, %v198
        %v279 = vadd.s32 %v221, %v199
        %v280 = vadd.s32 %v221, %v200
        %v281 = vadd.s32 %v221, %v201
        %v282 = vadd.s32 %v221, %v202
        %v283 = vadd.s32 %v221, %v203
        %v284 = vadd.s32 %v221, %v204
        %v285 = vadd.s32 %v221, %v205
        %v286 = vadd.s32 %v221, %v206
        %v287 = vadd.s32 %v221, %v207
        %v288 = vadd.s32 %v221, %v208
        %v289 = vadd.s32 %v221, %v209
        %v290 = vadd.s32 %v221, %v210
        %v291 = vadd.s32 %v221, %v211
        %v292 = vadd.s32 %v221, %v212
        %v293 = vadd.s32 %v221, %v213
        %v294 = vadd.s32 %v221, %v214
        %v295 = vadd.s32 %v221, %v215
        %v296 = vadd.s32 %v221, %v216
        %v297 = vadd.s32 %v221, %v217
        %v298 = vadd.s32 %v221, %v218
        %v299 = vadd.s32 %v221, %v219
        %v300 = vadd.s32 %v221, %v220
        %v301 = vcvt.s32.f32 %v222
        %v302 = vcvt.s32.f32 %v223
        %v303 = vcvt.s32.f32 %v224
        %v304 = vcvt.s32.f32 %v225
        %v305 = vcvt.s32.f32 %v226
        %v306 = vcvt.s32.f32 %v227
        %v307 = vcvt.s32.f32 %v228
        %v308 = vcvt.s32.f32 %v229
        %v309 = vcvt.s32.f32 %v230
        %v310 = vcvt.s32.f32 %v231
        %v311 = vcvt.s32.f32 %v232
        %v312 = vcvt.s32.f32 %v233
        %v313 = vcvt.s32.f32 %v234
        %v314 = vcvt.s32.f32 %v235
        %v315 = vcvt.s32.f32 %v236
        %v316 = vcvt.s32.f32 %v237
        %v317 = vcvt.s32.f32 %v238
        %v318 = vcvt.s32.f32 %v239
        %v319 = vcvt.s32.f32 %v240
        %v320 = vcvt.s32.f32 %v241
        %v321 = vcvt.s32.f32 %v242
        %v322 = vcvt.s32.f32 %v243
        %v323 = vcvt.s32.f32 %v244
        %v324 = vcvt.s32.f32 %v245
        %v325 = vcvt.s32.f32 %v246
        %v326 = vcvt.s32.f32 %v247
        %v327 = vcvt.s32.f32 %v248
        %v328 = vcvt.s32.f32 %v249
        %v329 = vcvt.s32.f32 %v250
        %v330 = vcvt.s32.f32 %v251
        %v331 = vcvt.s32.f32 %v252
        %v332 = vcvt.s32.f32 %v253
        %v333 = vcvt.s32.f32 %v254
        %v334 = vcvt.s32.f32 %v255
        %v335 = vcvt.s32.f32 %v256
        %v336 = vcvt.s32.f32 %v257
        %v337 = vcvt.s32.f32 %v258
        %v338 = vcvt.s32.f32 %v259
        %v339 = vcvt.s32.f32 %v260
        %v340 = vcvt.s32.f32 %v261
        %v341 = vcvt.s32.f32 %v262
        %v342 = vcvt.s32.f32 %v263
        %v343 = vcvt.s32.f32 %v264
        %v344 = vcvt.s32.f32 %v265
        %v345 = vcvt.s32.f32 %v266
        %v346 = vcvt.s32.f32 %v267
        %v347 = vcvt.s32.f32 %v268
        %v348 = vcvt.s32.f32 %v269
        %v349 = vcvt.s32.f32 %v270
        %v350 = vcvt.s32.f32 %v271
        %v351 = vcvt.s32.f32 %v272
        %v352 = vcvt.s32.f32 %v273
        %v353 = vcvt.s32.f32 %v274
        %v354 = vcvt.s32.f32 %v275
        %v355 = vcvt.s32.f32 %v276
        %v356 = vcvt.s32.f32 %v277
        %v357 = vcvt.s32.f32 %v278
        %v358 = vcvt.s32.f32 %v279
        %v359 = vcvt.s32.f32 %v280
        %v360 = vcvt.s32.f32 %v281
        %v361 = vcvt.s32.f32 %v282
        %v362 = vcvt.s32.f32 %v283
        %v363 = vcvt.s32.f32 %v284
        %v364 = vcvt.s32.f32 %v285
        %v365 = vcvt.s32.f32 %v286
        %v366 = vcvt.s32.f32 %v287
        %v367 = vcvt.s32.f32 %v288
        %v368 = vcvt.s32.f32 %v289
        %v369 = vcvt.s32.f32 %v290
        %v370 = vcvt.s32.f32 %v291
        %v371 = vcvt.s32.f32 %v292
        %v372 = vcvt.s32.f32 %v293
        %v373 = vcvt.s32.f32 %v294
        %v374 = vcvt.s32.f32 %v295
        %v375 = vcvt.s32.f32 %v296
        %v376 = vcvt.s32.f32 %v297
        %v377 = vcvt.s32.f32 %v298
        %v378 = vcvt.s32.f32 %v299
        %v379 = vcvt.s32.f32 %v300
        %v380 = vld [vmem:[#allocation2] sm:$0x1]
        %v382 = vlaneseq
        %v383 = vshrl.u32 %v382, 7
        %v384 = vsub.s32 0, %v383
        %v385 = vrot.slane %v380, %v384
        %v387 = vmul.f32 %v301, %v385
        %v388 = vmul.f32 %v302, %v385
        %v389 = vmul.f32 %v303, %v385
        %v390 = vmul.f32 %v304, %v385
        %v391 = vmul.f32 %v305, %v385
        %v392 = vmul.f32 %v306, %v385
        %v393 = vmul.f32 %v307, %v385
        %v394 = vmul.f32 %v308, %v385
        %v395 = vmul.f32 %v309, %v385
        %v396 = vmul.f32 %v310, %v385
        %v397 = vmul.f32 %v311, %v385
        %v398 = vmul.f32 %v312, %v385
        %v399 = vmul.f32 %v313, %v385
        %v400 = vmul.f32 %v314, %v385
        %v401 = vmul.f32 %v315, %v385
        %v402 = vmul.f32 %v316, %v385
        %v403 = vmul.f32 %v317, %v385
        %v404 = vmul.f32 %v318, %v385
        %v405 = vmul.f32 %v319, %v385
        %v406 = vmul.f32 %v320, %v385
        %v407 = vmul.f32 %v321, %v385
        %v408 = vmul.f32 %v322, %v385
        %v409 = vmul.f32 %v323, %v385
        %v410 = vmul.f32 %v324, %v385
        %v411 = vmul.f32 %v325, %v385
        %v412 = vmul.f32 %v326, %v385
        %v413 = vmul.f32 %v327, %v385
        %v414 = vmul.f32 %v328, %v385
        %v415 = vmul.f32 %v329, %v385
        %v416 = vmul.f32 %v330, %v385
        %v417 = vmul.f32 %v331, %v385
        %v418 = vmul.f32 %v332, %v385
        %v419 = vmul.f32 %v333, %v385
        %v420 = vmul.f32 %v334, %v385
        %v421 = vmul.f32 %v335, %v385
        %v422 = vmul.f32 %v336, %v385
        %v423 = vmul.f32 %v337, %v385
        %v424 = vmul.f32 %v338, %v385
        %v425 = vmul.f32 %v339, %v385
        %v426 = vmul.f32 %v340, %v385
        %v427 = vmul.f32 %v341, %v385
        %v428 = vmul.f32 %v342, %v385
        %v429 = vmul.f32 %v343, %v385
        %v430 = vmul.f32 %v344, %v385
        %v431 = vmul.f32 %v345, %v385
        %v432 = vmul.f32 %v346, %v385
        %v433 = vmul.f32 %v347, %v385
        %v434 = vmul.f32 %v348, %v385
        %v435 = vmul.f32 %v349, %v385
        %v436 = vmul.f32 %v350, %v385
        %v437 = vmul.f32 %v351, %v385
        %v438 = vmul.f32 %v352, %v385
        %v439 = vmul.f32 %v353, %v385
        %v440 = vmul.f32 %v354, %v385
        %v441 = vmul.f32 %v355, %v385
        %v442 = vmul.f32 %v356, %v385
        %v443 = vmul.f32 %v357, %v385
        %v444 = vmul.f32 %v358, %v385
        %v445 = vmul.f32 %v359, %v385
        %v446 = vmul.f32 %v360, %v385
        %v447 = vmul.f32 %v361, %v385
        %v448 = vmul.f32 %v362, %v385
        %v449 = vmul.f32 %v363, %v385
        %v450 = vmul.f32 %v364, %v385
        %v451 = vmul.f32 %v365, %v385
        %v452 = vmul.f32 %v366, %v385
        %v453 = vmul.f32 %v367, %v385
        %v454 = vmul.f32 %v368, %v385
        %v455 = vmul.f32 %v369, %v385
        %v456 = vmul.f32 %v370, %v385
        %v457 = vmul.f32 %v371, %v385
        %v458 = vmul.f32 %v372, %v385
        %v459 = vmul.f32 %v373, %v385
        %v460 = vmul.f32 %v374, %v385
        %v461 = vmul.f32 %v375, %v385
        %v462 = vmul.f32 %v376, %v385
        %v463 = vmul.f32 %v377, %v385
        %v464 = vmul.f32 %v378, %v385
        %v465 = vmul.f32 %v379, %v385
        %v466 = vld [vmem:[%s1] sm:$0x1]
        %v468 = vlaneseq
        %v469 = vshrl.u32 %v468, 7
        %v470 = vsub.s32 0, %v469
        %v471 = vrot.slane %v466, %v470
        %v473 = vadd.f32 %v387, %v471
        %v474 = vadd.f32 %v388, %v471
        %v475 = vadd.f32 %v389, %v471
        %v476 = vadd.f32 %v390, %v471
        %v477 = vadd.f32 %v391, %v471
        %v478 = vadd.f32 %v392, %v471
        %v479 = vadd.f32 %v393, %v471
        %v480 = vadd.f32 %v394, %v471
        %v481 = vadd.f32 %v395, %v471
        %v482 = vadd.f32 %v396, %v471
        %v483 = vadd.f32 %v397, %v471
        %v484 = vadd.f32 %v398, %v471
        %v485 = vadd.f32 %v399, %v471
        %v486 = vadd.f32 %v400, %v471
        %v487 = vadd.f32 %v401, %v471
        %v488 = vadd.f32 %v402, %v471
        %v489 = vadd.f32 %v403, %v471
        %v490 = vadd.f32 %v404, %v471
        %v491 = vadd.f32 %v405, %v471
        %v492 = vadd.f32 %v406, %v471
        %v493 = vadd.f32 %v407, %v471
        %v494 = vadd.f32 %v408, %v471
        %v495 = vadd.f32 %v409, %v471
        %v496 = vadd.f32 %v410, %v471
        %v497 = vadd.f32 %v411, %v471
        %v498 = vadd.f32 %v412, %v471
        %v499 = vadd.f32 %v413, %v471
        %v500 = vadd.f32 %v414, %v471
        %v501 = vadd.f32 %v415, %v471
        %v502 = vadd.f32 %v416, %v471
        %v503 = vadd.f32 %v417, %v471
        %v504 = vadd.f32 %v418, %v471
        %v505 = vadd.f32 %v419, %v471
        %v506 = vadd.f32 %v420, %v471
        %v507 = vadd.f32 %v421, %v471
        %v508 = vadd.f32 %v422, %v471
        %v509 = vadd.f32 %v423, %v471
        %v510 = vadd.f32 %v424, %v471
        %v511 = vadd.f32 %v425, %v471
        %v512 = vadd.f32 %v426, %v471
        %v513 = vadd.f32 %v427, %v471
        %v514 = vadd.f32 %v428, %v471
        %v515 = vadd.f32 %v429, %v471
        %v516 = vadd.f32 %v430, %v471
        %v517 = vadd.f32 %v431, %v471
        %v518 = vadd.f32 %v432, %v471
        %v519 = vadd.f32 %v433, %v471
        %v520 = vadd.f32 %v434, %v471
        %v521 = vadd.f32 %v435, %v471
        %v522 = vadd.f32 %v436, %v471
        %v523 = vadd.f32 %v437, %v471
        %v524 = vadd.f32 %v438, %v471
        %v525 = vadd.f32 %v439, %v471
        %v526 = vadd.f32 %v440, %v471
        %v527 = vadd.f32 %v441, %v471
        %v528 = vadd.f32 %v442, %v471
        %v529 = vadd.f32 %v443, %v471
        %v530 = vadd.f32 %v444, %v471
        %v531 = vadd.f32 %v445, %v471
        %v532 = vadd.f32 %v446, %v471
        %v533 = vadd.f32 %v447, %v471
        %v534 = vadd.f32 %v448, %v471
        %v535 = vadd.f32 %v449, %v471
        %v536 = vadd.f32 %v450, %v471
        %v537 = vadd.f32 %v451, %v471
        %v538 = vadd.f32 %v452, %v471
        %v539 = vadd.f32 %v453, %v471
        %v540 = vadd.f32 %v454, %v471
        %v541 = vadd.f32 %v455, %v471
        %v542 = vadd.f32 %v456, %v471
        %v543 = vadd.f32 %v457, %v471
        %v544 = vadd.f32 %v458, %v471
        %v545 = vadd.f32 %v459, %v471
        %v546 = vadd.f32 %v460, %v471
        %v547 = vadd.f32 %v461, %v471
        %v548 = vadd.f32 %v462, %v471
        %v549 = vadd.f32 %v463, %v471
        %v550 = vadd.f32 %v464, %v471
        %v551 = vadd.f32 %v465, %v471
        %v552 = vand.u32 2147483647, %v473
        %vm553 = vcmp.le.f32.partialorder %v552, 0.7853982
        %vm554 = vcmp.lt.s32.totalorder %v473, 0
        %v555 = vand.u32 %v473, 2139095040
        %v556 = vshrl.u32 %v555, 23
        %v557 = vsub.s32 %v556, 127
        %v558 = vand.u32 2147483647, %v473
        %v559 = vand.u32 %v558, 8388607
        %v560 = vor.u32 %v559, 8388608
        %v561 = vsub.s32 0, %v560
        %v562 = vadd.s32 %v557, 1
        %vm563 = vcmp.gt.s32.totalorder %v562, 0
        %v564 = vsel %vm563, %v562, 0
        %v565 = vshrl.u32 %v564, 5
        %v566 = vand.u32 %v564, 31
        %v567 = vsub.s32 32, %v566
        %v568 = vshrl.u32 683565275, %v567
        %v569 = vshll.u32 683565275, %v566
        %v570 = vshrl.u32 2475754826, %v567
        %v571 = vor.u32 %v569, %v570
        %v572 = vshll.u32 2475754826, %v566
        %v573 = vshrl.u32 2131351028, %v567
        %v574 = vor.u32 %v572, %v573
        %v575 = vshll.u32 2131351028, %v566
        %v576 = vshrl.u32 2102212464, %v567
        %v577 = vor.u32 %v575, %v576
        %v578 = vshll.u32 2102212464, %v566
        %v579 = vshrl.u32 920167782, %v567
        %v580 = vor.u32 %v578, %v579
        %v581 = vshll.u32 920167782, %v566
        %v582 = vshrl.u32 1326507024, %v567
        %v583 = vor.u32 %v581, %v582
        %vm584 = vcmp.lt.s32.totalorder %v565, 1
        %vm585 = vcmp.lt.s32.totalorder %v565, 2
        %vm586 = vcmp.lt.s32.totalorder %v565, 3
        %vm587 = vcmp.lt.s32.totalorder %v565, 4
        %v588 = vsel %vm584, %v568, %v571
        %v589 = vsel %vm587, %v577, 2102212464
        %v590 = vsel %vm586, %v574, %v589
        %v591 = vsel %vm585, %v588, %v590
        %v592 = vsel %vm584, %v571, %v574
        %v593 = vsel %vm587, %v580, 920167782
        %v594 = vsel %vm586, %v577, %v593
        %v595 = vsel %vm585, %v592, %v594
        %v596 = vsel %vm584, %v574, %v577
        %v597 = vsel %vm587, %v583, 1326507024
        %v598 = vsel %vm586, %v580, %v597
        %v599 = vsel %vm585, %v596, %v598
        %v600 = vshll.u32 %v560, 8
        %v601 = vmul.u32.u64.compose %v600, %v599
        %v602 = vextract.low.u32 %v601
        %v603 = vextract.high.u32 %v601
        %v604 = vmul.u32.u64.compose %v600, %v595
        %v605 = vextract.low.u32 %v604
        %v606 = vextract.high.u32 %v604
        %v607 = vmul.u32 %v600, %v591
        %v608 = vadd.s32 %v603, %v605
        %vm609 = vc.u32 %v603, %v605
        %v610 = vadd.s32 %v606, 1
        %v611 = vsel %vm609, %v610, %v606
        %v612 = vadd.s32 %v607, %v611
        %v613 = vadd.s32 %v612, 536870912
        %v614 = vshrl.u32 %v613, 30
        %v615 = vshll.u32 %v614, 30
        %v616 = vsub.s32 %v612, %v615
        %vm617 = vcmp.lt.s32.totalorder %v616, 0
        %v618 = vsub.s32 0, %v616
        %v619 = vsel %vm617, %v618, %v616
        %v620 = vclz %v619
        %v621 = vsub.s32 %v620, 2
        %vm622 = vcmp.gt.s32.totalorder 0, %v621
        %v623 = vsel %vm622, 0, %v621
        %v624 = vsub.s32 32, %v623
        %v625 = vshll.u32 %v616, %v623
        %v626 = vshrl.u32 %v608, %v624
        %v627 = vor.u32 %v625, %v626
        %v628 = vsub.s32 4294967266, %v623
        %v629 = vadd.s32 %v628, 127
        %v630 = vshll.u32 %v629, 23
        %v631 = vor.u32 4788187, %v630
        %v632 = vand.u32 2147483647, %v631
        %v634 = vcvt.s32.f32 %v627
        %v635 = vmul.f32 %v634, %v632
        %v636 = vxor.u32 %v635, 2147483648
        %v637 = vsel %vm554, %v636, %v635
        %v638 = vsub.s32 4, %v614
        %v639 = vsel %vm554, %v638, %v614
        %v640 = vsel %vm553, %v473, %v637
        %v641 = vsel %vm553, 0, %v639
        %v642 = vcosq.f32.pop %v640
        %v643 = vsinq.f32.pop %v640
        %vm644 = vweird.f32 %v473
        %v645 = vadd.s32 %v641, 3
        %v646 = vand.u32 %v645, 3
        %vm647 = vcmp.lt.s32.totalorder %v646, 2
        %vm648 = vcmp.eq.s32.totalorder %v646, 0
        %v649 = vxor.u32 %v643, 2147483648
        %v650 = vsel %vm648, %v642, %v649
        %vm651 = vcmp.eq.s32.totalorder %v646, 2
        %v652 = vxor.u32 %v642, 2147483648
        %v653 = vsel %vm651, %v652, %v643
        %v654 = vsel %vm647, %v650, %v653
        %v655 = vsel %vm644, nan, %v654
        %v656 = vand.u32 2147483647, %v474
        %vm657 = vcmp.le.f32.partialorder %v656, 0.7853982
        %vm658 = vcmp.lt.s32.totalorder %v474, 0
        %v659 = vand.u32 %v474, 2139095040
        %v660 = vshrl.u32 %v659, 23
        %v661 = vsub.s32 %v660, 127
        %v662 = vand.u32 2147483647, %v474
        %v663 = vand.u32 %v662, 8388607
        %v664 = vor.u32 %v663, 8388608
        %v665 = vsub.s32 0, %v664
        %v666 = vadd.s32 %v661, 1
        %vm667 = vcmp.gt.s32.totalorder %v666, 0
        %v668 = vsel %vm667, %v666, 0
        %v669 = vshrl.u32 %v668, 5
        %v670 = vand.u32 %v668, 31
        %v671 = vsub.s32 32, %v670
        %v672 = vshrl.u32 683565275, %v671
        %v673 = vshll.u32 683565275, %v670
        %v674 = vshrl.u32 2475754826, %v671
        %v675 = vor.u32 %v673, %v674
        %v676 = vshll.u32 2475754826, %v670
        %v677 = vshrl.u32 2131351028, %v671
        %v678 = vor.u32 %v676, %v677
        %v679 = vshll.u32 2131351028, %v670
        %v680 = vshrl.u32 2102212464, %v671
        %v681 = vor.u32 %v679, %v680
        %v682 = vshll.u32 2102212464, %v670
        %v683 = vshrl.u32 920167782, %v671
        %v684 = vor.u32 %v682, %v683
        %v685 = vshll.u32 920167782, %v670
        %v686 = vshrl.u32 1326507024, %v671
        %v687 = vor.u32 %v685, %v686
        %vm688 = vcmp.lt.s32.totalorder %v669, 1
        %vm689 = vcmp.lt.s32.totalorder %v669, 2
        %vm690 = vcmp.lt.s32.totalorder %v669, 3
        %vm691 = vcmp.lt.s32.totalorder %v669, 4
        %v692 = vsel %vm688, %v672, %v675
        %v693 = vsel %vm691, %v681, 2102212464
        %v694 = vsel %vm690, %v678, %v693
        %v695 = vsel %vm689, %v692, %v694
        %v696 = vsel %vm688, %v675, %v678
        %v697 = vsel %vm691, %v684, 920167782
        %v698 = vsel %vm690, %v681, %v697
        %v699 = vsel %vm689, %v696, %v698
        %v700 = vsel %vm688, %v678, %v681
        %v701 = vsel %vm691, %v687, 1326507024
        %v702 = vsel %vm690, %v684, %v701
        %v703 = vsel %vm689, %v700, %v702
        %v704 = vshll.u32 %v664, 8
        %v705 = vmul.u32.u64.compose %v704, %v703
        %v706 = vextract.low.u32 %v705
        %v707 = vextract.high.u32 %v705
        %v708 = vmul.u32.u64.compose %v704, %v699
        %v709 = vextract.low.u32 %v708
        %v710 = vextract.high.u32 %v708
        %v711 = vmul.u32 %v704, %v695
        %v712 = vadd.s32 %v707, %v709
        %vm713 = vc.u32 %v707, %v709
        %v714 = vadd.s32 %v710, 1
        %v715 = vsel %vm713, %v714, %v710
        %v716 = vadd.s32 %v711, %v715
        %v717 = vadd.s32 %v716, 536870912
        %v718 = vshrl.u32 %v717, 30
        %v719 = vshll.u32 %v718, 30
        %v720 = vsub.s32 %v716, %v719
        %vm721 = vcmp.lt.s32.totalorder %v720, 0
        %v722 = vsub.s32 0, %v720
        %v723 = vsel %vm721, %v722, %v720
        %v724 = vclz %v723
        %v725 = vsub.s32 %v724, 2
        %vm726 = vcmp.gt.s32.totalorder 0, %v725
        %v727 = vsel %vm726, 0, %v725
        %v728 = vsub.s32 32, %v727
        %v729 = vshll.u32 %v720, %v727
        %v730 = vshrl.u32 %v712, %v728
        %v731 = vor.u32 %v729, %v730
        %v732 = vsub.s32 4294967266, %v727
        %v733 = vadd.s32 %v732, 127
        %v734 = vshll.u32 %v733, 23
        %v735 = vor.u32 4788187, %v734
        %v736 = vand.u32 2147483647, %v735
        %v738 = vcvt.s32.f32 %v731
        %v739 = vmul.f32 %v738, %v736
        %v740 = vxor.u32 %v739, 2147483648
        %v741 = vsel %vm658, %v740, %v739
        %v742 = vsub.s32 4, %v718
        %v743 = vsel %vm658, %v742, %v718
        %v744 = vsel %vm657, %v474, %v741
        %v745 = vsel %vm657, 0, %v743
        %v746 = vcosq.f32.pop %v744
        %v747 = vsinq.f32.pop %v744
        %vm748 = vweird.f32 %v474
        %v749 = vadd.s32 %v745, 3
        %v750 = vand.u32 %v749, 3
        %vm751 = vcmp.lt.s32.totalorder %v750, 2
        %vm752 = vcmp.eq.s32.totalorder %v750, 0
        %v753 = vxor.u32 %v747, 2147483648
        %v754 = vsel %vm752, %v746, %v753
        %vm755 = vcmp.eq.s32.totalorder %v750, 2
        %v756 = vxor.u32 %v746, 2147483648
        %v757 = vsel %vm755, %v756, %v747
        %v758 = vsel %vm751, %v754, %v757
        %v759 = vsel %vm748, nan, %v758
        %v760 = vand.u32 2147483647, %v475
        %vm761 = vcmp.le.f32.partialorder %v760, 0.7853982
        %vm762 = vcmp.lt.s32.totalorder %v475, 0
        %v763 = vand.u32 %v475, 2139095040
        %v764 = vshrl.u32 %v763, 23
        %v765 = vsub.s32 %v764, 127
        %v766 = vand.u32 2147483647, %v475
        %v767 = vand.u32 %v766, 8388607
        %v768 = vor.u32 %v767, 8388608
        %v769 = vsub.s32 0, %v768
        %v770 = vadd.s32 %v765, 1
        %vm771 = vcmp.gt.s32.totalorder %v770, 0
        %v772 = vsel %vm771, %v770, 0
        %v773 = vshrl.u32 %v772, 5
        %v774 = vand.u32 %v772, 31
        %v775 = vsub.s32 32, %v774
        %v776 = vshrl.u32 683565275, %v775
        %v777 = vshll.u32 683565275, %v774
        %v778 = vshrl.u32 2475754826, %v775
        %v779 = vor.u32 %v777, %v778
        %v780 = vshll.u32 2475754826, %v774
        %v781 = vshrl.u32 2131351028, %v775
        %v782 = vor.u32 %v780, %v781
        %v783 = vshll.u32 2131351028, %v774
        %v784 = vshrl.u32 2102212464, %v775
        %v785 = vor.u32 %v783, %v784
        %v786 = vshll.u32 2102212464, %v774
        %v787 = vshrl.u32 920167782, %v775
        %v788 = vor.u32 %v786, %v787
        %v789 = vshll.u32 920167782, %v774
        %v790 = vshrl.u32 1326507024, %v775
        %v791 = vor.u32 %v789, %v790
        %vm792 = vcmp.lt.s32.totalorder %v773, 1
        %vm793 = vcmp.lt.s32.totalorder %v773, 2
        %vm794 = vcmp.lt.s32.totalorder %v773, 3
        %vm795 = vcmp.lt.s32.totalorder %v773, 4
        %v796 = vsel %vm792, %v776, %v779
        %v797 = vsel %vm795, %v785, 2102212464
        %v798 = vsel %vm794, %v782, %v797
        %v799 = vsel %vm793, %v796, %v798
        %v800 = vsel %vm792, %v779, %v782
        %v801 = vsel %vm795, %v788, 920167782
        %v802 = vsel %vm794, %v785, %v801
        %v803 = vsel %vm793, %v800, %v802
        %v804 = vsel %vm792, %v782, %v785
        %v805 = vsel %vm795, %v791, 1326507024
        %v806 = vsel %vm794, %v788, %v805
        %v807 = vsel %vm793, %v804, %v806
        %v808 = vshll.u32 %v768, 8
        %v809 = vmul.u32.u64.compose %v808, %v807
        %v810 = vextract.low.u32 %v809
        %v811 = vextract.high.u32 %v809
        %v812 = vmul.u32.u64.compose %v808, %v803
        %v813 = vextract.low.u32 %v812
        %v814 = vextract.high.u32 %v812
        %v815 = vmul.u32 %v808, %v799
        %v816 = vadd.s32 %v811, %v813
        %vm817 = vc.u32 %v811, %v813
        %v818 = vadd.s32 %v814, 1
        %v819 = vsel %vm817, %v818, %v814
        %v820 = vadd.s32 %v815, %v819
        %v821 = vadd.s32 %v820, 536870912
        %v822 = vshrl.u32 %v821, 30
        %v823 = vshll.u32 %v822, 30
        %v824 = vsub.s32 %v820, %v823
        %vm825 = vcmp.lt.s32.totalorder %v824, 0
        %v826 = vsub.s32 0, %v824
        %v827 = vsel %vm825, %v826, %v824
        %v828 = vclz %v827
        %v829 = vsub.s32 %v828, 2
        %vm830 = vcmp.gt.s32.totalorder 0, %v829
        %v831 = vsel %vm830, 0, %v829
        %v832 = vsub.s32 32, %v831
        %v833 = vshll.u32 %v824, %v831
        %v834 = vshrl.u32 %v816, %v832
        %v835 = vor.u32 %v833, %v834
        %v836 = vsub.s32 4294967266, %v831
        %v837 = vadd.s32 %v836, 127
        %v838 = vshll.u32 %v837, 23
        %v839 = vor.u32 4788187, %v838
        %v840 = vand.u32 2147483647, %v839
        %v842 = vcvt.s32.f32 %v835
        %v843 = vmul.f32 %v842, %v840
        %v844 = vxor.u32 %v843, 2147483648
        %v845 = vsel %vm762, %v844, %v843
        %v846 = vsub.s32 4, %v822
        %v847 = vsel %vm762, %v846, %v822
        %v848 = vsel %vm761, %v475, %v845
        %v849 = vsel %vm761, 0, %v847
        %v850 = vcosq.f32.pop %v848
        %v851 = vsinq.f32.pop %v848
        %vm852 = vweird.f32 %v475
        %v853 = vadd.s32 %v849, 3
        %v854 = vand.u32 %v853, 3
        %vm855 = vcmp.lt.s32.totalorder %v854, 2
        %vm856 = vcmp.eq.s32.totalorder %v854, 0
        %v857 = vxor.u32 %v851, 2147483648
        %v858 = vsel %vm856, %v850, %v857
        %vm859 = vcmp.eq.s32.totalorder %v854, 2
        %v860 = vxor.u32 %v850, 2147483648
        %v861 = vsel %vm859, %v860, %v851
        %v862 = vsel %vm855, %v858, %v861
        %v863 = vsel %vm852, nan, %v862
        %v864 = vand.u32 2147483647, %v476
        %vm865 = vcmp.le.f32.partialorder %v864, 0.7853982
        %vm866 = vcmp.lt.s32.totalorder %v476, 0
        %v867 = vand.u32 %v476, 2139095040
        %v868 = vshrl.u32 %v867, 23
        %v869 = vsub.s32 %v868, 127
        %v870 = vand.u32 2147483647, %v476
        %v871 = vand.u32 %v870, 8388607
        %v872 = vor.u32 %v871, 8388608
        %v873 = vsub.s32 0, %v872
        %v874 = vadd.s32 %v869, 1
        %vm875 = vcmp.gt.s32.totalorder %v874, 0
        %v876 = vsel %vm875, %v874, 0
        %v877 = vshrl.u32 %v876, 5
        %v878 = vand.u32 %v876, 31
        %v879 = vsub.s32 32, %v878
        %v880 = vshrl.u32 683565275, %v879
        %v881 = vshll.u32 683565275, %v878
        %v882 = vshrl.u32 2475754826, %v879
        %v883 = vor.u32 %v881, %v882
        %v884 = vshll.u32 2475754826, %v878
        %v885 = vshrl.u32 2131351028, %v879
        %v886 = vor.u32 %v884, %v885
        %v887 = vshll.u32 2131351028, %v878
        %v888 = vshrl.u32 2102212464, %v879
        %v889 = vor.u32 %v887, %v888
        %v890 = vshll.u32 2102212464, %v878
        %v891 = vshrl.u32 920167782, %v879
        %v892 = vor.u32 %v890, %v891
        %v893 = vshll.u32 920167782, %v878
        %v894 = vshrl.u32 1326507024, %v879
        %v895 = vor.u32 %v893, %v894
        %vm896 = vcmp.lt.s32.totalorder %v877, 1
        %vm897 = vcmp.lt.s32.totalorder %v877, 2
        %vm898 = vcmp.lt.s32.totalorder %v877, 3
        %vm899 = vcmp.lt.s32.totalorder %v877, 4
        %v900 = vsel %vm896, %v880, %v883
        %v901 = vsel %vm899, %v889, 2102212464
        %v902 = vsel %vm898, %v886, %v901
        %v903 = vsel %vm897, %v900, %v902
        %v904 = vsel %vm896, %v883, %v886
        %v905 = vsel %vm899, %v892, 920167782
        %v906 = vsel %vm898, %v889, %v905
        %v907 = vsel %vm897, %v904, %v906
        %v908 = vsel %vm896, %v886, %v889
        %v909 = vsel %vm899, %v895, 1326507024
        %v910 = vsel %vm898, %v892, %v909
        %v911 = vsel %vm897, %v908, %v910
        %v912 = vshll.u32 %v872, 8
        %v913 = vmul.u32.u64.compose %v912, %v911
        %v914 = vextract.low.u32 %v913
        %v915 = vextract.high.u32 %v913
        %v916 = vmul.u32.u64.compose %v912, %v907
        %v917 = vextract.low.u32 %v916
        %v918 = vextract.high.u32 %v916
        %v919 = vmul.u32 %v912, %v903
        %v920 = vadd.s32 %v915, %v917
        %vm921 = vc.u32 %v915, %v917
        %v922 = vadd.s32 %v918, 1
        %v923 = vsel %vm921, %v922, %v918
        %v924 = vadd.s32 %v919, %v923
        %v925 = vadd.s32 %v924, 536870912
        %v926 = vshrl.u32 %v925, 30
        %v927 = vshll.u32 %v926, 30
        %v928 = vsub.s32 %v924, %v927
        %vm929 = vcmp.lt.s32.totalorder %v928, 0
        %v930 = vsub.s32 0, %v928
        %v931 = vsel %vm929, %v930, %v928
        %v932 = vclz %v931
        %v933 = vsub.s32 %v932, 2
        %vm934 = vcmp.gt.s32.totalorder 0, %v933
        %v935 = vsel %vm934, 0, %v933
        %v936 = vsub.s32 32, %v935
        %v937 = vshll.u32 %v928, %v935
        %v938 = vshrl.u32 %v920, %v936
        %v939 = vor.u32 %v937, %v938
        %v940 = vsub.s32 4294967266, %v935
        %v941 = vadd.s32 %v940, 127
        %v942 = vshll.u32 %v941, 23
        %v943 = vor.u32 4788187, %v942
        %v944 = vand.u32 2147483647, %v943
        %v946 = vcvt.s32.f32 %v939
        %v947 = vmul.f32 %v946, %v944
        %v948 = vxor.u32 %v947, 2147483648
        %v949 = vsel %vm866, %v948, %v947
        %v950 = vsub.s32 4, %v926
        %v951 = vsel %vm866, %v950, %v926
        %v952 = vsel %vm865, %v476, %v949
        %v953 = vsel %vm865, 0, %v951
        %v954 = vcosq.f32.pop %v952
        %v955 = vsinq.f32.pop %v952
        %vm956 = vweird.f32 %v476
        %v957 = vadd.s32 %v953, 3
        %v958 = vand.u32 %v957, 3
        %vm959 = vcmp.lt.s32.totalorder %v958, 2
        %vm960 = vcmp.eq.s32.totalorder %v958, 0
        %v961 = vxor.u32 %v955, 2147483648
        %v962 = vsel %vm960, %v954, %v961
        %vm963 = vcmp.eq.s32.totalorder %v958, 2
        %v964 = vxor.u32 %v954, 2147483648
        %v965 = vsel %vm963, %v964, %v955
        %v966 = vsel %vm959, %v962, %v965
        %v967 = vsel %vm956, nan, %v966
        %v968 = vand.u32 2147483647, %v477
        %vm969 = vcmp.le.f32.partialorder %v968, 0.7853982
        %vm970 = vcmp.lt.s32.totalorder %v477, 0
        %v971 = vand.u32 %v477, 2139095040
        %v972 = vshrl.u32 %v971, 23
        %v973 = vsub.s32 %v972, 127
        %v974 = vand.u32 2147483647, %v477
        %v975 = vand.u32 %v974, 8388607
        %v976 = vor.u32 %v975, 8388608
        %v977 = vsub.s32 0, %v976
        %v978 = vadd.s32 %v973, 1
        %vm979 = vcmp.gt.s32.totalorder %v978, 0
        %v980 = vsel %vm979, %v978, 0
        %v981 = vshrl.u32 %v980, 5
        %v982 = vand.u32 %v980, 31
        %v983 = vsub.s32 32, %v982
        %v984 = vshrl.u32 683565275, %v983
        %v985 = vshll.u32 683565275, %v982
        %v986 = vshrl.u32 2475754826, %v983
        %v987 = vor.u32 %v985, %v986
        %v988 = vshll.u32 2475754826, %v982
        %v989 = vshrl.u32 2131351028, %v983
        %v990 = vor.u32 %v988, %v989
        %v991 = vshll.u32 2131351028, %v982
        %v992 = vshrl.u32 2102212464, %v983
        %v993 = vor.u32 %v991, %v992
        %v994 = vshll.u32 2102212464, %v982
        %v995 = vshrl.u32 920167782, %v983
        %v996 = vor.u32 %v994, %v995
        %v997 = vshll.u32 920167782, %v982
        %v998 = vshrl.u32 1326507024, %v983
        %v999 = vor.u32 %v997, %v998
        %vm1000 = vcmp.lt.s32.totalorder %v981, 1
        %vm1001 = vcmp.lt.s32.totalorder %v981, 2
        %vm1002 = vcmp.lt.s32.totalorder %v981, 3
        %vm1003 = vcmp.lt.s32.totalorder %v981, 4
        %v1004 = vsel %vm1000, %v984, %v987
        %v1005 = vsel %vm1003, %v993, 2102212464
        %v1006 = vsel %vm1002, %v990, %v1005
        %v1007 = vsel %vm1001, %v1004, %v1006
        %v1008 = vsel %vm1000, %v987, %v990
        %v1009 = vsel %vm1003, %v996, 920167782
        %v1010 = vsel %vm1002, %v993, %v1009
        %v1011 = vsel %vm1001, %v1008, %v1010
        %v1012 = vsel %vm1000, %v990, %v993
        %v1013 = vsel %vm1003, %v999, 1326507024
        %v1014 = vsel %vm1002, %v996, %v1013
        %v1015 = vsel %vm1001, %v1012, %v1014
        %v1016 = vshll.u32 %v976, 8
        %v1017 = vmul.u32.u64.compose %v1016, %v1015
        %v1018 = vextract.low.u32 %v1017
        %v1019 = vextract.high.u32 %v1017
        %v1020 = vmul.u32.u64.compose %v1016, %v1011
        %v1021 = vextract.low.u32 %v1020
        %v1022 = vextract.high.u32 %v1020
        %v1023 = vmul.u32 %v1016, %v1007
        %v1024 = vadd.s32 %v1019, %v1021
        %vm1025 = vc.u32 %v1019, %v1021
        %v1026 = vadd.s32 %v1022, 1
        %v1027 = vsel %vm1025, %v1026, %v1022
        %v1028 = vadd.s32 %v1023, %v1027
        %v1029 = vadd.s32 %v1028, 536870912
        %v1030 = vshrl.u32 %v1029, 30
        %v1031 = vshll.u32 %v1030, 30
        %v1032 = vsub.s32 %v1028, %v1031
        %vm1033 = vcmp.lt.s32.totalorder %v1032, 0
        %v1034 = vsub.s32 0, %v1032
        %v1035 = vsel %vm1033, %v1034, %v1032
        %v1036 = vclz %v1035
        %v1037 = vsub.s32 %v1036, 2
        %vm1038 = vcmp.gt.s32.totalorder 0, %v1037
        %v1039 = vsel %vm1038, 0, %v1037
        %v1040 = vsub.s32 32, %v1039
        %v1041 = vshll.u32 %v1032, %v1039
        %v1042 = vshrl.u32 %v1024, %v1040
        %v1043 = vor.u32 %v1041, %v1042
        %v1044 = vsub.s32 4294967266, %v1039
        %v1045 = vadd.s32 %v1044, 127
        %v1046 = vshll.u32 %v1045, 23
        %v1047 = vor.u32 4788187, %v1046
        %v1048 = vand.u32 2147483647, %v1047
        %v1050 = vcvt.s32.f32 %v1043
        %v1051 = vmul.f32 %v1050, %v1048
        %v1052 = vxor.u32 %v1051, 2147483648
        %v1053 = vsel %vm970, %v1052, %v1051
        %v1054 = vsub.s32 4, %v1030
        %v1055 = vsel %vm970, %v1054, %v1030
        %v1056 = vsel %vm969, %v477, %v1053
        %v1057 = vsel %vm969, 0, %v1055
        %v1058 = vcosq.f32.pop %v1056
        %v1059 = vsinq.f32.pop %v1056
        %vm1060 = vweird.f32 %v477
        %v1061 = vadd.s32 %v1057, 3
        %v1062 = vand.u32 %v1061, 3
        %vm1063 = vcmp.lt.s32.totalorder %v1062, 2
        %vm1064 = vcmp.eq.s32.totalorder %v1062, 0
        %v1065 = vxor.u32 %v1059, 2147483648
        %v1066 = vsel %vm1064, %v1058, %v1065
        %vm1067 = vcmp.eq.s32.totalorder %v1062, 2
        %v1068 = vxor.u32 %v1058, 2147483648
        %v1069 = vsel %vm1067, %v1068, %v1059
        %v1070 = vsel %vm1063, %v1066, %v1069
        %v1071 = vsel %vm1060, nan, %v1070
        %v1072 = vand.u32 2147483647, %v478
        %vm1073 = vcmp.le.f32.partialorder %v1072, 0.7853982
        %vm1074 = vcmp.lt.s32.totalorder %v478, 0
        %v1075 = vand.u32 %v478, 2139095040
        %v1076 = vshrl.u32 %v1075, 23
        %v1077 = vsub.s32 %v1076, 127
        %v1078 = vand.u32 2147483647, %v478
        %v1079 = vand.u32 %v1078, 8388607
        %v1080 = vor.u32 %v1079, 8388608
        %v1081 = vsub.s32 0, %v1080
        %v1082 = vadd.s32 %v1077, 1
        %vm1083 = vcmp.gt.s32.totalorder %v1082, 0
        %v1084 = vsel %vm1083, %v1082, 0
        %v1085 = vshrl.u32 %v1084, 5
        %v1086 = vand.u32 %v1084, 31
        %v1087 = vsub.s32 32, %v1086
        %v1088 = vshrl.u32 683565275, %v1087
        %v1089 = vshll.u32 683565275, %v1086
        %v1090 = vshrl.u32 2475754826, %v1087
        %v1091 = vor.u32 %v1089, %v1090
        %v1092 = vshll.u32 2475754826, %v1086
        %v1093 = vshrl.u32 2131351028, %v1087
        %v1094 = vor.u32 %v1092, %v1093
        %v1095 = vshll.u32 2131351028, %v1086
        %v1096 = vshrl.u32 2102212464, %v1087
        %v1097 = vor.u32 %v1095, %v1096
        %v1098 = vshll.u32 2102212464, %v1086
        %v1099 = vshrl.u32 920167782, %v1087
        %v1100 = vor.u32 %v1098, %v1099
        %v1101 = vshll.u32 920167782, %v1086
        %v1102 = vshrl.u32 1326507024, %v1087
        %v1103 = vor.u32 %v1101, %v1102
        %vm1104 = vcmp.lt.s32.totalorder %v1085, 1
        %vm1105 = vcmp.lt.s32.totalorder %v1085, 2
        %vm1106 = vcmp.lt.s32.totalorder %v1085, 3
        %vm1107 = vcmp.lt.s32.totalorder %v1085, 4
        %v1108 = vsel %vm1104, %v1088, %v1091
        %v1109 = vsel %vm1107, %v1097, 2102212464
        %v1110 = vsel %vm1106, %v1094, %v1109
        %v1111 = vsel %vm1105, %v1108, %v1110
        %v1112 = vsel %vm1104, %v1091, %v1094
        %v1113 = vsel %vm1107, %v1100, 920167782
        %v1114 = vsel %vm1106, %v1097, %v1113
        %v1115 = vsel %vm1105, %v1112, %v1114
        %v1116 = vsel %vm1104, %v1094, %v1097
        %v1117 = vsel %vm1107, %v1103, 1326507024
        %v1118 = vsel %vm1106, %v1100, %v1117
        %v1119 = vsel %vm1105, %v1116, %v1118
        %v1120 = vshll.u32 %v1080, 8
        %v1121 = vmul.u32.u64.compose %v1120, %v1119
        %v1122 = vextract.low.u32 %v1121
        %v1123 = vextract.high.u32 %v1121
        %v1124 = vmul.u32.u64.compose %v1120, %v1115
        %v1125 = vextract.low.u32 %v1124
        %v1126 = vextract.high.u32 %v1124
        %v1127 = vmul.u32 %v1120, %v1111
        %v1128 = vadd.s32 %v1123, %v1125
        %vm1129 = vc.u32 %v1123, %v1125
        %v1130 = vadd.s32 %v1126, 1
        %v1131 = vsel %vm1129, %v1130, %v1126
        %v1132 = vadd.s32 %v1127, %v1131
        %v1133 = vadd.s32 %v1132, 536870912
        %v1134 = vshrl.u32 %v1133, 30
        %v1135 = vshll.u32 %v1134, 30
        %v1136 = vsub.s32 %v1132, %v1135
        %vm1137 = vcmp.lt.s32.totalorder %v1136, 0
        %v1138 = vsub.s32 0, %v1136
        %v1139 = vsel %vm1137, %v1138, %v1136
        %v1140 = vclz %v1139
        %v1141 = vsub.s32 %v1140, 2
        %vm1142 = vcmp.gt.s32.totalorder 0, %v1141
        %v1143 = vsel %vm1142, 0, %v1141
        %v1144 = vsub.s32 32, %v1143
        %v1145 = vshll.u32 %v1136, %v1143
        %v1146 = vshrl.u32 %v1128, %v1144
        %v1147 = vor.u32 %v1145, %v1146
        %v1148 = vsub.s32 4294967266, %v1143
        %v1149 = vadd.s32 %v1148, 127
        %v1150 = vshll.u32 %v1149, 23
        %v1151 = vor.u32 4788187, %v1150
        %v1152 = vand.u32 2147483647, %v1151
        %v1154 = vcvt.s32.f32 %v1147
        %v1155 = vmul.f32 %v1154, %v1152
        %v1156 = vxor.u32 %v1155, 2147483648
        %v1157 = vsel %vm1074, %v1156, %v1155
        %v1158 = vsub.s32 4, %v1134
        %v1159 = vsel %vm1074, %v1158, %v1134
        %v1160 = vsel %vm1073, %v478, %v1157
        %v1161 = vsel %vm1073, 0, %v1159
        %v1162 = vcosq.f32.pop %v1160
        %v1163 = vsinq.f32.pop %v1160
        %vm1164 = vweird.f32 %v478
        %v1165 = vadd.s32 %v1161, 3
        %v1166 = vand.u32 %v1165, 3
        %vm1167 = vcmp.lt.s32.totalorder %v1166, 2
        %vm1168 = vcmp.eq.s32.totalorder %v1166, 0
        %v1169 = vxor.u32 %v1163, 2147483648
        %v1170 = vsel %vm1168, %v1162, %v1169
        %vm1171 = vcmp.eq.s32.totalorder %v1166, 2
        %v1172 = vxor.u32 %v1162, 2147483648
        %v1173 = vsel %vm1171, %v1172, %v1163
        %v1174 = vsel %vm1167, %v1170, %v1173
        %v1175 = vsel %vm1164, nan, %v1174
        %v1176 = vand.u32 2147483647, %v479
        %vm1177 = vcmp.le.f32.partialorder %v1176, 0.7853982
        %vm1178 = vcmp.lt.s32.totalorder %v479, 0
        %v1179 = vand.u32 %v479, 2139095040
        %v1180 = vshrl.u32 %v1179, 23
        %v1181 = vsub.s32 %v1180, 127
        %v1182 = vand.u32 2147483647, %v479
        %v1183 = vand.u32 %v1182, 8388607
        %v1184 = vor.u32 %v1183, 8388608
        %v1185 = vsub.s32 0, %v1184
        %v1186 = vadd.s32 %v1181, 1
        %vm1187 = vcmp.gt.s32.totalorder %v1186, 0
        %v1188 = vsel %vm1187, %v1186, 0
        %v1189 = vshrl.u32 %v1188, 5
        %v1190 = vand.u32 %v1188, 31
        %v1191 = vsub.s32 32, %v1190
        %v1192 = vshrl.u32 683565275, %v1191
        %v1193 = vshll.u32 683565275, %v1190
        %v1194 = vshrl.u32 2475754826, %v1191
        %v1195 = vor.u32 %v1193, %v1194
        %v1196 = vshll.u32 2475754826, %v1190
        %v1197 = vshrl.u32 2131351028, %v1191
        %v1198 = vor.u32 %v1196, %v1197
        %v1199 = vshll.u32 2131351028, %v1190
        %v1200 = vshrl.u32 2102212464, %v1191
        %v1201 = vor.u32 %v1199, %v1200
        %v1202 = vshll.u32 2102212464, %v1190
        %v1203 = vshrl.u32 920167782, %v1191
        %v1204 = vor.u32 %v1202, %v1203
        %v1205 = vshll.u32 920167782, %v1190
        %v1206 = vshrl.u32 1326507024, %v1191
        %v1207 = vor.u32 %v1205, %v1206
        %vm1208 = vcmp.lt.s32.totalorder %v1189, 1
        %vm1209 = vcmp.lt.s32.totalorder %v1189, 2
        %vm1210 = vcmp.lt.s32.totalorder %v1189, 3
        %vm1211 = vcmp.lt.s32.totalorder %v1189, 4
        %v1212 = vsel %vm1208, %v1192, %v1195
        %v1213 = vsel %vm1211, %v1201, 2102212464
        %v1214 = vsel %vm1210, %v1198, %v1213
        %v1215 = vsel %vm1209, %v1212, %v1214
        %v1216 = vsel %vm1208, %v1195, %v1198
        %v1217 = vsel %vm1211, %v1204, 920167782
        %v1218 = vsel %vm1210, %v1201, %v1217
        %v1219 = vsel %vm1209, %v1216, %v1218
        %v1220 = vsel %vm1208, %v1198, %v1201
        %v1221 = vsel %vm1211, %v1207, 1326507024
        %v1222 = vsel %vm1210, %v1204, %v1221
        %v1223 = vsel %vm1209, %v1220, %v1222
        %v1224 = vshll.u32 %v1184, 8
        %v1225 = vmul.u32.u64.compose %v1224, %v1223
        %v1226 = vextract.low.u32 %v1225
        %v1227 = vextract.high.u32 %v1225
        %v1228 = vmul.u32.u64.compose %v1224, %v1219
        %v1229 = vextract.low.u32 %v1228
        %v1230 = vextract.high.u32 %v1228
        %v1231 = vmul.u32 %v1224, %v1215
        %v1232 = vadd.s32 %v1227, %v1229
        %vm1233 = vc.u32 %v1227, %v1229
        %v1234 = vadd.s32 %v1230, 1
        %v1235 = vsel %vm1233, %v1234, %v1230
        %v1236 = vadd.s32 %v1231, %v1235
        %v1237 = vadd.s32 %v1236, 536870912
        %v1238 = vshrl.u32 %v1237, 30
        %v1239 = vshll.u32 %v1238, 30
        %v1240 = vsub.s32 %v1236, %v1239
        %vm1241 = vcmp.lt.s32.totalorder %v1240, 0
        %v1242 = vsub.s32 0, %v1240
        %v1243 = vsel %vm1241, %v1242, %v1240
        %v1244 = vclz %v1243
        %v1245 = vsub.s32 %v1244, 2
        %vm1246 = vcmp.gt.s32.totalorder 0, %v1245
        %v1247 = vsel %vm1246, 0, %v1245
        %v1248 = vsub.s32 32, %v1247
        %v1249 = vshll.u32 %v1240, %v1247
        %v1250 = vshrl.u32 %v1232, %v1248
        %v1251 = vor.u32 %v1249, %v1250
        %v1252 = vsub.s32 4294967266, %v1247
        %v1253 = vadd.s32 %v1252, 127
        %v1254 = vshll.u32 %v1253, 23
        %v1255 = vor.u32 4788187, %v1254
        %v1256 = vand.u32 2147483647, %v1255
        %v1258 = vcvt.s32.f32 %v1251
        %v1259 = vmul.f32 %v1258, %v1256
        %v1260 = vxor.u32 %v1259, 2147483648
        %v1261 = vsel %vm1178, %v1260, %v1259
        %v1262 = vsub.s32 4, %v1238
        %v1263 = vsel %vm1178, %v1262, %v1238
        %v1264 = vsel %vm1177, %v479, %v1261
        %v1265 = vsel %vm1177, 0, %v1263
        %v1266 = vcosq.f32.pop %v1264
        %v1267 = vsinq.f32.pop %v1264
        %vm1268 = vweird.f32 %v479
        %v1269 = vadd.s32 %v1265, 3
        %v1270 = vand.u32 %v1269, 3
        %vm1271 = vcmp.lt.s32.totalorder %v1270, 2
        %vm1272 = vcmp.eq.s32.totalorder %v1270, 0
        %v1273 = vxor.u32 %v1267, 2147483648
        %v1274 = vsel %vm1272, %v1266, %v1273
        %vm1275 = vcmp.eq.s32.totalorder %v1270, 2
        %v1276 = vxor.u32 %v1266, 2147483648
        %v1277 = vsel %vm1275, %v1276, %v1267
        %v1278 = vsel %vm1271, %v1274, %v1277
        %v1279 = vsel %vm1268, nan, %v1278
        %v1280 = vand.u32 2147483647, %v480
        %vm1281 = vcmp.le.f32.partialorder %v1280, 0.7853982
        %vm1282 = vcmp.lt.s32.totalorder %v480, 0
        %v1283 = vand.u32 %v480, 2139095040
        %v1284 = vshrl.u32 %v1283, 23
        %v1285 = vsub.s32 %v1284, 127
        %v1286 = vand.u32 2147483647, %v480
        %v1287 = vand.u32 %v1286, 8388607
        %v1288 = vor.u32 %v1287, 8388608
        %v1289 = vsub.s32 0, %v1288
        %v1290 = vadd.s32 %v1285, 1
        %vm1291 = vcmp.gt.s32.totalorder %v1290, 0
        %v1292 = vsel %vm1291, %v1290, 0
        %v1293 = vshrl.u32 %v1292, 5
        %v1294 = vand.u32 %v1292, 31
        %v1295 = vsub.s32 32, %v1294
        %v1296 = vshrl.u32 683565275, %v1295
        %v1297 = vshll.u32 683565275, %v1294
        %v1298 = vshrl.u32 2475754826, %v1295
        %v1299 = vor.u32 %v1297, %v1298
        %v1300 = vshll.u32 2475754826, %v1294
        %v1301 = vshrl.u32 2131351028, %v1295
        %v1302 = vor.u32 %v1300, %v1301
        %v1303 = vshll.u32 2131351028, %v1294
        %v1304 = vshrl.u32 2102212464, %v1295
        %v1305 = vor.u32 %v1303, %v1304
        %v1306 = vshll.u32 2102212464, %v1294
        %v1307 = vshrl.u32 920167782, %v1295
        %v1308 = vor.u32 %v1306, %v1307
        %v1309 = vshll.u32 920167782, %v1294
        %v1310 = vshrl.u32 1326507024, %v1295
        %v1311 = vor.u32 %v1309, %v1310
        %vm1312 = vcmp.lt.s32.totalorder %v1293, 1
        %vm1313 = vcmp.lt.s32.totalorder %v1293, 2
        %vm1314 = vcmp.lt.s32.totalorder %v1293, 3
        %vm1315 = vcmp.lt.s32.totalorder %v1293, 4
        %v1316 = vsel %vm1312, %v1296, %v1299
        %v1317 = vsel %vm1315, %v1305, 2102212464
        %v1318 = vsel %vm1314, %v1302, %v1317
        %v1319 = vsel %vm1313, %v1316, %v1318
        %v1320 = vsel %vm1312, %v1299, %v1302
        %v1321 = vsel %vm1315, %v1308, 920167782
        %v1322 = vsel %vm1314, %v1305, %v1321
        %v1323 = vsel %vm1313, %v1320, %v1322
        %v1324 = vsel %vm1312, %v1302, %v1305
        %v1325 = vsel %vm1315, %v1311, 1326507024
        %v1326 = vsel %vm1314, %v1308, %v1325
        %v1327 = vsel %vm1313, %v1324, %v1326
        %v1328 = vshll.u32 %v1288, 8
        %v1329 = vmul.u32.u64.compose %v1328, %v1327
        %v1330 = vextract.low.u32 %v1329
        %v1331 = vextract.high.u32 %v1329
        %v1332 = vmul.u32.u64.compose %v1328, %v1323
        %v1333 = vextract.low.u32 %v1332
        %v1334 = vextract.high.u32 %v1332
        %v1335 = vmul.u32 %v1328, %v1319
        %v1336 = vadd.s32 %v1331, %v1333
        %vm1337 = vc.u32 %v1331, %v1333
        %v1338 = vadd.s32 %v1334, 1
        %v1339 = vsel %vm1337, %v1338, %v1334
        %v1340 = vadd.s32 %v1335, %v1339
        %v1341 = vadd.s32 %v1340, 536870912
        %v1342 = vshrl.u32 %v1341, 30
        %v1343 = vshll.u32 %v1342, 30
        %v1344 = vsub.s32 %v1340, %v1343
        %vm1345 = vcmp.lt.s32.totalorder %v1344, 0
        %v1346 = vsub.s32 0, %v1344
        %v1347 = vsel %vm1345, %v1346, %v1344
        %v1348 = vclz %v1347
        %v1349 = vsub.s32 %v1348, 2
        %vm1350 = vcmp.gt.s32.totalorder 0, %v1349
        %v1351 = vsel %vm1350, 0, %v1349
        %v1352 = vsub.s32 32, %v1351
        %v1353 = vshll.u32 %v1344, %v1351
        %v1354 = vshrl.u32 %v1336, %v1352
        %v1355 = vor.u32 %v1353, %v1354
        %v1356 = vsub.s32 4294967266, %v1351
        %v1357 = vadd.s32 %v1356, 127
        %v1358 = vshll.u32 %v1357, 23
        %v1359 = vor.u32 4788187, %v1358
        %v1360 = vand.u32 2147483647, %v1359
        %v1362 = vcvt.s32.f32 %v1355
        %v1363 = vmul.f32 %v1362, %v1360
        %v1364 = vxor.u32 %v1363, 2147483648
        %v1365 = vsel %vm1282, %v1364, %v1363
        %v1366 = vsub.s32 4, %v1342
        %v1367 = vsel %vm1282, %v1366, %v1342
        %v1368 = vsel %vm1281, %v480, %v1365
        %v1369 = vsel %vm1281, 0, %v1367
        %v1370 = vcosq.f32.pop %v1368
        %v1371 = vsinq.f32.pop %v1368
        %vm1372 = vweird.f32 %v480
        %v1373 = vadd.s32 %v1369, 3
        %v1374 = vand.u32 %v1373, 3
        %vm1375 = vcmp.lt.s32.totalorder %v1374, 2
        %vm1376 = vcmp.eq.s32.totalorder %v1374, 0
        %v1377 = vxor.u32 %v1371, 2147483648
        %v1378 = vsel %vm1376, %v1370, %v1377
        %vm1379 = vcmp.eq.s32.totalorder %v1374, 2
        %v1380 = vxor.u32 %v1370, 2147483648
        %v1381 = vsel %vm1379, %v1380, %v1371
        %v1382 = vsel %vm1375, %v1378, %v1381
        %v1383 = vsel %vm1372, nan, %v1382
        %v1384 = vand.u32 2147483647, %v481
        %vm1385 = vcmp.le.f32.partialorder %v1384, 0.7853982
        %vm1386 = vcmp.lt.s32.totalorder %v481, 0
        %v1387 = vand.u32 %v481, 2139095040
        %v1388 = vshrl.u32 %v1387, 23
        %v1389 = vsub.s32 %v1388, 127
        %v1390 = vand.u32 2147483647, %v481
        %v1391 = vand.u32 %v1390, 8388607
        %v1392 = vor.u32 %v1391, 8388608
        %v1393 = vsub.s32 0, %v1392
        %v1394 = vadd.s32 %v1389, 1
        %vm1395 = vcmp.gt.s32.totalorder %v1394, 0
        %v1396 = vsel %vm1395, %v1394, 0
        %v1397 = vshrl.u32 %v1396, 5
        %v1398 = vand.u32 %v1396, 31
        %v1399 = vsub.s32 32, %v1398
        %v1400 = vshrl.u32 683565275, %v1399
        %v1401 = vshll.u32 683565275, %v1398
        %v1402 = vshrl.u32 2475754826, %v1399
        %v1403 = vor.u32 %v1401, %v1402
        %v1404 = vshll.u32 2475754826, %v1398
        %v1405 = vshrl.u32 2131351028, %v1399
        %v1406 = vor.u32 %v1404, %v1405
        %v1407 = vshll.u32 2131351028, %v1398
        %v1408 = vshrl.u32 2102212464, %v1399
        %v1409 = vor.u32 %v1407, %v1408
        %v1410 = vshll.u32 2102212464, %v1398
        %v1411 = vshrl.u32 920167782, %v1399
        %v1412 = vor.u32 %v1410, %v1411
        %v1413 = vshll.u32 920167782, %v1398
        %v1414 = vshrl.u32 1326507024, %v1399
        %v1415 = vor.u32 %v1413, %v1414
        %vm1416 = vcmp.lt.s32.totalorder %v1397, 1
        %vm1417 = vcmp.lt.s32.totalorder %v1397, 2
        %vm1418 = vcmp.lt.s32.totalorder %v1397, 3
        %vm1419 = vcmp.lt.s32.totalorder %v1397, 4
        %v1420 = vsel %vm1416, %v1400, %v1403
        %v1421 = vsel %vm1419, %v1409, 2102212464
        %v1422 = vsel %vm1418, %v1406, %v1421
        %v1423 = vsel %vm1417, %v1420, %v1422
        %v1424 = vsel %vm1416, %v1403, %v1406
        %v1425 = vsel %vm1419, %v1412, 920167782
        %v1426 = vsel %vm1418, %v1409, %v1425
        %v1427 = vsel %vm1417, %v1424, %v1426
        %v1428 = vsel %vm1416, %v1406, %v1409
        %v1429 = vsel %vm1419, %v1415, 1326507024
        %v1430 = vsel %vm1418, %v1412, %v1429
        %v1431 = vsel %vm1417, %v1428, %v1430
        %v1432 = vshll.u32 %v1392, 8
        %v1433 = vmul.u32.u64.compose %v1432, %v1431
        %v1434 = vextract.low.u32 %v1433
        %v1435 = vextract.high.u32 %v1433
        %v1436 = vmul.u32.u64.compose %v1432, %v1427
        %v1437 = vextract.low.u32 %v1436
        %v1438 = vextract.high.u32 %v1436
        %v1439 = vmul.u32 %v1432, %v1423
        %v1440 = vadd.s32 %v1435, %v1437
        %vm1441 = vc.u32 %v1435, %v1437
        %v1442 = vadd.s32 %v1438, 1
        %v1443 = vsel %vm1441, %v1442, %v1438
        %v1444 = vadd.s32 %v1439, %v1443
        %v1445 = vadd.s32 %v1444, 536870912
        %v1446 = vshrl.u32 %v1445, 30
        %v1447 = vshll.u32 %v1446, 30
        %v1448 = vsub.s32 %v1444, %v1447
        %vm1449 = vcmp.lt.s32.totalorder %v1448, 0
        %v1450 = vsub.s32 0, %v1448
        %v1451 = vsel %vm1449, %v1450, %v1448
        %v1452 = vclz %v1451
        %v1453 = vsub.s32 %v1452, 2
        %vm1454 = vcmp.gt.s32.totalorder 0, %v1453
        %v1455 = vsel %vm1454, 0, %v1453
        %v1456 = vsub.s32 32, %v1455
        %v1457 = vshll.u32 %v1448, %v1455
        %v1458 = vshrl.u32 %v1440, %v1456
        %v1459 = vor.u32 %v1457, %v1458
        %v1460 = vsub.s32 4294967266, %v1455
        %v1461 = vadd.s32 %v1460, 127
        %v1462 = vshll.u32 %v1461, 23
        %v1463 = vor.u32 4788187, %v1462
        %v1464 = vand.u32 2147483647, %v1463
        %v1466 = vcvt.s32.f32 %v1459
        %v1467 = vmul.f32 %v1466, %v1464
        %v1468 = vxor.u32 %v1467, 2147483648
        %v1469 = vsel %vm1386, %v1468, %v1467
        %v1470 = vsub.s32 4, %v1446
        %v1471 = vsel %vm1386, %v1470, %v1446
        %v1472 = vsel %vm1385, %v481, %v1469
        %v1473 = vsel %vm1385, 0, %v1471
        %v1474 = vcosq.f32.pop %v1472
        %v1475 = vsinq.f32.pop %v1472
        %vm1476 = vweird.f32 %v481
        %v1477 = vadd.s32 %v1473, 3
        %v1478 = vand.u32 %v1477, 3
        %vm1479 = vcmp.lt.s32.totalorder %v1478, 2
        %vm1480 = vcmp.eq.s32.totalorder %v1478, 0
        %v1481 = vxor.u32 %v1475, 2147483648
        %v1482 = vsel %vm1480, %v1474, %v1481
        %vm1483 = vcmp.eq.s32.totalorder %v1478, 2
        %v1484 = vxor.u32 %v1474, 2147483648
        %v1485 = vsel %vm1483, %v1484, %v1475
        %v1486 = vsel %vm1479, %v1482, %v1485
        %v1487 = vsel %vm1476, nan, %v1486
        %v1488 = vand.u32 2147483647, %v482
        %vm1489 = vcmp.le.f32.partialorder %v1488, 0.7853982
        %vm1490 = vcmp.lt.s32.totalorder %v482, 0
        %v1491 = vand.u32 %v482, 2139095040
        %v1492 = vshrl.u32 %v1491, 23
        %v1493 = vsub.s32 %v1492, 127
        %v1494 = vand.u32 2147483647, %v482
        %v1495 = vand.u32 %v1494, 8388607
        %v1496 = vor.u32 %v1495, 8388608
        %v1497 = vsub.s32 0, %v1496
        %v1498 = vadd.s32 %v1493, 1
        %vm1499 = vcmp.gt.s32.totalorder %v1498, 0
        %v1500 = vsel %vm1499, %v1498, 0
        %v1501 = vshrl.u32 %v1500, 5
        %v1502 = vand.u32 %v1500, 31
        %v1503 = vsub.s32 32, %v1502
        %v1504 = vshrl.u32 683565275, %v1503
        %v1505 = vshll.u32 683565275, %v1502
        %v1506 = vshrl.u32 2475754826, %v1503
        %v1507 = vor.u32 %v1505, %v1506
        %v1508 = vshll.u32 2475754826, %v1502
        %v1509 = vshrl.u32 2131351028, %v1503
        %v1510 = vor.u32 %v1508, %v1509
        %v1511 = vshll.u32 2131351028, %v1502
        %v1512 = vshrl.u32 2102212464, %v1503
        %v1513 = vor.u32 %v1511, %v1512
        %v1514 = vshll.u32 2102212464, %v1502
        %v1515 = vshrl.u32 920167782, %v1503
        %v1516 = vor.u32 %v1514, %v1515
        %v1517 = vshll.u32 920167782, %v1502
        %v1518 = vshrl.u32 1326507024, %v1503
        %v1519 = vor.u32 %v1517, %v1518
        %vm1520 = vcmp.lt.s32.totalorder %v1501, 1
        %vm1521 = vcmp.lt.s32.totalorder %v1501, 2
        %vm1522 = vcmp.lt.s32.totalorder %v1501, 3
        %vm1523 = vcmp.lt.s32.totalorder %v1501, 4
        %v1524 = vsel %vm1520, %v1504, %v1507
        %v1525 = vsel %vm1523, %v1513, 2102212464
        %v1526 = vsel %vm1522, %v1510, %v1525
        %v1527 = vsel %vm1521, %v1524, %v1526
        %v1528 = vsel %vm1520, %v1507, %v1510
        %v1529 = vsel %vm1523, %v1516, 920167782
        %v1530 = vsel %vm1522, %v1513, %v1529
        %v1531 = vsel %vm1521, %v1528, %v1530
        %v1532 = vsel %vm1520, %v1510, %v1513
        %v1533 = vsel %vm1523, %v1519, 1326507024
        %v1534 = vsel %vm1522, %v1516, %v1533
        %v1535 = vsel %vm1521, %v1532, %v1534
        %v1536 = vshll.u32 %v1496, 8
        %v1537 = vmul.u32.u64.compose %v1536, %v1535
        %v1538 = vextract.low.u32 %v1537
        %v1539 = vextract.high.u32 %v1537
        %v1540 = vmul.u32.u64.compose %v1536, %v1531
        %v1541 = vextract.low.u32 %v1540
        %v1542 = vextract.high.u32 %v1540
        %v1543 = vmul.u32 %v1536, %v1527
        %v1544 = vadd.s32 %v1539, %v1541
        %vm1545 = vc.u32 %v1539, %v1541
        %v1546 = vadd.s32 %v1542, 1
        %v1547 = vsel %vm1545, %v1546, %v1542
        %v1548 = vadd.s32 %v1543, %v1547
        %v1549 = vadd.s32 %v1548, 536870912
        %v1550 = vshrl.u32 %v1549, 30
        %v1551 = vshll.u32 %v1550, 30
        %v1552 = vsub.s32 %v1548, %v1551
        %vm1553 = vcmp.lt.s32.totalorder %v1552, 0
        %v1554 = vsub.s32 0, %v1552
        %v1555 = vsel %vm1553, %v1554, %v1552
        %v1556 = vclz %v1555
        %v1557 = vsub.s32 %v1556, 2
        %vm1558 = vcmp.gt.s32.totalorder 0, %v1557
        %v1559 = vsel %vm1558, 0, %v1557
        %v1560 = vsub.s32 32, %v1559
        %v1561 = vshll.u32 %v1552, %v1559
        %v1562 = vshrl.u32 %v1544, %v1560
        %v1563 = vor.u32 %v1561, %v1562
        %v1564 = vsub.s32 4294967266, %v1559
        %v1565 = vadd.s32 %v1564, 127
        %v1566 = vshll.u32 %v1565, 23
        %v1567 = vor.u32 4788187, %v1566
        %v1568 = vand.u32 2147483647, %v1567
        %v1570 = vcvt.s32.f32 %v1563
        %v1571 = vmul.f32 %v1570, %v1568
        %v1572 = vxor.u32 %v1571, 2147483648
        %v1573 = vsel %vm1490, %v1572, %v1571
        %v1574 = vsub.s32 4, %v1550
        %v1575 = vsel %vm1490, %v1574, %v1550
        %v1576 = vsel %vm1489, %v482, %v1573
        %v1577 = vsel %vm1489, 0, %v1575
        %v1578 = vcosq.f32.pop %v1576
        %v1579 = vsinq.f32.pop %v1576
        %vm1580 = vweird.f32 %v482
        %v1581 = vadd.s32 %v1577, 3
        %v1582 = vand.u32 %v1581, 3
        %vm1583 = vcmp.lt.s32.totalorder %v1582, 2
        %vm1584 = vcmp.eq.s32.totalorder %v1582, 0
        %v1585 = vxor.u32 %v1579, 2147483648
        %v1586 = vsel %vm1584, %v1578, %v1585
        %vm1587 = vcmp.eq.s32.totalorder %v1582, 2
        %v1588 = vxor.u32 %v1578, 2147483648
        %v1589 = vsel %vm1587, %v1588, %v1579
        %v1590 = vsel %vm1583, %v1586, %v1589
        %v1591 = vsel %vm1580, nan, %v1590
        %v1592 = vand.u32 2147483647, %v483
        %vm1593 = vcmp.le.f32.partialorder %v1592, 0.7853982
        %vm1594 = vcmp.lt.s32.totalorder %v483, 0
        %v1595 = vand.u32 %v483, 2139095040
        %v1596 = vshrl.u32 %v1595, 23
        %v1597 = vsub.s32 %v1596, 127
        %v1598 = vand.u32 2147483647, %v483
        %v1599 = vand.u32 %v1598, 8388607
        %v1600 = vor.u32 %v1599, 8388608
        %v1601 = vsub.s32 0, %v1600
        %v1602 = vadd.s32 %v1597, 1
        %vm1603 = vcmp.gt.s32.totalorder %v1602, 0
        %v1604 = vsel %vm1603, %v1602, 0
        %v1605 = vshrl.u32 %v1604, 5
        %v1606 = vand.u32 %v1604, 31
        %v1607 = vsub.s32 32, %v1606
        %v1608 = vshrl.u32 683565275, %v1607
        %v1609 = vshll.u32 683565275, %v1606
        %v1610 = vshrl.u32 2475754826, %v1607
        %v1611 = vor.u32 %v1609, %v1610
        %v1612 = vshll.u32 2475754826, %v1606
        %v1613 = vshrl.u32 2131351028, %v1607
        %v1614 = vor.u32 %v1612, %v1613
        %v1615 = vshll.u32 2131351028, %v1606
        %v1616 = vshrl.u32 2102212464, %v1607
        %v1617 = vor.u32 %v1615, %v1616
        %v1618 = vshll.u32 2102212464, %v1606
        %v1619 = vshrl.u32 920167782, %v1607
        %v1620 = vor.u32 %v1618, %v1619
        %v1621 = vshll.u32 920167782, %v1606
        %v1622 = vshrl.u32 1326507024, %v1607
        %v1623 = vor.u32 %v1621, %v1622
        %vm1624 = vcmp.lt.s32.totalorder %v1605, 1
        %vm1625 = vcmp.lt.s32.totalorder %v1605, 2
        %vm1626 = vcmp.lt.s32.totalorder %v1605, 3
        %vm1627 = vcmp.lt.s32.totalorder %v1605, 4
        %v1628 = vsel %vm1624, %v1608, %v1611
        %v1629 = vsel %vm1627, %v1617, 2102212464
        %v1630 = vsel %vm1626, %v1614, %v1629
        %v1631 = vsel %vm1625, %v1628, %v1630
        %v1632 = vsel %vm1624, %v1611, %v1614
        %v1633 = vsel %vm1627, %v1620, 920167782
        %v1634 = vsel %vm1626, %v1617, %v1633
        %v1635 = vsel %vm1625, %v1632, %v1634
        %v1636 = vsel %vm1624, %v1614, %v1617
        %v1637 = vsel %vm1627, %v1623, 1326507024
        %v1638 = vsel %vm1626, %v1620, %v1637
        %v1639 = vsel %vm1625, %v1636, %v1638
        %v1640 = vshll.u32 %v1600, 8
        %v1641 = vmul.u32.u64.compose %v1640, %v1639
        %v1642 = vextract.low.u32 %v1641
        %v1643 = vextract.high.u32 %v1641
        %v1644 = vmul.u32.u64.compose %v1640, %v1635
        %v1645 = vextract.low.u32 %v1644
        %v1646 = vextract.high.u32 %v1644
        %v1647 = vmul.u32 %v1640, %v1631
        %v1648 = vadd.s32 %v1643, %v1645
        %vm1649 = vc.u32 %v1643, %v1645
        %v1650 = vadd.s32 %v1646, 1
        %v1651 = vsel %vm1649, %v1650, %v1646
        %v1652 = vadd.s32 %v1647, %v1651
        %v1653 = vadd.s32 %v1652, 536870912
        %v1654 = vshrl.u32 %v1653, 30
        %v1655 = vshll.u32 %v1654, 30
        %v1656 = vsub.s32 %v1652, %v1655
        %vm1657 = vcmp.lt.s32.totalorder %v1656, 0
        %v1658 = vsub.s32 0, %v1656
        %v1659 = vsel %vm1657, %v1658, %v1656
        %v1660 = vclz %v1659
        %v1661 = vsub.s32 %v1660, 2
        %vm1662 = vcmp.gt.s32.totalorder 0, %v1661
        %v1663 = vsel %vm1662, 0, %v1661
        %v1664 = vsub.s32 32, %v1663
        %v1665 = vshll.u32 %v1656, %v1663
        %v1666 = vshrl.u32 %v1648, %v1664
        %v1667 = vor.u32 %v1665, %v1666
        %v1668 = vsub.s32 4294967266, %v1663
        %v1669 = vadd.s32 %v1668, 127
        %v1670 = vshll.u32 %v1669, 23
        %v1671 = vor.u32 4788187, %v1670
        %v1672 = vand.u32 2147483647, %v1671
        %v1674 = vcvt.s32.f32 %v1667
        %v1675 = vmul.f32 %v1674, %v1672
        %v1676 = vxor.u32 %v1675, 2147483648
        %v1677 = vsel %vm1594, %v1676, %v1675
        %v1678 = vsub.s32 4, %v1654
        %v1679 = vsel %vm1594, %v1678, %v1654
        %v1680 = vsel %vm1593, %v483, %v1677
        %v1681 = vsel %vm1593, 0, %v1679
        %v1682 = vcosq.f32.pop %v1680
        %v1683 = vsinq.f32.pop %v1680
        %vm1684 = vweird.f32 %v483
        %v1685 = vadd.s32 %v1681, 3
        %v1686 = vand.u32 %v1685, 3
        %vm1687 = vcmp.lt.s32.totalorder %v1686, 2
        %vm1688 = vcmp.eq.s32.totalorder %v1686, 0
        %v1689 = vxor.u32 %v1683, 2147483648
        %v1690 = vsel %vm1688, %v1682, %v1689
        %vm1691 = vcmp.eq.s32.totalorder %v1686, 2
        %v1692 = vxor.u32 %v1682, 2147483648
        %v1693 = vsel %vm1691, %v1692, %v1683
        %v1694 = vsel %vm1687, %v1690, %v1693
        %v1695 = vsel %vm1684, nan, %v1694
        %v1696 = vand.u32 2147483647, %v484
        %vm1697 = vcmp.le.f32.partialorder %v1696, 0.7853982
        %vm1698 = vcmp.lt.s32.totalorder %v484, 0
        %v1699 = vand.u32 %v484, 2139095040
        %v1700 = vshrl.u32 %v1699, 23
        %v1701 = vsub.s32 %v1700, 127
        %v1702 = vand.u32 2147483647, %v484
        %v1703 = vand.u32 %v1702, 8388607
        %v1704 = vor.u32 %v1703, 8388608
        %v1705 = vsub.s32 0, %v1704
        %v1706 = vadd.s32 %v1701, 1
        %vm1707 = vcmp.gt.s32.totalorder %v1706, 0
        %v1708 = vsel %vm1707, %v1706, 0
        %v1709 = vshrl.u32 %v1708, 5
        %v1710 = vand.u32 %v1708, 31
        %v1711 = vsub.s32 32, %v1710
        %v1712 = vshrl.u32 683565275, %v1711
        %v1713 = vshll.u32 683565275, %v1710
        %v1714 = vshrl.u32 2475754826, %v1711
        %v1715 = vor.u32 %v1713, %v1714
        %v1716 = vshll.u32 2475754826, %v1710
        %v1717 = vshrl.u32 2131351028, %v1711
        %v1718 = vor.u32 %v1716, %v1717
        %v1719 = vshll.u32 2131351028, %v1710
        %v1720 = vshrl.u32 2102212464, %v1711
        %v1721 = vor.u32 %v1719, %v1720
        %v1722 = vshll.u32 2102212464, %v1710
        %v1723 = vshrl.u32 920167782, %v1711
        %v1724 = vor.u32 %v1722, %v1723
        %v1725 = vshll.u32 920167782, %v1710
        %v1726 = vshrl.u32 1326507024, %v1711
        %v1727 = vor.u32 %v1725, %v1726
        %vm1728 = vcmp.lt.s32.totalorder %v1709, 1
        %vm1729 = vcmp.lt.s32.totalorder %v1709, 2
        %vm1730 = vcmp.lt.s32.totalorder %v1709, 3
        %vm1731 = vcmp.lt.s32.totalorder %v1709, 4
        %v1732 = vsel %vm1728, %v1712, %v1715
        %v1733 = vsel %vm1731, %v1721, 2102212464
        %v1734 = vsel %vm1730, %v1718, %v1733
        %v1735 = vsel %vm1729, %v1732, %v1734
        %v1736 = vsel %vm1728, %v1715, %v1718
        %v1737 = vsel %vm1731, %v1724, 920167782
        %v1738 = vsel %vm1730, %v1721, %v1737
        %v1739 = vsel %vm1729, %v1736, %v1738
        %v1740 = vsel %vm1728, %v1718, %v1721
        %v1741 = vsel %vm1731, %v1727, 1326507024
        %v1742 = vsel %vm1730, %v1724, %v1741
        %v1743 = vsel %vm1729, %v1740, %v1742
        %v1744 = vshll.u32 %v1704, 8
        %v1745 = vmul.u32.u64.compose %v1744, %v1743
        %v1746 = vextract.low.u32 %v1745
        %v1747 = vextract.high.u32 %v1745
        %v1748 = vmul.u32.u64.compose %v1744, %v1739
        %v1749 = vextract.low.u32 %v1748
        %v1750 = vextract.high.u32 %v1748
        %v1751 = vmul.u32 %v1744, %v1735
        %v1752 = vadd.s32 %v1747, %v1749
        %vm1753 = vc.u32 %v1747, %v1749
        %v1754 = vadd.s32 %v1750, 1
        %v1755 = vsel %vm1753, %v1754, %v1750
        %v1756 = vadd.s32 %v1751, %v1755
        %v1757 = vadd.s32 %v1756, 536870912
        %v1758 = vshrl.u32 %v1757, 30
        %v1759 = vshll.u32 %v1758, 30
        %v1760 = vsub.s32 %v1756, %v1759
        %vm1761 = vcmp.lt.s32.totalorder %v1760, 0
        %v1762 = vsub.s32 0, %v1760
        %v1763 = vsel %vm1761, %v1762, %v1760
        %v1764 = vclz %v1763
        %v1765 = vsub.s32 %v1764, 2
        %vm1766 = vcmp.gt.s32.totalorder 0, %v1765
        %v1767 = vsel %vm1766, 0, %v1765
        %v1768 = vsub.s32 32, %v1767
        %v1769 = vshll.u32 %v1760, %v1767
        %v1770 = vshrl.u32 %v1752, %v1768
        %v1771 = vor.u32 %v1769, %v1770
        %v1772 = vsub.s32 4294967266, %v1767
        %v1773 = vadd.s32 %v1772, 127
        %v1774 = vshll.u32 %v1773, 23
        %v1775 = vor.u32 4788187, %v1774
        %v1776 = vand.u32 2147483647, %v1775
        %v1778 = vcvt.s32.f32 %v1771
        %v1779 = vmul.f32 %v1778, %v1776
        %v1780 = vxor.u32 %v1779, 2147483648
        %v1781 = vsel %vm1698, %v1780, %v1779
        %v1782 = vsub.s32 4, %v1758
        %v1783 = vsel %vm1698, %v1782, %v1758
        %v1784 = vsel %vm1697, %v484, %v1781
        %v1785 = vsel %vm1697, 0, %v1783
        %v1786 = vcosq.f32.pop %v1784
        %v1787 = vsinq.f32.pop %v1784
        %vm1788 = vweird.f32 %v484
        %v1789 = vadd.s32 %v1785, 3
        %v1790 = vand.u32 %v1789, 3
        %vm1791 = vcmp.lt.s32.totalorder %v1790, 2
        %vm1792 = vcmp.eq.s32.totalorder %v1790, 0
        %v1793 = vxor.u32 %v1787, 2147483648
        %v1794 = vsel %vm1792, %v1786, %v1793
        %vm1795 = vcmp.eq.s32.totalorder %v1790, 2
        %v1796 = vxor.u32 %v1786, 2147483648
        %v1797 = vsel %vm1795, %v1796, %v1787
        %v1798 = vsel %vm1791, %v1794, %v1797
        %v1799 = vsel %vm1788, nan, %v1798
        %v1800 = vand.u32 2147483647, %v485
        %vm1801 = vcmp.le.f32.partialorder %v1800, 0.7853982
        %vm1802 = vcmp.lt.s32.totalorder %v485, 0
        %v1803 = vand.u32 %v485, 2139095040
        %v1804 = vshrl.u32 %v1803, 23
        %v1805 = vsub.s32 %v1804, 127
        %v1806 = vand.u32 2147483647, %v485
        %v1807 = vand.u32 %v1806, 8388607
        %v1808 = vor.u32 %v1807, 8388608
        %v1809 = vsub.s32 0, %v1808
        %v1810 = vadd.s32 %v1805, 1
        %vm1811 = vcmp.gt.s32.totalorder %v1810, 0
        %v1812 = vsel %vm1811, %v1810, 0
        %v1813 = vshrl.u32 %v1812, 5
        %v1814 = vand.u32 %v1812, 31
        %v1815 = vsub.s32 32, %v1814
        %v1816 = vshrl.u32 683565275, %v1815
        %v1817 = vshll.u32 683565275, %v1814
        %v1818 = vshrl.u32 2475754826, %v1815
        %v1819 = vor.u32 %v1817, %v1818
        %v1820 = vshll.u32 2475754826, %v1814
        %v1821 = vshrl.u32 2131351028, %v1815
        %v1822 = vor.u32 %v1820, %v1821
        %v1823 = vshll.u32 2131351028, %v1814
        %v1824 = vshrl.u32 2102212464, %v1815
        %v1825 = vor.u32 %v1823, %v1824
        %v1826 = vshll.u32 2102212464, %v1814
        %v1827 = vshrl.u32 920167782, %v1815
        %v1828 = vor.u32 %v1826, %v1827
        %v1829 = vshll.u32 920167782, %v1814
        %v1830 = vshrl.u32 1326507024, %v1815
        %v1831 = vor.u32 %v1829, %v1830
        %vm1832 = vcmp.lt.s32.totalorder %v1813, 1
        %vm1833 = vcmp.lt.s32.totalorder %v1813, 2
        %vm1834 = vcmp.lt.s32.totalorder %v1813, 3
        %vm1835 = vcmp.lt.s32.totalorder %v1813, 4
        %v1836 = vsel %vm1832, %v1816, %v1819
        %v1837 = vsel %vm1835, %v1825, 2102212464
        %v1838 = vsel %vm1834, %v1822, %v1837
        %v1839 = vsel %vm1833, %v1836, %v1838
        %v1840 = vsel %vm1832, %v1819, %v1822
        %v1841 = vsel %vm1835, %v1828, 920167782
        %v1842 = vsel %vm1834, %v1825, %v1841
        %v1843 = vsel %vm1833, %v1840, %v1842
        %v1844 = vsel %vm1832, %v1822, %v1825
        %v1845 = vsel %vm1835, %v1831, 1326507024
        %v1846 = vsel %vm1834, %v1828, %v1845
        %v1847 = vsel %vm1833, %v1844, %v1846
        %v1848 = vshll.u32 %v1808, 8
        %v1849 = vmul.u32.u64.compose %v1848, %v1847
        %v1850 = vextract.low.u32 %v1849
        %v1851 = vextract.high.u32 %v1849
        %v1852 = vmul.u32.u64.compose %v1848, %v1843
        %v1853 = vextract.low.u32 %v1852
        %v1854 = vextract.high.u32 %v1852
        %v1855 = vmul.u32 %v1848, %v1839
        %v1856 = vadd.s32 %v1851, %v1853
        %vm1857 = vc.u32 %v1851, %v1853
        %v1858 = vadd.s32 %v1854, 1
        %v1859 = vsel %vm1857, %v1858, %v1854
        %v1860 = vadd.s32 %v1855, %v1859
        %v1861 = vadd.s32 %v1860, 536870912
        %v1862 = vshrl.u32 %v1861, 30
        %v1863 = vshll.u32 %v1862, 30
        %v1864 = vsub.s32 %v1860, %v1863
        %vm1865 = vcmp.lt.s32.totalorder %v1864, 0
        %v1866 = vsub.s32 0, %v1864
        %v1867 = vsel %vm1865, %v1866, %v1864
        %v1868 = vclz %v1867
        %v1869 = vsub.s32 %v1868, 2
        %vm1870 = vcmp.gt.s32.totalorder 0, %v1869
        %v1871 = vsel %vm1870, 0, %v1869
        %v1872 = vsub.s32 32, %v1871
        %v1873 = vshll.u32 %v1864, %v1871
        %v1874 = vshrl.u32 %v1856, %v1872
        %v1875 = vor.u32 %v1873, %v1874
        %v1876 = vsub.s32 4294967266, %v1871
        %v1877 = vadd.s32 %v1876, 127
        %v1878 = vshll.u32 %v1877, 23
        %v1879 = vor.u32 4788187, %v1878
        %v1880 = vand.u32 2147483647, %v1879
        %v1882 = vcvt.s32.f32 %v1875
        %v1883 = vmul.f32 %v1882, %v1880
        %v1884 = vxor.u32 %v1883, 2147483648
        %v1885 = vsel %vm1802, %v1884, %v1883
        %v1886 = vsub.s32 4, %v1862
        %v1887 = vsel %vm1802, %v1886, %v1862
        %v1888 = vsel %vm1801, %v485, %v1885
        %v1889 = vsel %vm1801, 0, %v1887
        %v1890 = vcosq.f32.pop %v1888
        %v1891 = vsinq.f32.pop %v1888
        %vm1892 = vweird.f32 %v485
        %v1893 = vadd.s32 %v1889, 3
        %v1894 = vand.u32 %v1893, 3
        %vm1895 = vcmp.lt.s32.totalorder %v1894, 2
        %vm1896 = vcmp.eq.s32.totalorder %v1894, 0
        %v1897 = vxor.u32 %v1891, 2147483648
        %v1898 = vsel %vm1896, %v1890, %v1897
        %vm1899 = vcmp.eq.s32.totalorder %v1894, 2
        %v1900 = vxor.u32 %v1890, 2147483648
        %v1901 = vsel %vm1899, %v1900, %v1891
        %v1902 = vsel %vm1895, %v1898, %v1901
        %v1903 = vsel %vm1892, nan, %v1902
        %v1904 = vand.u32 2147483647, %v486
        %vm1905 = vcmp.le.f32.partialorder %v1904, 0.7853982
        %vm1906 = vcmp.lt.s32.totalorder %v486, 0
        %v1907 = vand.u32 %v486, 2139095040
        %v1908 = vshrl.u32 %v1907, 23
        %v1909 = vsub.s32 %v1908, 127
        %v1910 = vand.u32 2147483647, %v486
        %v1911 = vand.u32 %v1910, 8388607
        %v1912 = vor.u32 %v1911, 8388608
        %v1913 = vsub.s32 0, %v1912
        %v1914 = vadd.s32 %v1909, 1
        %vm1915 = vcmp.gt.s32.totalorder %v1914, 0
        %v1916 = vsel %vm1915, %v1914, 0
        %v1917 = vshrl.u32 %v1916, 5
        %v1918 = vand.u32 %v1916, 31
        %v1919 = vsub.s32 32, %v1918
        %v1920 = vshrl.u32 683565275, %v1919
        %v1921 = vshll.u32 683565275, %v1918
        %v1922 = vshrl.u32 2475754826, %v1919
        %v1923 = vor.u32 %v1921, %v1922
        %v1924 = vshll.u32 2475754826, %v1918
        %v1925 = vshrl.u32 2131351028, %v1919
        %v1926 = vor.u32 %v1924, %v1925
        %v1927 = vshll.u32 2131351028, %v1918
        %v1928 = vshrl.u32 2102212464, %v1919
        %v1929 = vor.u32 %v1927, %v1928
        %v1930 = vshll.u32 2102212464, %v1918
        %v1931 = vshrl.u32 920167782, %v1919
        %v1932 = vor.u32 %v1930, %v1931
        %v1933 = vshll.u32 920167782, %v1918
        %v1934 = vshrl.u32 1326507024, %v1919
        %v1935 = vor.u32 %v1933, %v1934
        %vm1936 = vcmp.lt.s32.totalorder %v1917, 1
        %vm1937 = vcmp.lt.s32.totalorder %v1917, 2
        %vm1938 = vcmp.lt.s32.totalorder %v1917, 3
        %vm1939 = vcmp.lt.s32.totalorder %v1917, 4
        %v1940 = vsel %vm1936, %v1920, %v1923
        %v1941 = vsel %vm1939, %v1929, 2102212464
        %v1942 = vsel %vm1938, %v1926, %v1941
        %v1943 = vsel %vm1937, %v1940, %v1942
        %v1944 = vsel %vm1936, %v1923, %v1926
        %v1945 = vsel %vm1939, %v1932, 920167782
        %v1946 = vsel %vm1938, %v1929, %v1945
        %v1947 = vsel %vm1937, %v1944, %v1946
        %v1948 = vsel %vm1936, %v1926, %v1929
        %v1949 = vsel %vm1939, %v1935, 1326507024
        %v1950 = vsel %vm1938, %v1932, %v1949
        %v1951 = vsel %vm1937, %v1948, %v1950
        %v1952 = vshll.u32 %v1912, 8
        %v1953 = vmul.u32.u64.compose %v1952, %v1951
        %v1954 = vextract.low.u32 %v1953
        %v1955 = vextract.high.u32 %v1953
        %v1956 = vmul.u32.u64.compose %v1952, %v1947
        %v1957 = vextract.low.u32 %v1956
        %v1958 = vextract.high.u32 %v1956
        %v1959 = vmul.u32 %v1952, %v1943
        %v1960 = vadd.s32 %v1955, %v1957
        %vm1961 = vc.u32 %v1955, %v1957
        %v1962 = vadd.s32 %v1958, 1
        %v1963 = vsel %vm1961, %v1962, %v1958
        %v1964 = vadd.s32 %v1959, %v1963
        %v1965 = vadd.s32 %v1964, 536870912
        %v1966 = vshrl.u32 %v1965, 30
        %v1967 = vshll.u32 %v1966, 30
        %v1968 = vsub.s32 %v1964, %v1967
        %vm1969 = vcmp.lt.s32.totalorder %v1968, 0
        %v1970 = vsub.s32 0, %v1968
        %v1971 = vsel %vm1969, %v1970, %v1968
        %v1972 = vclz %v1971
        %v1973 = vsub.s32 %v1972, 2
        %vm1974 = vcmp.gt.s32.totalorder 0, %v1973
        %v1975 = vsel %vm1974, 0, %v1973
        %v1976 = vsub.s32 32, %v1975
        %v1977 = vshll.u32 %v1968, %v1975
        %v1978 = vshrl.u32 %v1960, %v1976
        %v1979 = vor.u32 %v1977, %v1978
        %v1980 = vsub.s32 4294967266, %v1975
        %v1981 = vadd.s32 %v1980, 127
        %v1982 = vshll.u32 %v1981, 23
        %v1983 = vor.u32 4788187, %v1982
        %v1984 = vand.u32 2147483647, %v1983
        %v1986 = vcvt.s32.f32 %v1979
        %v1987 = vmul.f32 %v1986, %v1984
        %v1988 = vxor.u32 %v1987, 2147483648
        %v1989 = vsel %vm1906, %v1988, %v1987
        %v1990 = vsub.s32 4, %v1966
        %v1991 = vsel %vm1906, %v1990, %v1966
        %v1992 = vsel %vm1905, %v486, %v1989
        %v1993 = vsel %vm1905, 0, %v1991
        %v1994 = vcosq.f32.pop %v1992
        %v1995 = vsinq.f32.pop %v1992
        %vm1996 = vweird.f32 %v486
        %v1997 = vadd.s32 %v1993, 3
        %v1998 = vand.u32 %v1997, 3
        %vm1999 = vcmp.lt.s32.totalorder %v1998, 2
        %vm2000 = vcmp.eq.s32.totalorder %v1998, 0
        %v2001 = vxor.u32 %v1995, 2147483648
        %v2002 = vsel %vm2000, %v1994, %v2001
        %vm2003 = vcmp.eq.s32.totalorder %v1998, 2
        %v2004 = vxor.u32 %v1994, 2147483648
        %v2005 = vsel %vm2003, %v2004, %v1995
        %v2006 = vsel %vm1999, %v2002, %v2005
        %v2007 = vsel %vm1996, nan, %v2006
        %v2008 = vand.u32 2147483647, %v487
        %vm2009 = vcmp.le.f32.partialorder %v2008, 0.7853982
        %vm2010 = vcmp.lt.s32.totalorder %v487, 0
        %v2011 = vand.u32 %v487, 2139095040
        %v2012 = vshrl.u32 %v2011, 23
        %v2013 = vsub.s32 %v2012, 127
        %v2014 = vand.u32 2147483647, %v487
        %v2015 = vand.u32 %v2014, 8388607
        %v2016 = vor.u32 %v2015, 8388608
        %v2017 = vsub.s32 0, %v2016
        %v2018 = vadd.s32 %v2013, 1
        %vm2019 = vcmp.gt.s32.totalorder %v2018, 0
        %v2020 = vsel %vm2019, %v2018, 0
        %v2021 = vshrl.u32 %v2020, 5
        %v2022 = vand.u32 %v2020, 31
        %v2023 = vsub.s32 32, %v2022
        %v2024 = vshrl.u32 683565275, %v2023
        %v2025 = vshll.u32 683565275, %v2022
        %v2026 = vshrl.u32 2475754826, %v2023
        %v2027 = vor.u32 %v2025, %v2026
        %v2028 = vshll.u32 2475754826, %v2022
        %v2029 = vshrl.u32 2131351028, %v2023
        %v2030 = vor.u32 %v2028, %v2029
        %v2031 = vshll.u32 2131351028, %v2022
        %v2032 = vshrl.u32 2102212464, %v2023
        %v2033 = vor.u32 %v2031, %v2032
        %v2034 = vshll.u32 2102212464, %v2022
        %v2035 = vshrl.u32 920167782, %v2023
        %v2036 = vor.u32 %v2034, %v2035
        %v2037 = vshll.u32 920167782, %v2022
        %v2038 = vshrl.u32 1326507024, %v2023
        %v2039 = vor.u32 %v2037, %v2038
        %vm2040 = vcmp.lt.s32.totalorder %v2021, 1
        %vm2041 = vcmp.lt.s32.totalorder %v2021, 2
        %vm2042 = vcmp.lt.s32.totalorder %v2021, 3
        %vm2043 = vcmp.lt.s32.totalorder %v2021, 4
        %v2044 = vsel %vm2040, %v2024, %v2027
        %v2045 = vsel %vm2043, %v2033, 2102212464
        %v2046 = vsel %vm2042, %v2030, %v2045
        %v2047 = vsel %vm2041, %v2044, %v2046
        %v2048 = vsel %vm2040, %v2027, %v2030
        %v2049 = vsel %vm2043, %v2036, 920167782
        %v2050 = vsel %vm2042, %v2033, %v2049
        %v2051 = vsel %vm2041, %v2048, %v2050
        %v2052 = vsel %vm2040, %v2030, %v2033
        %v2053 = vsel %vm2043, %v2039, 1326507024
        %v2054 = vsel %vm2042, %v2036, %v2053
        %v2055 = vsel %vm2041, %v2052, %v2054
        %v2056 = vshll.u32 %v2016, 8
        %v2057 = vmul.u32.u64.compose %v2056, %v2055
        %v2058 = vextract.low.u32 %v2057
        %v2059 = vextract.high.u32 %v2057
        %v2060 = vmul.u32.u64.compose %v2056, %v2051
        %v2061 = vextract.low.u32 %v2060
        %v2062 = vextract.high.u32 %v2060
        %v2063 = vmul.u32 %v2056, %v2047
        %v2064 = vadd.s32 %v2059, %v2061
        %vm2065 = vc.u32 %v2059, %v2061
        %v2066 = vadd.s32 %v2062, 1
        %v2067 = vsel %vm2065, %v2066, %v2062
        %v2068 = vadd.s32 %v2063, %v2067
        %v2069 = vadd.s32 %v2068, 536870912
        %v2070 = vshrl.u32 %v2069, 30
        %v2071 = vshll.u32 %v2070, 30
        %v2072 = vsub.s32 %v2068, %v2071
        %vm2073 = vcmp.lt.s32.totalorder %v2072, 0
        %v2074 = vsub.s32 0, %v2072
        %v2075 = vsel %vm2073, %v2074, %v2072
        %v2076 = vclz %v2075
        %v2077 = vsub.s32 %v2076, 2
        %vm2078 = vcmp.gt.s32.totalorder 0, %v2077
        %v2079 = vsel %vm2078, 0, %v2077
        %v2080 = vsub.s32 32, %v2079
        %v2081 = vshll.u32 %v2072, %v2079
        %v2082 = vshrl.u32 %v2064, %v2080
        %v2083 = vor.u32 %v2081, %v2082
        %v2084 = vsub.s32 4294967266, %v2079
        %v2085 = vadd.s32 %v2084, 127
        %v2086 = vshll.u32 %v2085, 23
        %v2087 = vor.u32 4788187, %v2086
        %v2088 = vand.u32 2147483647, %v2087
        %v2090 = vcvt.s32.f32 %v2083
        %v2091 = vmul.f32 %v2090, %v2088
        %v2092 = vxor.u32 %v2091, 2147483648
        %v2093 = vsel %vm2010, %v2092, %v2091
        %v2094 = vsub.s32 4, %v2070
        %v2095 = vsel %vm2010, %v2094, %v2070
        %v2096 = vsel %vm2009, %v487, %v2093
        %v2097 = vsel %vm2009, 0, %v2095
        %v2098 = vcosq.f32.pop %v2096
        %v2099 = vsinq.f32.pop %v2096
        %vm2100 = vweird.f32 %v487
        %v2101 = vadd.s32 %v2097, 3
        %v2102 = vand.u32 %v2101, 3
        %vm2103 = vcmp.lt.s32.totalorder %v2102, 2
        %vm2104 = vcmp.eq.s32.totalorder %v2102, 0
        %v2105 = vxor.u32 %v2099, 2147483648
        %v2106 = vsel %vm2104, %v2098, %v2105
        %vm2107 = vcmp.eq.s32.totalorder %v2102, 2
        %v2108 = vxor.u32 %v2098, 2147483648
        %v2109 = vsel %vm2107, %v2108, %v2099
        %v2110 = vsel %vm2103, %v2106, %v2109
        %v2111 = vsel %vm2100, nan, %v2110
        %v2112 = vand.u32 2147483647, %v488
        %vm2113 = vcmp.le.f32.partialorder %v2112, 0.7853982
        %vm2114 = vcmp.lt.s32.totalorder %v488, 0
        %v2115 = vand.u32 %v488, 2139095040
        %v2116 = vshrl.u32 %v2115, 23
        %v2117 = vsub.s32 %v2116, 127
        %v2118 = vand.u32 2147483647, %v488
        %v2119 = vand.u32 %v2118, 8388607
        %v2120 = vor.u32 %v2119, 8388608
        %v2121 = vsub.s32 0, %v2120
        %v2122 = vadd.s32 %v2117, 1
        %vm2123 = vcmp.gt.s32.totalorder %v2122, 0
        %v2124 = vsel %vm2123, %v2122, 0
        %v2125 = vshrl.u32 %v2124, 5
        %v2126 = vand.u32 %v2124, 31
        %v2127 = vsub.s32 32, %v2126
        %v2128 = vshrl.u32 683565275, %v2127
        %v2129 = vshll.u32 683565275, %v2126
        %v2130 = vshrl.u32 2475754826, %v2127
        %v2131 = vor.u32 %v2129, %v2130
        %v2132 = vshll.u32 2475754826, %v2126
        %v2133 = vshrl.u32 2131351028, %v2127
        %v2134 = vor.u32 %v2132, %v2133
        %v2135 = vshll.u32 2131351028, %v2126
        %v2136 = vshrl.u32 2102212464, %v2127
        %v2137 = vor.u32 %v2135, %v2136
        %v2138 = vshll.u32 2102212464, %v2126
        %v2139 = vshrl.u32 920167782, %v2127
        %v2140 = vor.u32 %v2138, %v2139
        %v2141 = vshll.u32 920167782, %v2126
        %v2142 = vshrl.u32 1326507024, %v2127
        %v2143 = vor.u32 %v2141, %v2142
        %vm2144 = vcmp.lt.s32.totalorder %v2125, 1
        %vm2145 = vcmp.lt.s32.totalorder %v2125, 2
        %vm2146 = vcmp.lt.s32.totalorder %v2125, 3
        %vm2147 = vcmp.lt.s32.totalorder %v2125, 4
        %v2148 = vsel %vm2144, %v2128, %v2131
        %v2149 = vsel %vm2147, %v2137, 2102212464
        %v2150 = vsel %vm2146, %v2134, %v2149
        %v2151 = vsel %vm2145, %v2148, %v2150
        %v2152 = vsel %vm2144, %v2131, %v2134
        %v2153 = vsel %vm2147, %v2140, 920167782
        %v2154 = vsel %vm2146, %v2137, %v2153
        %v2155 = vsel %vm2145, %v2152, %v2154
        %v2156 = vsel %vm2144, %v2134, %v2137
        %v2157 = vsel %vm2147, %v2143, 1326507024
        %v2158 = vsel %vm2146, %v2140, %v2157
        %v2159 = vsel %vm2145, %v2156, %v2158
        %v2160 = vshll.u32 %v2120, 8
        %v2161 = vmul.u32.u64.compose %v2160, %v2159
        %v2162 = vextract.low.u32 %v2161
        %v2163 = vextract.high.u32 %v2161
        %v2164 = vmul.u32.u64.compose %v2160, %v2155
        %v2165 = vextract.low.u32 %v2164
        %v2166 = vextract.high.u32 %v2164
        %v2167 = vmul.u32 %v2160, %v2151
        %v2168 = vadd.s32 %v2163, %v2165
        %vm2169 = vc.u32 %v2163, %v2165
        %v2170 = vadd.s32 %v2166, 1
        %v2171 = vsel %vm2169, %v2170, %v2166
        %v2172 = vadd.s32 %v2167, %v2171
        %v2173 = vadd.s32 %v2172, 536870912
        %v2174 = vshrl.u32 %v2173, 30
        %v2175 = vshll.u32 %v2174, 30
        %v2176 = vsub.s32 %v2172, %v2175
        %vm2177 = vcmp.lt.s32.totalorder %v2176, 0
        %v2178 = vsub.s32 0, %v2176
        %v2179 = vsel %vm2177, %v2178, %v2176
        %v2180 = vclz %v2179
        %v2181 = vsub.s32 %v2180, 2
        %vm2182 = vcmp.gt.s32.totalorder 0, %v2181
        %v2183 = vsel %vm2182, 0, %v2181
        %v2184 = vsub.s32 32, %v2183
        %v2185 = vshll.u32 %v2176, %v2183
        %v2186 = vshrl.u32 %v2168, %v2184
        %v2187 = vor.u32 %v2185, %v2186
        %v2188 = vsub.s32 4294967266, %v2183
        %v2189 = vadd.s32 %v2188, 127
        %v2190 = vshll.u32 %v2189, 23
        %v2191 = vor.u32 4788187, %v2190
        %v2192 = vand.u32 2147483647, %v2191
        %v2194 = vcvt.s32.f32 %v2187
        %v2195 = vmul.f32 %v2194, %v2192
        %v2196 = vxor.u32 %v2195, 2147483648
        %v2197 = vsel %vm2114, %v2196, %v2195
        %v2198 = vsub.s32 4, %v2174
        %v2199 = vsel %vm2114, %v2198, %v2174
        %v2200 = vsel %vm2113, %v488, %v2197
        %v2201 = vsel %vm2113, 0, %v2199
        %v2202 = vcosq.f32.pop %v2200
        %v2203 = vsinq.f32.pop %v2200
        %vm2204 = vweird.f32 %v488
        %v2205 = vadd.s32 %v2201, 3
        %v2206 = vand.u32 %v2205, 3
        %vm2207 = vcmp.lt.s32.totalorder %v2206, 2
        %vm2208 = vcmp.eq.s32.totalorder %v2206, 0
        %v2209 = vxor.u32 %v2203, 2147483648
        %v2210 = vsel %vm2208, %v2202, %v2209
        %vm2211 = vcmp.eq.s32.totalorder %v2206, 2
        %v2212 = vxor.u32 %v2202, 2147483648
        %v2213 = vsel %vm2211, %v2212, %v2203
        %v2214 = vsel %vm2207, %v2210, %v2213
        %v2215 = vsel %vm2204, nan, %v2214
        %v2216 = vand.u32 2147483647, %v489
        %vm2217 = vcmp.le.f32.partialorder %v2216, 0.7853982
        %vm2218 = vcmp.lt.s32.totalorder %v489, 0
        %v2219 = vand.u32 %v489, 2139095040
        %v2220 = vshrl.u32 %v2219, 23
        %v2221 = vsub.s32 %v2220, 127
        %v2222 = vand.u32 2147483647, %v489
        %v2223 = vand.u32 %v2222, 8388607
        %v2224 = vor.u32 %v2223, 8388608
        %v2225 = vsub.s32 0, %v2224
        %v2226 = vadd.s32 %v2221, 1
        %vm2227 = vcmp.gt.s32.totalorder %v2226, 0
        %v2228 = vsel %vm2227, %v2226, 0
        %v2229 = vshrl.u32 %v2228, 5
        %v2230 = vand.u32 %v2228, 31
        %v2231 = vsub.s32 32, %v2230
        %v2232 = vshrl.u32 683565275, %v2231
        %v2233 = vshll.u32 683565275, %v2230
        %v2234 = vshrl.u32 2475754826, %v2231
        %v2235 = vor.u32 %v2233, %v2234
        %v2236 = vshll.u32 2475754826, %v2230
        %v2237 = vshrl.u32 2131351028, %v2231
        %v2238 = vor.u32 %v2236, %v2237
        %v2239 = vshll.u32 2131351028, %v2230
        %v2240 = vshrl.u32 2102212464, %v2231
        %v2241 = vor.u32 %v2239, %v2240
        %v2242 = vshll.u32 2102212464, %v2230
        %v2243 = vshrl.u32 920167782, %v2231
        %v2244 = vor.u32 %v2242, %v2243
        %v2245 = vshll.u32 920167782, %v2230
        %v2246 = vshrl.u32 1326507024, %v2231
        %v2247 = vor.u32 %v2245, %v2246
        %vm2248 = vcmp.lt.s32.totalorder %v2229, 1
        %vm2249 = vcmp.lt.s32.totalorder %v2229, 2
        %vm2250 = vcmp.lt.s32.totalorder %v2229, 3
        %vm2251 = vcmp.lt.s32.totalorder %v2229, 4
        %v2252 = vsel %vm2248, %v2232, %v2235
        %v2253 = vsel %vm2251, %v2241, 2102212464
        %v2254 = vsel %vm2250, %v2238, %v2253
        %v2255 = vsel %vm2249, %v2252, %v2254
        %v2256 = vsel %vm2248, %v2235, %v2238
        %v2257 = vsel %vm2251, %v2244, 920167782
        %v2258 = vsel %vm2250, %v2241, %v2257
        %v2259 = vsel %vm2249, %v2256, %v2258
        %v2260 = vsel %vm2248, %v2238, %v2241
        %v2261 = vsel %vm2251, %v2247, 1326507024
        %v2262 = vsel %vm2250, %v2244, %v2261
        %v2263 = vsel %vm2249, %v2260, %v2262
        %v2264 = vshll.u32 %v2224, 8
        %v2265 = vmul.u32.u64.compose %v2264, %v2263
        %v2266 = vextract.low.u32 %v2265
        %v2267 = vextract.high.u32 %v2265
        %v2268 = vmul.u32.u64.compose %v2264, %v2259
        %v2269 = vextract.low.u32 %v2268
        %v2270 = vextract.high.u32 %v2268
        %v2271 = vmul.u32 %v2264, %v2255
        %v2272 = vadd.s32 %v2267, %v2269
        %vm2273 = vc.u32 %v2267, %v2269
        %v2274 = vadd.s32 %v2270, 1
        %v2275 = vsel %vm2273, %v2274, %v2270
        %v2276 = vadd.s32 %v2271, %v2275
        %v2277 = vadd.s32 %v2276, 536870912
        %v2278 = vshrl.u32 %v2277, 30
        %v2279 = vshll.u32 %v2278, 30
        %v2280 = vsub.s32 %v2276, %v2279
        %vm2281 = vcmp.lt.s32.totalorder %v2280, 0
        %v2282 = vsub.s32 0, %v2280
        %v2283 = vsel %vm2281, %v2282, %v2280
        %v2284 = vclz %v2283
        %v2285 = vsub.s32 %v2284, 2
        %vm2286 = vcmp.gt.s32.totalorder 0, %v2285
        %v2287 = vsel %vm2286, 0, %v2285
        %v2288 = vsub.s32 32, %v2287
        %v2289 = vshll.u32 %v2280, %v2287
        %v2290 = vshrl.u32 %v2272, %v2288
        %v2291 = vor.u32 %v2289, %v2290
        %v2292 = vsub.s32 4294967266, %v2287
        %v2293 = vadd.s32 %v2292, 127
        %v2294 = vshll.u32 %v2293, 23
        %v2295 = vor.u32 4788187, %v2294
        %v2296 = vand.u32 2147483647, %v2295
        %v2298 = vcvt.s32.f32 %v2291
        %v2299 = vmul.f32 %v2298, %v2296
        %v2300 = vxor.u32 %v2299, 2147483648
        %v2301 = vsel %vm2218, %v2300, %v2299
        %v2302 = vsub.s32 4, %v2278
        %v2303 = vsel %vm2218, %v2302, %v2278
        %v2304 = vsel %vm2217, %v489, %v2301
        %v2305 = vsel %vm2217, 0, %v2303
        %v2306 = vcosq.f32.pop %v2304
        %v2307 = vsinq.f32.pop %v2304
        %vm2308 = vweird.f32 %v489
        %v2309 = vadd.s32 %v2305, 3
        %v2310 = vand.u32 %v2309, 3
        %vm2311 = vcmp.lt.s32.totalorder %v2310, 2
        %vm2312 = vcmp.eq.s32.totalorder %v2310, 0
        %v2313 = vxor.u32 %v2307, 2147483648
        %v2314 = vsel %vm2312, %v2306, %v2313
        %vm2315 = vcmp.eq.s32.totalorder %v2310, 2
        %v2316 = vxor.u32 %v2306, 2147483648
        %v2317 = vsel %vm2315, %v2316, %v2307
        %v2318 = vsel %vm2311, %v2314, %v2317
        %v2319 = vsel %vm2308, nan, %v2318
        %v2320 = vand.u32 2147483647, %v490
        %vm2321 = vcmp.le.f32.partialorder %v2320, 0.7853982
        %vm2322 = vcmp.lt.s32.totalorder %v490, 0
        %v2323 = vand.u32 %v490, 2139095040
        %v2324 = vshrl.u32 %v2323, 23
        %v2325 = vsub.s32 %v2324, 127
        %v2326 = vand.u32 2147483647, %v490
        %v2327 = vand.u32 %v2326, 8388607
        %v2328 = vor.u32 %v2327, 8388608
        %v2329 = vsub.s32 0, %v2328
        %v2330 = vadd.s32 %v2325, 1
        %vm2331 = vcmp.gt.s32.totalorder %v2330, 0
        %v2332 = vsel %vm2331, %v2330, 0
        %v2333 = vshrl.u32 %v2332, 5
        %v2334 = vand.u32 %v2332, 31
        %v2335 = vsub.s32 32, %v2334
        %v2336 = vshrl.u32 683565275, %v2335
        %v2337 = vshll.u32 683565275, %v2334
        %v2338 = vshrl.u32 2475754826, %v2335
        %v2339 = vor.u32 %v2337, %v2338
        %v2340 = vshll.u32 2475754826, %v2334
        %v2341 = vshrl.u32 2131351028, %v2335
        %v2342 = vor.u32 %v2340, %v2341
        %v2343 = vshll.u32 2131351028, %v2334
        %v2344 = vshrl.u32 2102212464, %v2335
        %v2345 = vor.u32 %v2343, %v2344
        %v2346 = vshll.u32 2102212464, %v2334
        %v2347 = vshrl.u32 920167782, %v2335
        %v2348 = vor.u32 %v2346, %v2347
        %v2349 = vshll.u32 920167782, %v2334
        %v2350 = vshrl.u32 1326507024, %v2335
        %v2351 = vor.u32 %v2349, %v2350
        %vm2352 = vcmp.lt.s32.totalorder %v2333, 1
        %vm2353 = vcmp.lt.s32.totalorder %v2333, 2
        %vm2354 = vcmp.lt.s32.totalorder %v2333, 3
        %vm2355 = vcmp.lt.s32.totalorder %v2333, 4
        %v2356 = vsel %vm2352, %v2336, %v2339
        %v2357 = vsel %vm2355, %v2345, 2102212464
        %v2358 = vsel %vm2354, %v2342, %v2357
        %v2359 = vsel %vm2353, %v2356, %v2358
        %v2360 = vsel %vm2352, %v2339, %v2342
        %v2361 = vsel %vm2355, %v2348, 920167782
        %v2362 = vsel %vm2354, %v2345, %v2361
        %v2363 = vsel %vm2353, %v2360, %v2362
        %v2364 = vsel %vm2352, %v2342, %v2345
        %v2365 = vsel %vm2355, %v2351, 1326507024
        %v2366 = vsel %vm2354, %v2348, %v2365
        %v2367 = vsel %vm2353, %v2364, %v2366
        %v2368 = vshll.u32 %v2328, 8
        %v2369 = vmul.u32.u64.compose %v2368, %v2367
        %v2370 = vextract.low.u32 %v2369
        %v2371 = vextract.high.u32 %v2369
        %v2372 = vmul.u32.u64.compose %v2368, %v2363
        %v2373 = vextract.low.u32 %v2372
        %v2374 = vextract.high.u32 %v2372
        %v2375 = vmul.u32 %v2368, %v2359
        %v2376 = vadd.s32 %v2371, %v2373
        %vm2377 = vc.u32 %v2371, %v2373
        %v2378 = vadd.s32 %v2374, 1
        %v2379 = vsel %vm2377, %v2378, %v2374
        %v2380 = vadd.s32 %v2375, %v2379
        %v2381 = vadd.s32 %v2380, 536870912
        %v2382 = vshrl.u32 %v2381, 30
        %v2383 = vshll.u32 %v2382, 30
        %v2384 = vsub.s32 %v2380, %v2383
        %vm2385 = vcmp.lt.s32.totalorder %v2384, 0
        %v2386 = vsub.s32 0, %v2384
        %v2387 = vsel %vm2385, %v2386, %v2384
        %v2388 = vclz %v2387
        %v2389 = vsub.s32 %v2388, 2
        %vm2390 = vcmp.gt.s32.totalorder 0, %v2389
        %v2391 = vsel %vm2390, 0, %v2389
        %v2392 = vsub.s32 32, %v2391
        %v2393 = vshll.u32 %v2384, %v2391
        %v2394 = vshrl.u32 %v2376, %v2392
        %v2395 = vor.u32 %v2393, %v2394
        %v2396 = vsub.s32 4294967266, %v2391
        %v2397 = vadd.s32 %v2396, 127
        %v2398 = vshll.u32 %v2397, 23
        %v2399 = vor.u32 4788187, %v2398
        %v2400 = vand.u32 2147483647, %v2399
        %v2402 = vcvt.s32.f32 %v2395
        %v2403 = vmul.f32 %v2402, %v2400
        %v2404 = vxor.u32 %v2403, 2147483648
        %v2405 = vsel %vm2322, %v2404, %v2403
        %v2406 = vsub.s32 4, %v2382
        %v2407 = vsel %vm2322, %v2406, %v2382
        %v2408 = vsel %vm2321, %v490, %v2405
        %v2409 = vsel %vm2321, 0, %v2407
        %v2410 = vcosq.f32.pop %v2408
        %v2411 = vsinq.f32.pop %v2408
        %vm2412 = vweird.f32 %v490
        %v2413 = vadd.s32 %v2409, 3
        %v2414 = vand.u32 %v2413, 3
        %vm2415 = vcmp.lt.s32.totalorder %v2414, 2
        %vm2416 = vcmp.eq.s32.totalorder %v2414, 0
        %v2417 = vxor.u32 %v2411, 2147483648
        %v2418 = vsel %vm2416, %v2410, %v2417
        %vm2419 = vcmp.eq.s32.totalorder %v2414, 2
        %v2420 = vxor.u32 %v2410, 2147483648
        %v2421 = vsel %vm2419, %v2420, %v2411
        %v2422 = vsel %vm2415, %v2418, %v2421
        %v2423 = vsel %vm2412, nan, %v2422
        %v2424 = vand.u32 2147483647, %v491
        %vm2425 = vcmp.le.f32.partialorder %v2424, 0.7853982
        %vm2426 = vcmp.lt.s32.totalorder %v491, 0
        %v2427 = vand.u32 %v491, 2139095040
        %v2428 = vshrl.u32 %v2427, 23
        %v2429 = vsub.s32 %v2428, 127
        %v2430 = vand.u32 2147483647, %v491
        %v2431 = vand.u32 %v2430, 8388607
        %v2432 = vor.u32 %v2431, 8388608
        %v2433 = vsub.s32 0, %v2432
        %v2434 = vadd.s32 %v2429, 1
        %vm2435 = vcmp.gt.s32.totalorder %v2434, 0
        %v2436 = vsel %vm2435, %v2434, 0
        %v2437 = vshrl.u32 %v2436, 5
        %v2438 = vand.u32 %v2436, 31
        %v2439 = vsub.s32 32, %v2438
        %v2440 = vshrl.u32 683565275, %v2439
        %v2441 = vshll.u32 683565275, %v2438
        %v2442 = vshrl.u32 2475754826, %v2439
        %v2443 = vor.u32 %v2441, %v2442
        %v2444 = vshll.u32 2475754826, %v2438
        %v2445 = vshrl.u32 2131351028, %v2439
        %v2446 = vor.u32 %v2444, %v2445
        %v2447 = vshll.u32 2131351028, %v2438
        %v2448 = vshrl.u32 2102212464, %v2439
        %v2449 = vor.u32 %v2447, %v2448
        %v2450 = vshll.u32 2102212464, %v2438
        %v2451 = vshrl.u32 920167782, %v2439
        %v2452 = vor.u32 %v2450, %v2451
        %v2453 = vshll.u32 920167782, %v2438
        %v2454 = vshrl.u32 1326507024, %v2439
        %v2455 = vor.u32 %v2453, %v2454
        %vm2456 = vcmp.lt.s32.totalorder %v2437, 1
        %vm2457 = vcmp.lt.s32.totalorder %v2437, 2
        %vm2458 = vcmp.lt.s32.totalorder %v2437, 3
        %vm2459 = vcmp.lt.s32.totalorder %v2437, 4
        %v2460 = vsel %vm2456, %v2440, %v2443
        %v2461 = vsel %vm2459, %v2449, 2102212464
        %v2462 = vsel %vm2458, %v2446, %v2461
        %v2463 = vsel %vm2457, %v2460, %v2462
        %v2464 = vsel %vm2456, %v2443, %v2446
        %v2465 = vsel %vm2459, %v2452, 920167782
        %v2466 = vsel %vm2458, %v2449, %v2465
        %v2467 = vsel %vm2457, %v2464, %v2466
        %v2468 = vsel %vm2456, %v2446, %v2449
        %v2469 = vsel %vm2459, %v2455, 1326507024
        %v2470 = vsel %vm2458, %v2452, %v2469
        %v2471 = vsel %vm2457, %v2468, %v2470
        %v2472 = vshll.u32 %v2432, 8
        %v2473 = vmul.u32.u64.compose %v2472, %v2471
        %v2474 = vextract.low.u32 %v2473
        %v2475 = vextract.high.u32 %v2473
        %v2476 = vmul.u32.u64.compose %v2472, %v2467
        %v2477 = vextract.low.u32 %v2476
        %v2478 = vextract.high.u32 %v2476
        %v2479 = vmul.u32 %v2472, %v2463
        %v2480 = vadd.s32 %v2475, %v2477
        %vm2481 = vc.u32 %v2475, %v2477
        %v2482 = vadd.s32 %v2478, 1
        %v2483 = vsel %vm2481, %v2482, %v2478
        %v2484 = vadd.s32 %v2479, %v2483
        %v2485 = vadd.s32 %v2484, 536870912
        %v2486 = vshrl.u32 %v2485, 30
        %v2487 = vshll.u32 %v2486, 30
        %v2488 = vsub.s32 %v2484, %v2487
        %vm2489 = vcmp.lt.s32.totalorder %v2488, 0
        %v2490 = vsub.s32 0, %v2488
        %v2491 = vsel %vm2489, %v2490, %v2488
        %v2492 = vclz %v2491
        %v2493 = vsub.s32 %v2492, 2
        %vm2494 = vcmp.gt.s32.totalorder 0, %v2493
        %v2495 = vsel %vm2494, 0, %v2493
        %v2496 = vsub.s32 32, %v2495
        %v2497 = vshll.u32 %v2488, %v2495
        %v2498 = vshrl.u32 %v2480, %v2496
        %v2499 = vor.u32 %v2497, %v2498
        %v2500 = vsub.s32 4294967266, %v2495
        %v2501 = vadd.s32 %v2500, 127
        %v2502 = vshll.u32 %v2501, 23
        %v2503 = vor.u32 4788187, %v2502
        %v2504 = vand.u32 2147483647, %v2503
        %v2506 = vcvt.s32.f32 %v2499
        %v2507 = vmul.f32 %v2506, %v2504
        %v2508 = vxor.u32 %v2507, 2147483648
        %v2509 = vsel %vm2426, %v2508, %v2507
        %v2510 = vsub.s32 4, %v2486
        %v2511 = vsel %vm2426, %v2510, %v2486
        %v2512 = vsel %vm2425, %v491, %v2509
        %v2513 = vsel %vm2425, 0, %v2511
        %v2514 = vcosq.f32.pop %v2512
        %v2515 = vsinq.f32.pop %v2512
        %vm2516 = vweird.f32 %v491
        %v2517 = vadd.s32 %v2513, 3
        %v2518 = vand.u32 %v2517, 3
        %vm2519 = vcmp.lt.s32.totalorder %v2518, 2
        %vm2520 = vcmp.eq.s32.totalorder %v2518, 0
        %v2521 = vxor.u32 %v2515, 2147483648
        %v2522 = vsel %vm2520, %v2514, %v2521
        %vm2523 = vcmp.eq.s32.totalorder %v2518, 2
        %v2524 = vxor.u32 %v2514, 2147483648
        %v2525 = vsel %vm2523, %v2524, %v2515
        %v2526 = vsel %vm2519, %v2522, %v2525
        %v2527 = vsel %vm2516, nan, %v2526
        %v2528 = vand.u32 2147483647, %v492
        %vm2529 = vcmp.le.f32.partialorder %v2528, 0.7853982
        %vm2530 = vcmp.lt.s32.totalorder %v492, 0
        %v2531 = vand.u32 %v492, 2139095040
        %v2532 = vshrl.u32 %v2531, 23
        %v2533 = vsub.s32 %v2532, 127
        %v2534 = vand.u32 2147483647, %v492
        %v2535 = vand.u32 %v2534, 8388607
        %v2536 = vor.u32 %v2535, 8388608
        %v2537 = vsub.s32 0, %v2536
        %v2538 = vadd.s32 %v2533, 1
        %vm2539 = vcmp.gt.s32.totalorder %v2538, 0
        %v2540 = vsel %vm2539, %v2538, 0
        %v2541 = vshrl.u32 %v2540, 5
        %v2542 = vand.u32 %v2540, 31
        %v2543 = vsub.s32 32, %v2542
        %v2544 = vshrl.u32 683565275, %v2543
        %v2545 = vshll.u32 683565275, %v2542
        %v2546 = vshrl.u32 2475754826, %v2543
        %v2547 = vor.u32 %v2545, %v2546
        %v2548 = vshll.u32 2475754826, %v2542
        %v2549 = vshrl.u32 2131351028, %v2543
        %v2550 = vor.u32 %v2548, %v2549
        %v2551 = vshll.u32 2131351028, %v2542
        %v2552 = vshrl.u32 2102212464, %v2543
        %v2553 = vor.u32 %v2551, %v2552
        %v2554 = vshll.u32 2102212464, %v2542
        %v2555 = vshrl.u32 920167782, %v2543
        %v2556 = vor.u32 %v2554, %v2555
        %v2557 = vshll.u32 920167782, %v2542
        %v2558 = vshrl.u32 1326507024, %v2543
        %v2559 = vor.u32 %v2557, %v2558
        %vm2560 = vcmp.lt.s32.totalorder %v2541, 1
        %vm2561 = vcmp.lt.s32.totalorder %v2541, 2
        %vm2562 = vcmp.lt.s32.totalorder %v2541, 3
        %vm2563 = vcmp.lt.s32.totalorder %v2541, 4
        %v2564 = vsel %vm2560, %v2544, %v2547
        %v2565 = vsel %vm2563, %v2553, 2102212464
        %v2566 = vsel %vm2562, %v2550, %v2565
        %v2567 = vsel %vm2561, %v2564, %v2566
        %v2568 = vsel %vm2560, %v2547, %v2550
        %v2569 = vsel %vm2563, %v2556, 920167782
        %v2570 = vsel %vm2562, %v2553, %v2569
        %v2571 = vsel %vm2561, %v2568, %v2570
        %v2572 = vsel %vm2560, %v2550, %v2553
        %v2573 = vsel %vm2563, %v2559, 1326507024
        %v2574 = vsel %vm2562, %v2556, %v2573
        %v2575 = vsel %vm2561, %v2572, %v2574
        %v2576 = vshll.u32 %v2536, 8
        %v2577 = vmul.u32.u64.compose %v2576, %v2575
        %v2578 = vextract.low.u32 %v2577
        %v2579 = vextract.high.u32 %v2577
        %v2580 = vmul.u32.u64.compose %v2576, %v2571
        %v2581 = vextract.low.u32 %v2580
        %v2582 = vextract.high.u32 %v2580
        %v2583 = vmul.u32 %v2576, %v2567
        %v2584 = vadd.s32 %v2579, %v2581
        %vm2585 = vc.u32 %v2579, %v2581
        %v2586 = vadd.s32 %v2582, 1
        %v2587 = vsel %vm2585, %v2586, %v2582
        %v2588 = vadd.s32 %v2583, %v2587
        %v2589 = vadd.s32 %v2588, 536870912
        %v2590 = vshrl.u32 %v2589, 30
        %v2591 = vshll.u32 %v2590, 30
        %v2592 = vsub.s32 %v2588, %v2591
        %vm2593 = vcmp.lt.s32.totalorder %v2592, 0
        %v2594 = vsub.s32 0, %v2592
        %v2595 = vsel %vm2593, %v2594, %v2592
        %v2596 = vclz %v2595
        %v2597 = vsub.s32 %v2596, 2
        %vm2598 = vcmp.gt.s32.totalorder 0, %v2597
        %v2599 = vsel %vm2598, 0, %v2597
        %v2600 = vsub.s32 32, %v2599
        %v2601 = vshll.u32 %v2592, %v2599
        %v2602 = vshrl.u32 %v2584, %v2600
        %v2603 = vor.u32 %v2601, %v2602
        %v2604 = vsub.s32 4294967266, %v2599
        %v2605 = vadd.s32 %v2604, 127
        %v2606 = vshll.u32 %v2605, 23
        %v2607 = vor.u32 4788187, %v2606
        %v2608 = vand.u32 2147483647, %v2607
        %v2610 = vcvt.s32.f32 %v2603
        %v2611 = vmul.f32 %v2610, %v2608
        %v2612 = vxor.u32 %v2611, 2147483648
        %v2613 = vsel %vm2530, %v2612, %v2611
        %v2614 = vsub.s32 4, %v2590
        %v2615 = vsel %vm2530, %v2614, %v2590
        %v2616 = vsel %vm2529, %v492, %v2613
        %v2617 = vsel %vm2529, 0, %v2615
        %v2618 = vcosq.f32.pop %v2616
        %v2619 = vsinq.f32.pop %v2616
        %vm2620 = vweird.f32 %v492
        %v2621 = vadd.s32 %v2617, 3
        %v2622 = vand.u32 %v2621, 3
        %vm2623 = vcmp.lt.s32.totalorder %v2622, 2
        %vm2624 = vcmp.eq.s32.totalorder %v2622, 0
        %v2625 = vxor.u32 %v2619, 2147483648
        %v2626 = vsel %vm2624, %v2618, %v2625
        %vm2627 = vcmp.eq.s32.totalorder %v2622, 2
        %v2628 = vxor.u32 %v2618, 2147483648
        %v2629 = vsel %vm2627, %v2628, %v2619
        %v2630 = vsel %vm2623, %v2626, %v2629
        %v2631 = vsel %vm2620, nan, %v2630
        %v2632 = vand.u32 2147483647, %v493
        %vm2633 = vcmp.le.f32.partialorder %v2632, 0.7853982
        %vm2634 = vcmp.lt.s32.totalorder %v493, 0
        %v2635 = vand.u32 %v493, 2139095040
        %v2636 = vshrl.u32 %v2635, 23
        %v2637 = vsub.s32 %v2636, 127
        %v2638 = vand.u32 2147483647, %v493
        %v2639 = vand.u32 %v2638, 8388607
        %v2640 = vor.u32 %v2639, 8388608
        %v2641 = vsub.s32 0, %v2640
        %v2642 = vadd.s32 %v2637, 1
        %vm2643 = vcmp.gt.s32.totalorder %v2642, 0
        %v2644 = vsel %vm2643, %v2642, 0
        %v2645 = vshrl.u32 %v2644, 5
        %v2646 = vand.u32 %v2644, 31
        %v2647 = vsub.s32 32, %v2646
        %v2648 = vshrl.u32 683565275, %v2647
        %v2649 = vshll.u32 683565275, %v2646
        %v2650 = vshrl.u32 2475754826, %v2647
        %v2651 = vor.u32 %v2649, %v2650
        %v2652 = vshll.u32 2475754826, %v2646
        %v2653 = vshrl.u32 2131351028, %v2647
        %v2654 = vor.u32 %v2652, %v2653
        %v2655 = vshll.u32 2131351028, %v2646
        %v2656 = vshrl.u32 2102212464, %v2647
        %v2657 = vor.u32 %v2655, %v2656
        %v2658 = vshll.u32 2102212464, %v2646
        %v2659 = vshrl.u32 920167782, %v2647
        %v2660 = vor.u32 %v2658, %v2659
        %v2661 = vshll.u32 920167782, %v2646
        %v2662 = vshrl.u32 1326507024, %v2647
        %v2663 = vor.u32 %v2661, %v2662
        %vm2664 = vcmp.lt.s32.totalorder %v2645, 1
        %vm2665 = vcmp.lt.s32.totalorder %v2645, 2
        %vm2666 = vcmp.lt.s32.totalorder %v2645, 3
        %vm2667 = vcmp.lt.s32.totalorder %v2645, 4
        %v2668 = vsel %vm2664, %v2648, %v2651
        %v2669 = vsel %vm2667, %v2657, 2102212464
        %v2670 = vsel %vm2666, %v2654, %v2669
        %v2671 = vsel %vm2665, %v2668, %v2670
        %v2672 = vsel %vm2664, %v2651, %v2654
        %v2673 = vsel %vm2667, %v2660, 920167782
        %v2674 = vsel %vm2666, %v2657, %v2673
        %v2675 = vsel %vm2665, %v2672, %v2674
        %v2676 = vsel %vm2664, %v2654, %v2657
        %v2677 = vsel %vm2667, %v2663, 1326507024
        %v2678 = vsel %vm2666, %v2660, %v2677
        %v2679 = vsel %vm2665, %v2676, %v2678
        %v2680 = vshll.u32 %v2640, 8
        %v2681 = vmul.u32.u64.compose %v2680, %v2679
        %v2682 = vextract.low.u32 %v2681
        %v2683 = vextract.high.u32 %v2681
        %v2684 = vmul.u32.u64.compose %v2680, %v2675
        %v2685 = vextract.low.u32 %v2684
        %v2686 = vextract.high.u32 %v2684
        %v2687 = vmul.u32 %v2680, %v2671
        %v2688 = vadd.s32 %v2683, %v2685
        %vm2689 = vc.u32 %v2683, %v2685
        %v2690 = vadd.s32 %v2686, 1
        %v2691 = vsel %vm2689, %v2690, %v2686
        %v2692 = vadd.s32 %v2687, %v2691
        %v2693 = vadd.s32 %v2692, 536870912
        %v2694 = vshrl.u32 %v2693, 30
        %v2695 = vshll.u32 %v2694, 30
        %v2696 = vsub.s32 %v2692, %v2695
        %vm2697 = vcmp.lt.s32.totalorder %v2696, 0
        %v2698 = vsub.s32 0, %v2696
        %v2699 = vsel %vm2697, %v2698, %v2696
        %v2700 = vclz %v2699
        %v2701 = vsub.s32 %v2700, 2
        %vm2702 = vcmp.gt.s32.totalorder 0, %v2701
        %v2703 = vsel %vm2702, 0, %v2701
        %v2704 = vsub.s32 32, %v2703
        %v2705 = vshll.u32 %v2696, %v2703
        %v2706 = vshrl.u32 %v2688, %v2704
        %v2707 = vor.u32 %v2705, %v2706
        %v2708 = vsub.s32 4294967266, %v2703
        %v2709 = vadd.s32 %v2708, 127
        %v2710 = vshll.u32 %v2709, 23
        %v2711 = vor.u32 4788187, %v2710
        %v2712 = vand.u32 2147483647, %v2711
        %v2714 = vcvt.s32.f32 %v2707
        %v2715 = vmul.f32 %v2714, %v2712
        %v2716 = vxor.u32 %v2715, 2147483648
        %v2717 = vsel %vm2634, %v2716, %v2715
        %v2718 = vsub.s32 4, %v2694
        %v2719 = vsel %vm2634, %v2718, %v2694
        %v2720 = vsel %vm2633, %v493, %v2717
        %v2721 = vsel %vm2633, 0, %v2719
        %v2722 = vcosq.f32.pop %v2720
        %v2723 = vsinq.f32.pop %v2720
        %vm2724 = vweird.f32 %v493
        %v2725 = vadd.s32 %v2721, 3
        %v2726 = vand.u32 %v2725, 3
        %vm2727 = vcmp.lt.s32.totalorder %v2726, 2
        %vm2728 = vcmp.eq.s32.totalorder %v2726, 0
        %v2729 = vxor.u32 %v2723, 2147483648
        %v2730 = vsel %vm2728, %v2722, %v2729
        %vm2731 = vcmp.eq.s32.totalorder %v2726, 2
        %v2732 = vxor.u32 %v2722, 2147483648
        %v2733 = vsel %vm2731, %v2732, %v2723
        %v2734 = vsel %vm2727, %v2730, %v2733
        %v2735 = vsel %vm2724, nan, %v2734
        %v2736 = vand.u32 2147483647, %v494
        %vm2737 = vcmp.le.f32.partialorder %v2736, 0.7853982
        %vm2738 = vcmp.lt.s32.totalorder %v494, 0
        %v2739 = vand.u32 %v494, 2139095040
        %v2740 = vshrl.u32 %v2739, 23
        %v2741 = vsub.s32 %v2740, 127
        %v2742 = vand.u32 2147483647, %v494
        %v2743 = vand.u32 %v2742, 8388607
        %v2744 = vor.u32 %v2743, 8388608
        %v2745 = vsub.s32 0, %v2744
        %v2746 = vadd.s32 %v2741, 1
        %vm2747 = vcmp.gt.s32.totalorder %v2746, 0
        %v2748 = vsel %vm2747, %v2746, 0
        %v2749 = vshrl.u32 %v2748, 5
        %v2750 = vand.u32 %v2748, 31
        %v2751 = vsub.s32 32, %v2750
        %v2752 = vshrl.u32 683565275, %v2751
        %v2753 = vshll.u32 683565275, %v2750
        %v2754 = vshrl.u32 2475754826, %v2751
        %v2755 = vor.u32 %v2753, %v2754
        %v2756 = vshll.u32 2475754826, %v2750
        %v2757 = vshrl.u32 2131351028, %v2751
        %v2758 = vor.u32 %v2756, %v2757
        %v2759 = vshll.u32 2131351028, %v2750
        %v2760 = vshrl.u32 2102212464, %v2751
        %v2761 = vor.u32 %v2759, %v2760
        %v2762 = vshll.u32 2102212464, %v2750
        %v2763 = vshrl.u32 920167782, %v2751
        %v2764 = vor.u32 %v2762, %v2763
        %v2765 = vshll.u32 920167782, %v2750
        %v2766 = vshrl.u32 1326507024, %v2751
        %v2767 = vor.u32 %v2765, %v2766
        %vm2768 = vcmp.lt.s32.totalorder %v2749, 1
        %vm2769 = vcmp.lt.s32.totalorder %v2749, 2
        %vm2770 = vcmp.lt.s32.totalorder %v2749, 3
        %vm2771 = vcmp.lt.s32.totalorder %v2749, 4
        %v2772 = vsel %vm2768, %v2752, %v2755
        %v2773 = vsel %vm2771, %v2761, 2102212464
        %v2774 = vsel %vm2770, %v2758, %v2773
        %v2775 = vsel %vm2769, %v2772, %v2774
        %v2776 = vsel %vm2768, %v2755, %v2758
        %v2777 = vsel %vm2771, %v2764, 920167782
        %v2778 = vsel %vm2770, %v2761, %v2777
        %v2779 = vsel %vm2769, %v2776, %v2778
        %v2780 = vsel %vm2768, %v2758, %v2761
        %v2781 = vsel %vm2771, %v2767, 1326507024
        %v2782 = vsel %vm2770, %v2764, %v2781
        %v2783 = vsel %vm2769, %v2780, %v2782
        %v2784 = vshll.u32 %v2744, 8
        %v2785 = vmul.u32.u64.compose %v2784, %v2783
        %v2786 = vextract.low.u32 %v2785
        %v2787 = vextract.high.u32 %v2785
        %v2788 = vmul.u32.u64.compose %v2784, %v2779
        %v2789 = vextract.low.u32 %v2788
        %v2790 = vextract.high.u32 %v2788
        %v2791 = vmul.u32 %v2784, %v2775
        %v2792 = vadd.s32 %v2787, %v2789
        %vm2793 = vc.u32 %v2787, %v2789
        %v2794 = vadd.s32 %v2790, 1
        %v2795 = vsel %vm2793, %v2794, %v2790
        %v2796 = vadd.s32 %v2791, %v2795
        %v2797 = vadd.s32 %v2796, 536870912
        %v2798 = vshrl.u32 %v2797, 30
        %v2799 = vshll.u32 %v2798, 30
        %v2800 = vsub.s32 %v2796, %v2799
        %vm2801 = vcmp.lt.s32.totalorder %v2800, 0
        %v2802 = vsub.s32 0, %v2800
        %v2803 = vsel %vm2801, %v2802, %v2800
        %v2804 = vclz %v2803
        %v2805 = vsub.s32 %v2804, 2
        %vm2806 = vcmp.gt.s32.totalorder 0, %v2805
        %v2807 = vsel %vm2806, 0, %v2805
        %v2808 = vsub.s32 32, %v2807
        %v2809 = vshll.u32 %v2800, %v2807
        %v2810 = vshrl.u32 %v2792, %v2808
        %v2811 = vor.u32 %v2809, %v2810
        %v2812 = vsub.s32 4294967266, %v2807
        %v2813 = vadd.s32 %v2812, 127
        %v2814 = vshll.u32 %v2813, 23
        %v2815 = vor.u32 4788187, %v2814
        %v2816 = vand.u32 2147483647, %v2815
        %v2818 = vcvt.s32.f32 %v2811
        %v2819 = vmul.f32 %v2818, %v2816
        %v2820 = vxor.u32 %v2819, 2147483648
        %v2821 = vsel %vm2738, %v2820, %v2819
        %v2822 = vsub.s32 4, %v2798
        %v2823 = vsel %vm2738, %v2822, %v2798
        %v2824 = vsel %vm2737, %v494, %v2821
        %v2825 = vsel %vm2737, 0, %v2823
        %v2826 = vcosq.f32.pop %v2824
        %v2827 = vsinq.f32.pop %v2824
        %vm2828 = vweird.f32 %v494
        %v2829 = vadd.s32 %v2825, 3
        %v2830 = vand.u32 %v2829, 3
        %vm2831 = vcmp.lt.s32.totalorder %v2830, 2
        %vm2832 = vcmp.eq.s32.totalorder %v2830, 0
        %v2833 = vxor.u32 %v2827, 2147483648
        %v2834 = vsel %vm2832, %v2826, %v2833
        %vm2835 = vcmp.eq.s32.totalorder %v2830, 2
        %v2836 = vxor.u32 %v2826, 2147483648
        %v2837 = vsel %vm2835, %v2836, %v2827
        %v2838 = vsel %vm2831, %v2834, %v2837
        %v2839 = vsel %vm2828, nan, %v2838
        %v2840 = vand.u32 2147483647, %v495
        %vm2841 = vcmp.le.f32.partialorder %v2840, 0.7853982
        %vm2842 = vcmp.lt.s32.totalorder %v495, 0
        %v2843 = vand.u32 %v495, 2139095040
        %v2844 = vshrl.u32 %v2843, 23
        %v2845 = vsub.s32 %v2844, 127
        %v2846 = vand.u32 2147483647, %v495
        %v2847 = vand.u32 %v2846, 8388607
        %v2848 = vor.u32 %v2847, 8388608
        %v2849 = vsub.s32 0, %v2848
        %v2850 = vadd.s32 %v2845, 1
        %vm2851 = vcmp.gt.s32.totalorder %v2850, 0
        %v2852 = vsel %vm2851, %v2850, 0
        %v2853 = vshrl.u32 %v2852, 5
        %v2854 = vand.u32 %v2852, 31
        %v2855 = vsub.s32 32, %v2854
        %v2856 = vshrl.u32 683565275, %v2855
        %v2857 = vshll.u32 683565275, %v2854
        %v2858 = vshrl.u32 2475754826, %v2855
        %v2859 = vor.u32 %v2857, %v2858
        %v2860 = vshll.u32 2475754826, %v2854
        %v2861 = vshrl.u32 2131351028, %v2855
        %v2862 = vor.u32 %v2860, %v2861
        %v2863 = vshll.u32 2131351028, %v2854
        %v2864 = vshrl.u32 2102212464, %v2855
        %v2865 = vor.u32 %v2863, %v2864
        %v2866 = vshll.u32 2102212464, %v2854
        %v2867 = vshrl.u32 920167782, %v2855
        %v2868 = vor.u32 %v2866, %v2867
        %v2869 = vshll.u32 920167782, %v2854
        %v2870 = vshrl.u32 1326507024, %v2855
        %v2871 = vor.u32 %v2869, %v2870
        %vm2872 = vcmp.lt.s32.totalorder %v2853, 1
        %vm2873 = vcmp.lt.s32.totalorder %v2853, 2
        %vm2874 = vcmp.lt.s32.totalorder %v2853, 3
        %vm2875 = vcmp.lt.s32.totalorder %v2853, 4
        %v2876 = vsel %vm2872, %v2856, %v2859
        %v2877 = vsel %vm2875, %v2865, 2102212464
        %v2878 = vsel %vm2874, %v2862, %v2877
        %v2879 = vsel %vm2873, %v2876, %v2878
        %v2880 = vsel %vm2872, %v2859, %v2862
        %v2881 = vsel %vm2875, %v2868, 920167782
        %v2882 = vsel %vm2874, %v2865, %v2881
        %v2883 = vsel %vm2873, %v2880, %v2882
        %v2884 = vsel %vm2872, %v2862, %v2865
        %v2885 = vsel %vm2875, %v2871, 1326507024
        %v2886 = vsel %vm2874, %v2868, %v2885
        %v2887 = vsel %vm2873, %v2884, %v2886
        %v2888 = vshll.u32 %v2848, 8
        %v2889 = vmul.u32.u64.compose %v2888, %v2887
        %v2890 = vextract.low.u32 %v2889
        %v2891 = vextract.high.u32 %v2889
        %v2892 = vmul.u32.u64.compose %v2888, %v2883
        %v2893 = vextract.low.u32 %v2892
        %v2894 = vextract.high.u32 %v2892
        %v2895 = vmul.u32 %v2888, %v2879
        %v2896 = vadd.s32 %v2891, %v2893
        %vm2897 = vc.u32 %v2891, %v2893
        %v2898 = vadd.s32 %v2894, 1
        %v2899 = vsel %vm2897, %v2898, %v2894
        %v2900 = vadd.s32 %v2895, %v2899
        %v2901 = vadd.s32 %v2900, 536870912
        %v2902 = vshrl.u32 %v2901, 30
        %v2903 = vshll.u32 %v2902, 30
        %v2904 = vsub.s32 %v2900, %v2903
        %vm2905 = vcmp.lt.s32.totalorder %v2904, 0
        %v2906 = vsub.s32 0, %v2904
        %v2907 = vsel %vm2905, %v2906, %v2904
        %v2908 = vclz %v2907
        %v2909 = vsub.s32 %v2908, 2
        %vm2910 = vcmp.gt.s32.totalorder 0, %v2909
        %v2911 = vsel %vm2910, 0, %v2909
        %v2912 = vsub.s32 32, %v2911
        %v2913 = vshll.u32 %v2904, %v2911
        %v2914 = vshrl.u32 %v2896, %v2912
        %v2915 = vor.u32 %v2913, %v2914
        %v2916 = vsub.s32 4294967266, %v2911
        %v2917 = vadd.s32 %v2916, 127
        %v2918 = vshll.u32 %v2917, 23
        %v2919 = vor.u32 4788187, %v2918
        %v2920 = vand.u32 2147483647, %v2919
        %v2922 = vcvt.s32.f32 %v2915
        %v2923 = vmul.f32 %v2922, %v2920
        %v2924 = vxor.u32 %v2923, 2147483648
        %v2925 = vsel %vm2842, %v2924, %v2923
        %v2926 = vsub.s32 4, %v2902
        %v2927 = vsel %vm2842, %v2926, %v2902
        %v2928 = vsel %vm2841, %v495, %v2925
        %v2929 = vsel %vm2841, 0, %v2927
        %v2930 = vcosq.f32.pop %v2928
        %v2931 = vsinq.f32.pop %v2928
        %vm2932 = vweird.f32 %v495
        %v2933 = vadd.s32 %v2929, 3
        %v2934 = vand.u32 %v2933, 3
        %vm2935 = vcmp.lt.s32.totalorder %v2934, 2
        %vm2936 = vcmp.eq.s32.totalorder %v2934, 0
        %v2937 = vxor.u32 %v2931, 2147483648
        %v2938 = vsel %vm2936, %v2930, %v2937
        %vm2939 = vcmp.eq.s32.totalorder %v2934, 2
        %v2940 = vxor.u32 %v2930, 2147483648
        %v2941 = vsel %vm2939, %v2940, %v2931
        %v2942 = vsel %vm2935, %v2938, %v2941
        %v2943 = vsel %vm2932, nan, %v2942
        %v2944 = vand.u32 2147483647, %v496
        %vm2945 = vcmp.le.f32.partialorder %v2944, 0.7853982
        %vm2946 = vcmp.lt.s32.totalorder %v496, 0
        %v2947 = vand.u32 %v496, 2139095040
        %v2948 = vshrl.u32 %v2947, 23
        %v2949 = vsub.s32 %v2948, 127
        %v2950 = vand.u32 2147483647, %v496
        %v2951 = vand.u32 %v2950, 8388607
        %v2952 = vor.u32 %v2951, 8388608
        %v2953 = vsub.s32 0, %v2952
        %v2954 = vadd.s32 %v2949, 1
        %vm2955 = vcmp.gt.s32.totalorder %v2954, 0
        %v2956 = vsel %vm2955, %v2954, 0
        %v2957 = vshrl.u32 %v2956, 5
        %v2958 = vand.u32 %v2956, 31
        %v2959 = vsub.s32 32, %v2958
        %v2960 = vshrl.u32 683565275, %v2959
        %v2961 = vshll.u32 683565275, %v2958
        %v2962 = vshrl.u32 2475754826, %v2959
        %v2963 = vor.u32 %v2961, %v2962
        %v2964 = vshll.u32 2475754826, %v2958
        %v2965 = vshrl.u32 2131351028, %v2959
        %v2966 = vor.u32 %v2964, %v2965
        %v2967 = vshll.u32 2131351028, %v2958
        %v2968 = vshrl.u32 2102212464, %v2959
        %v2969 = vor.u32 %v2967, %v2968
        %v2970 = vshll.u32 2102212464, %v2958
        %v2971 = vshrl.u32 920167782, %v2959
        %v2972 = vor.u32 %v2970, %v2971
        %v2973 = vshll.u32 920167782, %v2958
        %v2974 = vshrl.u32 1326507024, %v2959
        %v2975 = vor.u32 %v2973, %v2974
        %vm2976 = vcmp.lt.s32.totalorder %v2957, 1
        %vm2977 = vcmp.lt.s32.totalorder %v2957, 2
        %vm2978 = vcmp.lt.s32.totalorder %v2957, 3
        %vm2979 = vcmp.lt.s32.totalorder %v2957, 4
        %v2980 = vsel %vm2976, %v2960, %v2963
        %v2981 = vsel %vm2979, %v2969, 2102212464
        %v2982 = vsel %vm2978, %v2966, %v2981
        %v2983 = vsel %vm2977, %v2980, %v2982
        %v2984 = vsel %vm2976, %v2963, %v2966
        %v2985 = vsel %vm2979, %v2972, 920167782
        %v2986 = vsel %vm2978, %v2969, %v2985
        %v2987 = vsel %vm2977, %v2984, %v2986
        %v2988 = vsel %vm2976, %v2966, %v2969
        %v2989 = vsel %vm2979, %v2975, 1326507024
        %v2990 = vsel %vm2978, %v2972, %v2989
        %v2991 = vsel %vm2977, %v2988, %v2990
        %v2992 = vshll.u32 %v2952, 8
        %v2993 = vmul.u32.u64.compose %v2992, %v2991
        %v2994 = vextract.low.u32 %v2993
        %v2995 = vextract.high.u32 %v2993
        %v2996 = vmul.u32.u64.compose %v2992, %v2987
        %v2997 = vextract.low.u32 %v2996
        %v2998 = vextract.high.u32 %v2996
        %v2999 = vmul.u32 %v2992, %v2983
        %v3000 = vadd.s32 %v2995, %v2997
        %vm3001 = vc.u32 %v2995, %v2997
        %v3002 = vadd.s32 %v2998, 1
        %v3003 = vsel %vm3001, %v3002, %v2998
        %v3004 = vadd.s32 %v2999, %v3003
        %v3005 = vadd.s32 %v3004, 536870912
        %v3006 = vshrl.u32 %v3005, 30
        %v3007 = vshll.u32 %v3006, 30
        %v3008 = vsub.s32 %v3004, %v3007
        %vm3009 = vcmp.lt.s32.totalorder %v3008, 0
        %v3010 = vsub.s32 0, %v3008
        %v3011 = vsel %vm3009, %v3010, %v3008
        %v3012 = vclz %v3011
        %v3013 = vsub.s32 %v3012, 2
        %vm3014 = vcmp.gt.s32.totalorder 0, %v3013
        %v3015 = vsel %vm3014, 0, %v3013
        %v3016 = vsub.s32 32, %v3015
        %v3017 = vshll.u32 %v3008, %v3015
        %v3018 = vshrl.u32 %v3000, %v3016
        %v3019 = vor.u32 %v3017, %v3018
        %v3020 = vsub.s32 4294967266, %v3015
        %v3021 = vadd.s32 %v3020, 127
        %v3022 = vshll.u32 %v3021, 23
        %v3023 = vor.u32 4788187, %v3022
        %v3024 = vand.u32 2147483647, %v3023
        %v3026 = vcvt.s32.f32 %v3019
        %v3027 = vmul.f32 %v3026, %v3024
        %v3028 = vxor.u32 %v3027, 2147483648
        %v3029 = vsel %vm2946, %v3028, %v3027
        %v3030 = vsub.s32 4, %v3006
        %v3031 = vsel %vm2946, %v3030, %v3006
        %v3032 = vsel %vm2945, %v496, %v3029
        %v3033 = vsel %vm2945, 0, %v3031
        %v3034 = vcosq.f32.pop %v3032
        %v3035 = vsinq.f32.pop %v3032
        %vm3036 = vweird.f32 %v496
        %v3037 = vadd.s32 %v3033, 3
        %v3038 = vand.u32 %v3037, 3
        %vm3039 = vcmp.lt.s32.totalorder %v3038, 2
        %vm3040 = vcmp.eq.s32.totalorder %v3038, 0
        %v3041 = vxor.u32 %v3035, 2147483648
        %v3042 = vsel %vm3040, %v3034, %v3041
        %vm3043 = vcmp.eq.s32.totalorder %v3038, 2
        %v3044 = vxor.u32 %v3034, 2147483648
        %v3045 = vsel %vm3043, %v3044, %v3035
        %v3046 = vsel %vm3039, %v3042, %v3045
        %v3047 = vsel %vm3036, nan, %v3046
        %v3048 = vand.u32 2147483647, %v497
        %vm3049 = vcmp.le.f32.partialorder %v3048, 0.7853982
        %vm3050 = vcmp.lt.s32.totalorder %v497, 0
        %v3051 = vand.u32 %v497, 2139095040
        %v3052 = vshrl.u32 %v3051, 23
        %v3053 = vsub.s32 %v3052, 127
        %v3054 = vand.u32 2147483647, %v497
        %v3055 = vand.u32 %v3054, 8388607
        %v3056 = vor.u32 %v3055, 8388608
        %v3057 = vsub.s32 0, %v3056
        %v3058 = vadd.s32 %v3053, 1
        %vm3059 = vcmp.gt.s32.totalorder %v3058, 0
        %v3060 = vsel %vm3059, %v3058, 0
        %v3061 = vshrl.u32 %v3060, 5
        %v3062 = vand.u32 %v3060, 31
        %v3063 = vsub.s32 32, %v3062
        %v3064 = vshrl.u32 683565275, %v3063
        %v3065 = vshll.u32 683565275, %v3062
        %v3066 = vshrl.u32 2475754826, %v3063
        %v3067 = vor.u32 %v3065, %v3066
        %v3068 = vshll.u32 2475754826, %v3062
        %v3069 = vshrl.u32 2131351028, %v3063
        %v3070 = vor.u32 %v3068, %v3069
        %v3071 = vshll.u32 2131351028, %v3062
        %v3072 = vshrl.u32 2102212464, %v3063
        %v3073 = vor.u32 %v3071, %v3072
        %v3074 = vshll.u32 2102212464, %v3062
        %v3075 = vshrl.u32 920167782, %v3063
        %v3076 = vor.u32 %v3074, %v3075
        %v3077 = vshll.u32 920167782, %v3062
        %v3078 = vshrl.u32 1326507024, %v3063
        %v3079 = vor.u32 %v3077, %v3078
        %vm3080 = vcmp.lt.s32.totalorder %v3061, 1
        %vm3081 = vcmp.lt.s32.totalorder %v3061, 2
        %vm3082 = vcmp.lt.s32.totalorder %v3061, 3
        %vm3083 = vcmp.lt.s32.totalorder %v3061, 4
        %v3084 = vsel %vm3080, %v3064, %v3067
        %v3085 = vsel %vm3083, %v3073, 2102212464
        %v3086 = vsel %vm3082, %v3070, %v3085
        %v3087 = vsel %vm3081, %v3084, %v3086
        %v3088 = vsel %vm3080, %v3067, %v3070
        %v3089 = vsel %vm3083, %v3076, 920167782
        %v3090 = vsel %vm3082, %v3073, %v3089
        %v3091 = vsel %vm3081, %v3088, %v3090
        %v3092 = vsel %vm3080, %v3070, %v3073
        %v3093 = vsel %vm3083, %v3079, 1326507024
        %v3094 = vsel %vm3082, %v3076, %v3093
        %v3095 = vsel %vm3081, %v3092, %v3094
        %v3096 = vshll.u32 %v3056, 8
        %v3097 = vmul.u32.u64.compose %v3096, %v3095
        %v3098 = vextract.low.u32 %v3097
        %v3099 = vextract.high.u32 %v3097
        %v3100 = vmul.u32.u64.compose %v3096, %v3091
        %v3101 = vextract.low.u32 %v3100
        %v3102 = vextract.high.u32 %v3100
        %v3103 = vmul.u32 %v3096, %v3087
        %v3104 = vadd.s32 %v3099, %v3101
        %vm3105 = vc.u32 %v3099, %v3101
        %v3106 = vadd.s32 %v3102, 1
        %v3107 = vsel %vm3105, %v3106, %v3102
        %v3108 = vadd.s32 %v3103, %v3107
        %v3109 = vadd.s32 %v3108, 536870912
        %v3110 = vshrl.u32 %v3109, 30
        %v3111 = vshll.u32 %v3110, 30
        %v3112 = vsub.s32 %v3108, %v3111
        %vm3113 = vcmp.lt.s32.totalorder %v3112, 0
        %v3114 = vsub.s32 0, %v3112
        %v3115 = vsel %vm3113, %v3114, %v3112
        %v3116 = vclz %v3115
        %v3117 = vsub.s32 %v3116, 2
        %vm3118 = vcmp.gt.s32.totalorder 0, %v3117
        %v3119 = vsel %vm3118, 0, %v3117
        %v3120 = vsub.s32 32, %v3119
        %v3121 = vshll.u32 %v3112, %v3119
        %v3122 = vshrl.u32 %v3104, %v3120
        %v3123 = vor.u32 %v3121, %v3122
        %v3124 = vsub.s32 4294967266, %v3119
        %v3125 = vadd.s32 %v3124, 127
        %v3126 = vshll.u32 %v3125, 23
        %v3127 = vor.u32 4788187, %v3126
        %v3128 = vand.u32 2147483647, %v3127
        %v3130 = vcvt.s32.f32 %v3123
        %v3131 = vmul.f32 %v3130, %v3128
        %v3132 = vxor.u32 %v3131, 2147483648
        %v3133 = vsel %vm3050, %v3132, %v3131
        %v3134 = vsub.s32 4, %v3110
        %v3135 = vsel %vm3050, %v3134, %v3110
        %v3136 = vsel %vm3049, %v497, %v3133
        %v3137 = vsel %vm3049, 0, %v3135
        %v3138 = vcosq.f32.pop %v3136
        %v3139 = vsinq.f32.pop %v3136
        %vm3140 = vweird.f32 %v497
        %v3141 = vadd.s32 %v3137, 3
        %v3142 = vand.u32 %v3141, 3
        %vm3143 = vcmp.lt.s32.totalorder %v3142, 2
        %vm3144 = vcmp.eq.s32.totalorder %v3142, 0
        %v3145 = vxor.u32 %v3139, 2147483648
        %v3146 = vsel %vm3144, %v3138, %v3145
        %vm3147 = vcmp.eq.s32.totalorder %v3142, 2
        %v3148 = vxor.u32 %v3138, 2147483648
        %v3149 = vsel %vm3147, %v3148, %v3139
        %v3150 = vsel %vm3143, %v3146, %v3149
        %v3151 = vsel %vm3140, nan, %v3150
        %v3152 = vand.u32 2147483647, %v498
        %vm3153 = vcmp.le.f32.partialorder %v3152, 0.7853982
        %vm3154 = vcmp.lt.s32.totalorder %v498, 0
        %v3155 = vand.u32 %v498, 2139095040
        %v3156 = vshrl.u32 %v3155, 23
        %v3157 = vsub.s32 %v3156, 127
        %v3158 = vand.u32 2147483647, %v498
        %v3159 = vand.u32 %v3158, 8388607
        %v3160 = vor.u32 %v3159, 8388608
        %v3161 = vsub.s32 0, %v3160
        %v3162 = vadd.s32 %v3157, 1
        %vm3163 = vcmp.gt.s32.totalorder %v3162, 0
        %v3164 = vsel %vm3163, %v3162, 0
        %v3165 = vshrl.u32 %v3164, 5
        %v3166 = vand.u32 %v3164, 31
        %v3167 = vsub.s32 32, %v3166
        %v3168 = vshrl.u32 683565275, %v3167
        %v3169 = vshll.u32 683565275, %v3166
        %v3170 = vshrl.u32 2475754826, %v3167
        %v3171 = vor.u32 %v3169, %v3170
        %v3172 = vshll.u32 2475754826, %v3166
        %v3173 = vshrl.u32 2131351028, %v3167
        %v3174 = vor.u32 %v3172, %v3173
        %v3175 = vshll.u32 2131351028, %v3166
        %v3176 = vshrl.u32 2102212464, %v3167
        %v3177 = vor.u32 %v3175, %v3176
        %v3178 = vshll.u32 2102212464, %v3166
        %v3179 = vshrl.u32 920167782, %v3167
        %v3180 = vor.u32 %v3178, %v3179
        %v3181 = vshll.u32 920167782, %v3166
        %v3182 = vshrl.u32 1326507024, %v3167
        %v3183 = vor.u32 %v3181, %v3182
        %vm3184 = vcmp.lt.s32.totalorder %v3165, 1
        %vm3185 = vcmp.lt.s32.totalorder %v3165, 2
        %vm3186 = vcmp.lt.s32.totalorder %v3165, 3
        %vm3187 = vcmp.lt.s32.totalorder %v3165, 4
        %v3188 = vsel %vm3184, %v3168, %v3171
        %v3189 = vsel %vm3187, %v3177, 2102212464
        %v3190 = vsel %vm3186, %v3174, %v3189
        %v3191 = vsel %vm3185, %v3188, %v3190
        %v3192 = vsel %vm3184, %v3171, %v3174
        %v3193 = vsel %vm3187, %v3180, 920167782
        %v3194 = vsel %vm3186, %v3177, %v3193
        %v3195 = vsel %vm3185, %v3192, %v3194
        %v3196 = vsel %vm3184, %v3174, %v3177
        %v3197 = vsel %vm3187, %v3183, 1326507024
        %v3198 = vsel %vm3186, %v3180, %v3197
        %v3199 = vsel %vm3185, %v3196, %v3198
        %v3200 = vshll.u32 %v3160, 8
        %v3201 = vmul.u32.u64.compose %v3200, %v3199
        %v3202 = vextract.low.u32 %v3201
        %v3203 = vextract.high.u32 %v3201
        %v3204 = vmul.u32.u64.compose %v3200, %v3195
        %v3205 = vextract.low.u32 %v3204
        %v3206 = vextract.high.u32 %v3204
        %v3207 = vmul.u32 %v3200, %v3191
        %v3208 = vadd.s32 %v3203, %v3205
        %vm3209 = vc.u32 %v3203, %v3205
        %v3210 = vadd.s32 %v3206, 1
        %v3211 = vsel %vm3209, %v3210, %v3206
        %v3212 = vadd.s32 %v3207, %v3211
        %v3213 = vadd.s32 %v3212, 536870912
        %v3214 = vshrl.u32 %v3213, 30
        %v3215 = vshll.u32 %v3214, 30
        %v3216 = vsub.s32 %v3212, %v3215
        %vm3217 = vcmp.lt.s32.totalorder %v3216, 0
        %v3218 = vsub.s32 0, %v3216
        %v3219 = vsel %vm3217, %v3218, %v3216
        %v3220 = vclz %v3219
        %v3221 = vsub.s32 %v3220, 2
        %vm3222 = vcmp.gt.s32.totalorder 0, %v3221
        %v3223 = vsel %vm3222, 0, %v3221
        %v3224 = vsub.s32 32, %v3223
        %v3225 = vshll.u32 %v3216, %v3223
        %v3226 = vshrl.u32 %v3208, %v3224
        %v3227 = vor.u32 %v3225, %v3226
        %v3228 = vsub.s32 4294967266, %v3223
        %v3229 = vadd.s32 %v3228, 127
        %v3230 = vshll.u32 %v3229, 23
        %v3231 = vor.u32 4788187, %v3230
        %v3232 = vand.u32 2147483647, %v3231
        %v3234 = vcvt.s32.f32 %v3227
        %v3235 = vmul.f32 %v3234, %v3232
        %v3236 = vxor.u32 %v3235, 2147483648
        %v3237 = vsel %vm3154, %v3236, %v3235
        %v3238 = vsub.s32 4, %v3214
        %v3239 = vsel %vm3154, %v3238, %v3214
        %v3240 = vsel %vm3153, %v498, %v3237
        %v3241 = vsel %vm3153, 0, %v3239
        %v3242 = vcosq.f32.pop %v3240
        %v3243 = vsinq.f32.pop %v3240
        %vm3244 = vweird.f32 %v498
        %v3245 = vadd.s32 %v3241, 3
        %v3246 = vand.u32 %v3245, 3
        %vm3247 = vcmp.lt.s32.totalorder %v3246, 2
        %vm3248 = vcmp.eq.s32.totalorder %v3246, 0
        %v3249 = vxor.u32 %v3243, 2147483648
        %v3250 = vsel %vm3248, %v3242, %v3249
        %vm3251 = vcmp.eq.s32.totalorder %v3246, 2
        %v3252 = vxor.u32 %v3242, 2147483648
        %v3253 = vsel %vm3251, %v3252, %v3243
        %v3254 = vsel %vm3247, %v3250, %v3253
        %v3255 = vsel %vm3244, nan, %v3254
        %v3256 = vand.u32 2147483647, %v499
        %vm3257 = vcmp.le.f32.partialorder %v3256, 0.7853982
        %vm3258 = vcmp.lt.s32.totalorder %v499, 0
        %v3259 = vand.u32 %v499, 2139095040
        %v3260 = vshrl.u32 %v3259, 23
        %v3261 = vsub.s32 %v3260, 127
        %v3262 = vand.u32 2147483647, %v499
        %v3263 = vand.u32 %v3262, 8388607
        %v3264 = vor.u32 %v3263, 8388608
        %v3265 = vsub.s32 0, %v3264
        %v3266 = vadd.s32 %v3261, 1
        %vm3267 = vcmp.gt.s32.totalorder %v3266, 0
        %v3268 = vsel %vm3267, %v3266, 0
        %v3269 = vshrl.u32 %v3268, 5
        %v3270 = vand.u32 %v3268, 31
        %v3271 = vsub.s32 32, %v3270
        %v3272 = vshrl.u32 683565275, %v3271
        %v3273 = vshll.u32 683565275, %v3270
        %v3274 = vshrl.u32 2475754826, %v3271
        %v3275 = vor.u32 %v3273, %v3274
        %v3276 = vshll.u32 2475754826, %v3270
        %v3277 = vshrl.u32 2131351028, %v3271
        %v3278 = vor.u32 %v3276, %v3277
        %v3279 = vshll.u32 2131351028, %v3270
        %v3280 = vshrl.u32 2102212464, %v3271
        %v3281 = vor.u32 %v3279, %v3280
        %v3282 = vshll.u32 2102212464, %v3270
        %v3283 = vshrl.u32 920167782, %v3271
        %v3284 = vor.u32 %v3282, %v3283
        %v3285 = vshll.u32 920167782, %v3270
        %v3286 = vshrl.u32 1326507024, %v3271
        %v3287 = vor.u32 %v3285, %v3286
        %vm3288 = vcmp.lt.s32.totalorder %v3269, 1
        %vm3289 = vcmp.lt.s32.totalorder %v3269, 2
        %vm3290 = vcmp.lt.s32.totalorder %v3269, 3
        %vm3291 = vcmp.lt.s32.totalorder %v3269, 4
        %v3292 = vsel %vm3288, %v3272, %v3275
        %v3293 = vsel %vm3291, %v3281, 2102212464
        %v3294 = vsel %vm3290, %v3278, %v3293
        %v3295 = vsel %vm3289, %v3292, %v3294
        %v3296 = vsel %vm3288, %v3275, %v3278
        %v3297 = vsel %vm3291, %v3284, 920167782
        %v3298 = vsel %vm3290, %v3281, %v3297
        %v3299 = vsel %vm3289, %v3296, %v3298
        %v3300 = vsel %vm3288, %v3278, %v3281
        %v3301 = vsel %vm3291, %v3287, 1326507024
        %v3302 = vsel %vm3290, %v3284, %v3301
        %v3303 = vsel %vm3289, %v3300, %v3302
        %v3304 = vshll.u32 %v3264, 8
        %v3305 = vmul.u32.u64.compose %v3304, %v3303
        %v3306 = vextract.low.u32 %v3305
        %v3307 = vextract.high.u32 %v3305
        %v3308 = vmul.u32.u64.compose %v3304, %v3299
        %v3309 = vextract.low.u32 %v3308
        %v3310 = vextract.high.u32 %v3308
        %v3311 = vmul.u32 %v3304, %v3295
        %v3312 = vadd.s32 %v3307, %v3309
        %vm3313 = vc.u32 %v3307, %v3309
        %v3314 = vadd.s32 %v3310, 1
        %v3315 = vsel %vm3313, %v3314, %v3310
        %v3316 = vadd.s32 %v3311, %v3315
        %v3317 = vadd.s32 %v3316, 536870912
        %v3318 = vshrl.u32 %v3317, 30
        %v3319 = vshll.u32 %v3318, 30
        %v3320 = vsub.s32 %v3316, %v3319
        %vm3321 = vcmp.lt.s32.totalorder %v3320, 0
        %v3322 = vsub.s32 0, %v3320
        %v3323 = vsel %vm3321, %v3322, %v3320
        %v3324 = vclz %v3323
        %v3325 = vsub.s32 %v3324, 2
        %vm3326 = vcmp.gt.s32.totalorder 0, %v3325
        %v3327 = vsel %vm3326, 0, %v3325
        %v3328 = vsub.s32 32, %v3327
        %v3329 = vshll.u32 %v3320, %v3327
        %v3330 = vshrl.u32 %v3312, %v3328
        %v3331 = vor.u32 %v3329, %v3330
        %v3332 = vsub.s32 4294967266, %v3327
        %v3333 = vadd.s32 %v3332, 127
        %v3334 = vshll.u32 %v3333, 23
        %v3335 = vor.u32 4788187, %v3334
        %v3336 = vand.u32 2147483647, %v3335
        %v3338 = vcvt.s32.f32 %v3331
        %v3339 = vmul.f32 %v3338, %v3336
        %v3340 = vxor.u32 %v3339, 2147483648
        %v3341 = vsel %vm3258, %v3340, %v3339
        %v3342 = vsub.s32 4, %v3318
        %v3343 = vsel %vm3258, %v3342, %v3318
        %v3344 = vsel %vm3257, %v499, %v3341
        %v3345 = vsel %vm3257, 0, %v3343
        %v3346 = vcosq.f32.pop %v3344
        %v3347 = vsinq.f32.pop %v3344
        %vm3348 = vweird.f32 %v499
        %v3349 = vadd.s32 %v3345, 3
        %v3350 = vand.u32 %v3349, 3
        %vm3351 = vcmp.lt.s32.totalorder %v3350, 2
        %vm3352 = vcmp.eq.s32.totalorder %v3350, 0
        %v3353 = vxor.u32 %v3347, 2147483648
        %v3354 = vsel %vm3352, %v3346, %v3353
        %vm3355 = vcmp.eq.s32.totalorder %v3350, 2
        %v3356 = vxor.u32 %v3346, 2147483648
        %v3357 = vsel %vm3355, %v3356, %v3347
        %v3358 = vsel %vm3351, %v3354, %v3357
        %v3359 = vsel %vm3348, nan, %v3358
        %v3360 = vand.u32 2147483647, %v500
        %vm3361 = vcmp.le.f32.partialorder %v3360, 0.7853982
        %vm3362 = vcmp.lt.s32.totalorder %v500, 0
        %v3363 = vand.u32 %v500, 2139095040
        %v3364 = vshrl.u32 %v3363, 23
        %v3365 = vsub.s32 %v3364, 127
        %v3366 = vand.u32 2147483647, %v500
        %v3367 = vand.u32 %v3366, 8388607
        %v3368 = vor.u32 %v3367, 8388608
        %v3369 = vsub.s32 0, %v3368
        %v3370 = vadd.s32 %v3365, 1
        %vm3371 = vcmp.gt.s32.totalorder %v3370, 0
        %v3372 = vsel %vm3371, %v3370, 0
        %v3373 = vshrl.u32 %v3372, 5
        %v3374 = vand.u32 %v3372, 31
        %v3375 = vsub.s32 32, %v3374
        %v3376 = vshrl.u32 683565275, %v3375
        %v3377 = vshll.u32 683565275, %v3374
        %v3378 = vshrl.u32 2475754826, %v3375
        %v3379 = vor.u32 %v3377, %v3378
        %v3380 = vshll.u32 2475754826, %v3374
        %v3381 = vshrl.u32 2131351028, %v3375
        %v3382 = vor.u32 %v3380, %v3381
        %v3383 = vshll.u32 2131351028, %v3374
        %v3384 = vshrl.u32 2102212464, %v3375
        %v3385 = vor.u32 %v3383, %v3384
        %v3386 = vshll.u32 2102212464, %v3374
        %v3387 = vshrl.u32 920167782, %v3375
        %v3388 = vor.u32 %v3386, %v3387
        %v3389 = vshll.u32 920167782, %v3374
        %v3390 = vshrl.u32 1326507024, %v3375
        %v3391 = vor.u32 %v3389, %v3390
        %vm3392 = vcmp.lt.s32.totalorder %v3373, 1
        %vm3393 = vcmp.lt.s32.totalorder %v3373, 2
        %vm3394 = vcmp.lt.s32.totalorder %v3373, 3
        %vm3395 = vcmp.lt.s32.totalorder %v3373, 4
        %v3396 = vsel %vm3392, %v3376, %v3379
        %v3397 = vsel %vm3395, %v3385, 2102212464
        %v3398 = vsel %vm3394, %v3382, %v3397
        %v3399 = vsel %vm3393, %v3396, %v3398
        %v3400 = vsel %vm3392, %v3379, %v3382
        %v3401 = vsel %vm3395, %v3388, 920167782
        %v3402 = vsel %vm3394, %v3385, %v3401
        %v3403 = vsel %vm3393, %v3400, %v3402
        %v3404 = vsel %vm3392, %v3382, %v3385
        %v3405 = vsel %vm3395, %v3391, 1326507024
        %v3406 = vsel %vm3394, %v3388, %v3405
        %v3407 = vsel %vm3393, %v3404, %v3406
        %v3408 = vshll.u32 %v3368, 8
        %v3409 = vmul.u32.u64.compose %v3408, %v3407
        %v3410 = vextract.low.u32 %v3409
        %v3411 = vextract.high.u32 %v3409
        %v3412 = vmul.u32.u64.compose %v3408, %v3403
        %v3413 = vextract.low.u32 %v3412
        %v3414 = vextract.high.u32 %v3412
        %v3415 = vmul.u32 %v3408, %v3399
        %v3416 = vadd.s32 %v3411, %v3413
        %vm3417 = vc.u32 %v3411, %v3413
        %v3418 = vadd.s32 %v3414, 1
        %v3419 = vsel %vm3417, %v3418, %v3414
        %v3420 = vadd.s32 %v3415, %v3419
        %v3421 = vadd.s32 %v3420, 536870912
        %v3422 = vshrl.u32 %v3421, 30
        %v3423 = vshll.u32 %v3422, 30
        %v3424 = vsub.s32 %v3420, %v3423
        %vm3425 = vcmp.lt.s32.totalorder %v3424, 0
        %v3426 = vsub.s32 0, %v3424
        %v3427 = vsel %vm3425, %v3426, %v3424
        %v3428 = vclz %v3427
        %v3429 = vsub.s32 %v3428, 2
        %vm3430 = vcmp.gt.s32.totalorder 0, %v3429
        %v3431 = vsel %vm3430, 0, %v3429
        %v3432 = vsub.s32 32, %v3431
        %v3433 = vshll.u32 %v3424, %v3431
        %v3434 = vshrl.u32 %v3416, %v3432
        %v3435 = vor.u32 %v3433, %v3434
        %v3436 = vsub.s32 4294967266, %v3431
        %v3437 = vadd.s32 %v3436, 127
        %v3438 = vshll.u32 %v3437, 23
        %v3439 = vor.u32 4788187, %v3438
        %v3440 = vand.u32 2147483647, %v3439
        %v3442 = vcvt.s32.f32 %v3435
        %v3443 = vmul.f32 %v3442, %v3440
        %v3444 = vxor.u32 %v3443, 2147483648
        %v3445 = vsel %vm3362, %v3444, %v3443
        %v3446 = vsub.s32 4, %v3422
        %v3447 = vsel %vm3362, %v3446, %v3422
        %v3448 = vsel %vm3361, %v500, %v3445
        %v3449 = vsel %vm3361, 0, %v3447
        %v3450 = vcosq.f32.pop %v3448
        %v3451 = vsinq.f32.pop %v3448
        %vm3452 = vweird.f32 %v500
        %v3453 = vadd.s32 %v3449, 3
        %v3454 = vand.u32 %v3453, 3
        %vm3455 = vcmp.lt.s32.totalorder %v3454, 2
        %vm3456 = vcmp.eq.s32.totalorder %v3454, 0
        %v3457 = vxor.u32 %v3451, 2147483648
        %v3458 = vsel %vm3456, %v3450, %v3457
        %vm3459 = vcmp.eq.s32.totalorder %v3454, 2
        %v3460 = vxor.u32 %v3450, 2147483648
        %v3461 = vsel %vm3459, %v3460, %v3451
        %v3462 = vsel %vm3455, %v3458, %v3461
        %v3463 = vsel %vm3452, nan, %v3462
        %v3464 = vand.u32 2147483647, %v501
        %vm3465 = vcmp.le.f32.partialorder %v3464, 0.7853982
        %vm3466 = vcmp.lt.s32.totalorder %v501, 0
        %v3467 = vand.u32 %v501, 2139095040
        %v3468 = vshrl.u32 %v3467, 23
        %v3469 = vsub.s32 %v3468, 127
        %v3470 = vand.u32 2147483647, %v501
        %v3471 = vand.u32 %v3470, 8388607
        %v3472 = vor.u32 %v3471, 8388608
        %v3473 = vsub.s32 0, %v3472
        %v3474 = vadd.s32 %v3469, 1
        %vm3475 = vcmp.gt.s32.totalorder %v3474, 0
        %v3476 = vsel %vm3475, %v3474, 0
        %v3477 = vshrl.u32 %v3476, 5
        %v3478 = vand.u32 %v3476, 31
        %v3479 = vsub.s32 32, %v3478
        %v3480 = vshrl.u32 683565275, %v3479
        %v3481 = vshll.u32 683565275, %v3478
        %v3482 = vshrl.u32 2475754826, %v3479
        %v3483 = vor.u32 %v3481, %v3482
        %v3484 = vshll.u32 2475754826, %v3478
        %v3485 = vshrl.u32 2131351028, %v3479
        %v3486 = vor.u32 %v3484, %v3485
        %v3487 = vshll.u32 2131351028, %v3478
        %v3488 = vshrl.u32 2102212464, %v3479
        %v3489 = vor.u32 %v3487, %v3488
        %v3490 = vshll.u32 2102212464, %v3478
        %v3491 = vshrl.u32 920167782, %v3479
        %v3492 = vor.u32 %v3490, %v3491
        %v3493 = vshll.u32 920167782, %v3478
        %v3494 = vshrl.u32 1326507024, %v3479
        %v3495 = vor.u32 %v3493, %v3494
        %vm3496 = vcmp.lt.s32.totalorder %v3477, 1
        %vm3497 = vcmp.lt.s32.totalorder %v3477, 2
        %vm3498 = vcmp.lt.s32.totalorder %v3477, 3
        %vm3499 = vcmp.lt.s32.totalorder %v3477, 4
        %v3500 = vsel %vm3496, %v3480, %v3483
        %v3501 = vsel %vm3499, %v3489, 2102212464
        %v3502 = vsel %vm3498, %v3486, %v3501
        %v3503 = vsel %vm3497, %v3500, %v3502
        %v3504 = vsel %vm3496, %v3483, %v3486
        %v3505 = vsel %vm3499, %v3492, 920167782
        %v3506 = vsel %vm3498, %v3489, %v3505
        %v3507 = vsel %vm3497, %v3504, %v3506
        %v3508 = vsel %vm3496, %v3486, %v3489
        %v3509 = vsel %vm3499, %v3495, 1326507024
        %v3510 = vsel %vm3498, %v3492, %v3509
        %v3511 = vsel %vm3497, %v3508, %v3510
        %v3512 = vshll.u32 %v3472, 8
        %v3513 = vmul.u32.u64.compose %v3512, %v3511
        %v3514 = vextract.low.u32 %v3513
        %v3515 = vextract.high.u32 %v3513
        %v3516 = vmul.u32.u64.compose %v3512, %v3507
        %v3517 = vextract.low.u32 %v3516
        %v3518 = vextract.high.u32 %v3516
        %v3519 = vmul.u32 %v3512, %v3503
        %v3520 = vadd.s32 %v3515, %v3517
        %vm3521 = vc.u32 %v3515, %v3517
        %v3522 = vadd.s32 %v3518, 1
        %v3523 = vsel %vm3521, %v3522, %v3518
        %v3524 = vadd.s32 %v3519, %v3523
        %v3525 = vadd.s32 %v3524, 536870912
        %v3526 = vshrl.u32 %v3525, 30
        %v3527 = vshll.u32 %v3526, 30
        %v3528 = vsub.s32 %v3524, %v3527
        %vm3529 = vcmp.lt.s32.totalorder %v3528, 0
        %v3530 = vsub.s32 0, %v3528
        %v3531 = vsel %vm3529, %v3530, %v3528
        %v3532 = vclz %v3531
        %v3533 = vsub.s32 %v3532, 2
        %vm3534 = vcmp.gt.s32.totalorder 0, %v3533
        %v3535 = vsel %vm3534, 0, %v3533
        %v3536 = vsub.s32 32, %v3535
        %v3537 = vshll.u32 %v3528, %v3535
        %v3538 = vshrl.u32 %v3520, %v3536
        %v3539 = vor.u32 %v3537, %v3538
        %v3540 = vsub.s32 4294967266, %v3535
        %v3541 = vadd.s32 %v3540, 127
        %v3542 = vshll.u32 %v3541, 23
        %v3543 = vor.u32 4788187, %v3542
        %v3544 = vand.u32 2147483647, %v3543
        %v3546 = vcvt.s32.f32 %v3539
        %v3547 = vmul.f32 %v3546, %v3544
        %v3548 = vxor.u32 %v3547, 2147483648
        %v3549 = vsel %vm3466, %v3548, %v3547
        %v3550 = vsub.s32 4, %v3526
        %v3551 = vsel %vm3466, %v3550, %v3526
        %v3552 = vsel %vm3465, %v501, %v3549
        %v3553 = vsel %vm3465, 0, %v3551
        %v3554 = vcosq.f32.pop %v3552
        %v3555 = vsinq.f32.pop %v3552
        %vm3556 = vweird.f32 %v501
        %v3557 = vadd.s32 %v3553, 3
        %v3558 = vand.u32 %v3557, 3
        %vm3559 = vcmp.lt.s32.totalorder %v3558, 2
        %vm3560 = vcmp.eq.s32.totalorder %v3558, 0
        %v3561 = vxor.u32 %v3555, 2147483648
        %v3562 = vsel %vm3560, %v3554, %v3561
        %vm3563 = vcmp.eq.s32.totalorder %v3558, 2
        %v3564 = vxor.u32 %v3554, 2147483648
        %v3565 = vsel %vm3563, %v3564, %v3555
        %v3566 = vsel %vm3559, %v3562, %v3565
        %v3567 = vsel %vm3556, nan, %v3566
        %v3568 = vand.u32 2147483647, %v502
        %vm3569 = vcmp.le.f32.partialorder %v3568, 0.7853982
        %vm3570 = vcmp.lt.s32.totalorder %v502, 0
        %v3571 = vand.u32 %v502, 2139095040
        %v3572 = vshrl.u32 %v3571, 23
        %v3573 = vsub.s32 %v3572, 127
        %v3574 = vand.u32 2147483647, %v502
        %v3575 = vand.u32 %v3574, 8388607
        %v3576 = vor.u32 %v3575, 8388608
        %v3577 = vsub.s32 0, %v3576
        %v3578 = vadd.s32 %v3573, 1
        %vm3579 = vcmp.gt.s32.totalorder %v3578, 0
        %v3580 = vsel %vm3579, %v3578, 0
        %v3581 = vshrl.u32 %v3580, 5
        %v3582 = vand.u32 %v3580, 31
        %v3583 = vsub.s32 32, %v3582
        %v3584 = vshrl.u32 683565275, %v3583
        %v3585 = vshll.u32 683565275, %v3582
        %v3586 = vshrl.u32 2475754826, %v3583
        %v3587 = vor.u32 %v3585, %v3586
        %v3588 = vshll.u32 2475754826, %v3582
        %v3589 = vshrl.u32 2131351028, %v3583
        %v3590 = vor.u32 %v3588, %v3589
        %v3591 = vshll.u32 2131351028, %v3582
        %v3592 = vshrl.u32 2102212464, %v3583
        %v3593 = vor.u32 %v3591, %v3592
        %v3594 = vshll.u32 2102212464, %v3582
        %v3595 = vshrl.u32 920167782, %v3583
        %v3596 = vor.u32 %v3594, %v3595
        %v3597 = vshll.u32 920167782, %v3582
        %v3598 = vshrl.u32 1326507024, %v3583
        %v3599 = vor.u32 %v3597, %v3598
        %vm3600 = vcmp.lt.s32.totalorder %v3581, 1
        %vm3601 = vcmp.lt.s32.totalorder %v3581, 2
        %vm3602 = vcmp.lt.s32.totalorder %v3581, 3
        %vm3603 = vcmp.lt.s32.totalorder %v3581, 4
        %v3604 = vsel %vm3600, %v3584, %v3587
        %v3605 = vsel %vm3603, %v3593, 2102212464
        %v3606 = vsel %vm3602, %v3590, %v3605
        %v3607 = vsel %vm3601, %v3604, %v3606
        %v3608 = vsel %vm3600, %v3587, %v3590
        %v3609 = vsel %vm3603, %v3596, 920167782
        %v3610 = vsel %vm3602, %v3593, %v3609
        %v3611 = vsel %vm3601, %v3608, %v3610
        %v3612 = vsel %vm3600, %v3590, %v3593
        %v3613 = vsel %vm3603, %v3599, 1326507024
        %v3614 = vsel %vm3602, %v3596, %v3613
        %v3615 = vsel %vm3601, %v3612, %v3614
        %v3616 = vshll.u32 %v3576, 8
        %v3617 = vmul.u32.u64.compose %v3616, %v3615
        %v3618 = vextract.low.u32 %v3617
        %v3619 = vextract.high.u32 %v3617
        %v3620 = vmul.u32.u64.compose %v3616, %v3611
        %v3621 = vextract.low.u32 %v3620
        %v3622 = vextract.high.u32 %v3620
        %v3623 = vmul.u32 %v3616, %v3607
        %v3624 = vadd.s32 %v3619, %v3621
        %vm3625 = vc.u32 %v3619, %v3621
        %v3626 = vadd.s32 %v3622, 1
        %v3627 = vsel %vm3625, %v3626, %v3622
        %v3628 = vadd.s32 %v3623, %v3627
        %v3629 = vadd.s32 %v3628, 536870912
        %v3630 = vshrl.u32 %v3629, 30
        %v3631 = vshll.u32 %v3630, 30
        %v3632 = vsub.s32 %v3628, %v3631
        %vm3633 = vcmp.lt.s32.totalorder %v3632, 0
        %v3634 = vsub.s32 0, %v3632
        %v3635 = vsel %vm3633, %v3634, %v3632
        %v3636 = vclz %v3635
        %v3637 = vsub.s32 %v3636, 2
        %vm3638 = vcmp.gt.s32.totalorder 0, %v3637
        %v3639 = vsel %vm3638, 0, %v3637
        %v3640 = vsub.s32 32, %v3639
        %v3641 = vshll.u32 %v3632, %v3639
        %v3642 = vshrl.u32 %v3624, %v3640
        %v3643 = vor.u32 %v3641, %v3642
        %v3644 = vsub.s32 4294967266, %v3639
        %v3645 = vadd.s32 %v3644, 127
        %v3646 = vshll.u32 %v3645, 23
        %v3647 = vor.u32 4788187, %v3646
        %v3648 = vand.u32 2147483647, %v3647
        %v3650 = vcvt.s32.f32 %v3643
        %v3651 = vmul.f32 %v3650, %v3648
        %v3652 = vxor.u32 %v3651, 2147483648
        %v3653 = vsel %vm3570, %v3652, %v3651
        %v3654 = vsub.s32 4, %v3630
        %v3655 = vsel %vm3570, %v3654, %v3630
        %v3656 = vsel %vm3569, %v502, %v3653
        %v3657 = vsel %vm3569, 0, %v3655
        %v3658 = vcosq.f32.pop %v3656
        %v3659 = vsinq.f32.pop %v3656
        %vm3660 = vweird.f32 %v502
        %v3661 = vadd.s32 %v3657, 3
        %v3662 = vand.u32 %v3661, 3
        %vm3663 = vcmp.lt.s32.totalorder %v3662, 2
        %vm3664 = vcmp.eq.s32.totalorder %v3662, 0
        %v3665 = vxor.u32 %v3659, 2147483648
        %v3666 = vsel %vm3664, %v3658, %v3665
        %vm3667 = vcmp.eq.s32.totalorder %v3662, 2
        %v3668 = vxor.u32 %v3658, 2147483648
        %v3669 = vsel %vm3667, %v3668, %v3659
        %v3670 = vsel %vm3663, %v3666, %v3669
        %v3671 = vsel %vm3660, nan, %v3670
        %v3672 = vand.u32 2147483647, %v503
        %vm3673 = vcmp.le.f32.partialorder %v3672, 0.7853982
        %vm3674 = vcmp.lt.s32.totalorder %v503, 0
        %v3675 = vand.u32 %v503, 2139095040
        %v3676 = vshrl.u32 %v3675, 23
        %v3677 = vsub.s32 %v3676, 127
        %v3678 = vand.u32 2147483647, %v503
        %v3679 = vand.u32 %v3678, 8388607
        %v3680 = vor.u32 %v3679, 8388608
        %v3681 = vsub.s32 0, %v3680
        %v3682 = vadd.s32 %v3677, 1
        %vm3683 = vcmp.gt.s32.totalorder %v3682, 0
        %v3684 = vsel %vm3683, %v3682, 0
        %v3685 = vshrl.u32 %v3684, 5
        %v3686 = vand.u32 %v3684, 31
        %v3687 = vsub.s32 32, %v3686
        %v3688 = vshrl.u32 683565275, %v3687
        %v3689 = vshll.u32 683565275, %v3686
        %v3690 = vshrl.u32 2475754826, %v3687
        %v3691 = vor.u32 %v3689, %v3690
        %v3692 = vshll.u32 2475754826, %v3686
        %v3693 = vshrl.u32 2131351028, %v3687
        %v3694 = vor.u32 %v3692, %v3693
        %v3695 = vshll.u32 2131351028, %v3686
        %v3696 = vshrl.u32 2102212464, %v3687
        %v3697 = vor.u32 %v3695, %v3696
        %v3698 = vshll.u32 2102212464, %v3686
        %v3699 = vshrl.u32 920167782, %v3687
        %v3700 = vor.u32 %v3698, %v3699
        %v3701 = vshll.u32 920167782, %v3686
        %v3702 = vshrl.u32 1326507024, %v3687
        %v3703 = vor.u32 %v3701, %v3702
        %vm3704 = vcmp.lt.s32.totalorder %v3685, 1
        %vm3705 = vcmp.lt.s32.totalorder %v3685, 2
        %vm3706 = vcmp.lt.s32.totalorder %v3685, 3
        %vm3707 = vcmp.lt.s32.totalorder %v3685, 4
        %v3708 = vsel %vm3704, %v3688, %v3691
        %v3709 = vsel %vm3707, %v3697, 2102212464
        %v3710 = vsel %vm3706, %v3694, %v3709
        %v3711 = vsel %vm3705, %v3708, %v3710
        %v3712 = vsel %vm3704, %v3691, %v3694
        %v3713 = vsel %vm3707, %v3700, 920167782
        %v3714 = vsel %vm3706, %v3697, %v3713
        %v3715 = vsel %vm3705, %v3712, %v3714
        %v3716 = vsel %vm3704, %v3694, %v3697
        %v3717 = vsel %vm3707, %v3703, 1326507024
        %v3718 = vsel %vm3706, %v3700, %v3717
        %v3719 = vsel %vm3705, %v3716, %v3718
        %v3720 = vshll.u32 %v3680, 8
        %v3721 = vmul.u32.u64.compose %v3720, %v3719
        %v3722 = vextract.low.u32 %v3721
        %v3723 = vextract.high.u32 %v3721
        %v3724 = vmul.u32.u64.compose %v3720, %v3715
        %v3725 = vextract.low.u32 %v3724
        %v3726 = vextract.high.u32 %v3724
        %v3727 = vmul.u32 %v3720, %v3711
        %v3728 = vadd.s32 %v3723, %v3725
        %vm3729 = vc.u32 %v3723, %v3725
        %v3730 = vadd.s32 %v3726, 1
        %v3731 = vsel %vm3729, %v3730, %v3726
        %v3732 = vadd.s32 %v3727, %v3731
        %v3733 = vadd.s32 %v3732, 536870912
        %v3734 = vshrl.u32 %v3733, 30
        %v3735 = vshll.u32 %v3734, 30
        %v3736 = vsub.s32 %v3732, %v3735
        %vm3737 = vcmp.lt.s32.totalorder %v3736, 0
        %v3738 = vsub.s32 0, %v3736
        %v3739 = vsel %vm3737, %v3738, %v3736
        %v3740 = vclz %v3739
        %v3741 = vsub.s32 %v3740, 2
        %vm3742 = vcmp.gt.s32.totalorder 0, %v3741
        %v3743 = vsel %vm3742, 0, %v3741
        %v3744 = vsub.s32 32, %v3743
        %v3745 = vshll.u32 %v3736, %v3743
        %v3746 = vshrl.u32 %v3728, %v3744
        %v3747 = vor.u32 %v3745, %v3746
        %v3748 = vsub.s32 4294967266, %v3743
        %v3749 = vadd.s32 %v3748, 127
        %v3750 = vshll.u32 %v3749, 23
        %v3751 = vor.u32 4788187, %v3750
        %v3752 = vand.u32 2147483647, %v3751
        %v3754 = vcvt.s32.f32 %v3747
        %v3755 = vmul.f32 %v3754, %v3752
        %v3756 = vxor.u32 %v3755, 2147483648
        %v3757 = vsel %vm3674, %v3756, %v3755
        %v3758 = vsub.s32 4, %v3734
        %v3759 = vsel %vm3674, %v3758, %v3734
        %v3760 = vsel %vm3673, %v503, %v3757
        %v3761 = vsel %vm3673, 0, %v3759
        %v3762 = vcosq.f32.pop %v3760
        %v3763 = vsinq.f32.pop %v3760
        %vm3764 = vweird.f32 %v503
        %v3765 = vadd.s32 %v3761, 3
        %v3766 = vand.u32 %v3765, 3
        %vm3767 = vcmp.lt.s32.totalorder %v3766, 2
        %vm3768 = vcmp.eq.s32.totalorder %v3766, 0
        %v3769 = vxor.u32 %v3763, 2147483648
        %v3770 = vsel %vm3768, %v3762, %v3769
        %vm3771 = vcmp.eq.s32.totalorder %v3766, 2
        %v3772 = vxor.u32 %v3762, 2147483648
        %v3773 = vsel %vm3771, %v3772, %v3763
        %v3774 = vsel %vm3767, %v3770, %v3773
        %v3775 = vsel %vm3764, nan, %v3774
        %v3776 = vand.u32 2147483647, %v504
        %vm3777 = vcmp.le.f32.partialorder %v3776, 0.7853982
        %vm3778 = vcmp.lt.s32.totalorder %v504, 0
        %v3779 = vand.u32 %v504, 2139095040
        %v3780 = vshrl.u32 %v3779, 23
        %v3781 = vsub.s32 %v3780, 127
        %v3782 = vand.u32 2147483647, %v504
        %v3783 = vand.u32 %v3782, 8388607
        %v3784 = vor.u32 %v3783, 8388608
        %v3785 = vsub.s32 0, %v3784
        %v3786 = vadd.s32 %v3781, 1
        %vm3787 = vcmp.gt.s32.totalorder %v3786, 0
        %v3788 = vsel %vm3787, %v3786, 0
        %v3789 = vshrl.u32 %v3788, 5
        %v3790 = vand.u32 %v3788, 31
        %v3791 = vsub.s32 32, %v3790
        %v3792 = vshrl.u32 683565275, %v3791
        %v3793 = vshll.u32 683565275, %v3790
        %v3794 = vshrl.u32 2475754826, %v3791
        %v3795 = vor.u32 %v3793, %v3794
        %v3796 = vshll.u32 2475754826, %v3790
        %v3797 = vshrl.u32 2131351028, %v3791
        %v3798 = vor.u32 %v3796, %v3797
        %v3799 = vshll.u32 2131351028, %v3790
        %v3800 = vshrl.u32 2102212464, %v3791
        %v3801 = vor.u32 %v3799, %v3800
        %v3802 = vshll.u32 2102212464, %v3790
        %v3803 = vshrl.u32 920167782, %v3791
        %v3804 = vor.u32 %v3802, %v3803
        %v3805 = vshll.u32 920167782, %v3790
        %v3806 = vshrl.u32 1326507024, %v3791
        %v3807 = vor.u32 %v3805, %v3806
        %vm3808 = vcmp.lt.s32.totalorder %v3789, 1
        %vm3809 = vcmp.lt.s32.totalorder %v3789, 2
        %vm3810 = vcmp.lt.s32.totalorder %v3789, 3
        %vm3811 = vcmp.lt.s32.totalorder %v3789, 4
        %v3812 = vsel %vm3808, %v3792, %v3795
        %v3813 = vsel %vm3811, %v3801, 2102212464
        %v3814 = vsel %vm3810, %v3798, %v3813
        %v3815 = vsel %vm3809, %v3812, %v3814
        %v3816 = vsel %vm3808, %v3795, %v3798
        %v3817 = vsel %vm3811, %v3804, 920167782
        %v3818 = vsel %vm3810, %v3801, %v3817
        %v3819 = vsel %vm3809, %v3816, %v3818
        %v3820 = vsel %vm3808, %v3798, %v3801
        %v3821 = vsel %vm3811, %v3807, 1326507024
        %v3822 = vsel %vm3810, %v3804, %v3821
        %v3823 = vsel %vm3809, %v3820, %v3822
        %v3824 = vshll.u32 %v3784, 8
        %v3825 = vmul.u32.u64.compose %v3824, %v3823
        %v3826 = vextract.low.u32 %v3825
        %v3827 = vextract.high.u32 %v3825
        %v3828 = vmul.u32.u64.compose %v3824, %v3819
        %v3829 = vextract.low.u32 %v3828
        %v3830 = vextract.high.u32 %v3828
        %v3831 = vmul.u32 %v3824, %v3815
        %v3832 = vadd.s32 %v3827, %v3829
        %vm3833 = vc.u32 %v3827, %v3829
        %v3834 = vadd.s32 %v3830, 1
        %v3835 = vsel %vm3833, %v3834, %v3830
        %v3836 = vadd.s32 %v3831, %v3835
        %v3837 = vadd.s32 %v3836, 536870912
        %v3838 = vshrl.u32 %v3837, 30
        %v3839 = vshll.u32 %v3838, 30
        %v3840 = vsub.s32 %v3836, %v3839
        %vm3841 = vcmp.lt.s32.totalorder %v3840, 0
        %v3842 = vsub.s32 0, %v3840
        %v3843 = vsel %vm3841, %v3842, %v3840
        %v3844 = vclz %v3843
        %v3845 = vsub.s32 %v3844, 2
        %vm3846 = vcmp.gt.s32.totalorder 0, %v3845
        %v3847 = vsel %vm3846, 0, %v3845
        %v3848 = vsub.s32 32, %v3847
        %v3849 = vshll.u32 %v3840, %v3847
        %v3850 = vshrl.u32 %v3832, %v3848
        %v3851 = vor.u32 %v3849, %v3850
        %v3852 = vsub.s32 4294967266, %v3847
        %v3853 = vadd.s32 %v3852, 127
        %v3854 = vshll.u32 %v3853, 23
        %v3855 = vor.u32 4788187, %v3854
        %v3856 = vand.u32 2147483647, %v3855
        %v3858 = vcvt.s32.f32 %v3851
        %v3859 = vmul.f32 %v3858, %v3856
        %v3860 = vxor.u32 %v3859, 2147483648
        %v3861 = vsel %vm3778, %v3860, %v3859
        %v3862 = vsub.s32 4, %v3838
        %v3863 = vsel %vm3778, %v3862, %v3838
        %v3864 = vsel %vm3777, %v504, %v3861
        %v3865 = vsel %vm3777, 0, %v3863
        %v3866 = vcosq.f32.pop %v3864
        %v3867 = vsinq.f32.pop %v3864
        %vm3868 = vweird.f32 %v504
        %v3869 = vadd.s32 %v3865, 3
        %v3870 = vand.u32 %v3869, 3
        %vm3871 = vcmp.lt.s32.totalorder %v3870, 2
        %vm3872 = vcmp.eq.s32.totalorder %v3870, 0
        %v3873 = vxor.u32 %v3867, 2147483648
        %v3874 = vsel %vm3872, %v3866, %v3873
        %vm3875 = vcmp.eq.s32.totalorder %v3870, 2
        %v3876 = vxor.u32 %v3866, 2147483648
        %v3877 = vsel %vm3875, %v3876, %v3867
        %v3878 = vsel %vm3871, %v3874, %v3877
        %v3879 = vsel %vm3868, nan, %v3878
        %v3880 = vand.u32 2147483647, %v505
        %vm3881 = vcmp.le.f32.partialorder %v3880, 0.7853982
        %vm3882 = vcmp.lt.s32.totalorder %v505, 0
        %v3883 = vand.u32 %v505, 2139095040
        %v3884 = vshrl.u32 %v3883, 23
        %v3885 = vsub.s32 %v3884, 127
        %v3886 = vand.u32 2147483647, %v505
        %v3887 = vand.u32 %v3886, 8388607
        %v3888 = vor.u32 %v3887, 8388608
        %v3889 = vsub.s32 0, %v3888
        %v3890 = vadd.s32 %v3885, 1
        %vm3891 = vcmp.gt.s32.totalorder %v3890, 0
        %v3892 = vsel %vm3891, %v3890, 0
        %v3893 = vshrl.u32 %v3892, 5
        %v3894 = vand.u32 %v3892, 31
        %v3895 = vsub.s32 32, %v3894
        %v3896 = vshrl.u32 683565275, %v3895
        %v3897 = vshll.u32 683565275, %v3894
        %v3898 = vshrl.u32 2475754826, %v3895
        %v3899 = vor.u32 %v3897, %v3898
        %v3900 = vshll.u32 2475754826, %v3894
        %v3901 = vshrl.u32 2131351028, %v3895
        %v3902 = vor.u32 %v3900, %v3901
        %v3903 = vshll.u32 2131351028, %v3894
        %v3904 = vshrl.u32 2102212464, %v3895
        %v3905 = vor.u32 %v3903, %v3904
        %v3906 = vshll.u32 2102212464, %v3894
        %v3907 = vshrl.u32 920167782, %v3895
        %v3908 = vor.u32 %v3906, %v3907
        %v3909 = vshll.u32 920167782, %v3894
        %v3910 = vshrl.u32 1326507024, %v3895
        %v3911 = vor.u32 %v3909, %v3910
        %vm3912 = vcmp.lt.s32.totalorder %v3893, 1
        %vm3913 = vcmp.lt.s32.totalorder %v3893, 2
        %vm3914 = vcmp.lt.s32.totalorder %v3893, 3
        %vm3915 = vcmp.lt.s32.totalorder %v3893, 4
        %v3916 = vsel %vm3912, %v3896, %v3899
        %v3917 = vsel %vm3915, %v3905, 2102212464
        %v3918 = vsel %vm3914, %v3902, %v3917
        %v3919 = vsel %vm3913, %v3916, %v3918
        %v3920 = vsel %vm3912, %v3899, %v3902
        %v3921 = vsel %vm3915, %v3908, 920167782
        %v3922 = vsel %vm3914, %v3905, %v3921
        %v3923 = vsel %vm3913, %v3920, %v3922
        %v3924 = vsel %vm3912, %v3902, %v3905
        %v3925 = vsel %vm3915, %v3911, 1326507024
        %v3926 = vsel %vm3914, %v3908, %v3925
        %v3927 = vsel %vm3913, %v3924, %v3926
        %v3928 = vshll.u32 %v3888, 8
        %v3929 = vmul.u32.u64.compose %v3928, %v3927
        %v3930 = vextract.low.u32 %v3929
        %v3931 = vextract.high.u32 %v3929
        %v3932 = vmul.u32.u64.compose %v3928, %v3923
        %v3933 = vextract.low.u32 %v3932
        %v3934 = vextract.high.u32 %v3932
        %v3935 = vmul.u32 %v3928, %v3919
        %v3936 = vadd.s32 %v3931, %v3933
        %vm3937 = vc.u32 %v3931, %v3933
        %v3938 = vadd.s32 %v3934, 1
        %v3939 = vsel %vm3937, %v3938, %v3934
        %v3940 = vadd.s32 %v3935, %v3939
        %v3941 = vadd.s32 %v3940, 536870912
        %v3942 = vshrl.u32 %v3941, 30
        %v3943 = vshll.u32 %v3942, 30
        %v3944 = vsub.s32 %v3940, %v3943
        %vm3945 = vcmp.lt.s32.totalorder %v3944, 0
        %v3946 = vsub.s32 0, %v3944
        %v3947 = vsel %vm3945, %v3946, %v3944
        %v3948 = vclz %v3947
        %v3949 = vsub.s32 %v3948, 2
        %vm3950 = vcmp.gt.s32.totalorder 0, %v3949
        %v3951 = vsel %vm3950, 0, %v3949
        %v3952 = vsub.s32 32, %v3951
        %v3953 = vshll.u32 %v3944, %v3951
        %v3954 = vshrl.u32 %v3936, %v3952
        %v3955 = vor.u32 %v3953, %v3954
        %v3956 = vsub.s32 4294967266, %v3951
        %v3957 = vadd.s32 %v3956, 127
        %v3958 = vshll.u32 %v3957, 23
        %v3959 = vor.u32 4788187, %v3958
        %v3960 = vand.u32 2147483647, %v3959
        %v3962 = vcvt.s32.f32 %v3955
        %v3963 = vmul.f32 %v3962, %v3960
        %v3964 = vxor.u32 %v3963, 2147483648
        %v3965 = vsel %vm3882, %v3964, %v3963
        %v3966 = vsub.s32 4, %v3942
        %v3967 = vsel %vm3882, %v3966, %v3942
        %v3968 = vsel %vm3881, %v505, %v3965
        %v3969 = vsel %vm3881, 0, %v3967
        %v3970 = vcosq.f32.pop %v3968
        %v3971 = vsinq.f32.pop %v3968
        %vm3972 = vweird.f32 %v505
        %v3973 = vadd.s32 %v3969, 3
        %v3974 = vand.u32 %v3973, 3
        %vm3975 = vcmp.lt.s32.totalorder %v3974, 2
        %vm3976 = vcmp.eq.s32.totalorder %v3974, 0
        %v3977 = vxor.u32 %v3971, 2147483648
        %v3978 = vsel %vm3976, %v3970, %v3977
        %vm3979 = vcmp.eq.s32.totalorder %v3974, 2
        %v3980 = vxor.u32 %v3970, 2147483648
        %v3981 = vsel %vm3979, %v3980, %v3971
        %v3982 = vsel %vm3975, %v3978, %v3981
        %v3983 = vsel %vm3972, nan, %v3982
        %v3984 = vand.u32 2147483647, %v506
        %vm3985 = vcmp.le.f32.partialorder %v3984, 0.7853982
        %vm3986 = vcmp.lt.s32.totalorder %v506, 0
        %v3987 = vand.u32 %v506, 2139095040
        %v3988 = vshrl.u32 %v3987, 23
        %v3989 = vsub.s32 %v3988, 127
        %v3990 = vand.u32 2147483647, %v506
        %v3991 = vand.u32 %v3990, 8388607
        %v3992 = vor.u32 %v3991, 8388608
        %v3993 = vsub.s32 0, %v3992
        %v3994 = vadd.s32 %v3989, 1
        %vm3995 = vcmp.gt.s32.totalorder %v3994, 0
        %v3996 = vsel %vm3995, %v3994, 0
        %v3997 = vshrl.u32 %v3996, 5
        %v3998 = vand.u32 %v3996, 31
        %v3999 = vsub.s32 32, %v3998
        %v4000 = vshrl.u32 683565275, %v3999
        %v4001 = vshll.u32 683565275, %v3998
        %v4002 = vshrl.u32 2475754826, %v3999
        %v4003 = vor.u32 %v4001, %v4002
        %v4004 = vshll.u32 2475754826, %v3998
        %v4005 = vshrl.u32 2131351028, %v3999
        %v4006 = vor.u32 %v4004, %v4005
        %v4007 = vshll.u32 2131351028, %v3998
        %v4008 = vshrl.u32 2102212464, %v3999
        %v4009 = vor.u32 %v4007, %v4008
        %v4010 = vshll.u32 2102212464, %v3998
        %v4011 = vshrl.u32 920167782, %v3999
        %v4012 = vor.u32 %v4010, %v4011
        %v4013 = vshll.u32 920167782, %v3998
        %v4014 = vshrl.u32 1326507024, %v3999
        %v4015 = vor.u32 %v4013, %v4014
        %vm4016 = vcmp.lt.s32.totalorder %v3997, 1
        %vm4017 = vcmp.lt.s32.totalorder %v3997, 2
        %vm4018 = vcmp.lt.s32.totalorder %v3997, 3
        %vm4019 = vcmp.lt.s32.totalorder %v3997, 4
        %v4020 = vsel %vm4016, %v4000, %v4003
        %v4021 = vsel %vm4019, %v4009, 2102212464
        %v4022 = vsel %vm4018, %v4006, %v4021
        %v4023 = vsel %vm4017, %v4020, %v4022
        %v4024 = vsel %vm4016, %v4003, %v4006
        %v4025 = vsel %vm4019, %v4012, 920167782
        %v4026 = vsel %vm4018, %v4009, %v4025
        %v4027 = vsel %vm4017, %v4024, %v4026
        %v4028 = vsel %vm4016, %v4006, %v4009
        %v4029 = vsel %vm4019, %v4015, 1326507024
        %v4030 = vsel %vm4018, %v4012, %v4029
        %v4031 = vsel %vm4017, %v4028, %v4030
        %v4032 = vshll.u32 %v3992, 8
        %v4033 = vmul.u32.u64.compose %v4032, %v4031
        %v4034 = vextract.low.u32 %v4033
        %v4035 = vextract.high.u32 %v4033
        %v4036 = vmul.u32.u64.compose %v4032, %v4027
        %v4037 = vextract.low.u32 %v4036
        %v4038 = vextract.high.u32 %v4036
        %v4039 = vmul.u32 %v4032, %v4023
        %v4040 = vadd.s32 %v4035, %v4037
        %vm4041 = vc.u32 %v4035, %v4037
        %v4042 = vadd.s32 %v4038, 1
        %v4043 = vsel %vm4041, %v4042, %v4038
        %v4044 = vadd.s32 %v4039, %v4043
        %v4045 = vadd.s32 %v4044, 536870912
        %v4046 = vshrl.u32 %v4045, 30
        %v4047 = vshll.u32 %v4046, 30
        %v4048 = vsub.s32 %v4044, %v4047
        %vm4049 = vcmp.lt.s32.totalorder %v4048, 0
        %v4050 = vsub.s32 0, %v4048
        %v4051 = vsel %vm4049, %v4050, %v4048
        %v4052 = vclz %v4051
        %v4053 = vsub.s32 %v4052, 2
        %vm4054 = vcmp.gt.s32.totalorder 0, %v4053
        %v4055 = vsel %vm4054, 0, %v4053
        %v4056 = vsub.s32 32, %v4055
        %v4057 = vshll.u32 %v4048, %v4055
        %v4058 = vshrl.u32 %v4040, %v4056
        %v4059 = vor.u32 %v4057, %v4058
        %v4060 = vsub.s32 4294967266, %v4055
        %v4061 = vadd.s32 %v4060, 127
        %v4062 = vshll.u32 %v4061, 23
        %v4063 = vor.u32 4788187, %v4062
        %v4064 = vand.u32 2147483647, %v4063
        %v4066 = vcvt.s32.f32 %v4059
        %v4067 = vmul.f32 %v4066, %v4064
        %v4068 = vxor.u32 %v4067, 2147483648
        %v4069 = vsel %vm3986, %v4068, %v4067
        %v4070 = vsub.s32 4, %v4046
        %v4071 = vsel %vm3986, %v4070, %v4046
        %v4072 = vsel %vm3985, %v506, %v4069
        %v4073 = vsel %vm3985, 0, %v4071
        %v4074 = vcosq.f32.pop %v4072
        %v4075 = vsinq.f32.pop %v4072
        %vm4076 = vweird.f32 %v506
        %v4077 = vadd.s32 %v4073, 3
        %v4078 = vand.u32 %v4077, 3
        %vm4079 = vcmp.lt.s32.totalorder %v4078, 2
        %vm4080 = vcmp.eq.s32.totalorder %v4078, 0
        %v4081 = vxor.u32 %v4075, 2147483648
        %v4082 = vsel %vm4080, %v4074, %v4081
        %vm4083 = vcmp.eq.s32.totalorder %v4078, 2
        %v4084 = vxor.u32 %v4074, 2147483648
        %v4085 = vsel %vm4083, %v4084, %v4075
        %v4086 = vsel %vm4079, %v4082, %v4085
        %v4087 = vsel %vm4076, nan, %v4086
        %v4088 = vand.u32 2147483647, %v507
        %vm4089 = vcmp.le.f32.partialorder %v4088, 0.7853982
        %vm4090 = vcmp.lt.s32.totalorder %v507, 0
        %v4091 = vand.u32 %v507, 2139095040
        %v4092 = vshrl.u32 %v4091, 23
        %v4093 = vsub.s32 %v4092, 127
        %v4094 = vand.u32 2147483647, %v507
        %v4095 = vand.u32 %v4094, 8388607
        %v4096 = vor.u32 %v4095, 8388608
        %v4097 = vsub.s32 0, %v4096
        %v4098 = vadd.s32 %v4093, 1
        %vm4099 = vcmp.gt.s32.totalorder %v4098, 0
        %v4100 = vsel %vm4099, %v4098, 0
        %v4101 = vshrl.u32 %v4100, 5
        %v4102 = vand.u32 %v4100, 31
        %v4103 = vsub.s32 32, %v4102
        %v4104 = vshrl.u32 683565275, %v4103
        %v4105 = vshll.u32 683565275, %v4102
        %v4106 = vshrl.u32 2475754826, %v4103
        %v4107 = vor.u32 %v4105, %v4106
        %v4108 = vshll.u32 2475754826, %v4102
        %v4109 = vshrl.u32 2131351028, %v4103
        %v4110 = vor.u32 %v4108, %v4109
        %v4111 = vshll.u32 2131351028, %v4102
        %v4112 = vshrl.u32 2102212464, %v4103
        %v4113 = vor.u32 %v4111, %v4112
        %v4114 = vshll.u32 2102212464, %v4102
        %v4115 = vshrl.u32 920167782, %v4103
        %v4116 = vor.u32 %v4114, %v4115
        %v4117 = vshll.u32 920167782, %v4102
        %v4118 = vshrl.u32 1326507024, %v4103
        %v4119 = vor.u32 %v4117, %v4118
        %vm4120 = vcmp.lt.s32.totalorder %v4101, 1
        %vm4121 = vcmp.lt.s32.totalorder %v4101, 2
        %vm4122 = vcmp.lt.s32.totalorder %v4101, 3
        %vm4123 = vcmp.lt.s32.totalorder %v4101, 4
        %v4124 = vsel %vm4120, %v4104, %v4107
        %v4125 = vsel %vm4123, %v4113, 2102212464
        %v4126 = vsel %vm4122, %v4110, %v4125
        %v4127 = vsel %vm4121, %v4124, %v4126
        %v4128 = vsel %vm4120, %v4107, %v4110
        %v4129 = vsel %vm4123, %v4116, 920167782
        %v4130 = vsel %vm4122, %v4113, %v4129
        %v4131 = vsel %vm4121, %v4128, %v4130
        %v4132 = vsel %vm4120, %v4110, %v4113
        %v4133 = vsel %vm4123, %v4119, 1326507024
        %v4134 = vsel %vm4122, %v4116, %v4133
        %v4135 = vsel %vm4121, %v4132, %v4134
        %v4136 = vshll.u32 %v4096, 8
        %v4137 = vmul.u32.u64.compose %v4136, %v4135
        %v4138 = vextract.low.u32 %v4137
        %v4139 = vextract.high.u32 %v4137
        %v4140 = vmul.u32.u64.compose %v4136, %v4131
        %v4141 = vextract.low.u32 %v4140
        %v4142 = vextract.high.u32 %v4140
        %v4143 = vmul.u32 %v4136, %v4127
        %v4144 = vadd.s32 %v4139, %v4141
        %vm4145 = vc.u32 %v4139, %v4141
        %v4146 = vadd.s32 %v4142, 1
        %v4147 = vsel %vm4145, %v4146, %v4142
        %v4148 = vadd.s32 %v4143, %v4147
        %v4149 = vadd.s32 %v4148, 536870912
        %v4150 = vshrl.u32 %v4149, 30
        %v4151 = vshll.u32 %v4150, 30
        %v4152 = vsub.s32 %v4148, %v4151
        %vm4153 = vcmp.lt.s32.totalorder %v4152, 0
        %v4154 = vsub.s32 0, %v4152
        %v4155 = vsel %vm4153, %v4154, %v4152
        %v4156 = vclz %v4155
        %v4157 = vsub.s32 %v4156, 2
        %vm4158 = vcmp.gt.s32.totalorder 0, %v4157
        %v4159 = vsel %vm4158, 0, %v4157
        %v4160 = vsub.s32 32, %v4159
        %v4161 = vshll.u32 %v4152, %v4159
        %v4162 = vshrl.u32 %v4144, %v4160
        %v4163 = vor.u32 %v4161, %v4162
        %v4164 = vsub.s32 4294967266, %v4159
        %v4165 = vadd.s32 %v4164, 127
        %v4166 = vshll.u32 %v4165, 23
        %v4167 = vor.u32 4788187, %v4166
        %v4168 = vand.u32 2147483647, %v4167
        %v4170 = vcvt.s32.f32 %v4163
        %v4171 = vmul.f32 %v4170, %v4168
        %v4172 = vxor.u32 %v4171, 2147483648
        %v4173 = vsel %vm4090, %v4172, %v4171
        %v4174 = vsub.s32 4, %v4150
        %v4175 = vsel %vm4090, %v4174, %v4150
        %v4176 = vsel %vm4089, %v507, %v4173
        %v4177 = vsel %vm4089, 0, %v4175
        %v4178 = vcosq.f32.pop %v4176
        %v4179 = vsinq.f32.pop %v4176
        %vm4180 = vweird.f32 %v507
        %v4181 = vadd.s32 %v4177, 3
        %v4182 = vand.u32 %v4181, 3
        %vm4183 = vcmp.lt.s32.totalorder %v4182, 2
        %vm4184 = vcmp.eq.s32.totalorder %v4182, 0
        %v4185 = vxor.u32 %v4179, 2147483648
        %v4186 = vsel %vm4184, %v4178, %v4185
        %vm4187 = vcmp.eq.s32.totalorder %v4182, 2
        %v4188 = vxor.u32 %v4178, 2147483648
        %v4189 = vsel %vm4187, %v4188, %v4179
        %v4190 = vsel %vm4183, %v4186, %v4189
        %v4191 = vsel %vm4180, nan, %v4190
        %v4192 = vand.u32 2147483647, %v508
        %vm4193 = vcmp.le.f32.partialorder %v4192, 0.7853982
        %vm4194 = vcmp.lt.s32.totalorder %v508, 0
        %v4195 = vand.u32 %v508, 2139095040
        %v4196 = vshrl.u32 %v4195, 23
        %v4197 = vsub.s32 %v4196, 127
        %v4198 = vand.u32 2147483647, %v508
        %v4199 = vand.u32 %v4198, 8388607
        %v4200 = vor.u32 %v4199, 8388608
        %v4201 = vsub.s32 0, %v4200
        %v4202 = vadd.s32 %v4197, 1
        %vm4203 = vcmp.gt.s32.totalorder %v4202, 0
        %v4204 = vsel %vm4203, %v4202, 0
        %v4205 = vshrl.u32 %v4204, 5
        %v4206 = vand.u32 %v4204, 31
        %v4207 = vsub.s32 32, %v4206
        %v4208 = vshrl.u32 683565275, %v4207
        %v4209 = vshll.u32 683565275, %v4206
        %v4210 = vshrl.u32 2475754826, %v4207
        %v4211 = vor.u32 %v4209, %v4210
        %v4212 = vshll.u32 2475754826, %v4206
        %v4213 = vshrl.u32 2131351028, %v4207
        %v4214 = vor.u32 %v4212, %v4213
        %v4215 = vshll.u32 2131351028, %v4206
        %v4216 = vshrl.u32 2102212464, %v4207
        %v4217 = vor.u32 %v4215, %v4216
        %v4218 = vshll.u32 2102212464, %v4206
        %v4219 = vshrl.u32 920167782, %v4207
        %v4220 = vor.u32 %v4218, %v4219
        %v4221 = vshll.u32 920167782, %v4206
        %v4222 = vshrl.u32 1326507024, %v4207
        %v4223 = vor.u32 %v4221, %v4222
        %vm4224 = vcmp.lt.s32.totalorder %v4205, 1
        %vm4225 = vcmp.lt.s32.totalorder %v4205, 2
        %vm4226 = vcmp.lt.s32.totalorder %v4205, 3
        %vm4227 = vcmp.lt.s32.totalorder %v4205, 4
        %v4228 = vsel %vm4224, %v4208, %v4211
        %v4229 = vsel %vm4227, %v4217, 2102212464
        %v4230 = vsel %vm4226, %v4214, %v4229
        %v4231 = vsel %vm4225, %v4228, %v4230
        %v4232 = vsel %vm4224, %v4211, %v4214
        %v4233 = vsel %vm4227, %v4220, 920167782
        %v4234 = vsel %vm4226, %v4217, %v4233
        %v4235 = vsel %vm4225, %v4232, %v4234
        %v4236 = vsel %vm4224, %v4214, %v4217
        %v4237 = vsel %vm4227, %v4223, 1326507024
        %v4238 = vsel %vm4226, %v4220, %v4237
        %v4239 = vsel %vm4225, %v4236, %v4238
        %v4240 = vshll.u32 %v4200, 8
        %v4241 = vmul.u32.u64.compose %v4240, %v4239
        %v4242 = vextract.low.u32 %v4241
        %v4243 = vextract.high.u32 %v4241
        %v4244 = vmul.u32.u64.compose %v4240, %v4235
        %v4245 = vextract.low.u32 %v4244
        %v4246 = vextract.high.u32 %v4244
        %v4247 = vmul.u32 %v4240, %v4231
        %v4248 = vadd.s32 %v4243, %v4245
        %vm4249 = vc.u32 %v4243, %v4245
        %v4250 = vadd.s32 %v4246, 1
        %v4251 = vsel %vm4249, %v4250, %v4246
        %v4252 = vadd.s32 %v4247, %v4251
        %v4253 = vadd.s32 %v4252, 536870912
        %v4254 = vshrl.u32 %v4253, 30
        %v4255 = vshll.u32 %v4254, 30
        %v4256 = vsub.s32 %v4252, %v4255
        %vm4257 = vcmp.lt.s32.totalorder %v4256, 0
        %v4258 = vsub.s32 0, %v4256
        %v4259 = vsel %vm4257, %v4258, %v4256
        %v4260 = vclz %v4259
        %v4261 = vsub.s32 %v4260, 2
        %vm4262 = vcmp.gt.s32.totalorder 0, %v4261
        %v4263 = vsel %vm4262, 0, %v4261
        %v4264 = vsub.s32 32, %v4263
        %v4265 = vshll.u32 %v4256, %v4263
        %v4266 = vshrl.u32 %v4248, %v4264
        %v4267 = vor.u32 %v4265, %v4266
        %v4268 = vsub.s32 4294967266, %v4263
        %v4269 = vadd.s32 %v4268, 127
        %v4270 = vshll.u32 %v4269, 23
        %v4271 = vor.u32 4788187, %v4270
        %v4272 = vand.u32 2147483647, %v4271
        %v4274 = vcvt.s32.f32 %v4267
        %v4275 = vmul.f32 %v4274, %v4272
        %v4276 = vxor.u32 %v4275, 2147483648
        %v4277 = vsel %vm4194, %v4276, %v4275
        %v4278 = vsub.s32 4, %v4254
        %v4279 = vsel %vm4194, %v4278, %v4254
        %v4280 = vsel %vm4193, %v508, %v4277
        %v4281 = vsel %vm4193, 0, %v4279
        %v4282 = vcosq.f32.pop %v4280
        %v4283 = vsinq.f32.pop %v4280
        %vm4284 = vweird.f32 %v508
        %v4285 = vadd.s32 %v4281, 3
        %v4286 = vand.u32 %v4285, 3
        %vm4287 = vcmp.lt.s32.totalorder %v4286, 2
        %vm4288 = vcmp.eq.s32.totalorder %v4286, 0
        %v4289 = vxor.u32 %v4283, 2147483648
        %v4290 = vsel %vm4288, %v4282, %v4289
        %vm4291 = vcmp.eq.s32.totalorder %v4286, 2
        %v4292 = vxor.u32 %v4282, 2147483648
        %v4293 = vsel %vm4291, %v4292, %v4283
        %v4294 = vsel %vm4287, %v4290, %v4293
        %v4295 = vsel %vm4284, nan, %v4294
        %v4296 = vand.u32 2147483647, %v509
        %vm4297 = vcmp.le.f32.partialorder %v4296, 0.7853982
        %vm4298 = vcmp.lt.s32.totalorder %v509, 0
        %v4299 = vand.u32 %v509, 2139095040
        %v4300 = vshrl.u32 %v4299, 23
        %v4301 = vsub.s32 %v4300, 127
        %v4302 = vand.u32 2147483647, %v509
        %v4303 = vand.u32 %v4302, 8388607
        %v4304 = vor.u32 %v4303, 8388608
        %v4305 = vsub.s32 0, %v4304
        %v4306 = vadd.s32 %v4301, 1
        %vm4307 = vcmp.gt.s32.totalorder %v4306, 0
        %v4308 = vsel %vm4307, %v4306, 0
        %v4309 = vshrl.u32 %v4308, 5
        %v4310 = vand.u32 %v4308, 31
        %v4311 = vsub.s32 32, %v4310
        %v4312 = vshrl.u32 683565275, %v4311
        %v4313 = vshll.u32 683565275, %v4310
        %v4314 = vshrl.u32 2475754826, %v4311
        %v4315 = vor.u32 %v4313, %v4314
        %v4316 = vshll.u32 2475754826, %v4310
        %v4317 = vshrl.u32 2131351028, %v4311
        %v4318 = vor.u32 %v4316, %v4317
        %v4319 = vshll.u32 2131351028, %v4310
        %v4320 = vshrl.u32 2102212464, %v4311
        %v4321 = vor.u32 %v4319, %v4320
        %v4322 = vshll.u32 2102212464, %v4310
        %v4323 = vshrl.u32 920167782, %v4311
        %v4324 = vor.u32 %v4322, %v4323
        %v4325 = vshll.u32 920167782, %v4310
        %v4326 = vshrl.u32 1326507024, %v4311
        %v4327 = vor.u32 %v4325, %v4326
        %vm4328 = vcmp.lt.s32.totalorder %v4309, 1
        %vm4329 = vcmp.lt.s32.totalorder %v4309, 2
        %vm4330 = vcmp.lt.s32.totalorder %v4309, 3
        %vm4331 = vcmp.lt.s32.totalorder %v4309, 4
        %v4332 = vsel %vm4328, %v4312, %v4315
        %v4333 = vsel %vm4331, %v4321, 2102212464
        %v4334 = vsel %vm4330, %v4318, %v4333
        %v4335 = vsel %vm4329, %v4332, %v4334
        %v4336 = vsel %vm4328, %v4315, %v4318
        %v4337 = vsel %vm4331, %v4324, 920167782
        %v4338 = vsel %vm4330, %v4321, %v4337
        %v4339 = vsel %vm4329, %v4336, %v4338
        %v4340 = vsel %vm4328, %v4318, %v4321
        %v4341 = vsel %vm4331, %v4327, 1326507024
        %v4342 = vsel %vm4330, %v4324, %v4341
        %v4343 = vsel %vm4329, %v4340, %v4342
        %v4344 = vshll.u32 %v4304, 8
        %v4345 = vmul.u32.u64.compose %v4344, %v4343
        %v4346 = vextract.low.u32 %v4345
        %v4347 = vextract.high.u32 %v4345
        %v4348 = vmul.u32.u64.compose %v4344, %v4339
        %v4349 = vextract.low.u32 %v4348
        %v4350 = vextract.high.u32 %v4348
        %v4351 = vmul.u32 %v4344, %v4335
        %v4352 = vadd.s32 %v4347, %v4349
        %vm4353 = vc.u32 %v4347, %v4349
        %v4354 = vadd.s32 %v4350, 1
        %v4355 = vsel %vm4353, %v4354, %v4350
        %v4356 = vadd.s32 %v4351, %v4355
        %v4357 = vadd.s32 %v4356, 536870912
        %v4358 = vshrl.u32 %v4357, 30
        %v4359 = vshll.u32 %v4358, 30
        %v4360 = vsub.s32 %v4356, %v4359
        %vm4361 = vcmp.lt.s32.totalorder %v4360, 0
        %v4362 = vsub.s32 0, %v4360
        %v4363 = vsel %vm4361, %v4362, %v4360
        %v4364 = vclz %v4363
        %v4365 = vsub.s32 %v4364, 2
        %vm4366 = vcmp.gt.s32.totalorder 0, %v4365
        %v4367 = vsel %vm4366, 0, %v4365
        %v4368 = vsub.s32 32, %v4367
        %v4369 = vshll.u32 %v4360, %v4367
        %v4370 = vshrl.u32 %v4352, %v4368
        %v4371 = vor.u32 %v4369, %v4370
        %v4372 = vsub.s32 4294967266, %v4367
        %v4373 = vadd.s32 %v4372, 127
        %v4374 = vshll.u32 %v4373, 23
        %v4375 = vor.u32 4788187, %v4374
        %v4376 = vand.u32 2147483647, %v4375
        %v4378 = vcvt.s32.f32 %v4371
        %v4379 = vmul.f32 %v4378, %v4376
        %v4380 = vxor.u32 %v4379, 2147483648
        %v4381 = vsel %vm4298, %v4380, %v4379
        %v4382 = vsub.s32 4, %v4358
        %v4383 = vsel %vm4298, %v4382, %v4358
        %v4384 = vsel %vm4297, %v509, %v4381
        %v4385 = vsel %vm4297, 0, %v4383
        %v4386 = vcosq.f32.pop %v4384
        %v4387 = vsinq.f32.pop %v4384
        %vm4388 = vweird.f32 %v509
        %v4389 = vadd.s32 %v4385, 3
        %v4390 = vand.u32 %v4389, 3
        %vm4391 = vcmp.lt.s32.totalorder %v4390, 2
        %vm4392 = vcmp.eq.s32.totalorder %v4390, 0
        %v4393 = vxor.u32 %v4387, 2147483648
        %v4394 = vsel %vm4392, %v4386, %v4393
        %vm4395 = vcmp.eq.s32.totalorder %v4390, 2
        %v4396 = vxor.u32 %v4386, 2147483648
        %v4397 = vsel %vm4395, %v4396, %v4387
        %v4398 = vsel %vm4391, %v4394, %v4397
        %v4399 = vsel %vm4388, nan, %v4398
        %v4400 = vand.u32 2147483647, %v510
        %vm4401 = vcmp.le.f32.partialorder %v4400, 0.7853982
        %vm4402 = vcmp.lt.s32.totalorder %v510, 0
        %v4403 = vand.u32 %v510, 2139095040
        %v4404 = vshrl.u32 %v4403, 23
        %v4405 = vsub.s32 %v4404, 127
        %v4406 = vand.u32 2147483647, %v510
        %v4407 = vand.u32 %v4406, 8388607
        %v4408 = vor.u32 %v4407, 8388608
        %v4409 = vsub.s32 0, %v4408
        %v4410 = vadd.s32 %v4405, 1
        %vm4411 = vcmp.gt.s32.totalorder %v4410, 0
        %v4412 = vsel %vm4411, %v4410, 0
        %v4413 = vshrl.u32 %v4412, 5
        %v4414 = vand.u32 %v4412, 31
        %v4415 = vsub.s32 32, %v4414
        %v4416 = vshrl.u32 683565275, %v4415
        %v4417 = vshll.u32 683565275, %v4414
        %v4418 = vshrl.u32 2475754826, %v4415
        %v4419 = vor.u32 %v4417, %v4418
        %v4420 = vshll.u32 2475754826, %v4414
        %v4421 = vshrl.u32 2131351028, %v4415
        %v4422 = vor.u32 %v4420, %v4421
        %v4423 = vshll.u32 2131351028, %v4414
        %v4424 = vshrl.u32 2102212464, %v4415
        %v4425 = vor.u32 %v4423, %v4424
        %v4426 = vshll.u32 2102212464, %v4414
        %v4427 = vshrl.u32 920167782, %v4415
        %v4428 = vor.u32 %v4426, %v4427
        %v4429 = vshll.u32 920167782, %v4414
        %v4430 = vshrl.u32 1326507024, %v4415
        %v4431 = vor.u32 %v4429, %v4430
        %vm4432 = vcmp.lt.s32.totalorder %v4413, 1
        %vm4433 = vcmp.lt.s32.totalorder %v4413, 2
        %vm4434 = vcmp.lt.s32.totalorder %v4413, 3
        %vm4435 = vcmp.lt.s32.totalorder %v4413, 4
        %v4436 = vsel %vm4432, %v4416, %v4419
        %v4437 = vsel %vm4435, %v4425, 2102212464
        %v4438 = vsel %vm4434, %v4422, %v4437
        %v4439 = vsel %vm4433, %v4436, %v4438
        %v4440 = vsel %vm4432, %v4419, %v4422
        %v4441 = vsel %vm4435, %v4428, 920167782
        %v4442 = vsel %vm4434, %v4425, %v4441
        %v4443 = vsel %vm4433, %v4440, %v4442
        %v4444 = vsel %vm4432, %v4422, %v4425
        %v4445 = vsel %vm4435, %v4431, 1326507024
        %v4446 = vsel %vm4434, %v4428, %v4445
        %v4447 = vsel %vm4433, %v4444, %v4446
        %v4448 = vshll.u32 %v4408, 8
        %v4449 = vmul.u32.u64.compose %v4448, %v4447
        %v4450 = vextract.low.u32 %v4449
        %v4451 = vextract.high.u32 %v4449
        %v4452 = vmul.u32.u64.compose %v4448, %v4443
        %v4453 = vextract.low.u32 %v4452
        %v4454 = vextract.high.u32 %v4452
        %v4455 = vmul.u32 %v4448, %v4439
        %v4456 = vadd.s32 %v4451, %v4453
        %vm4457 = vc.u32 %v4451, %v4453
        %v4458 = vadd.s32 %v4454, 1
        %v4459 = vsel %vm4457, %v4458, %v4454
        %v4460 = vadd.s32 %v4455, %v4459
        %v4461 = vadd.s32 %v4460, 536870912
        %v4462 = vshrl.u32 %v4461, 30
        %v4463 = vshll.u32 %v4462, 30
        %v4464 = vsub.s32 %v4460, %v4463
        %vm4465 = vcmp.lt.s32.totalorder %v4464, 0
        %v4466 = vsub.s32 0, %v4464
        %v4467 = vsel %vm4465, %v4466, %v4464
        %v4468 = vclz %v4467
        %v4469 = vsub.s32 %v4468, 2
        %vm4470 = vcmp.gt.s32.totalorder 0, %v4469
        %v4471 = vsel %vm4470, 0, %v4469
        %v4472 = vsub.s32 32, %v4471
        %v4473 = vshll.u32 %v4464, %v4471
        %v4474 = vshrl.u32 %v4456, %v4472
        %v4475 = vor.u32 %v4473, %v4474
        %v4476 = vsub.s32 4294967266, %v4471
        %v4477 = vadd.s32 %v4476, 127
        %v4478 = vshll.u32 %v4477, 23
        %v4479 = vor.u32 4788187, %v4478
        %v4480 = vand.u32 2147483647, %v4479
        %v4482 = vcvt.s32.f32 %v4475
        %v4483 = vmul.f32 %v4482, %v4480
        %v4484 = vxor.u32 %v4483, 2147483648
        %v4485 = vsel %vm4402, %v4484, %v4483
        %v4486 = vsub.s32 4, %v4462
        %v4487 = vsel %vm4402, %v4486, %v4462
        %v4488 = vsel %vm4401, %v510, %v4485
        %v4489 = vsel %vm4401, 0, %v4487
        %v4490 = vcosq.f32.pop %v4488
        %v4491 = vsinq.f32.pop %v4488
        %vm4492 = vweird.f32 %v510
        %v4493 = vadd.s32 %v4489, 3
        %v4494 = vand.u32 %v4493, 3
        %vm4495 = vcmp.lt.s32.totalorder %v4494, 2
        %vm4496 = vcmp.eq.s32.totalorder %v4494, 0
        %v4497 = vxor.u32 %v4491, 2147483648
        %v4498 = vsel %vm4496, %v4490, %v4497
        %vm4499 = vcmp.eq.s32.totalorder %v4494, 2
        %v4500 = vxor.u32 %v4490, 2147483648
        %v4501 = vsel %vm4499, %v4500, %v4491
        %v4502 = vsel %vm4495, %v4498, %v4501
        %v4503 = vsel %vm4492, nan, %v4502
        %v4504 = vand.u32 2147483647, %v511
        %vm4505 = vcmp.le.f32.partialorder %v4504, 0.7853982
        %vm4506 = vcmp.lt.s32.totalorder %v511, 0
        %v4507 = vand.u32 %v511, 2139095040
        %v4508 = vshrl.u32 %v4507, 23
        %v4509 = vsub.s32 %v4508, 127
        %v4510 = vand.u32 2147483647, %v511
        %v4511 = vand.u32 %v4510, 8388607
        %v4512 = vor.u32 %v4511, 8388608
        %v4513 = vsub.s32 0, %v4512
        %v4514 = vadd.s32 %v4509, 1
        %vm4515 = vcmp.gt.s32.totalorder %v4514, 0
        %v4516 = vsel %vm4515, %v4514, 0
        %v4517 = vshrl.u32 %v4516, 5
        %v4518 = vand.u32 %v4516, 31
        %v4519 = vsub.s32 32, %v4518
        %v4520 = vshrl.u32 683565275, %v4519
        %v4521 = vshll.u32 683565275, %v4518
        %v4522 = vshrl.u32 2475754826, %v4519
        %v4523 = vor.u32 %v4521, %v4522
        %v4524 = vshll.u32 2475754826, %v4518
        %v4525 = vshrl.u32 2131351028, %v4519
        %v4526 = vor.u32 %v4524, %v4525
        %v4527 = vshll.u32 2131351028, %v4518
        %v4528 = vshrl.u32 2102212464, %v4519
        %v4529 = vor.u32 %v4527, %v4528
        %v4530 = vshll.u32 2102212464, %v4518
        %v4531 = vshrl.u32 920167782, %v4519
        %v4532 = vor.u32 %v4530, %v4531
        %v4533 = vshll.u32 920167782, %v4518
        %v4534 = vshrl.u32 1326507024, %v4519
        %v4535 = vor.u32 %v4533, %v4534
        %vm4536 = vcmp.lt.s32.totalorder %v4517, 1
        %vm4537 = vcmp.lt.s32.totalorder %v4517, 2
        %vm4538 = vcmp.lt.s32.totalorder %v4517, 3
        %vm4539 = vcmp.lt.s32.totalorder %v4517, 4
        %v4540 = vsel %vm4536, %v4520, %v4523
        %v4541 = vsel %vm4539, %v4529, 2102212464
        %v4542 = vsel %vm4538, %v4526, %v4541
        %v4543 = vsel %vm4537, %v4540, %v4542
        %v4544 = vsel %vm4536, %v4523, %v4526
        %v4545 = vsel %vm4539, %v4532, 920167782
        %v4546 = vsel %vm4538, %v4529, %v4545
        %v4547 = vsel %vm4537, %v4544, %v4546
        %v4548 = vsel %vm4536, %v4526, %v4529
        %v4549 = vsel %vm4539, %v4535, 1326507024
        %v4550 = vsel %vm4538, %v4532, %v4549
        %v4551 = vsel %vm4537, %v4548, %v4550
        %v4552 = vshll.u32 %v4512, 8
        %v4553 = vmul.u32.u64.compose %v4552, %v4551
        %v4554 = vextract.low.u32 %v4553
        %v4555 = vextract.high.u32 %v4553
        %v4556 = vmul.u32.u64.compose %v4552, %v4547
        %v4557 = vextract.low.u32 %v4556
        %v4558 = vextract.high.u32 %v4556
        %v4559 = vmul.u32 %v4552, %v4543
        %v4560 = vadd.s32 %v4555, %v4557
        %vm4561 = vc.u32 %v4555, %v4557
        %v4562 = vadd.s32 %v4558, 1
        %v4563 = vsel %vm4561, %v4562, %v4558
        %v4564 = vadd.s32 %v4559, %v4563
        %v4565 = vadd.s32 %v4564, 536870912
        %v4566 = vshrl.u32 %v4565, 30
        %v4567 = vshll.u32 %v4566, 30
        %v4568 = vsub.s32 %v4564, %v4567
        %vm4569 = vcmp.lt.s32.totalorder %v4568, 0
        %v4570 = vsub.s32 0, %v4568
        %v4571 = vsel %vm4569, %v4570, %v4568
        %v4572 = vclz %v4571
        %v4573 = vsub.s32 %v4572, 2
        %vm4574 = vcmp.gt.s32.totalorder 0, %v4573
        %v4575 = vsel %vm4574, 0, %v4573
        %v4576 = vsub.s32 32, %v4575
        %v4577 = vshll.u32 %v4568, %v4575
        %v4578 = vshrl.u32 %v4560, %v4576
        %v4579 = vor.u32 %v4577, %v4578
        %v4580 = vsub.s32 4294967266, %v4575
        %v4581 = vadd.s32 %v4580, 127
        %v4582 = vshll.u32 %v4581, 23
        %v4583 = vor.u32 4788187, %v4582
        %v4584 = vand.u32 2147483647, %v4583
        %v4586 = vcvt.s32.f32 %v4579
        %v4587 = vmul.f32 %v4586, %v4584
        %v4588 = vxor.u32 %v4587, 2147483648
        %v4589 = vsel %vm4506, %v4588, %v4587
        %v4590 = vsub.s32 4, %v4566
        %v4591 = vsel %vm4506, %v4590, %v4566
        %v4592 = vsel %vm4505, %v511, %v4589
        %v4593 = vsel %vm4505, 0, %v4591
        %v4594 = vcosq.f32.pop %v4592
        %v4595 = vsinq.f32.pop %v4592
        %vm4596 = vweird.f32 %v511
        %v4597 = vadd.s32 %v4593, 3
        %v4598 = vand.u32 %v4597, 3
        %vm4599 = vcmp.lt.s32.totalorder %v4598, 2
        %vm4600 = vcmp.eq.s32.totalorder %v4598, 0
        %v4601 = vxor.u32 %v4595, 2147483648
        %v4602 = vsel %vm4600, %v4594, %v4601
        %vm4603 = vcmp.eq.s32.totalorder %v4598, 2
        %v4604 = vxor.u32 %v4594, 2147483648
        %v4605 = vsel %vm4603, %v4604, %v4595
        %v4606 = vsel %vm4599, %v4602, %v4605
        %v4607 = vsel %vm4596, nan, %v4606
        %v4608 = vand.u32 2147483647, %v512
        %vm4609 = vcmp.le.f32.partialorder %v4608, 0.7853982
        %vm4610 = vcmp.lt.s32.totalorder %v512, 0
        %v4611 = vand.u32 %v512, 2139095040
        %v4612 = vshrl.u32 %v4611, 23
        %v4613 = vsub.s32 %v4612, 127
        %v4614 = vand.u32 2147483647, %v512
        %v4615 = vand.u32 %v4614, 8388607
        %v4616 = vor.u32 %v4615, 8388608
        %v4617 = vsub.s32 0, %v4616
        %v4618 = vadd.s32 %v4613, 1
        %vm4619 = vcmp.gt.s32.totalorder %v4618, 0
        %v4620 = vsel %vm4619, %v4618, 0
        %v4621 = vshrl.u32 %v4620, 5
        %v4622 = vand.u32 %v4620, 31
        %v4623 = vsub.s32 32, %v4622
        %v4624 = vshrl.u32 683565275, %v4623
        %v4625 = vshll.u32 683565275, %v4622
        %v4626 = vshrl.u32 2475754826, %v4623
        %v4627 = vor.u32 %v4625, %v4626
        %v4628 = vshll.u32 2475754826, %v4622
        %v4629 = vshrl.u32 2131351028, %v4623
        %v4630 = vor.u32 %v4628, %v4629
        %v4631 = vshll.u32 2131351028, %v4622
        %v4632 = vshrl.u32 2102212464, %v4623
        %v4633 = vor.u32 %v4631, %v4632
        %v4634 = vshll.u32 2102212464, %v4622
        %v4635 = vshrl.u32 920167782, %v4623
        %v4636 = vor.u32 %v4634, %v4635
        %v4637 = vshll.u32 920167782, %v4622
        %v4638 = vshrl.u32 1326507024, %v4623
        %v4639 = vor.u32 %v4637, %v4638
        %vm4640 = vcmp.lt.s32.totalorder %v4621, 1
        %vm4641 = vcmp.lt.s32.totalorder %v4621, 2
        %vm4642 = vcmp.lt.s32.totalorder %v4621, 3
        %vm4643 = vcmp.lt.s32.totalorder %v4621, 4
        %v4644 = vsel %vm4640, %v4624, %v4627
        %v4645 = vsel %vm4643, %v4633, 2102212464
        %v4646 = vsel %vm4642, %v4630, %v4645
        %v4647 = vsel %vm4641, %v4644, %v4646
        %v4648 = vsel %vm4640, %v4627, %v4630
        %v4649 = vsel %vm4643, %v4636, 920167782
        %v4650 = vsel %vm4642, %v4633, %v4649
        %v4651 = vsel %vm4641, %v4648, %v4650
        %v4652 = vsel %vm4640, %v4630, %v4633
        %v4653 = vsel %vm4643, %v4639, 1326507024
        %v4654 = vsel %vm4642, %v4636, %v4653
        %v4655 = vsel %vm4641, %v4652, %v4654
        %v4656 = vshll.u32 %v4616, 8
        %v4657 = vmul.u32.u64.compose %v4656, %v4655
        %v4658 = vextract.low.u32 %v4657
        %v4659 = vextract.high.u32 %v4657
        %v4660 = vmul.u32.u64.compose %v4656, %v4651
        %v4661 = vextract.low.u32 %v4660
        %v4662 = vextract.high.u32 %v4660
        %v4663 = vmul.u32 %v4656, %v4647
        %v4664 = vadd.s32 %v4659, %v4661
        %vm4665 = vc.u32 %v4659, %v4661
        %v4666 = vadd.s32 %v4662, 1
        %v4667 = vsel %vm4665, %v4666, %v4662
        %v4668 = vadd.s32 %v4663, %v4667
        %v4669 = vadd.s32 %v4668, 536870912
        %v4670 = vshrl.u32 %v4669, 30
        %v4671 = vshll.u32 %v4670, 30
        %v4672 = vsub.s32 %v4668, %v4671
        %vm4673 = vcmp.lt.s32.totalorder %v4672, 0
        %v4674 = vsub.s32 0, %v4672
        %v4675 = vsel %vm4673, %v4674, %v4672
        %v4676 = vclz %v4675
        %v4677 = vsub.s32 %v4676, 2
        %vm4678 = vcmp.gt.s32.totalorder 0, %v4677
        %v4679 = vsel %vm4678, 0, %v4677
        %v4680 = vsub.s32 32, %v4679
        %v4681 = vshll.u32 %v4672, %v4679
        %v4682 = vshrl.u32 %v4664, %v4680
        %v4683 = vor.u32 %v4681, %v4682
        %v4684 = vsub.s32 4294967266, %v4679
        %v4685 = vadd.s32 %v4684, 127
        %v4686 = vshll.u32 %v4685, 23
        %v4687 = vor.u32 4788187, %v4686
        %v4688 = vand.u32 2147483647, %v4687
        %v4690 = vcvt.s32.f32 %v4683
        %v4691 = vmul.f32 %v4690, %v4688
        %v4692 = vxor.u32 %v4691, 2147483648
        %v4693 = vsel %vm4610, %v4692, %v4691
        %v4694 = vsub.s32 4, %v4670
        %v4695 = vsel %vm4610, %v4694, %v4670
        %v4696 = vsel %vm4609, %v512, %v4693
        %v4697 = vsel %vm4609, 0, %v4695
        %v4698 = vcosq.f32.pop %v4696
        %v4699 = vsinq.f32.pop %v4696
        %vm4700 = vweird.f32 %v512
        %v4701 = vadd.s32 %v4697, 3
        %v4702 = vand.u32 %v4701, 3
        %vm4703 = vcmp.lt.s32.totalorder %v4702, 2
        %vm4704 = vcmp.eq.s32.totalorder %v4702, 0
        %v4705 = vxor.u32 %v4699, 2147483648
        %v4706 = vsel %vm4704, %v4698, %v4705
        %vm4707 = vcmp.eq.s32.totalorder %v4702, 2
        %v4708 = vxor.u32 %v4698, 2147483648
        %v4709 = vsel %vm4707, %v4708, %v4699
        %v4710 = vsel %vm4703, %v4706, %v4709
        %v4711 = vsel %vm4700, nan, %v4710
        %v4712 = vand.u32 2147483647, %v513
        %vm4713 = vcmp.le.f32.partialorder %v4712, 0.7853982
        %vm4714 = vcmp.lt.s32.totalorder %v513, 0
        %v4715 = vand.u32 %v513, 2139095040
        %v4716 = vshrl.u32 %v4715, 23
        %v4717 = vsub.s32 %v4716, 127
        %v4718 = vand.u32 2147483647, %v513
        %v4719 = vand.u32 %v4718, 8388607
        %v4720 = vor.u32 %v4719, 8388608
        %v4721 = vsub.s32 0, %v4720
        %v4722 = vadd.s32 %v4717, 1
        %vm4723 = vcmp.gt.s32.totalorder %v4722, 0
        %v4724 = vsel %vm4723, %v4722, 0
        %v4725 = vshrl.u32 %v4724, 5
        %v4726 = vand.u32 %v4724, 31
        %v4727 = vsub.s32 32, %v4726
        %v4728 = vshrl.u32 683565275, %v4727
        %v4729 = vshll.u32 683565275, %v4726
        %v4730 = vshrl.u32 2475754826, %v4727
        %v4731 = vor.u32 %v4729, %v4730
        %v4732 = vshll.u32 2475754826, %v4726
        %v4733 = vshrl.u32 2131351028, %v4727
        %v4734 = vor.u32 %v4732, %v4733
        %v4735 = vshll.u32 2131351028, %v4726
        %v4736 = vshrl.u32 2102212464, %v4727
        %v4737 = vor.u32 %v4735, %v4736
        %v4738 = vshll.u32 2102212464, %v4726
        %v4739 = vshrl.u32 920167782, %v4727
        %v4740 = vor.u32 %v4738, %v4739
        %v4741 = vshll.u32 920167782, %v4726
        %v4742 = vshrl.u32 1326507024, %v4727
        %v4743 = vor.u32 %v4741, %v4742
        %vm4744 = vcmp.lt.s32.totalorder %v4725, 1
        %vm4745 = vcmp.lt.s32.totalorder %v4725, 2
        %vm4746 = vcmp.lt.s32.totalorder %v4725, 3
        %vm4747 = vcmp.lt.s32.totalorder %v4725, 4
        %v4748 = vsel %vm4744, %v4728, %v4731
        %v4749 = vsel %vm4747, %v4737, 2102212464
        %v4750 = vsel %vm4746, %v4734, %v4749
        %v4751 = vsel %vm4745, %v4748, %v4750
        %v4752 = vsel %vm4744, %v4731, %v4734
        %v4753 = vsel %vm4747, %v4740, 920167782
        %v4754 = vsel %vm4746, %v4737, %v4753
        %v4755 = vsel %vm4745, %v4752, %v4754
        %v4756 = vsel %vm4744, %v4734, %v4737
        %v4757 = vsel %vm4747, %v4743, 1326507024
        %v4758 = vsel %vm4746, %v4740, %v4757
        %v4759 = vsel %vm4745, %v4756, %v4758
        %v4760 = vshll.u32 %v4720, 8
        %v4761 = vmul.u32.u64.compose %v4760, %v4759
        %v4762 = vextract.low.u32 %v4761
        %v4763 = vextract.high.u32 %v4761
        %v4764 = vmul.u32.u64.compose %v4760, %v4755
        %v4765 = vextract.low.u32 %v4764
        %v4766 = vextract.high.u32 %v4764
        %v4767 = vmul.u32 %v4760, %v4751
        %v4768 = vadd.s32 %v4763, %v4765
        %vm4769 = vc.u32 %v4763, %v4765
        %v4770 = vadd.s32 %v4766, 1
        %v4771 = vsel %vm4769, %v4770, %v4766
        %v4772 = vadd.s32 %v4767, %v4771
        %v4773 = vadd.s32 %v4772, 536870912
        %v4774 = vshrl.u32 %v4773, 30
        %v4775 = vshll.u32 %v4774, 30
        %v4776 = vsub.s32 %v4772, %v4775
        %vm4777 = vcmp.lt.s32.totalorder %v4776, 0
        %v4778 = vsub.s32 0, %v4776
        %v4779 = vsel %vm4777, %v4778, %v4776
        %v4780 = vclz %v4779
        %v4781 = vsub.s32 %v4780, 2
        %vm4782 = vcmp.gt.s32.totalorder 0, %v4781
        %v4783 = vsel %vm4782, 0, %v4781
        %v4784 = vsub.s32 32, %v4783
        %v4785 = vshll.u32 %v4776, %v4783
        %v4786 = vshrl.u32 %v4768, %v4784
        %v4787 = vor.u32 %v4785, %v4786
        %v4788 = vsub.s32 4294967266, %v4783
        %v4789 = vadd.s32 %v4788, 127
        %v4790 = vshll.u32 %v4789, 23
        %v4791 = vor.u32 4788187, %v4790
        %v4792 = vand.u32 2147483647, %v4791
        %v4794 = vcvt.s32.f32 %v4787
        %v4795 = vmul.f32 %v4794, %v4792
        %v4796 = vxor.u32 %v4795, 2147483648
        %v4797 = vsel %vm4714, %v4796, %v4795
        %v4798 = vsub.s32 4, %v4774
        %v4799 = vsel %vm4714, %v4798, %v4774
        %v4800 = vsel %vm4713, %v513, %v4797
        %v4801 = vsel %vm4713, 0, %v4799
        %v4802 = vcosq.f32.pop %v4800
        %v4803 = vsinq.f32.pop %v4800
        %vm4804 = vweird.f32 %v513
        %v4805 = vadd.s32 %v4801, 3
        %v4806 = vand.u32 %v4805, 3
        %vm4807 = vcmp.lt.s32.totalorder %v4806, 2
        %vm4808 = vcmp.eq.s32.totalorder %v4806, 0
        %v4809 = vxor.u32 %v4803, 2147483648
        %v4810 = vsel %vm4808, %v4802, %v4809
        %vm4811 = vcmp.eq.s32.totalorder %v4806, 2
        %v4812 = vxor.u32 %v4802, 2147483648
        %v4813 = vsel %vm4811, %v4812, %v4803
        %v4814 = vsel %vm4807, %v4810, %v4813
        %v4815 = vsel %vm4804, nan, %v4814
        %v4816 = vand.u32 2147483647, %v514
        %vm4817 = vcmp.le.f32.partialorder %v4816, 0.7853982
        %vm4818 = vcmp.lt.s32.totalorder %v514, 0
        %v4819 = vand.u32 %v514, 2139095040
        %v4820 = vshrl.u32 %v4819, 23
        %v4821 = vsub.s32 %v4820, 127
        %v4822 = vand.u32 2147483647, %v514
        %v4823 = vand.u32 %v4822, 8388607
        %v4824 = vor.u32 %v4823, 8388608
        %v4825 = vsub.s32 0, %v4824
        %v4826 = vadd.s32 %v4821, 1
        %vm4827 = vcmp.gt.s32.totalorder %v4826, 0
        %v4828 = vsel %vm4827, %v4826, 0
        %v4829 = vshrl.u32 %v4828, 5
        %v4830 = vand.u32 %v4828, 31
        %v4831 = vsub.s32 32, %v4830
        %v4832 = vshrl.u32 683565275, %v4831
        %v4833 = vshll.u32 683565275, %v4830
        %v4834 = vshrl.u32 2475754826, %v4831
        %v4835 = vor.u32 %v4833, %v4834
        %v4836 = vshll.u32 2475754826, %v4830
        %v4837 = vshrl.u32 2131351028, %v4831
        %v4838 = vor.u32 %v4836, %v4837
        %v4839 = vshll.u32 2131351028, %v4830
        %v4840 = vshrl.u32 2102212464, %v4831
        %v4841 = vor.u32 %v4839, %v4840
        %v4842 = vshll.u32 2102212464, %v4830
        %v4843 = vshrl.u32 920167782, %v4831
        %v4844 = vor.u32 %v4842, %v4843
        %v4845 = vshll.u32 920167782, %v4830
        %v4846 = vshrl.u32 1326507024, %v4831
        %v4847 = vor.u32 %v4845, %v4846
        %vm4848 = vcmp.lt.s32.totalorder %v4829, 1
        %vm4849 = vcmp.lt.s32.totalorder %v4829, 2
        %vm4850 = vcmp.lt.s32.totalorder %v4829, 3
        %vm4851 = vcmp.lt.s32.totalorder %v4829, 4
        %v4852 = vsel %vm4848, %v4832, %v4835
        %v4853 = vsel %vm4851, %v4841, 2102212464
        %v4854 = vsel %vm4850, %v4838, %v4853
        %v4855 = vsel %vm4849, %v4852, %v4854
        %v4856 = vsel %vm4848, %v4835, %v4838
        %v4857 = vsel %vm4851, %v4844, 920167782
        %v4858 = vsel %vm4850, %v4841, %v4857
        %v4859 = vsel %vm4849, %v4856, %v4858
        %v4860 = vsel %vm4848, %v4838, %v4841
        %v4861 = vsel %vm4851, %v4847, 1326507024
        %v4862 = vsel %vm4850, %v4844, %v4861
        %v4863 = vsel %vm4849, %v4860, %v4862
        %v4864 = vshll.u32 %v4824, 8
        %v4865 = vmul.u32.u64.compose %v4864, %v4863
        %v4866 = vextract.low.u32 %v4865
        %v4867 = vextract.high.u32 %v4865
        %v4868 = vmul.u32.u64.compose %v4864, %v4859
        %v4869 = vextract.low.u32 %v4868
        %v4870 = vextract.high.u32 %v4868
        %v4871 = vmul.u32 %v4864, %v4855
        %v4872 = vadd.s32 %v4867, %v4869
        %vm4873 = vc.u32 %v4867, %v4869
        %v4874 = vadd.s32 %v4870, 1
        %v4875 = vsel %vm4873, %v4874, %v4870
        %v4876 = vadd.s32 %v4871, %v4875
        %v4877 = vadd.s32 %v4876, 536870912
        %v4878 = vshrl.u32 %v4877, 30
        %v4879 = vshll.u32 %v4878, 30
        %v4880 = vsub.s32 %v4876, %v4879
        %vm4881 = vcmp.lt.s32.totalorder %v4880, 0
        %v4882 = vsub.s32 0, %v4880
        %v4883 = vsel %vm4881, %v4882, %v4880
        %v4884 = vclz %v4883
        %v4885 = vsub.s32 %v4884, 2
        %vm4886 = vcmp.gt.s32.totalorder 0, %v4885
        %v4887 = vsel %vm4886, 0, %v4885
        %v4888 = vsub.s32 32, %v4887
        %v4889 = vshll.u32 %v4880, %v4887
        %v4890 = vshrl.u32 %v4872, %v4888
        %v4891 = vor.u32 %v4889, %v4890
        %v4892 = vsub.s32 4294967266, %v4887
        %v4893 = vadd.s32 %v4892, 127
        %v4894 = vshll.u32 %v4893, 23
        %v4895 = vor.u32 4788187, %v4894
        %v4896 = vand.u32 2147483647, %v4895
        %v4898 = vcvt.s32.f32 %v4891
        %v4899 = vmul.f32 %v4898, %v4896
        %v4900 = vxor.u32 %v4899, 2147483648
        %v4901 = vsel %vm4818, %v4900, %v4899
        %v4902 = vsub.s32 4, %v4878
        %v4903 = vsel %vm4818, %v4902, %v4878
        %v4904 = vsel %vm4817, %v514, %v4901
        %v4905 = vsel %vm4817, 0, %v4903
        %v4906 = vcosq.f32.pop %v4904
        %v4907 = vsinq.f32.pop %v4904
        %vm4908 = vweird.f32 %v514
        %v4909 = vadd.s32 %v4905, 3
        %v4910 = vand.u32 %v4909, 3
        %vm4911 = vcmp.lt.s32.totalorder %v4910, 2
        %vm4912 = vcmp.eq.s32.totalorder %v4910, 0
        %v4913 = vxor.u32 %v4907, 2147483648
        %v4914 = vsel %vm4912, %v4906, %v4913
        %vm4915 = vcmp.eq.s32.totalorder %v4910, 2
        %v4916 = vxor.u32 %v4906, 2147483648
        %v4917 = vsel %vm4915, %v4916, %v4907
        %v4918 = vsel %vm4911, %v4914, %v4917
        %v4919 = vsel %vm4908, nan, %v4918
        %v4920 = vand.u32 2147483647, %v515
        %vm4921 = vcmp.le.f32.partialorder %v4920, 0.7853982
        %vm4922 = vcmp.lt.s32.totalorder %v515, 0
        %v4923 = vand.u32 %v515, 2139095040
        %v4924 = vshrl.u32 %v4923, 23
        %v4925 = vsub.s32 %v4924, 127
        %v4926 = vand.u32 2147483647, %v515
        %v4927 = vand.u32 %v4926, 8388607
        %v4928 = vor.u32 %v4927, 8388608
        %v4929 = vsub.s32 0, %v4928
        %v4930 = vadd.s32 %v4925, 1
        %vm4931 = vcmp.gt.s32.totalorder %v4930, 0
        %v4932 = vsel %vm4931, %v4930, 0
        %v4933 = vshrl.u32 %v4932, 5
        %v4934 = vand.u32 %v4932, 31
        %v4935 = vsub.s32 32, %v4934
        %v4936 = vshrl.u32 683565275, %v4935
        %v4937 = vshll.u32 683565275, %v4934
        %v4938 = vshrl.u32 2475754826, %v4935
        %v4939 = vor.u32 %v4937, %v4938
        %v4940 = vshll.u32 2475754826, %v4934
        %v4941 = vshrl.u32 2131351028, %v4935
        %v4942 = vor.u32 %v4940, %v4941
        %v4943 = vshll.u32 2131351028, %v4934
        %v4944 = vshrl.u32 2102212464, %v4935
        %v4945 = vor.u32 %v4943, %v4944
        %v4946 = vshll.u32 2102212464, %v4934
        %v4947 = vshrl.u32 920167782, %v4935
        %v4948 = vor.u32 %v4946, %v4947
        %v4949 = vshll.u32 920167782, %v4934
        %v4950 = vshrl.u32 1326507024, %v4935
        %v4951 = vor.u32 %v4949, %v4950
        %vm4952 = vcmp.lt.s32.totalorder %v4933, 1
        %vm4953 = vcmp.lt.s32.totalorder %v4933, 2
        %vm4954 = vcmp.lt.s32.totalorder %v4933, 3
        %vm4955 = vcmp.lt.s32.totalorder %v4933, 4
        %v4956 = vsel %vm4952, %v4936, %v4939
        %v4957 = vsel %vm4955, %v4945, 2102212464
        %v4958 = vsel %vm4954, %v4942, %v4957
        %v4959 = vsel %vm4953, %v4956, %v4958
        %v4960 = vsel %vm4952, %v4939, %v4942
        %v4961 = vsel %vm4955, %v4948, 920167782
        %v4962 = vsel %vm4954, %v4945, %v4961
        %v4963 = vsel %vm4953, %v4960, %v4962
        %v4964 = vsel %vm4952, %v4942, %v4945
        %v4965 = vsel %vm4955, %v4951, 1326507024
        %v4966 = vsel %vm4954, %v4948, %v4965
        %v4967 = vsel %vm4953, %v4964, %v4966
        %v4968 = vshll.u32 %v4928, 8
        %v4969 = vmul.u32.u64.compose %v4968, %v4967
        %v4970 = vextract.low.u32 %v4969
        %v4971 = vextract.high.u32 %v4969
        %v4972 = vmul.u32.u64.compose %v4968, %v4963
        %v4973 = vextract.low.u32 %v4972
        %v4974 = vextract.high.u32 %v4972
        %v4975 = vmul.u32 %v4968, %v4959
        %v4976 = vadd.s32 %v4971, %v4973
        %vm4977 = vc.u32 %v4971, %v4973
        %v4978 = vadd.s32 %v4974, 1
        %v4979 = vsel %vm4977, %v4978, %v4974
        %v4980 = vadd.s32 %v4975, %v4979
        %v4981 = vadd.s32 %v4980, 536870912
        %v4982 = vshrl.u32 %v4981, 30
        %v4983 = vshll.u32 %v4982, 30
        %v4984 = vsub.s32 %v4980, %v4983
        %vm4985 = vcmp.lt.s32.totalorder %v4984, 0
        %v4986 = vsub.s32 0, %v4984
        %v4987 = vsel %vm4985, %v4986, %v4984
        %v4988 = vclz %v4987
        %v4989 = vsub.s32 %v4988, 2
        %vm4990 = vcmp.gt.s32.totalorder 0, %v4989
        %v4991 = vsel %vm4990, 0, %v4989
        %v4992 = vsub.s32 32, %v4991
        %v4993 = vshll.u32 %v4984, %v4991
        %v4994 = vshrl.u32 %v4976, %v4992
        %v4995 = vor.u32 %v4993, %v4994
        %v4996 = vsub.s32 4294967266, %v4991
        %v4997 = vadd.s32 %v4996, 127
        %v4998 = vshll.u32 %v4997, 23
        %v4999 = vor.u32 4788187, %v4998
        %v5000 = vand.u32 2147483647, %v4999
        %v5002 = vcvt.s32.f32 %v4995
        %v5003 = vmul.f32 %v5002, %v5000
        %v5004 = vxor.u32 %v5003, 2147483648
        %v5005 = vsel %vm4922, %v5004, %v5003
        %v5006 = vsub.s32 4, %v4982
        %v5007 = vsel %vm4922, %v5006, %v4982
        %v5008 = vsel %vm4921, %v515, %v5005
        %v5009 = vsel %vm4921, 0, %v5007
        %v5010 = vcosq.f32.pop %v5008
        %v5011 = vsinq.f32.pop %v5008
        %vm5012 = vweird.f32 %v515
        %v5013 = vadd.s32 %v5009, 3
        %v5014 = vand.u32 %v5013, 3
        %vm5015 = vcmp.lt.s32.totalorder %v5014, 2
        %vm5016 = vcmp.eq.s32.totalorder %v5014, 0
        %v5017 = vxor.u32 %v5011, 2147483648
        %v5018 = vsel %vm5016, %v5010, %v5017
        %vm5019 = vcmp.eq.s32.totalorder %v5014, 2
        %v5020 = vxor.u32 %v5010, 2147483648
        %v5021 = vsel %vm5019, %v5020, %v5011
        %v5022 = vsel %vm5015, %v5018, %v5021
        %v5023 = vsel %vm5012, nan, %v5022
        %v5024 = vand.u32 2147483647, %v516
        %vm5025 = vcmp.le.f32.partialorder %v5024, 0.7853982
        %vm5026 = vcmp.lt.s32.totalorder %v516, 0
        %v5027 = vand.u32 %v516, 2139095040
        %v5028 = vshrl.u32 %v5027, 23
        %v5029 = vsub.s32 %v5028, 127
        %v5030 = vand.u32 2147483647, %v516
        %v5031 = vand.u32 %v5030, 8388607
        %v5032 = vor.u32 %v5031, 8388608
        %v5033 = vsub.s32 0, %v5032
        %v5034 = vadd.s32 %v5029, 1
        %vm5035 = vcmp.gt.s32.totalorder %v5034, 0
        %v5036 = vsel %vm5035, %v5034, 0
        %v5037 = vshrl.u32 %v5036, 5
        %v5038 = vand.u32 %v5036, 31
        %v5039 = vsub.s32 32, %v5038
        %v5040 = vshrl.u32 683565275, %v5039
        %v5041 = vshll.u32 683565275, %v5038
        %v5042 = vshrl.u32 2475754826, %v5039
        %v5043 = vor.u32 %v5041, %v5042
        %v5044 = vshll.u32 2475754826, %v5038
        %v5045 = vshrl.u32 2131351028, %v5039
        %v5046 = vor.u32 %v5044, %v5045
        %v5047 = vshll.u32 2131351028, %v5038
        %v5048 = vshrl.u32 2102212464, %v5039
        %v5049 = vor.u32 %v5047, %v5048
        %v5050 = vshll.u32 2102212464, %v5038
        %v5051 = vshrl.u32 920167782, %v5039
        %v5052 = vor.u32 %v5050, %v5051
        %v5053 = vshll.u32 920167782, %v5038
        %v5054 = vshrl.u32 1326507024, %v5039
        %v5055 = vor.u32 %v5053, %v5054
        %vm5056 = vcmp.lt.s32.totalorder %v5037, 1
        %vm5057 = vcmp.lt.s32.totalorder %v5037, 2
        %vm5058 = vcmp.lt.s32.totalorder %v5037, 3
        %vm5059 = vcmp.lt.s32.totalorder %v5037, 4
        %v5060 = vsel %vm5056, %v5040, %v5043
        %v5061 = vsel %vm5059, %v5049, 2102212464
        %v5062 = vsel %vm5058, %v5046, %v5061
        %v5063 = vsel %vm5057, %v5060, %v5062
        %v5064 = vsel %vm5056, %v5043, %v5046
        %v5065 = vsel %vm5059, %v5052, 920167782
        %v5066 = vsel %vm5058, %v5049, %v5065
        %v5067 = vsel %vm5057, %v5064, %v5066
        %v5068 = vsel %vm5056, %v5046, %v5049
        %v5069 = vsel %vm5059, %v5055, 1326507024
        %v5070 = vsel %vm5058, %v5052, %v5069
        %v5071 = vsel %vm5057, %v5068, %v5070
        %v5072 = vshll.u32 %v5032, 8
        %v5073 = vmul.u32.u64.compose %v5072, %v5071
        %v5074 = vextract.low.u32 %v5073
        %v5075 = vextract.high.u32 %v5073
        %v5076 = vmul.u32.u64.compose %v5072, %v5067
        %v5077 = vextract.low.u32 %v5076
        %v5078 = vextract.high.u32 %v5076
        %v5079 = vmul.u32 %v5072, %v5063
        %v5080 = vadd.s32 %v5075, %v5077
        %vm5081 = vc.u32 %v5075, %v5077
        %v5082 = vadd.s32 %v5078, 1
        %v5083 = vsel %vm5081, %v5082, %v5078
        %v5084 = vadd.s32 %v5079, %v5083
        %v5085 = vadd.s32 %v5084, 536870912
        %v5086 = vshrl.u32 %v5085, 30
        %v5087 = vshll.u32 %v5086, 30
        %v5088 = vsub.s32 %v5084, %v5087
        %vm5089 = vcmp.lt.s32.totalorder %v5088, 0
        %v5090 = vsub.s32 0, %v5088
        %v5091 = vsel %vm5089, %v5090, %v5088
        %v5092 = vclz %v5091
        %v5093 = vsub.s32 %v5092, 2
        %vm5094 = vcmp.gt.s32.totalorder 0, %v5093
        %v5095 = vsel %vm5094, 0, %v5093
        %v5096 = vsub.s32 32, %v5095
        %v5097 = vshll.u32 %v5088, %v5095
        %v5098 = vshrl.u32 %v5080, %v5096
        %v5099 = vor.u32 %v5097, %v5098
        %v5100 = vsub.s32 4294967266, %v5095
        %v5101 = vadd.s32 %v5100, 127
        %v5102 = vshll.u32 %v5101, 23
        %v5103 = vor.u32 4788187, %v5102
        %v5104 = vand.u32 2147483647, %v5103
        %v5106 = vcvt.s32.f32 %v5099
        %v5107 = vmul.f32 %v5106, %v5104
        %v5108 = vxor.u32 %v5107, 2147483648
        %v5109 = vsel %vm5026, %v5108, %v5107
        %v5110 = vsub.s32 4, %v5086
        %v5111 = vsel %vm5026, %v5110, %v5086
        %v5112 = vsel %vm5025, %v516, %v5109
        %v5113 = vsel %vm5025, 0, %v5111
        %v5114 = vcosq.f32.pop %v5112
        %v5115 = vsinq.f32.pop %v5112
        %vm5116 = vweird.f32 %v516
        %v5117 = vadd.s32 %v5113, 3
        %v5118 = vand.u32 %v5117, 3
        %vm5119 = vcmp.lt.s32.totalorder %v5118, 2
        %vm5120 = vcmp.eq.s32.totalorder %v5118, 0
        %v5121 = vxor.u32 %v5115, 2147483648
        %v5122 = vsel %vm5120, %v5114, %v5121
        %vm5123 = vcmp.eq.s32.totalorder %v5118, 2
        %v5124 = vxor.u32 %v5114, 2147483648
        %v5125 = vsel %vm5123, %v5124, %v5115
        %v5126 = vsel %vm5119, %v5122, %v5125
        %v5127 = vsel %vm5116, nan, %v5126
        %v5128 = vand.u32 2147483647, %v517
        %vm5129 = vcmp.le.f32.partialorder %v5128, 0.7853982
        %vm5130 = vcmp.lt.s32.totalorder %v517, 0
        %v5131 = vand.u32 %v517, 2139095040
        %v5132 = vshrl.u32 %v5131, 23
        %v5133 = vsub.s32 %v5132, 127
        %v5134 = vand.u32 2147483647, %v517
        %v5135 = vand.u32 %v5134, 8388607
        %v5136 = vor.u32 %v5135, 8388608
        %v5137 = vsub.s32 0, %v5136
        %v5138 = vadd.s32 %v5133, 1
        %vm5139 = vcmp.gt.s32.totalorder %v5138, 0
        %v5140 = vsel %vm5139, %v5138, 0
        %v5141 = vshrl.u32 %v5140, 5
        %v5142 = vand.u32 %v5140, 31
        %v5143 = vsub.s32 32, %v5142
        %v5144 = vshrl.u32 683565275, %v5143
        %v5145 = vshll.u32 683565275, %v5142
        %v5146 = vshrl.u32 2475754826, %v5143
        %v5147 = vor.u32 %v5145, %v5146
        %v5148 = vshll.u32 2475754826, %v5142
        %v5149 = vshrl.u32 2131351028, %v5143
        %v5150 = vor.u32 %v5148, %v5149
        %v5151 = vshll.u32 2131351028, %v5142
        %v5152 = vshrl.u32 2102212464, %v5143
        %v5153 = vor.u32 %v5151, %v5152
        %v5154 = vshll.u32 2102212464, %v5142
        %v5155 = vshrl.u32 920167782, %v5143
        %v5156 = vor.u32 %v5154, %v5155
        %v5157 = vshll.u32 920167782, %v5142
        %v5158 = vshrl.u32 1326507024, %v5143
        %v5159 = vor.u32 %v5157, %v5158
        %vm5160 = vcmp.lt.s32.totalorder %v5141, 1
        %vm5161 = vcmp.lt.s32.totalorder %v5141, 2
        %vm5162 = vcmp.lt.s32.totalorder %v5141, 3
        %vm5163 = vcmp.lt.s32.totalorder %v5141, 4
        %v5164 = vsel %vm5160, %v5144, %v5147
        %v5165 = vsel %vm5163, %v5153, 2102212464
        %v5166 = vsel %vm5162, %v5150, %v5165
        %v5167 = vsel %vm5161, %v5164, %v5166
        %v5168 = vsel %vm5160, %v5147, %v5150
        %v5169 = vsel %vm5163, %v5156, 920167782
        %v5170 = vsel %vm5162, %v5153, %v5169
        %v5171 = vsel %vm5161, %v5168, %v5170
        %v5172 = vsel %vm5160, %v5150, %v5153
        %v5173 = vsel %vm5163, %v5159, 1326507024
        %v5174 = vsel %vm5162, %v5156, %v5173
        %v5175 = vsel %vm5161, %v5172, %v5174
        %v5176 = vshll.u32 %v5136, 8
        %v5177 = vmul.u32.u64.compose %v5176, %v5175
        %v5178 = vextract.low.u32 %v5177
        %v5179 = vextract.high.u32 %v5177
        %v5180 = vmul.u32.u64.compose %v5176, %v5171
        %v5181 = vextract.low.u32 %v5180
        %v5182 = vextract.high.u32 %v5180
        %v5183 = vmul.u32 %v5176, %v5167
        %v5184 = vadd.s32 %v5179, %v5181
        %vm5185 = vc.u32 %v5179, %v5181
        %v5186 = vadd.s32 %v5182, 1
        %v5187 = vsel %vm5185, %v5186, %v5182
        %v5188 = vadd.s32 %v5183, %v5187
        %v5189 = vadd.s32 %v5188, 536870912
        %v5190 = vshrl.u32 %v5189, 30
        %v5191 = vshll.u32 %v5190, 30
        %v5192 = vsub.s32 %v5188, %v5191
        %vm5193 = vcmp.lt.s32.totalorder %v5192, 0
        %v5194 = vsub.s32 0, %v5192
        %v5195 = vsel %vm5193, %v5194, %v5192
        %v5196 = vclz %v5195
        %v5197 = vsub.s32 %v5196, 2
        %vm5198 = vcmp.gt.s32.totalorder 0, %v5197
        %v5199 = vsel %vm5198, 0, %v5197
        %v5200 = vsub.s32 32, %v5199
        %v5201 = vshll.u32 %v5192, %v5199
        %v5202 = vshrl.u32 %v5184, %v5200
        %v5203 = vor.u32 %v5201, %v5202
        %v5204 = vsub.s32 4294967266, %v5199
        %v5205 = vadd.s32 %v5204, 127
        %v5206 = vshll.u32 %v5205, 23
        %v5207 = vor.u32 4788187, %v5206
        %v5208 = vand.u32 2147483647, %v5207
        %v5210 = vcvt.s32.f32 %v5203
        %v5211 = vmul.f32 %v5210, %v5208
        %v5212 = vxor.u32 %v5211, 2147483648
        %v5213 = vsel %vm5130, %v5212, %v5211
        %v5214 = vsub.s32 4, %v5190
        %v5215 = vsel %vm5130, %v5214, %v5190
        %v5216 = vsel %vm5129, %v517, %v5213
        %v5217 = vsel %vm5129, 0, %v5215
        %v5218 = vcosq.f32.pop %v5216
        %v5219 = vsinq.f32.pop %v5216
        %vm5220 = vweird.f32 %v517
        %v5221 = vadd.s32 %v5217, 3
        %v5222 = vand.u32 %v5221, 3
        %vm5223 = vcmp.lt.s32.totalorder %v5222, 2
        %vm5224 = vcmp.eq.s32.totalorder %v5222, 0
        %v5225 = vxor.u32 %v5219, 2147483648
        %v5226 = vsel %vm5224, %v5218, %v5225
        %vm5227 = vcmp.eq.s32.totalorder %v5222, 2
        %v5228 = vxor.u32 %v5218, 2147483648
        %v5229 = vsel %vm5227, %v5228, %v5219
        %v5230 = vsel %vm5223, %v5226, %v5229
        %v5231 = vsel %vm5220, nan, %v5230
        %v5232 = vand.u32 2147483647, %v518
        %vm5233 = vcmp.le.f32.partialorder %v5232, 0.7853982
        %vm5234 = vcmp.lt.s32.totalorder %v518, 0
        %v5235 = vand.u32 %v518, 2139095040
        %v5236 = vshrl.u32 %v5235, 23
        %v5237 = vsub.s32 %v5236, 127
        %v5238 = vand.u32 2147483647, %v518
        %v5239 = vand.u32 %v5238, 8388607
        %v5240 = vor.u32 %v5239, 8388608
        %v5241 = vsub.s32 0, %v5240
        %v5242 = vadd.s32 %v5237, 1
        %vm5243 = vcmp.gt.s32.totalorder %v5242, 0
        %v5244 = vsel %vm5243, %v5242, 0
        %v5245 = vshrl.u32 %v5244, 5
        %v5246 = vand.u32 %v5244, 31
        %v5247 = vsub.s32 32, %v5246
        %v5248 = vshrl.u32 683565275, %v5247
        %v5249 = vshll.u32 683565275, %v5246
        %v5250 = vshrl.u32 2475754826, %v5247
        %v5251 = vor.u32 %v5249, %v5250
        %v5252 = vshll.u32 2475754826, %v5246
        %v5253 = vshrl.u32 2131351028, %v5247
        %v5254 = vor.u32 %v5252, %v5253
        %v5255 = vshll.u32 2131351028, %v5246
        %v5256 = vshrl.u32 2102212464, %v5247
        %v5257 = vor.u32 %v5255, %v5256
        %v5258 = vshll.u32 2102212464, %v5246
        %v5259 = vshrl.u32 920167782, %v5247
        %v5260 = vor.u32 %v5258, %v5259
        %v5261 = vshll.u32 920167782, %v5246
        %v5262 = vshrl.u32 1326507024, %v5247
        %v5263 = vor.u32 %v5261, %v5262
        %vm5264 = vcmp.lt.s32.totalorder %v5245, 1
        %vm5265 = vcmp.lt.s32.totalorder %v5245, 2
        %vm5266 = vcmp.lt.s32.totalorder %v5245, 3
        %vm5267 = vcmp.lt.s32.totalorder %v5245, 4
        %v5268 = vsel %vm5264, %v5248, %v5251
        %v5269 = vsel %vm5267, %v5257, 2102212464
        %v5270 = vsel %vm5266, %v5254, %v5269
        %v5271 = vsel %vm5265, %v5268, %v5270
        %v5272 = vsel %vm5264, %v5251, %v5254
        %v5273 = vsel %vm5267, %v5260, 920167782
        %v5274 = vsel %vm5266, %v5257, %v5273
        %v5275 = vsel %vm5265, %v5272, %v5274
        %v5276 = vsel %vm5264, %v5254, %v5257
        %v5277 = vsel %vm5267, %v5263, 1326507024
        %v5278 = vsel %vm5266, %v5260, %v5277
        %v5279 = vsel %vm5265, %v5276, %v5278
        %v5280 = vshll.u32 %v5240, 8
        %v5281 = vmul.u32.u64.compose %v5280, %v5279
        %v5282 = vextract.low.u32 %v5281
        %v5283 = vextract.high.u32 %v5281
        %v5284 = vmul.u32.u64.compose %v5280, %v5275
        %v5285 = vextract.low.u32 %v5284
        %v5286 = vextract.high.u32 %v5284
        %v5287 = vmul.u32 %v5280, %v5271
        %v5288 = vadd.s32 %v5283, %v5285
        %vm5289 = vc.u32 %v5283, %v5285
        %v5290 = vadd.s32 %v5286, 1
        %v5291 = vsel %vm5289, %v5290, %v5286
        %v5292 = vadd.s32 %v5287, %v5291
        %v5293 = vadd.s32 %v5292, 536870912
        %v5294 = vshrl.u32 %v5293, 30
        %v5295 = vshll.u32 %v5294, 30
        %v5296 = vsub.s32 %v5292, %v5295
        %vm5297 = vcmp.lt.s32.totalorder %v5296, 0
        %v5298 = vsub.s32 0, %v5296
        %v5299 = vsel %vm5297, %v5298, %v5296
        %v5300 = vclz %v5299
        %v5301 = vsub.s32 %v5300, 2
        %vm5302 = vcmp.gt.s32.totalorder 0, %v5301
        %v5303 = vsel %vm5302, 0, %v5301
        %v5304 = vsub.s32 32, %v5303
        %v5305 = vshll.u32 %v5296, %v5303
        %v5306 = vshrl.u32 %v5288, %v5304
        %v5307 = vor.u32 %v5305, %v5306
        %v5308 = vsub.s32 4294967266, %v5303
        %v5309 = vadd.s32 %v5308, 127
        %v5310 = vshll.u32 %v5309, 23
        %v5311 = vor.u32 4788187, %v5310
        %v5312 = vand.u32 2147483647, %v5311
        %v5314 = vcvt.s32.f32 %v5307
        %v5315 = vmul.f32 %v5314, %v5312
        %v5316 = vxor.u32 %v5315, 2147483648
        %v5317 = vsel %vm5234, %v5316, %v5315
        %v5318 = vsub.s32 4, %v5294
        %v5319 = vsel %vm5234, %v5318, %v5294
        %v5320 = vsel %vm5233, %v518, %v5317
        %v5321 = vsel %vm5233, 0, %v5319
        %v5322 = vcosq.f32.pop %v5320
        %v5323 = vsinq.f32.pop %v5320
        %vm5324 = vweird.f32 %v518
        %v5325 = vadd.s32 %v5321, 3
        %v5326 = vand.u32 %v5325, 3
        %vm5327 = vcmp.lt.s32.totalorder %v5326, 2
        %vm5328 = vcmp.eq.s32.totalorder %v5326, 0
        %v5329 = vxor.u32 %v5323, 2147483648
        %v5330 = vsel %vm5328, %v5322, %v5329
        %vm5331 = vcmp.eq.s32.totalorder %v5326, 2
        %v5332 = vxor.u32 %v5322, 2147483648
        %v5333 = vsel %vm5331, %v5332, %v5323
        %v5334 = vsel %vm5327, %v5330, %v5333
        %v5335 = vsel %vm5324, nan, %v5334
        %v5336 = vand.u32 2147483647, %v519
        %vm5337 = vcmp.le.f32.partialorder %v5336, 0.7853982
        %vm5338 = vcmp.lt.s32.totalorder %v519, 0
        %v5339 = vand.u32 %v519, 2139095040
        %v5340 = vshrl.u32 %v5339, 23
        %v5341 = vsub.s32 %v5340, 127
        %v5342 = vand.u32 2147483647, %v519
        %v5343 = vand.u32 %v5342, 8388607
        %v5344 = vor.u32 %v5343, 8388608
        %v5345 = vsub.s32 0, %v5344
        %v5346 = vadd.s32 %v5341, 1
        %vm5347 = vcmp.gt.s32.totalorder %v5346, 0
        %v5348 = vsel %vm5347, %v5346, 0
        %v5349 = vshrl.u32 %v5348, 5
        %v5350 = vand.u32 %v5348, 31
        %v5351 = vsub.s32 32, %v5350
        %v5352 = vshrl.u32 683565275, %v5351
        %v5353 = vshll.u32 683565275, %v5350
        %v5354 = vshrl.u32 2475754826, %v5351
        %v5355 = vor.u32 %v5353, %v5354
        %v5356 = vshll.u32 2475754826, %v5350
        %v5357 = vshrl.u32 2131351028, %v5351
        %v5358 = vor.u32 %v5356, %v5357
        %v5359 = vshll.u32 2131351028, %v5350
        %v5360 = vshrl.u32 2102212464, %v5351
        %v5361 = vor.u32 %v5359, %v5360
        %v5362 = vshll.u32 2102212464, %v5350
        %v5363 = vshrl.u32 920167782, %v5351
        %v5364 = vor.u32 %v5362, %v5363
        %v5365 = vshll.u32 920167782, %v5350
        %v5366 = vshrl.u32 1326507024, %v5351
        %v5367 = vor.u32 %v5365, %v5366
        %vm5368 = vcmp.lt.s32.totalorder %v5349, 1
        %vm5369 = vcmp.lt.s32.totalorder %v5349, 2
        %vm5370 = vcmp.lt.s32.totalorder %v5349, 3
        %vm5371 = vcmp.lt.s32.totalorder %v5349, 4
        %v5372 = vsel %vm5368, %v5352, %v5355
        %v5373 = vsel %vm5371, %v5361, 2102212464
        %v5374 = vsel %vm5370, %v5358, %v5373
        %v5375 = vsel %vm5369, %v5372, %v5374
        %v5376 = vsel %vm5368, %v5355, %v5358
        %v5377 = vsel %vm5371, %v5364, 920167782
        %v5378 = vsel %vm5370, %v5361, %v5377
        %v5379 = vsel %vm5369, %v5376, %v5378
        %v5380 = vsel %vm5368, %v5358, %v5361
        %v5381 = vsel %vm5371, %v5367, 1326507024
        %v5382 = vsel %vm5370, %v5364, %v5381
        %v5383 = vsel %vm5369, %v5380, %v5382
        %v5384 = vshll.u32 %v5344, 8
        %v5385 = vmul.u32.u64.compose %v5384, %v5383
        %v5386 = vextract.low.u32 %v5385
        %v5387 = vextract.high.u32 %v5385
        %v5388 = vmul.u32.u64.compose %v5384, %v5379
        %v5389 = vextract.low.u32 %v5388
        %v5390 = vextract.high.u32 %v5388
        %v5391 = vmul.u32 %v5384, %v5375
        %v5392 = vadd.s32 %v5387, %v5389
        %vm5393 = vc.u32 %v5387, %v5389
        %v5394 = vadd.s32 %v5390, 1
        %v5395 = vsel %vm5393, %v5394, %v5390
        %v5396 = vadd.s32 %v5391, %v5395
        %v5397 = vadd.s32 %v5396, 536870912
        %v5398 = vshrl.u32 %v5397, 30
        %v5399 = vshll.u32 %v5398, 30
        %v5400 = vsub.s32 %v5396, %v5399
        %vm5401 = vcmp.lt.s32.totalorder %v5400, 0
        %v5402 = vsub.s32 0, %v5400
        %v5403 = vsel %vm5401, %v5402, %v5400
        %v5404 = vclz %v5403
        %v5405 = vsub.s32 %v5404, 2
        %vm5406 = vcmp.gt.s32.totalorder 0, %v5405
        %v5407 = vsel %vm5406, 0, %v5405
        %v5408 = vsub.s32 32, %v5407
        %v5409 = vshll.u32 %v5400, %v5407
        %v5410 = vshrl.u32 %v5392, %v5408
        %v5411 = vor.u32 %v5409, %v5410
        %v5412 = vsub.s32 4294967266, %v5407
        %v5413 = vadd.s32 %v5412, 127
        %v5414 = vshll.u32 %v5413, 23
        %v5415 = vor.u32 4788187, %v5414
        %v5416 = vand.u32 2147483647, %v5415
        %v5418 = vcvt.s32.f32 %v5411
        %v5419 = vmul.f32 %v5418, %v5416
        %v5420 = vxor.u32 %v5419, 2147483648
        %v5421 = vsel %vm5338, %v5420, %v5419
        %v5422 = vsub.s32 4, %v5398
        %v5423 = vsel %vm5338, %v5422, %v5398
        %v5424 = vsel %vm5337, %v519, %v5421
        %v5425 = vsel %vm5337, 0, %v5423
        %v5426 = vcosq.f32.pop %v5424
        %v5427 = vsinq.f32.pop %v5424
        %vm5428 = vweird.f32 %v519
        %v5429 = vadd.s32 %v5425, 3
        %v5430 = vand.u32 %v5429, 3
        %vm5431 = vcmp.lt.s32.totalorder %v5430, 2
        %vm5432 = vcmp.eq.s32.totalorder %v5430, 0
        %v5433 = vxor.u32 %v5427, 2147483648
        %v5434 = vsel %vm5432, %v5426, %v5433
        %vm5435 = vcmp.eq.s32.totalorder %v5430, 2
        %v5436 = vxor.u32 %v5426, 2147483648
        %v5437 = vsel %vm5435, %v5436, %v5427
        %v5438 = vsel %vm5431, %v5434, %v5437
        %v5439 = vsel %vm5428, nan, %v5438
        %v5440 = vand.u32 2147483647, %v520
        %vm5441 = vcmp.le.f32.partialorder %v5440, 0.7853982
        %vm5442 = vcmp.lt.s32.totalorder %v520, 0
        %v5443 = vand.u32 %v520, 2139095040
        %v5444 = vshrl.u32 %v5443, 23
        %v5445 = vsub.s32 %v5444, 127
        %v5446 = vand.u32 2147483647, %v520
        %v5447 = vand.u32 %v5446, 8388607
        %v5448 = vor.u32 %v5447, 8388608
        %v5449 = vsub.s32 0, %v5448
        %v5450 = vadd.s32 %v5445, 1
        %vm5451 = vcmp.gt.s32.totalorder %v5450, 0
        %v5452 = vsel %vm5451, %v5450, 0
        %v5453 = vshrl.u32 %v5452, 5
        %v5454 = vand.u32 %v5452, 31
        %v5455 = vsub.s32 32, %v5454
        %v5456 = vshrl.u32 683565275, %v5455
        %v5457 = vshll.u32 683565275, %v5454
        %v5458 = vshrl.u32 2475754826, %v5455
        %v5459 = vor.u32 %v5457, %v5458
        %v5460 = vshll.u32 2475754826, %v5454
        %v5461 = vshrl.u32 2131351028, %v5455
        %v5462 = vor.u32 %v5460, %v5461
        %v5463 = vshll.u32 2131351028, %v5454
        %v5464 = vshrl.u32 2102212464, %v5455
        %v5465 = vor.u32 %v5463, %v5464
        %v5466 = vshll.u32 2102212464, %v5454
        %v5467 = vshrl.u32 920167782, %v5455
        %v5468 = vor.u32 %v5466, %v5467
        %v5469 = vshll.u32 920167782, %v5454
        %v5470 = vshrl.u32 1326507024, %v5455
        %v5471 = vor.u32 %v5469, %v5470
        %vm5472 = vcmp.lt.s32.totalorder %v5453, 1
        %vm5473 = vcmp.lt.s32.totalorder %v5453, 2
        %vm5474 = vcmp.lt.s32.totalorder %v5453, 3
        %vm5475 = vcmp.lt.s32.totalorder %v5453, 4
        %v5476 = vsel %vm5472, %v5456, %v5459
        %v5477 = vsel %vm5475, %v5465, 2102212464
        %v5478 = vsel %vm5474, %v5462, %v5477
        %v5479 = vsel %vm5473, %v5476, %v5478
        %v5480 = vsel %vm5472, %v5459, %v5462
        %v5481 = vsel %vm5475, %v5468, 920167782
        %v5482 = vsel %vm5474, %v5465, %v5481
        %v5483 = vsel %vm5473, %v5480, %v5482
        %v5484 = vsel %vm5472, %v5462, %v5465
        %v5485 = vsel %vm5475, %v5471, 1326507024
        %v5486 = vsel %vm5474, %v5468, %v5485
        %v5487 = vsel %vm5473, %v5484, %v5486
        %v5488 = vshll.u32 %v5448, 8
        %v5489 = vmul.u32.u64.compose %v5488, %v5487
        %v5490 = vextract.low.u32 %v5489
        %v5491 = vextract.high.u32 %v5489
        %v5492 = vmul.u32.u64.compose %v5488, %v5483
        %v5493 = vextract.low.u32 %v5492
        %v5494 = vextract.high.u32 %v5492
        %v5495 = vmul.u32 %v5488, %v5479
        %v5496 = vadd.s32 %v5491, %v5493
        %vm5497 = vc.u32 %v5491, %v5493
        %v5498 = vadd.s32 %v5494, 1
        %v5499 = vsel %vm5497, %v5498, %v5494
        %v5500 = vadd.s32 %v5495, %v5499
        %v5501 = vadd.s32 %v5500, 536870912
        %v5502 = vshrl.u32 %v5501, 30
        %v5503 = vshll.u32 %v5502, 30
        %v5504 = vsub.s32 %v5500, %v5503
        %vm5505 = vcmp.lt.s32.totalorder %v5504, 0
        %v5506 = vsub.s32 0, %v5504
        %v5507 = vsel %vm5505, %v5506, %v5504
        %v5508 = vclz %v5507
        %v5509 = vsub.s32 %v5508, 2
        %vm5510 = vcmp.gt.s32.totalorder 0, %v5509
        %v5511 = vsel %vm5510, 0, %v5509
        %v5512 = vsub.s32 32, %v5511
        %v5513 = vshll.u32 %v5504, %v5511
        %v5514 = vshrl.u32 %v5496, %v5512
        %v5515 = vor.u32 %v5513, %v5514
        %v5516 = vsub.s32 4294967266, %v5511
        %v5517 = vadd.s32 %v5516, 127
        %v5518 = vshll.u32 %v5517, 23
        %v5519 = vor.u32 4788187, %v5518
        %v5520 = vand.u32 2147483647, %v5519
        %v5522 = vcvt.s32.f32 %v5515
        %v5523 = vmul.f32 %v5522, %v5520
        %v5524 = vxor.u32 %v5523, 2147483648
        %v5525 = vsel %vm5442, %v5524, %v5523
        %v5526 = vsub.s32 4, %v5502
        %v5527 = vsel %vm5442, %v5526, %v5502
        %v5528 = vsel %vm5441, %v520, %v5525
        %v5529 = vsel %vm5441, 0, %v5527
        %v5530 = vcosq.f32.pop %v5528
        %v5531 = vsinq.f32.pop %v5528
        %vm5532 = vweird.f32 %v520
        %v5533 = vadd.s32 %v5529, 3
        %v5534 = vand.u32 %v5533, 3
        %vm5535 = vcmp.lt.s32.totalorder %v5534, 2
        %vm5536 = vcmp.eq.s32.totalorder %v5534, 0
        %v5537 = vxor.u32 %v5531, 2147483648
        %v5538 = vsel %vm5536, %v5530, %v5537
        %vm5539 = vcmp.eq.s32.totalorder %v5534, 2
        %v5540 = vxor.u32 %v5530, 2147483648
        %v5541 = vsel %vm5539, %v5540, %v5531
        %v5542 = vsel %vm5535, %v5538, %v5541
        %v5543 = vsel %vm5532, nan, %v5542
        %v5544 = vand.u32 2147483647, %v521
        %vm5545 = vcmp.le.f32.partialorder %v5544, 0.7853982
        %vm5546 = vcmp.lt.s32.totalorder %v521, 0
        %v5547 = vand.u32 %v521, 2139095040
        %v5548 = vshrl.u32 %v5547, 23
        %v5549 = vsub.s32 %v5548, 127
        %v5550 = vand.u32 2147483647, %v521
        %v5551 = vand.u32 %v5550, 8388607
        %v5552 = vor.u32 %v5551, 8388608
        %v5553 = vsub.s32 0, %v5552
        %v5554 = vadd.s32 %v5549, 1
        %vm5555 = vcmp.gt.s32.totalorder %v5554, 0
        %v5556 = vsel %vm5555, %v5554, 0
        %v5557 = vshrl.u32 %v5556, 5
        %v5558 = vand.u32 %v5556, 31
        %v5559 = vsub.s32 32, %v5558
        %v5560 = vshrl.u32 683565275, %v5559
        %v5561 = vshll.u32 683565275, %v5558
        %v5562 = vshrl.u32 2475754826, %v5559
        %v5563 = vor.u32 %v5561, %v5562
        %v5564 = vshll.u32 2475754826, %v5558
        %v5565 = vshrl.u32 2131351028, %v5559
        %v5566 = vor.u32 %v5564, %v5565
        %v5567 = vshll.u32 2131351028, %v5558
        %v5568 = vshrl.u32 2102212464, %v5559
        %v5569 = vor.u32 %v5567, %v5568
        %v5570 = vshll.u32 2102212464, %v5558
        %v5571 = vshrl.u32 920167782, %v5559
        %v5572 = vor.u32 %v5570, %v5571
        %v5573 = vshll.u32 920167782, %v5558
        %v5574 = vshrl.u32 1326507024, %v5559
        %v5575 = vor.u32 %v5573, %v5574
        %vm5576 = vcmp.lt.s32.totalorder %v5557, 1
        %vm5577 = vcmp.lt.s32.totalorder %v5557, 2
        %vm5578 = vcmp.lt.s32.totalorder %v5557, 3
        %vm5579 = vcmp.lt.s32.totalorder %v5557, 4
        %v5580 = vsel %vm5576, %v5560, %v5563
        %v5581 = vsel %vm5579, %v5569, 2102212464
        %v5582 = vsel %vm5578, %v5566, %v5581
        %v5583 = vsel %vm5577, %v5580, %v5582
        %v5584 = vsel %vm5576, %v5563, %v5566
        %v5585 = vsel %vm5579, %v5572, 920167782
        %v5586 = vsel %vm5578, %v5569, %v5585
        %v5587 = vsel %vm5577, %v5584, %v5586
        %v5588 = vsel %vm5576, %v5566, %v5569
        %v5589 = vsel %vm5579, %v5575, 1326507024
        %v5590 = vsel %vm5578, %v5572, %v5589
        %v5591 = vsel %vm5577, %v5588, %v5590
        %v5592 = vshll.u32 %v5552, 8
        %v5593 = vmul.u32.u64.compose %v5592, %v5591
        %v5594 = vextract.low.u32 %v5593
        %v5595 = vextract.high.u32 %v5593
        %v5596 = vmul.u32.u64.compose %v5592, %v5587
        %v5597 = vextract.low.u32 %v5596
        %v5598 = vextract.high.u32 %v5596
        %v5599 = vmul.u32 %v5592, %v5583
        %v5600 = vadd.s32 %v5595, %v5597
        %vm5601 = vc.u32 %v5595, %v5597
        %v5602 = vadd.s32 %v5598, 1
        %v5603 = vsel %vm5601, %v5602, %v5598
        %v5604 = vadd.s32 %v5599, %v5603
        %v5605 = vadd.s32 %v5604, 536870912
        %v5606 = vshrl.u32 %v5605, 30
        %v5607 = vshll.u32 %v5606, 30
        %v5608 = vsub.s32 %v5604, %v5607
        %vm5609 = vcmp.lt.s32.totalorder %v5608, 0
        %v5610 = vsub.s32 0, %v5608
        %v5611 = vsel %vm5609, %v5610, %v5608
        %v5612 = vclz %v5611
        %v5613 = vsub.s32 %v5612, 2
        %vm5614 = vcmp.gt.s32.totalorder 0, %v5613
        %v5615 = vsel %vm5614, 0, %v5613
        %v5616 = vsub.s32 32, %v5615
        %v5617 = vshll.u32 %v5608, %v5615
        %v5618 = vshrl.u32 %v5600, %v5616
        %v5619 = vor.u32 %v5617, %v5618
        %v5620 = vsub.s32 4294967266, %v5615
        %v5621 = vadd.s32 %v5620, 127
        %v5622 = vshll.u32 %v5621, 23
        %v5623 = vor.u32 4788187, %v5622
        %v5624 = vand.u32 2147483647, %v5623
        %v5626 = vcvt.s32.f32 %v5619
        %v5627 = vmul.f32 %v5626, %v5624
        %v5628 = vxor.u32 %v5627, 2147483648
        %v5629 = vsel %vm5546, %v5628, %v5627
        %v5630 = vsub.s32 4, %v5606
        %v5631 = vsel %vm5546, %v5630, %v5606
        %v5632 = vsel %vm5545, %v521, %v5629
        %v5633 = vsel %vm5545, 0, %v5631
        %v5634 = vcosq.f32.pop %v5632
        %v5635 = vsinq.f32.pop %v5632
        %vm5636 = vweird.f32 %v521
        %v5637 = vadd.s32 %v5633, 3
        %v5638 = vand.u32 %v5637, 3
        %vm5639 = vcmp.lt.s32.totalorder %v5638, 2
        %vm5640 = vcmp.eq.s32.totalorder %v5638, 0
        %v5641 = vxor.u32 %v5635, 2147483648
        %v5642 = vsel %vm5640, %v5634, %v5641
        %vm5643 = vcmp.eq.s32.totalorder %v5638, 2
        %v5644 = vxor.u32 %v5634, 2147483648
        %v5645 = vsel %vm5643, %v5644, %v5635
        %v5646 = vsel %vm5639, %v5642, %v5645
        %v5647 = vsel %vm5636, nan, %v5646
        %v5648 = vand.u32 2147483647, %v522
        %vm5649 = vcmp.le.f32.partialorder %v5648, 0.7853982
        %vm5650 = vcmp.lt.s32.totalorder %v522, 0
        %v5651 = vand.u32 %v522, 2139095040
        %v5652 = vshrl.u32 %v5651, 23
        %v5653 = vsub.s32 %v5652, 127
        %v5654 = vand.u32 2147483647, %v522
        %v5655 = vand.u32 %v5654, 8388607
        %v5656 = vor.u32 %v5655, 8388608
        %v5657 = vsub.s32 0, %v5656
        %v5658 = vadd.s32 %v5653, 1
        %vm5659 = vcmp.gt.s32.totalorder %v5658, 0
        %v5660 = vsel %vm5659, %v5658, 0
        %v5661 = vshrl.u32 %v5660, 5
        %v5662 = vand.u32 %v5660, 31
        %v5663 = vsub.s32 32, %v5662
        %v5664 = vshrl.u32 683565275, %v5663
        %v5665 = vshll.u32 683565275, %v5662
        %v5666 = vshrl.u32 2475754826, %v5663
        %v5667 = vor.u32 %v5665, %v5666
        %v5668 = vshll.u32 2475754826, %v5662
        %v5669 = vshrl.u32 2131351028, %v5663
        %v5670 = vor.u32 %v5668, %v5669
        %v5671 = vshll.u32 2131351028, %v5662
        %v5672 = vshrl.u32 2102212464, %v5663
        %v5673 = vor.u32 %v5671, %v5672
        %v5674 = vshll.u32 2102212464, %v5662
        %v5675 = vshrl.u32 920167782, %v5663
        %v5676 = vor.u32 %v5674, %v5675
        %v5677 = vshll.u32 920167782, %v5662
        %v5678 = vshrl.u32 1326507024, %v5663
        %v5679 = vor.u32 %v5677, %v5678
        %vm5680 = vcmp.lt.s32.totalorder %v5661, 1
        %vm5681 = vcmp.lt.s32.totalorder %v5661, 2
        %vm5682 = vcmp.lt.s32.totalorder %v5661, 3
        %vm5683 = vcmp.lt.s32.totalorder %v5661, 4
        %v5684 = vsel %vm5680, %v5664, %v5667
        %v5685 = vsel %vm5683, %v5673, 2102212464
        %v5686 = vsel %vm5682, %v5670, %v5685
        %v5687 = vsel %vm5681, %v5684, %v5686
        %v5688 = vsel %vm5680, %v5667, %v5670
        %v5689 = vsel %vm5683, %v5676, 920167782
        %v5690 = vsel %vm5682, %v5673, %v5689
        %v5691 = vsel %vm5681, %v5688, %v5690
        %v5692 = vsel %vm5680, %v5670, %v5673
        %v5693 = vsel %vm5683, %v5679, 1326507024
        %v5694 = vsel %vm5682, %v5676, %v5693
        %v5695 = vsel %vm5681, %v5692, %v5694
        %v5696 = vshll.u32 %v5656, 8
        %v5697 = vmul.u32.u64.compose %v5696, %v5695
        %v5698 = vextract.low.u32 %v5697
        %v5699 = vextract.high.u32 %v5697
        %v5700 = vmul.u32.u64.compose %v5696, %v5691
        %v5701 = vextract.low.u32 %v5700
        %v5702 = vextract.high.u32 %v5700
        %v5703 = vmul.u32 %v5696, %v5687
        %v5704 = vadd.s32 %v5699, %v5701
        %vm5705 = vc.u32 %v5699, %v5701
        %v5706 = vadd.s32 %v5702, 1
        %v5707 = vsel %vm5705, %v5706, %v5702
        %v5708 = vadd.s32 %v5703, %v5707
        %v5709 = vadd.s32 %v5708, 536870912
        %v5710 = vshrl.u32 %v5709, 30
        %v5711 = vshll.u32 %v5710, 30
        %v5712 = vsub.s32 %v5708, %v5711
        %vm5713 = vcmp.lt.s32.totalorder %v5712, 0
        %v5714 = vsub.s32 0, %v5712
        %v5715 = vsel %vm5713, %v5714, %v5712
        %v5716 = vclz %v5715
        %v5717 = vsub.s32 %v5716, 2
        %vm5718 = vcmp.gt.s32.totalorder 0, %v5717
        %v5719 = vsel %vm5718, 0, %v5717
        %v5720 = vsub.s32 32, %v5719
        %v5721 = vshll.u32 %v5712, %v5719
        %v5722 = vshrl.u32 %v5704, %v5720
        %v5723 = vor.u32 %v5721, %v5722
        %v5724 = vsub.s32 4294967266, %v5719
        %v5725 = vadd.s32 %v5724, 127
        %v5726 = vshll.u32 %v5725, 23
        %v5727 = vor.u32 4788187, %v5726
        %v5728 = vand.u32 2147483647, %v5727
        %v5730 = vcvt.s32.f32 %v5723
        %v5731 = vmul.f32 %v5730, %v5728
        %v5732 = vxor.u32 %v5731, 2147483648
        %v5733 = vsel %vm5650, %v5732, %v5731
        %v5734 = vsub.s32 4, %v5710
        %v5735 = vsel %vm5650, %v5734, %v5710
        %v5736 = vsel %vm5649, %v522, %v5733
        %v5737 = vsel %vm5649, 0, %v5735
        %v5738 = vcosq.f32.pop %v5736
        %v5739 = vsinq.f32.pop %v5736
        %vm5740 = vweird.f32 %v522
        %v5741 = vadd.s32 %v5737, 3
        %v5742 = vand.u32 %v5741, 3
        %vm5743 = vcmp.lt.s32.totalorder %v5742, 2
        %vm5744 = vcmp.eq.s32.totalorder %v5742, 0
        %v5745 = vxor.u32 %v5739, 2147483648
        %v5746 = vsel %vm5744, %v5738, %v5745
        %vm5747 = vcmp.eq.s32.totalorder %v5742, 2
        %v5748 = vxor.u32 %v5738, 2147483648
        %v5749 = vsel %vm5747, %v5748, %v5739
        %v5750 = vsel %vm5743, %v5746, %v5749
        %v5751 = vsel %vm5740, nan, %v5750
        %v5752 = vand.u32 2147483647, %v523
        %vm5753 = vcmp.le.f32.partialorder %v5752, 0.7853982
        %vm5754 = vcmp.lt.s32.totalorder %v523, 0
        %v5755 = vand.u32 %v523, 2139095040
        %v5756 = vshrl.u32 %v5755, 23
        %v5757 = vsub.s32 %v5756, 127
        %v5758 = vand.u32 2147483647, %v523
        %v5759 = vand.u32 %v5758, 8388607
        %v5760 = vor.u32 %v5759, 8388608
        %v5761 = vsub.s32 0, %v5760
        %v5762 = vadd.s32 %v5757, 1
        %vm5763 = vcmp.gt.s32.totalorder %v5762, 0
        %v5764 = vsel %vm5763, %v5762, 0
        %v5765 = vshrl.u32 %v5764, 5
        %v5766 = vand.u32 %v5764, 31
        %v5767 = vsub.s32 32, %v5766
        %v5768 = vshrl.u32 683565275, %v5767
        %v5769 = vshll.u32 683565275, %v5766
        %v5770 = vshrl.u32 2475754826, %v5767
        %v5771 = vor.u32 %v5769, %v5770
        %v5772 = vshll.u32 2475754826, %v5766
        %v5773 = vshrl.u32 2131351028, %v5767
        %v5774 = vor.u32 %v5772, %v5773
        %v5775 = vshll.u32 2131351028, %v5766
        %v5776 = vshrl.u32 2102212464, %v5767
        %v5777 = vor.u32 %v5775, %v5776
        %v5778 = vshll.u32 2102212464, %v5766
        %v5779 = vshrl.u32 920167782, %v5767
        %v5780 = vor.u32 %v5778, %v5779
        %v5781 = vshll.u32 920167782, %v5766
        %v5782 = vshrl.u32 1326507024, %v5767
        %v5783 = vor.u32 %v5781, %v5782
        %vm5784 = vcmp.lt.s32.totalorder %v5765, 1
        %vm5785 = vcmp.lt.s32.totalorder %v5765, 2
        %vm5786 = vcmp.lt.s32.totalorder %v5765, 3
        %vm5787 = vcmp.lt.s32.totalorder %v5765, 4
        %v5788 = vsel %vm5784, %v5768, %v5771
        %v5789 = vsel %vm5787, %v5777, 2102212464
        %v5790 = vsel %vm5786, %v5774, %v5789
        %v5791 = vsel %vm5785, %v5788, %v5790
        %v5792 = vsel %vm5784, %v5771, %v5774
        %v5793 = vsel %vm5787, %v5780, 920167782
        %v5794 = vsel %vm5786, %v5777, %v5793
        %v5795 = vsel %vm5785, %v5792, %v5794
        %v5796 = vsel %vm5784, %v5774, %v5777
        %v5797 = vsel %vm5787, %v5783, 1326507024
        %v5798 = vsel %vm5786, %v5780, %v5797
        %v5799 = vsel %vm5785, %v5796, %v5798
        %v5800 = vshll.u32 %v5760, 8
        %v5801 = vmul.u32.u64.compose %v5800, %v5799
        %v5802 = vextract.low.u32 %v5801
        %v5803 = vextract.high.u32 %v5801
        %v5804 = vmul.u32.u64.compose %v5800, %v5795
        %v5805 = vextract.low.u32 %v5804
        %v5806 = vextract.high.u32 %v5804
        %v5807 = vmul.u32 %v5800, %v5791
        %v5808 = vadd.s32 %v5803, %v5805
        %vm5809 = vc.u32 %v5803, %v5805
        %v5810 = vadd.s32 %v5806, 1
        %v5811 = vsel %vm5809, %v5810, %v5806
        %v5812 = vadd.s32 %v5807, %v5811
        %v5813 = vadd.s32 %v5812, 536870912
        %v5814 = vshrl.u32 %v5813, 30
        %v5815 = vshll.u32 %v5814, 30
        %v5816 = vsub.s32 %v5812, %v5815
        %vm5817 = vcmp.lt.s32.totalorder %v5816, 0
        %v5818 = vsub.s32 0, %v5816
        %v5819 = vsel %vm5817, %v5818, %v5816
        %v5820 = vclz %v5819
        %v5821 = vsub.s32 %v5820, 2
        %vm5822 = vcmp.gt.s32.totalorder 0, %v5821
        %v5823 = vsel %vm5822, 0, %v5821
        %v5824 = vsub.s32 32, %v5823
        %v5825 = vshll.u32 %v5816, %v5823
        %v5826 = vshrl.u32 %v5808, %v5824
        %v5827 = vor.u32 %v5825, %v5826
        %v5828 = vsub.s32 4294967266, %v5823
        %v5829 = vadd.s32 %v5828, 127
        %v5830 = vshll.u32 %v5829, 23
        %v5831 = vor.u32 4788187, %v5830
        %v5832 = vand.u32 2147483647, %v5831
        %v5834 = vcvt.s32.f32 %v5827
        %v5835 = vmul.f32 %v5834, %v5832
        %v5836 = vxor.u32 %v5835, 2147483648
        %v5837 = vsel %vm5754, %v5836, %v5835
        %v5838 = vsub.s32 4, %v5814
        %v5839 = vsel %vm5754, %v5838, %v5814
        %v5840 = vsel %vm5753, %v523, %v5837
        %v5841 = vsel %vm5753, 0, %v5839
        %v5842 = vcosq.f32.pop %v5840
        %v5843 = vsinq.f32.pop %v5840
        %vm5844 = vweird.f32 %v523
        %v5845 = vadd.s32 %v5841, 3
        %v5846 = vand.u32 %v5845, 3
        %vm5847 = vcmp.lt.s32.totalorder %v5846, 2
        %vm5848 = vcmp.eq.s32.totalorder %v5846, 0
        %v5849 = vxor.u32 %v5843, 2147483648
        %v5850 = vsel %vm5848, %v5842, %v5849
        %vm5851 = vcmp.eq.s32.totalorder %v5846, 2
        %v5852 = vxor.u32 %v5842, 2147483648
        %v5853 = vsel %vm5851, %v5852, %v5843
        %v5854 = vsel %vm5847, %v5850, %v5853
        %v5855 = vsel %vm5844, nan, %v5854
        %v5856 = vand.u32 2147483647, %v524
        %vm5857 = vcmp.le.f32.partialorder %v5856, 0.7853982
        %vm5858 = vcmp.lt.s32.totalorder %v524, 0
        %v5859 = vand.u32 %v524, 2139095040
        %v5860 = vshrl.u32 %v5859, 23
        %v5861 = vsub.s32 %v5860, 127
        %v5862 = vand.u32 2147483647, %v524
        %v5863 = vand.u32 %v5862, 8388607
        %v5864 = vor.u32 %v5863, 8388608
        %v5865 = vsub.s32 0, %v5864
        %v5866 = vadd.s32 %v5861, 1
        %vm5867 = vcmp.gt.s32.totalorder %v5866, 0
        %v5868 = vsel %vm5867, %v5866, 0
        %v5869 = vshrl.u32 %v5868, 5
        %v5870 = vand.u32 %v5868, 31
        %v5871 = vsub.s32 32, %v5870
        %v5872 = vshrl.u32 683565275, %v5871
        %v5873 = vshll.u32 683565275, %v5870
        %v5874 = vshrl.u32 2475754826, %v5871
        %v5875 = vor.u32 %v5873, %v5874
        %v5876 = vshll.u32 2475754826, %v5870
        %v5877 = vshrl.u32 2131351028, %v5871
        %v5878 = vor.u32 %v5876, %v5877
        %v5879 = vshll.u32 2131351028, %v5870
        %v5880 = vshrl.u32 2102212464, %v5871
        %v5881 = vor.u32 %v5879, %v5880
        %v5882 = vshll.u32 2102212464, %v5870
        %v5883 = vshrl.u32 920167782, %v5871
        %v5884 = vor.u32 %v5882, %v5883
        %v5885 = vshll.u32 920167782, %v5870
        %v5886 = vshrl.u32 1326507024, %v5871
        %v5887 = vor.u32 %v5885, %v5886
        %vm5888 = vcmp.lt.s32.totalorder %v5869, 1
        %vm5889 = vcmp.lt.s32.totalorder %v5869, 2
        %vm5890 = vcmp.lt.s32.totalorder %v5869, 3
        %vm5891 = vcmp.lt.s32.totalorder %v5869, 4
        %v5892 = vsel %vm5888, %v5872, %v5875
        %v5893 = vsel %vm5891, %v5881, 2102212464
        %v5894 = vsel %vm5890, %v5878, %v5893
        %v5895 = vsel %vm5889, %v5892, %v5894
        %v5896 = vsel %vm5888, %v5875, %v5878
        %v5897 = vsel %vm5891, %v5884, 920167782
        %v5898 = vsel %vm5890, %v5881, %v5897
        %v5899 = vsel %vm5889, %v5896, %v5898
        %v5900 = vsel %vm5888, %v5878, %v5881
        %v5901 = vsel %vm5891, %v5887, 1326507024
        %v5902 = vsel %vm5890, %v5884, %v5901
        %v5903 = vsel %vm5889, %v5900, %v5902
        %v5904 = vshll.u32 %v5864, 8
        %v5905 = vmul.u32.u64.compose %v5904, %v5903
        %v5906 = vextract.low.u32 %v5905
        %v5907 = vextract.high.u32 %v5905
        %v5908 = vmul.u32.u64.compose %v5904, %v5899
        %v5909 = vextract.low.u32 %v5908
        %v5910 = vextract.high.u32 %v5908
        %v5911 = vmul.u32 %v5904, %v5895
        %v5912 = vadd.s32 %v5907, %v5909
        %vm5913 = vc.u32 %v5907, %v5909
        %v5914 = vadd.s32 %v5910, 1
        %v5915 = vsel %vm5913, %v5914, %v5910
        %v5916 = vadd.s32 %v5911, %v5915
        %v5917 = vadd.s32 %v5916, 536870912
        %v5918 = vshrl.u32 %v5917, 30
        %v5919 = vshll.u32 %v5918, 30
        %v5920 = vsub.s32 %v5916, %v5919
        %vm5921 = vcmp.lt.s32.totalorder %v5920, 0
        %v5922 = vsub.s32 0, %v5920
        %v5923 = vsel %vm5921, %v5922, %v5920
        %v5924 = vclz %v5923
        %v5925 = vsub.s32 %v5924, 2
        %vm5926 = vcmp.gt.s32.totalorder 0, %v5925
        %v5927 = vsel %vm5926, 0, %v5925
        %v5928 = vsub.s32 32, %v5927
        %v5929 = vshll.u32 %v5920, %v5927
        %v5930 = vshrl.u32 %v5912, %v5928
        %v5931 = vor.u32 %v5929, %v5930
        %v5932 = vsub.s32 4294967266, %v5927
        %v5933 = vadd.s32 %v5932, 127
        %v5934 = vshll.u32 %v5933, 23
        %v5935 = vor.u32 4788187, %v5934
        %v5936 = vand.u32 2147483647, %v5935
        %v5938 = vcvt.s32.f32 %v5931
        %v5939 = vmul.f32 %v5938, %v5936
        %v5940 = vxor.u32 %v5939, 2147483648
        %v5941 = vsel %vm5858, %v5940, %v5939
        %v5942 = vsub.s32 4, %v5918
        %v5943 = vsel %vm5858, %v5942, %v5918
        %v5944 = vsel %vm5857, %v524, %v5941
        %v5945 = vsel %vm5857, 0, %v5943
        %v5946 = vcosq.f32.pop %v5944
        %v5947 = vsinq.f32.pop %v5944
        %vm5948 = vweird.f32 %v524
        %v5949 = vadd.s32 %v5945, 3
        %v5950 = vand.u32 %v5949, 3
        %vm5951 = vcmp.lt.s32.totalorder %v5950, 2
        %vm5952 = vcmp.eq.s32.totalorder %v5950, 0
        %v5953 = vxor.u32 %v5947, 2147483648
        %v5954 = vsel %vm5952, %v5946, %v5953
        %vm5955 = vcmp.eq.s32.totalorder %v5950, 2
        %v5956 = vxor.u32 %v5946, 2147483648
        %v5957 = vsel %vm5955, %v5956, %v5947
        %v5958 = vsel %vm5951, %v5954, %v5957
        %v5959 = vsel %vm5948, nan, %v5958
        %v5960 = vand.u32 2147483647, %v525
        %vm5961 = vcmp.le.f32.partialorder %v5960, 0.7853982
        %vm5962 = vcmp.lt.s32.totalorder %v525, 0
        %v5963 = vand.u32 %v525, 2139095040
        %v5964 = vshrl.u32 %v5963, 23
        %v5965 = vsub.s32 %v5964, 127
        %v5966 = vand.u32 2147483647, %v525
        %v5967 = vand.u32 %v5966, 8388607
        %v5968 = vor.u32 %v5967, 8388608
        %v5969 = vsub.s32 0, %v5968
        %v5970 = vadd.s32 %v5965, 1
        %vm5971 = vcmp.gt.s32.totalorder %v5970, 0
        %v5972 = vsel %vm5971, %v5970, 0
        %v5973 = vshrl.u32 %v5972, 5
        %v5974 = vand.u32 %v5972, 31
        %v5975 = vsub.s32 32, %v5974
        %v5976 = vshrl.u32 683565275, %v5975
        %v5977 = vshll.u32 683565275, %v5974
        %v5978 = vshrl.u32 2475754826, %v5975
        %v5979 = vor.u32 %v5977, %v5978
        %v5980 = vshll.u32 2475754826, %v5974
        %v5981 = vshrl.u32 2131351028, %v5975
        %v5982 = vor.u32 %v5980, %v5981
        %v5983 = vshll.u32 2131351028, %v5974
        %v5984 = vshrl.u32 2102212464, %v5975
        %v5985 = vor.u32 %v5983, %v5984
        %v5986 = vshll.u32 2102212464, %v5974
        %v5987 = vshrl.u32 920167782, %v5975
        %v5988 = vor.u32 %v5986, %v5987
        %v5989 = vshll.u32 920167782, %v5974
        %v5990 = vshrl.u32 1326507024, %v5975
        %v5991 = vor.u32 %v5989, %v5990
        %vm5992 = vcmp.lt.s32.totalorder %v5973, 1
        %vm5993 = vcmp.lt.s32.totalorder %v5973, 2
        %vm5994 = vcmp.lt.s32.totalorder %v5973, 3
        %vm5995 = vcmp.lt.s32.totalorder %v5973, 4
        %v5996 = vsel %vm5992, %v5976, %v5979
        %v5997 = vsel %vm5995, %v5985, 2102212464
        %v5998 = vsel %vm5994, %v5982, %v5997
        %v5999 = vsel %vm5993, %v5996, %v5998
        %v6000 = vsel %vm5992, %v5979, %v5982
        %v6001 = vsel %vm5995, %v5988, 920167782
        %v6002 = vsel %vm5994, %v5985, %v6001
        %v6003 = vsel %vm5993, %v6000, %v6002
        %v6004 = vsel %vm5992, %v5982, %v5985
        %v6005 = vsel %vm5995, %v5991, 1326507024
        %v6006 = vsel %vm5994, %v5988, %v6005
        %v6007 = vsel %vm5993, %v6004, %v6006
        %v6008 = vshll.u32 %v5968, 8
        %v6009 = vmul.u32.u64.compose %v6008, %v6007
        %v6010 = vextract.low.u32 %v6009
        %v6011 = vextract.high.u32 %v6009
        %v6012 = vmul.u32.u64.compose %v6008, %v6003
        %v6013 = vextract.low.u32 %v6012
        %v6014 = vextract.high.u32 %v6012
        %v6015 = vmul.u32 %v6008, %v5999
        %v6016 = vadd.s32 %v6011, %v6013
        %vm6017 = vc.u32 %v6011, %v6013
        %v6018 = vadd.s32 %v6014, 1
        %v6019 = vsel %vm6017, %v6018, %v6014
        %v6020 = vadd.s32 %v6015, %v6019
        %v6021 = vadd.s32 %v6020, 536870912
        %v6022 = vshrl.u32 %v6021, 30
        %v6023 = vshll.u32 %v6022, 30
        %v6024 = vsub.s32 %v6020, %v6023
        %vm6025 = vcmp.lt.s32.totalorder %v6024, 0
        %v6026 = vsub.s32 0, %v6024
        %v6027 = vsel %vm6025, %v6026, %v6024
        %v6028 = vclz %v6027
        %v6029 = vsub.s32 %v6028, 2
        %vm6030 = vcmp.gt.s32.totalorder 0, %v6029
        %v6031 = vsel %vm6030, 0, %v6029
        %v6032 = vsub.s32 32, %v6031
        %v6033 = vshll.u32 %v6024, %v6031
        %v6034 = vshrl.u32 %v6016, %v6032
        %v6035 = vor.u32 %v6033, %v6034
        %v6036 = vsub.s32 4294967266, %v6031
        %v6037 = vadd.s32 %v6036, 127
        %v6038 = vshll.u32 %v6037, 23
        %v6039 = vor.u32 4788187, %v6038
        %v6040 = vand.u32 2147483647, %v6039
        %v6042 = vcvt.s32.f32 %v6035
        %v6043 = vmul.f32 %v6042, %v6040
        %v6044 = vxor.u32 %v6043, 2147483648
        %v6045 = vsel %vm5962, %v6044, %v6043
        %v6046 = vsub.s32 4, %v6022
        %v6047 = vsel %vm5962, %v6046, %v6022
        %v6048 = vsel %vm5961, %v525, %v6045
        %v6049 = vsel %vm5961, 0, %v6047
        %v6050 = vcosq.f32.pop %v6048
        %v6051 = vsinq.f32.pop %v6048
        %vm6052 = vweird.f32 %v525
        %v6053 = vadd.s32 %v6049, 3
        %v6054 = vand.u32 %v6053, 3
        %vm6055 = vcmp.lt.s32.totalorder %v6054, 2
        %vm6056 = vcmp.eq.s32.totalorder %v6054, 0
        %v6057 = vxor.u32 %v6051, 2147483648
        %v6058 = vsel %vm6056, %v6050, %v6057
        %vm6059 = vcmp.eq.s32.totalorder %v6054, 2
        %v6060 = vxor.u32 %v6050, 2147483648
        %v6061 = vsel %vm6059, %v6060, %v6051
        %v6062 = vsel %vm6055, %v6058, %v6061
        %v6063 = vsel %vm6052, nan, %v6062
        %v6064 = vand.u32 2147483647, %v526
        %vm6065 = vcmp.le.f32.partialorder %v6064, 0.7853982
        %vm6066 = vcmp.lt.s32.totalorder %v526, 0
        %v6067 = vand.u32 %v526, 2139095040
        %v6068 = vshrl.u32 %v6067, 23
        %v6069 = vsub.s32 %v6068, 127
        %v6070 = vand.u32 2147483647, %v526
        %v6071 = vand.u32 %v6070, 8388607
        %v6072 = vor.u32 %v6071, 8388608
        %v6073 = vsub.s32 0, %v6072
        %v6074 = vadd.s32 %v6069, 1
        %vm6075 = vcmp.gt.s32.totalorder %v6074, 0
        %v6076 = vsel %vm6075, %v6074, 0
        %v6077 = vshrl.u32 %v6076, 5
        %v6078 = vand.u32 %v6076, 31
        %v6079 = vsub.s32 32, %v6078
        %v6080 = vshrl.u32 683565275, %v6079
        %v6081 = vshll.u32 683565275, %v6078
        %v6082 = vshrl.u32 2475754826, %v6079
        %v6083 = vor.u32 %v6081, %v6082
        %v6084 = vshll.u32 2475754826, %v6078
        %v6085 = vshrl.u32 2131351028, %v6079
        %v6086 = vor.u32 %v6084, %v6085
        %v6087 = vshll.u32 2131351028, %v6078
        %v6088 = vshrl.u32 2102212464, %v6079
        %v6089 = vor.u32 %v6087, %v6088
        %v6090 = vshll.u32 2102212464, %v6078
        %v6091 = vshrl.u32 920167782, %v6079
        %v6092 = vor.u32 %v6090, %v6091
        %v6093 = vshll.u32 920167782, %v6078
        %v6094 = vshrl.u32 1326507024, %v6079
        %v6095 = vor.u32 %v6093, %v6094
        %vm6096 = vcmp.lt.s32.totalorder %v6077, 1
        %vm6097 = vcmp.lt.s32.totalorder %v6077, 2
        %vm6098 = vcmp.lt.s32.totalorder %v6077, 3
        %vm6099 = vcmp.lt.s32.totalorder %v6077, 4
        %v6100 = vsel %vm6096, %v6080, %v6083
        %v6101 = vsel %vm6099, %v6089, 2102212464
        %v6102 = vsel %vm6098, %v6086, %v6101
        %v6103 = vsel %vm6097, %v6100, %v6102
        %v6104 = vsel %vm6096, %v6083, %v6086
        %v6105 = vsel %vm6099, %v6092, 920167782
        %v6106 = vsel %vm6098, %v6089, %v6105
        %v6107 = vsel %vm6097, %v6104, %v6106
        %v6108 = vsel %vm6096, %v6086, %v6089
        %v6109 = vsel %vm6099, %v6095, 1326507024
        %v6110 = vsel %vm6098, %v6092, %v6109
        %v6111 = vsel %vm6097, %v6108, %v6110
        %v6112 = vshll.u32 %v6072, 8
        %v6113 = vmul.u32.u64.compose %v6112, %v6111
        %v6114 = vextract.low.u32 %v6113
        %v6115 = vextract.high.u32 %v6113
        %v6116 = vmul.u32.u64.compose %v6112, %v6107
        %v6117 = vextract.low.u32 %v6116
        %v6118 = vextract.high.u32 %v6116
        %v6119 = vmul.u32 %v6112, %v6103
        %v6120 = vadd.s32 %v6115, %v6117
        %vm6121 = vc.u32 %v6115, %v6117
        %v6122 = vadd.s32 %v6118, 1
        %v6123 = vsel %vm6121, %v6122, %v6118
        %v6124 = vadd.s32 %v6119, %v6123
        %v6125 = vadd.s32 %v6124, 536870912
        %v6126 = vshrl.u32 %v6125, 30
        %v6127 = vshll.u32 %v6126, 30
        %v6128 = vsub.s32 %v6124, %v6127
        %vm6129 = vcmp.lt.s32.totalorder %v6128, 0
        %v6130 = vsub.s32 0, %v6128
        %v6131 = vsel %vm6129, %v6130, %v6128
        %v6132 = vclz %v6131
        %v6133 = vsub.s32 %v6132, 2
        %vm6134 = vcmp.gt.s32.totalorder 0, %v6133
        %v6135 = vsel %vm6134, 0, %v6133
        %v6136 = vsub.s32 32, %v6135
        %v6137 = vshll.u32 %v6128, %v6135
        %v6138 = vshrl.u32 %v6120, %v6136
        %v6139 = vor.u32 %v6137, %v6138
        %v6140 = vsub.s32 4294967266, %v6135
        %v6141 = vadd.s32 %v6140, 127
        %v6142 = vshll.u32 %v6141, 23
        %v6143 = vor.u32 4788187, %v6142
        %v6144 = vand.u32 2147483647, %v6143
        %v6146 = vcvt.s32.f32 %v6139
        %v6147 = vmul.f32 %v6146, %v6144
        %v6148 = vxor.u32 %v6147, 2147483648
        %v6149 = vsel %vm6066, %v6148, %v6147
        %v6150 = vsub.s32 4, %v6126
        %v6151 = vsel %vm6066, %v6150, %v6126
        %v6152 = vsel %vm6065, %v526, %v6149
        %v6153 = vsel %vm6065, 0, %v6151
        %v6154 = vcosq.f32.pop %v6152
        %v6155 = vsinq.f32.pop %v6152
        %vm6156 = vweird.f32 %v526
        %v6157 = vadd.s32 %v6153, 3
        %v6158 = vand.u32 %v6157, 3
        %vm6159 = vcmp.lt.s32.totalorder %v6158, 2
        %vm6160 = vcmp.eq.s32.totalorder %v6158, 0
        %v6161 = vxor.u32 %v6155, 2147483648
        %v6162 = vsel %vm6160, %v6154, %v6161
        %vm6163 = vcmp.eq.s32.totalorder %v6158, 2
        %v6164 = vxor.u32 %v6154, 2147483648
        %v6165 = vsel %vm6163, %v6164, %v6155
        %v6166 = vsel %vm6159, %v6162, %v6165
        %v6167 = vsel %vm6156, nan, %v6166
        %v6168 = vand.u32 2147483647, %v527
        %vm6169 = vcmp.le.f32.partialorder %v6168, 0.7853982
        %vm6170 = vcmp.lt.s32.totalorder %v527, 0
        %v6171 = vand.u32 %v527, 2139095040
        %v6172 = vshrl.u32 %v6171, 23
        %v6173 = vsub.s32 %v6172, 127
        %v6174 = vand.u32 2147483647, %v527
        %v6175 = vand.u32 %v6174, 8388607
        %v6176 = vor.u32 %v6175, 8388608
        %v6177 = vsub.s32 0, %v6176
        %v6178 = vadd.s32 %v6173, 1
        %vm6179 = vcmp.gt.s32.totalorder %v6178, 0
        %v6180 = vsel %vm6179, %v6178, 0
        %v6181 = vshrl.u32 %v6180, 5
        %v6182 = vand.u32 %v6180, 31
        %v6183 = vsub.s32 32, %v6182
        %v6184 = vshrl.u32 683565275, %v6183
        %v6185 = vshll.u32 683565275, %v6182
        %v6186 = vshrl.u32 2475754826, %v6183
        %v6187 = vor.u32 %v6185, %v6186
        %v6188 = vshll.u32 2475754826, %v6182
        %v6189 = vshrl.u32 2131351028, %v6183
        %v6190 = vor.u32 %v6188, %v6189
        %v6191 = vshll.u32 2131351028, %v6182
        %v6192 = vshrl.u32 2102212464, %v6183
        %v6193 = vor.u32 %v6191, %v6192
        %v6194 = vshll.u32 2102212464, %v6182
        %v6195 = vshrl.u32 920167782, %v6183
        %v6196 = vor.u32 %v6194, %v6195
        %v6197 = vshll.u32 920167782, %v6182
        %v6198 = vshrl.u32 1326507024, %v6183
        %v6199 = vor.u32 %v6197, %v6198
        %vm6200 = vcmp.lt.s32.totalorder %v6181, 1
        %vm6201 = vcmp.lt.s32.totalorder %v6181, 2
        %vm6202 = vcmp.lt.s32.totalorder %v6181, 3
        %vm6203 = vcmp.lt.s32.totalorder %v6181, 4
        %v6204 = vsel %vm6200, %v6184, %v6187
        %v6205 = vsel %vm6203, %v6193, 2102212464
        %v6206 = vsel %vm6202, %v6190, %v6205
        %v6207 = vsel %vm6201, %v6204, %v6206
        %v6208 = vsel %vm6200, %v6187, %v6190
        %v6209 = vsel %vm6203, %v6196, 920167782
        %v6210 = vsel %vm6202, %v6193, %v6209
        %v6211 = vsel %vm6201, %v6208, %v6210
        %v6212 = vsel %vm6200, %v6190, %v6193
        %v6213 = vsel %vm6203, %v6199, 1326507024
        %v6214 = vsel %vm6202, %v6196, %v6213
        %v6215 = vsel %vm6201, %v6212, %v6214
        %v6216 = vshll.u32 %v6176, 8
        %v6217 = vmul.u32.u64.compose %v6216, %v6215
        %v6218 = vextract.low.u32 %v6217
        %v6219 = vextract.high.u32 %v6217
        %v6220 = vmul.u32.u64.compose %v6216, %v6211
        %v6221 = vextract.low.u32 %v6220
        %v6222 = vextract.high.u32 %v6220
        %v6223 = vmul.u32 %v6216, %v6207
        %v6224 = vadd.s32 %v6219, %v6221
        %vm6225 = vc.u32 %v6219, %v6221
        %v6226 = vadd.s32 %v6222, 1
        %v6227 = vsel %vm6225, %v6226, %v6222
        %v6228 = vadd.s32 %v6223, %v6227
        %v6229 = vadd.s32 %v6228, 536870912
        %v6230 = vshrl.u32 %v6229, 30
        %v6231 = vshll.u32 %v6230, 30
        %v6232 = vsub.s32 %v6228, %v6231
        %vm6233 = vcmp.lt.s32.totalorder %v6232, 0
        %v6234 = vsub.s32 0, %v6232
        %v6235 = vsel %vm6233, %v6234, %v6232
        %v6236 = vclz %v6235
        %v6237 = vsub.s32 %v6236, 2
        %vm6238 = vcmp.gt.s32.totalorder 0, %v6237
        %v6239 = vsel %vm6238, 0, %v6237
        %v6240 = vsub.s32 32, %v6239
        %v6241 = vshll.u32 %v6232, %v6239
        %v6242 = vshrl.u32 %v6224, %v6240
        %v6243 = vor.u32 %v6241, %v6242
        %v6244 = vsub.s32 4294967266, %v6239
        %v6245 = vadd.s32 %v6244, 127
        %v6246 = vshll.u32 %v6245, 23
        %v6247 = vor.u32 4788187, %v6246
        %v6248 = vand.u32 2147483647, %v6247
        %v6250 = vcvt.s32.f32 %v6243
        %v6251 = vmul.f32 %v6250, %v6248
        %v6252 = vxor.u32 %v6251, 2147483648
        %v6253 = vsel %vm6170, %v6252, %v6251
        %v6254 = vsub.s32 4, %v6230
        %v6255 = vsel %vm6170, %v6254, %v6230
        %v6256 = vsel %vm6169, %v527, %v6253
        %v6257 = vsel %vm6169, 0, %v6255
        %v6258 = vcosq.f32.pop %v6256
        %v6259 = vsinq.f32.pop %v6256
        %vm6260 = vweird.f32 %v527
        %v6261 = vadd.s32 %v6257, 3
        %v6262 = vand.u32 %v6261, 3
        %vm6263 = vcmp.lt.s32.totalorder %v6262, 2
        %vm6264 = vcmp.eq.s32.totalorder %v6262, 0
        %v6265 = vxor.u32 %v6259, 2147483648
        %v6266 = vsel %vm6264, %v6258, %v6265
        %vm6267 = vcmp.eq.s32.totalorder %v6262, 2
        %v6268 = vxor.u32 %v6258, 2147483648
        %v6269 = vsel %vm6267, %v6268, %v6259
        %v6270 = vsel %vm6263, %v6266, %v6269
        %v6271 = vsel %vm6260, nan, %v6270
        %v6272 = vand.u32 2147483647, %v528
        %vm6273 = vcmp.le.f32.partialorder %v6272, 0.7853982
        %vm6274 = vcmp.lt.s32.totalorder %v528, 0
        %v6275 = vand.u32 %v528, 2139095040
        %v6276 = vshrl.u32 %v6275, 23
        %v6277 = vsub.s32 %v6276, 127
        %v6278 = vand.u32 2147483647, %v528
        %v6279 = vand.u32 %v6278, 8388607
        %v6280 = vor.u32 %v6279, 8388608
        %v6281 = vsub.s32 0, %v6280
        %v6282 = vadd.s32 %v6277, 1
        %vm6283 = vcmp.gt.s32.totalorder %v6282, 0
        %v6284 = vsel %vm6283, %v6282, 0
        %v6285 = vshrl.u32 %v6284, 5
        %v6286 = vand.u32 %v6284, 31
        %v6287 = vsub.s32 32, %v6286
        %v6288 = vshrl.u32 683565275, %v6287
        %v6289 = vshll.u32 683565275, %v6286
        %v6290 = vshrl.u32 2475754826, %v6287
        %v6291 = vor.u32 %v6289, %v6290
        %v6292 = vshll.u32 2475754826, %v6286
        %v6293 = vshrl.u32 2131351028, %v6287
        %v6294 = vor.u32 %v6292, %v6293
        %v6295 = vshll.u32 2131351028, %v6286
        %v6296 = vshrl.u32 2102212464, %v6287
        %v6297 = vor.u32 %v6295, %v6296
        %v6298 = vshll.u32 2102212464, %v6286
        %v6299 = vshrl.u32 920167782, %v6287
        %v6300 = vor.u32 %v6298, %v6299
        %v6301 = vshll.u32 920167782, %v6286
        %v6302 = vshrl.u32 1326507024, %v6287
        %v6303 = vor.u32 %v6301, %v6302
        %vm6304 = vcmp.lt.s32.totalorder %v6285, 1
        %vm6305 = vcmp.lt.s32.totalorder %v6285, 2
        %vm6306 = vcmp.lt.s32.totalorder %v6285, 3
        %vm6307 = vcmp.lt.s32.totalorder %v6285, 4
        %v6308 = vsel %vm6304, %v6288, %v6291
        %v6309 = vsel %vm6307, %v6297, 2102212464
        %v6310 = vsel %vm6306, %v6294, %v6309
        %v6311 = vsel %vm6305, %v6308, %v6310
        %v6312 = vsel %vm6304, %v6291, %v6294
        %v6313 = vsel %vm6307, %v6300, 920167782
        %v6314 = vsel %vm6306, %v6297, %v6313
        %v6315 = vsel %vm6305, %v6312, %v6314
        %v6316 = vsel %vm6304, %v6294, %v6297
        %v6317 = vsel %vm6307, %v6303, 1326507024
        %v6318 = vsel %vm6306, %v6300, %v6317
        %v6319 = vsel %vm6305, %v6316, %v6318
        %v6320 = vshll.u32 %v6280, 8
        %v6321 = vmul.u32.u64.compose %v6320, %v6319
        %v6322 = vextract.low.u32 %v6321
        %v6323 = vextract.high.u32 %v6321
        %v6324 = vmul.u32.u64.compose %v6320, %v6315
        %v6325 = vextract.low.u32 %v6324
        %v6326 = vextract.high.u32 %v6324
        %v6327 = vmul.u32 %v6320, %v6311
        %v6328 = vadd.s32 %v6323, %v6325
        %vm6329 = vc.u32 %v6323, %v6325
        %v6330 = vadd.s32 %v6326, 1
        %v6331 = vsel %vm6329, %v6330, %v6326
        %v6332 = vadd.s32 %v6327, %v6331
        %v6333 = vadd.s32 %v6332, 536870912
        %v6334 = vshrl.u32 %v6333, 30
        %v6335 = vshll.u32 %v6334, 30
        %v6336 = vsub.s32 %v6332, %v6335
        %vm6337 = vcmp.lt.s32.totalorder %v6336, 0
        %v6338 = vsub.s32 0, %v6336
        %v6339 = vsel %vm6337, %v6338, %v6336
        %v6340 = vclz %v6339
        %v6341 = vsub.s32 %v6340, 2
        %vm6342 = vcmp.gt.s32.totalorder 0, %v6341
        %v6343 = vsel %vm6342, 0, %v6341
        %v6344 = vsub.s32 32, %v6343
        %v6345 = vshll.u32 %v6336, %v6343
        %v6346 = vshrl.u32 %v6328, %v6344
        %v6347 = vor.u32 %v6345, %v6346
        %v6348 = vsub.s32 4294967266, %v6343
        %v6349 = vadd.s32 %v6348, 127
        %v6350 = vshll.u32 %v6349, 23
        %v6351 = vor.u32 4788187, %v6350
        %v6352 = vand.u32 2147483647, %v6351
        %v6354 = vcvt.s32.f32 %v6347
        %v6355 = vmul.f32 %v6354, %v6352
        %v6356 = vxor.u32 %v6355, 2147483648
        %v6357 = vsel %vm6274, %v6356, %v6355
        %v6358 = vsub.s32 4, %v6334
        %v6359 = vsel %vm6274, %v6358, %v6334
        %v6360 = vsel %vm6273, %v528, %v6357
        %v6361 = vsel %vm6273, 0, %v6359
        %v6362 = vcosq.f32.pop %v6360
        %v6363 = vsinq.f32.pop %v6360
        %vm6364 = vweird.f32 %v528
        %v6365 = vadd.s32 %v6361, 3
        %v6366 = vand.u32 %v6365, 3
        %vm6367 = vcmp.lt.s32.totalorder %v6366, 2
        %vm6368 = vcmp.eq.s32.totalorder %v6366, 0
        %v6369 = vxor.u32 %v6363, 2147483648
        %v6370 = vsel %vm6368, %v6362, %v6369
        %vm6371 = vcmp.eq.s32.totalorder %v6366, 2
        %v6372 = vxor.u32 %v6362, 2147483648
        %v6373 = vsel %vm6371, %v6372, %v6363
        %v6374 = vsel %vm6367, %v6370, %v6373
        %v6375 = vsel %vm6364, nan, %v6374
        %v6376 = vand.u32 2147483647, %v529
        %vm6377 = vcmp.le.f32.partialorder %v6376, 0.7853982
        %vm6378 = vcmp.lt.s32.totalorder %v529, 0
        %v6379 = vand.u32 %v529, 2139095040
        %v6380 = vshrl.u32 %v6379, 23
        %v6381 = vsub.s32 %v6380, 127
        %v6382 = vand.u32 2147483647, %v529
        %v6383 = vand.u32 %v6382, 8388607
        %v6384 = vor.u32 %v6383, 8388608
        %v6385 = vsub.s32 0, %v6384
        %v6386 = vadd.s32 %v6381, 1
        %vm6387 = vcmp.gt.s32.totalorder %v6386, 0
        %v6388 = vsel %vm6387, %v6386, 0
        %v6389 = vshrl.u32 %v6388, 5
        %v6390 = vand.u32 %v6388, 31
        %v6391 = vsub.s32 32, %v6390
        %v6392 = vshrl.u32 683565275, %v6391
        %v6393 = vshll.u32 683565275, %v6390
        %v6394 = vshrl.u32 2475754826, %v6391
        %v6395 = vor.u32 %v6393, %v6394
        %v6396 = vshll.u32 2475754826, %v6390
        %v6397 = vshrl.u32 2131351028, %v6391
        %v6398 = vor.u32 %v6396, %v6397
        %v6399 = vshll.u32 2131351028, %v6390
        %v6400 = vshrl.u32 2102212464, %v6391
        %v6401 = vor.u32 %v6399, %v6400
        %v6402 = vshll.u32 2102212464, %v6390
        %v6403 = vshrl.u32 920167782, %v6391
        %v6404 = vor.u32 %v6402, %v6403
        %v6405 = vshll.u32 920167782, %v6390
        %v6406 = vshrl.u32 1326507024, %v6391
        %v6407 = vor.u32 %v6405, %v6406
        %vm6408 = vcmp.lt.s32.totalorder %v6389, 1
        %vm6409 = vcmp.lt.s32.totalorder %v6389, 2
        %vm6410 = vcmp.lt.s32.totalorder %v6389, 3
        %vm6411 = vcmp.lt.s32.totalorder %v6389, 4
        %v6412 = vsel %vm6408, %v6392, %v6395
        %v6413 = vsel %vm6411, %v6401, 2102212464
        %v6414 = vsel %vm6410, %v6398, %v6413
        %v6415 = vsel %vm6409, %v6412, %v6414
        %v6416 = vsel %vm6408, %v6395, %v6398
        %v6417 = vsel %vm6411, %v6404, 920167782
        %v6418 = vsel %vm6410, %v6401, %v6417
        %v6419 = vsel %vm6409, %v6416, %v6418
        %v6420 = vsel %vm6408, %v6398, %v6401
        %v6421 = vsel %vm6411, %v6407, 1326507024
        %v6422 = vsel %vm6410, %v6404, %v6421
        %v6423 = vsel %vm6409, %v6420, %v6422
        %v6424 = vshll.u32 %v6384, 8
        %v6425 = vmul.u32.u64.compose %v6424, %v6423
        %v6426 = vextract.low.u32 %v6425
        %v6427 = vextract.high.u32 %v6425
        %v6428 = vmul.u32.u64.compose %v6424, %v6419
        %v6429 = vextract.low.u32 %v6428
        %v6430 = vextract.high.u32 %v6428
        %v6431 = vmul.u32 %v6424, %v6415
        %v6432 = vadd.s32 %v6427, %v6429
        %vm6433 = vc.u32 %v6427, %v6429
        %v6434 = vadd.s32 %v6430, 1
        %v6435 = vsel %vm6433, %v6434, %v6430
        %v6436 = vadd.s32 %v6431, %v6435
        %v6437 = vadd.s32 %v6436, 536870912
        %v6438 = vshrl.u32 %v6437, 30
        %v6439 = vshll.u32 %v6438, 30
        %v6440 = vsub.s32 %v6436, %v6439
        %vm6441 = vcmp.lt.s32.totalorder %v6440, 0
        %v6442 = vsub.s32 0, %v6440
        %v6443 = vsel %vm6441, %v6442, %v6440
        %v6444 = vclz %v6443
        %v6445 = vsub.s32 %v6444, 2
        %vm6446 = vcmp.gt.s32.totalorder 0, %v6445
        %v6447 = vsel %vm6446, 0, %v6445
        %v6448 = vsub.s32 32, %v6447
        %v6449 = vshll.u32 %v6440, %v6447
        %v6450 = vshrl.u32 %v6432, %v6448
        %v6451 = vor.u32 %v6449, %v6450
        %v6452 = vsub.s32 4294967266, %v6447
        %v6453 = vadd.s32 %v6452, 127
        %v6454 = vshll.u32 %v6453, 23
        %v6455 = vor.u32 4788187, %v6454
        %v6456 = vand.u32 2147483647, %v6455
        %v6458 = vcvt.s32.f32 %v6451
        %v6459 = vmul.f32 %v6458, %v6456
        %v6460 = vxor.u32 %v6459, 2147483648
        %v6461 = vsel %vm6378, %v6460, %v6459
        %v6462 = vsub.s32 4, %v6438
        %v6463 = vsel %vm6378, %v6462, %v6438
        %v6464 = vsel %vm6377, %v529, %v6461
        %v6465 = vsel %vm6377, 0, %v6463
        %v6466 = vcosq.f32.pop %v6464
        %v6467 = vsinq.f32.pop %v6464
        %vm6468 = vweird.f32 %v529
        %v6469 = vadd.s32 %v6465, 3
        %v6470 = vand.u32 %v6469, 3
        %vm6471 = vcmp.lt.s32.totalorder %v6470, 2
        %vm6472 = vcmp.eq.s32.totalorder %v6470, 0
        %v6473 = vxor.u32 %v6467, 2147483648
        %v6474 = vsel %vm6472, %v6466, %v6473
        %vm6475 = vcmp.eq.s32.totalorder %v6470, 2
        %v6476 = vxor.u32 %v6466, 2147483648
        %v6477 = vsel %vm6475, %v6476, %v6467
        %v6478 = vsel %vm6471, %v6474, %v6477
        %v6479 = vsel %vm6468, nan, %v6478
        %v6480 = vand.u32 2147483647, %v530
        %vm6481 = vcmp.le.f32.partialorder %v6480, 0.7853982
        %vm6482 = vcmp.lt.s32.totalorder %v530, 0
        %v6483 = vand.u32 %v530, 2139095040
        %v6484 = vshrl.u32 %v6483, 23
        %v6485 = vsub.s32 %v6484, 127
        %v6486 = vand.u32 2147483647, %v530
        %v6487 = vand.u32 %v6486, 8388607
        %v6488 = vor.u32 %v6487, 8388608
        %v6489 = vsub.s32 0, %v6488
        %v6490 = vadd.s32 %v6485, 1
        %vm6491 = vcmp.gt.s32.totalorder %v6490, 0
        %v6492 = vsel %vm6491, %v6490, 0
        %v6493 = vshrl.u32 %v6492, 5
        %v6494 = vand.u32 %v6492, 31
        %v6495 = vsub.s32 32, %v6494
        %v6496 = vshrl.u32 683565275, %v6495
        %v6497 = vshll.u32 683565275, %v6494
        %v6498 = vshrl.u32 2475754826, %v6495
        %v6499 = vor.u32 %v6497, %v6498
        %v6500 = vshll.u32 2475754826, %v6494
        %v6501 = vshrl.u32 2131351028, %v6495
        %v6502 = vor.u32 %v6500, %v6501
        %v6503 = vshll.u32 2131351028, %v6494
        %v6504 = vshrl.u32 2102212464, %v6495
        %v6505 = vor.u32 %v6503, %v6504
        %v6506 = vshll.u32 2102212464, %v6494
        %v6507 = vshrl.u32 920167782, %v6495
        %v6508 = vor.u32 %v6506, %v6507
        %v6509 = vshll.u32 920167782, %v6494
        %v6510 = vshrl.u32 1326507024, %v6495
        %v6511 = vor.u32 %v6509, %v6510
        %vm6512 = vcmp.lt.s32.totalorder %v6493, 1
        %vm6513 = vcmp.lt.s32.totalorder %v6493, 2
        %vm6514 = vcmp.lt.s32.totalorder %v6493, 3
        %vm6515 = vcmp.lt.s32.totalorder %v6493, 4
        %v6516 = vsel %vm6512, %v6496, %v6499
        %v6517 = vsel %vm6515, %v6505, 2102212464
        %v6518 = vsel %vm6514, %v6502, %v6517
        %v6519 = vsel %vm6513, %v6516, %v6518
        %v6520 = vsel %vm6512, %v6499, %v6502
        %v6521 = vsel %vm6515, %v6508, 920167782
        %v6522 = vsel %vm6514, %v6505, %v6521
        %v6523 = vsel %vm6513, %v6520, %v6522
        %v6524 = vsel %vm6512, %v6502, %v6505
        %v6525 = vsel %vm6515, %v6511, 1326507024
        %v6526 = vsel %vm6514, %v6508, %v6525
        %v6527 = vsel %vm6513, %v6524, %v6526
        %v6528 = vshll.u32 %v6488, 8
        %v6529 = vmul.u32.u64.compose %v6528, %v6527
        %v6530 = vextract.low.u32 %v6529
        %v6531 = vextract.high.u32 %v6529
        %v6532 = vmul.u32.u64.compose %v6528, %v6523
        %v6533 = vextract.low.u32 %v6532
        %v6534 = vextract.high.u32 %v6532
        %v6535 = vmul.u32 %v6528, %v6519
        %v6536 = vadd.s32 %v6531, %v6533
        %vm6537 = vc.u32 %v6531, %v6533
        %v6538 = vadd.s32 %v6534, 1
        %v6539 = vsel %vm6537, %v6538, %v6534
        %v6540 = vadd.s32 %v6535, %v6539
        %v6541 = vadd.s32 %v6540, 536870912
        %v6542 = vshrl.u32 %v6541, 30
        %v6543 = vshll.u32 %v6542, 30
        %v6544 = vsub.s32 %v6540, %v6543
        %vm6545 = vcmp.lt.s32.totalorder %v6544, 0
        %v6546 = vsub.s32 0, %v6544
        %v6547 = vsel %vm6545, %v6546, %v6544
        %v6548 = vclz %v6547
        %v6549 = vsub.s32 %v6548, 2
        %vm6550 = vcmp.gt.s32.totalorder 0, %v6549
        %v6551 = vsel %vm6550, 0, %v6549
        %v6552 = vsub.s32 32, %v6551
        %v6553 = vshll.u32 %v6544, %v6551
        %v6554 = vshrl.u32 %v6536, %v6552
        %v6555 = vor.u32 %v6553, %v6554
        %v6556 = vsub.s32 4294967266, %v6551
        %v6557 = vadd.s32 %v6556, 127
        %v6558 = vshll.u32 %v6557, 23
        %v6559 = vor.u32 4788187, %v6558
        %v6560 = vand.u32 2147483647, %v6559
        %v6562 = vcvt.s32.f32 %v6555
        %v6563 = vmul.f32 %v6562, %v6560
        %v6564 = vxor.u32 %v6563, 2147483648
        %v6565 = vsel %vm6482, %v6564, %v6563
        %v6566 = vsub.s32 4, %v6542
        %v6567 = vsel %vm6482, %v6566, %v6542
        %v6568 = vsel %vm6481, %v530, %v6565
        %v6569 = vsel %vm6481, 0, %v6567
        %v6570 = vcosq.f32.pop %v6568
        %v6571 = vsinq.f32.pop %v6568
        %vm6572 = vweird.f32 %v530
        %v6573 = vadd.s32 %v6569, 3
        %v6574 = vand.u32 %v6573, 3
        %vm6575 = vcmp.lt.s32.totalorder %v6574, 2
        %vm6576 = vcmp.eq.s32.totalorder %v6574, 0
        %v6577 = vxor.u32 %v6571, 2147483648
        %v6578 = vsel %vm6576, %v6570, %v6577
        %vm6579 = vcmp.eq.s32.totalorder %v6574, 2
        %v6580 = vxor.u32 %v6570, 2147483648
        %v6581 = vsel %vm6579, %v6580, %v6571
        %v6582 = vsel %vm6575, %v6578, %v6581
        %v6583 = vsel %vm6572, nan, %v6582
        %v6584 = vand.u32 2147483647, %v531
        %vm6585 = vcmp.le.f32.partialorder %v6584, 0.7853982
        %vm6586 = vcmp.lt.s32.totalorder %v531, 0
        %v6587 = vand.u32 %v531, 2139095040
        %v6588 = vshrl.u32 %v6587, 23
        %v6589 = vsub.s32 %v6588, 127
        %v6590 = vand.u32 2147483647, %v531
        %v6591 = vand.u32 %v6590, 8388607
        %v6592 = vor.u32 %v6591, 8388608
        %v6593 = vsub.s32 0, %v6592
        %v6594 = vadd.s32 %v6589, 1
        %vm6595 = vcmp.gt.s32.totalorder %v6594, 0
        %v6596 = vsel %vm6595, %v6594, 0
        %v6597 = vshrl.u32 %v6596, 5
        %v6598 = vand.u32 %v6596, 31
        %v6599 = vsub.s32 32, %v6598
        %v6600 = vshrl.u32 683565275, %v6599
        %v6601 = vshll.u32 683565275, %v6598
        %v6602 = vshrl.u32 2475754826, %v6599
        %v6603 = vor.u32 %v6601, %v6602
        %v6604 = vshll.u32 2475754826, %v6598
        %v6605 = vshrl.u32 2131351028, %v6599
        %v6606 = vor.u32 %v6604, %v6605
        %v6607 = vshll.u32 2131351028, %v6598
        %v6608 = vshrl.u32 2102212464, %v6599
        %v6609 = vor.u32 %v6607, %v6608
        %v6610 = vshll.u32 2102212464, %v6598
        %v6611 = vshrl.u32 920167782, %v6599
        %v6612 = vor.u32 %v6610, %v6611
        %v6613 = vshll.u32 920167782, %v6598
        %v6614 = vshrl.u32 1326507024, %v6599
        %v6615 = vor.u32 %v6613, %v6614
        %vm6616 = vcmp.lt.s32.totalorder %v6597, 1
        %vm6617 = vcmp.lt.s32.totalorder %v6597, 2
        %vm6618 = vcmp.lt.s32.totalorder %v6597, 3
        %vm6619 = vcmp.lt.s32.totalorder %v6597, 4
        %v6620 = vsel %vm6616, %v6600, %v6603
        %v6621 = vsel %vm6619, %v6609, 2102212464
        %v6622 = vsel %vm6618, %v6606, %v6621
        %v6623 = vsel %vm6617, %v6620, %v6622
        %v6624 = vsel %vm6616, %v6603, %v6606
        %v6625 = vsel %vm6619, %v6612, 920167782
        %v6626 = vsel %vm6618, %v6609, %v6625
        %v6627 = vsel %vm6617, %v6624, %v6626
        %v6628 = vsel %vm6616, %v6606, %v6609
        %v6629 = vsel %vm6619, %v6615, 1326507024
        %v6630 = vsel %vm6618, %v6612, %v6629
        %v6631 = vsel %vm6617, %v6628, %v6630
        %v6632 = vshll.u32 %v6592, 8
        %v6633 = vmul.u32.u64.compose %v6632, %v6631
        %v6634 = vextract.low.u32 %v6633
        %v6635 = vextract.high.u32 %v6633
        %v6636 = vmul.u32.u64.compose %v6632, %v6627
        %v6637 = vextract.low.u32 %v6636
        %v6638 = vextract.high.u32 %v6636
        %v6639 = vmul.u32 %v6632, %v6623
        %v6640 = vadd.s32 %v6635, %v6637
        %vm6641 = vc.u32 %v6635, %v6637
        %v6642 = vadd.s32 %v6638, 1
        %v6643 = vsel %vm6641, %v6642, %v6638
        %v6644 = vadd.s32 %v6639, %v6643
        %v6645 = vadd.s32 %v6644, 536870912
        %v6646 = vshrl.u32 %v6645, 30
        %v6647 = vshll.u32 %v6646, 30
        %v6648 = vsub.s32 %v6644, %v6647
        %vm6649 = vcmp.lt.s32.totalorder %v6648, 0
        %v6650 = vsub.s32 0, %v6648
        %v6651 = vsel %vm6649, %v6650, %v6648
        %v6652 = vclz %v6651
        %v6653 = vsub.s32 %v6652, 2
        %vm6654 = vcmp.gt.s32.totalorder 0, %v6653
        %v6655 = vsel %vm6654, 0, %v6653
        %v6656 = vsub.s32 32, %v6655
        %v6657 = vshll.u32 %v6648, %v6655
        %v6658 = vshrl.u32 %v6640, %v6656
        %v6659 = vor.u32 %v6657, %v6658
        %v6660 = vsub.s32 4294967266, %v6655
        %v6661 = vadd.s32 %v6660, 127
        %v6662 = vshll.u32 %v6661, 23
        %v6663 = vor.u32 4788187, %v6662
        %v6664 = vand.u32 2147483647, %v6663
        %v6666 = vcvt.s32.f32 %v6659
        %v6667 = vmul.f32 %v6666, %v6664
        %v6668 = vxor.u32 %v6667, 2147483648
        %v6669 = vsel %vm6586, %v6668, %v6667
        %v6670 = vsub.s32 4, %v6646
        %v6671 = vsel %vm6586, %v6670, %v6646
        %v6672 = vsel %vm6585, %v531, %v6669
        %v6673 = vsel %vm6585, 0, %v6671
        %v6674 = vcosq.f32.pop %v6672
        %v6675 = vsinq.f32.pop %v6672
        %vm6676 = vweird.f32 %v531
        %v6677 = vadd.s32 %v6673, 3
        %v6678 = vand.u32 %v6677, 3
        %vm6679 = vcmp.lt.s32.totalorder %v6678, 2
        %vm6680 = vcmp.eq.s32.totalorder %v6678, 0
        %v6681 = vxor.u32 %v6675, 2147483648
        %v6682 = vsel %vm6680, %v6674, %v6681
        %vm6683 = vcmp.eq.s32.totalorder %v6678, 2
        %v6684 = vxor.u32 %v6674, 2147483648
        %v6685 = vsel %vm6683, %v6684, %v6675
        %v6686 = vsel %vm6679, %v6682, %v6685
        %v6687 = vsel %vm6676, nan, %v6686
        %v6688 = vand.u32 2147483647, %v532
        %vm6689 = vcmp.le.f32.partialorder %v6688, 0.7853982
        %vm6690 = vcmp.lt.s32.totalorder %v532, 0
        %v6691 = vand.u32 %v532, 2139095040
        %v6692 = vshrl.u32 %v6691, 23
        %v6693 = vsub.s32 %v6692, 127
        %v6694 = vand.u32 2147483647, %v532
        %v6695 = vand.u32 %v6694, 8388607
        %v6696 = vor.u32 %v6695, 8388608
        %v6697 = vsub.s32 0, %v6696
        %v6698 = vadd.s32 %v6693, 1
        %vm6699 = vcmp.gt.s32.totalorder %v6698, 0
        %v6700 = vsel %vm6699, %v6698, 0
        %v6701 = vshrl.u32 %v6700, 5
        %v6702 = vand.u32 %v6700, 31
        %v6703 = vsub.s32 32, %v6702
        %v6704 = vshrl.u32 683565275, %v6703
        %v6705 = vshll.u32 683565275, %v6702
        %v6706 = vshrl.u32 2475754826, %v6703
        %v6707 = vor.u32 %v6705, %v6706
        %v6708 = vshll.u32 2475754826, %v6702
        %v6709 = vshrl.u32 2131351028, %v6703
        %v6710 = vor.u32 %v6708, %v6709
        %v6711 = vshll.u32 2131351028, %v6702
        %v6712 = vshrl.u32 2102212464, %v6703
        %v6713 = vor.u32 %v6711, %v6712
        %v6714 = vshll.u32 2102212464, %v6702
        %v6715 = vshrl.u32 920167782, %v6703
        %v6716 = vor.u32 %v6714, %v6715
        %v6717 = vshll.u32 920167782, %v6702
        %v6718 = vshrl.u32 1326507024, %v6703
        %v6719 = vor.u32 %v6717, %v6718
        %vm6720 = vcmp.lt.s32.totalorder %v6701, 1
        %vm6721 = vcmp.lt.s32.totalorder %v6701, 2
        %vm6722 = vcmp.lt.s32.totalorder %v6701, 3
        %vm6723 = vcmp.lt.s32.totalorder %v6701, 4
        %v6724 = vsel %vm6720, %v6704, %v6707
        %v6725 = vsel %vm6723, %v6713, 2102212464
        %v6726 = vsel %vm6722, %v6710, %v6725
        %v6727 = vsel %vm6721, %v6724, %v6726
        %v6728 = vsel %vm6720, %v6707, %v6710
        %v6729 = vsel %vm6723, %v6716, 920167782
        %v6730 = vsel %vm6722, %v6713, %v6729
        %v6731 = vsel %vm6721, %v6728, %v6730
        %v6732 = vsel %vm6720, %v6710, %v6713
        %v6733 = vsel %vm6723, %v6719, 1326507024
        %v6734 = vsel %vm6722, %v6716, %v6733
        %v6735 = vsel %vm6721, %v6732, %v6734
        %v6736 = vshll.u32 %v6696, 8
        %v6737 = vmul.u32.u64.compose %v6736, %v6735
        %v6738 = vextract.low.u32 %v6737
        %v6739 = vextract.high.u32 %v6737
        %v6740 = vmul.u32.u64.compose %v6736, %v6731
        %v6741 = vextract.low.u32 %v6740
        %v6742 = vextract.high.u32 %v6740
        %v6743 = vmul.u32 %v6736, %v6727
        %v6744 = vadd.s32 %v6739, %v6741
        %vm6745 = vc.u32 %v6739, %v6741
        %v6746 = vadd.s32 %v6742, 1
        %v6747 = vsel %vm6745, %v6746, %v6742
        %v6748 = vadd.s32 %v6743, %v6747
        %v6749 = vadd.s32 %v6748, 536870912
        %v6750 = vshrl.u32 %v6749, 30
        %v6751 = vshll.u32 %v6750, 30
        %v6752 = vsub.s32 %v6748, %v6751
        %vm6753 = vcmp.lt.s32.totalorder %v6752, 0
        %v6754 = vsub.s32 0, %v6752
        %v6755 = vsel %vm6753, %v6754, %v6752
        %v6756 = vclz %v6755
        %v6757 = vsub.s32 %v6756, 2
        %vm6758 = vcmp.gt.s32.totalorder 0, %v6757
        %v6759 = vsel %vm6758, 0, %v6757
        %v6760 = vsub.s32 32, %v6759
        %v6761 = vshll.u32 %v6752, %v6759
        %v6762 = vshrl.u32 %v6744, %v6760
        %v6763 = vor.u32 %v6761, %v6762
        %v6764 = vsub.s32 4294967266, %v6759
        %v6765 = vadd.s32 %v6764, 127
        %v6766 = vshll.u32 %v6765, 23
        %v6767 = vor.u32 4788187, %v6766
        %v6768 = vand.u32 2147483647, %v6767
        %v6770 = vcvt.s32.f32 %v6763
        %v6771 = vmul.f32 %v6770, %v6768
        %v6772 = vxor.u32 %v6771, 2147483648
        %v6773 = vsel %vm6690, %v6772, %v6771
        %v6774 = vsub.s32 4, %v6750
        %v6775 = vsel %vm6690, %v6774, %v6750
        %v6776 = vsel %vm6689, %v532, %v6773
        %v6777 = vsel %vm6689, 0, %v6775
        %v6778 = vcosq.f32.pop %v6776
        %v6779 = vsinq.f32.pop %v6776
        %vm6780 = vweird.f32 %v532
        %v6781 = vadd.s32 %v6777, 3
        %v6782 = vand.u32 %v6781, 3
        %vm6783 = vcmp.lt.s32.totalorder %v6782, 2
        %vm6784 = vcmp.eq.s32.totalorder %v6782, 0
        %v6785 = vxor.u32 %v6779, 2147483648
        %v6786 = vsel %vm6784, %v6778, %v6785
        %vm6787 = vcmp.eq.s32.totalorder %v6782, 2
        %v6788 = vxor.u32 %v6778, 2147483648
        %v6789 = vsel %vm6787, %v6788, %v6779
        %v6790 = vsel %vm6783, %v6786, %v6789
        %v6791 = vsel %vm6780, nan, %v6790
        %v6792 = vand.u32 2147483647, %v533
        %vm6793 = vcmp.le.f32.partialorder %v6792, 0.7853982
        %vm6794 = vcmp.lt.s32.totalorder %v533, 0
        %v6795 = vand.u32 %v533, 2139095040
        %v6796 = vshrl.u32 %v6795, 23
        %v6797 = vsub.s32 %v6796, 127
        %v6798 = vand.u32 2147483647, %v533
        %v6799 = vand.u32 %v6798, 8388607
        %v6800 = vor.u32 %v6799, 8388608
        %v6801 = vsub.s32 0, %v6800
        %v6802 = vadd.s32 %v6797, 1
        %vm6803 = vcmp.gt.s32.totalorder %v6802, 0
        %v6804 = vsel %vm6803, %v6802, 0
        %v6805 = vshrl.u32 %v6804, 5
        %v6806 = vand.u32 %v6804, 31
        %v6807 = vsub.s32 32, %v6806
        %v6808 = vshrl.u32 683565275, %v6807
        %v6809 = vshll.u32 683565275, %v6806
        %v6810 = vshrl.u32 2475754826, %v6807
        %v6811 = vor.u32 %v6809, %v6810
        %v6812 = vshll.u32 2475754826, %v6806
        %v6813 = vshrl.u32 2131351028, %v6807
        %v6814 = vor.u32 %v6812, %v6813
        %v6815 = vshll.u32 2131351028, %v6806
        %v6816 = vshrl.u32 2102212464, %v6807
        %v6817 = vor.u32 %v6815, %v6816
        %v6818 = vshll.u32 2102212464, %v6806
        %v6819 = vshrl.u32 920167782, %v6807
        %v6820 = vor.u32 %v6818, %v6819
        %v6821 = vshll.u32 920167782, %v6806
        %v6822 = vshrl.u32 1326507024, %v6807
        %v6823 = vor.u32 %v6821, %v6822
        %vm6824 = vcmp.lt.s32.totalorder %v6805, 1
        %vm6825 = vcmp.lt.s32.totalorder %v6805, 2
        %vm6826 = vcmp.lt.s32.totalorder %v6805, 3
        %vm6827 = vcmp.lt.s32.totalorder %v6805, 4
        %v6828 = vsel %vm6824, %v6808, %v6811
        %v6829 = vsel %vm6827, %v6817, 2102212464
        %v6830 = vsel %vm6826, %v6814, %v6829
        %v6831 = vsel %vm6825, %v6828, %v6830
        %v6832 = vsel %vm6824, %v6811, %v6814
        %v6833 = vsel %vm6827, %v6820, 920167782
        %v6834 = vsel %vm6826, %v6817, %v6833
        %v6835 = vsel %vm6825, %v6832, %v6834
        %v6836 = vsel %vm6824, %v6814, %v6817
        %v6837 = vsel %vm6827, %v6823, 1326507024
        %v6838 = vsel %vm6826, %v6820, %v6837
        %v6839 = vsel %vm6825, %v6836, %v6838
        %v6840 = vshll.u32 %v6800, 8
        %v6841 = vmul.u32.u64.compose %v6840, %v6839
        %v6842 = vextract.low.u32 %v6841
        %v6843 = vextract.high.u32 %v6841
        %v6844 = vmul.u32.u64.compose %v6840, %v6835
        %v6845 = vextract.low.u32 %v6844
        %v6846 = vextract.high.u32 %v6844
        %v6847 = vmul.u32 %v6840, %v6831
        %v6848 = vadd.s32 %v6843, %v6845
        %vm6849 = vc.u32 %v6843, %v6845
        %v6850 = vadd.s32 %v6846, 1
        %v6851 = vsel %vm6849, %v6850, %v6846
        %v6852 = vadd.s32 %v6847, %v6851
        %v6853 = vadd.s32 %v6852, 536870912
        %v6854 = vshrl.u32 %v6853, 30
        %v6855 = vshll.u32 %v6854, 30
        %v6856 = vsub.s32 %v6852, %v6855
        %vm6857 = vcmp.lt.s32.totalorder %v6856, 0
        %v6858 = vsub.s32 0, %v6856
        %v6859 = vsel %vm6857, %v6858, %v6856
        %v6860 = vclz %v6859
        %v6861 = vsub.s32 %v6860, 2
        %vm6862 = vcmp.gt.s32.totalorder 0, %v6861
        %v6863 = vsel %vm6862, 0, %v6861
        %v6864 = vsub.s32 32, %v6863
        %v6865 = vshll.u32 %v6856, %v6863
        %v6866 = vshrl.u32 %v6848, %v6864
        %v6867 = vor.u32 %v6865, %v6866
        %v6868 = vsub.s32 4294967266, %v6863
        %v6869 = vadd.s32 %v6868, 127
        %v6870 = vshll.u32 %v6869, 23
        %v6871 = vor.u32 4788187, %v6870
        %v6872 = vand.u32 2147483647, %v6871
        %v6874 = vcvt.s32.f32 %v6867
        %v6875 = vmul.f32 %v6874, %v6872
        %v6876 = vxor.u32 %v6875, 2147483648
        %v6877 = vsel %vm6794, %v6876, %v6875
        %v6878 = vsub.s32 4, %v6854
        %v6879 = vsel %vm6794, %v6878, %v6854
        %v6880 = vsel %vm6793, %v533, %v6877
        %v6881 = vsel %vm6793, 0, %v6879
        %v6882 = vcosq.f32.pop %v6880
        %v6883 = vsinq.f32.pop %v6880
        %vm6884 = vweird.f32 %v533
        %v6885 = vadd.s32 %v6881, 3
        %v6886 = vand.u32 %v6885, 3
        %vm6887 = vcmp.lt.s32.totalorder %v6886, 2
        %vm6888 = vcmp.eq.s32.totalorder %v6886, 0
        %v6889 = vxor.u32 %v6883, 2147483648
        %v6890 = vsel %vm6888, %v6882, %v6889
        %vm6891 = vcmp.eq.s32.totalorder %v6886, 2
        %v6892 = vxor.u32 %v6882, 2147483648
        %v6893 = vsel %vm6891, %v6892, %v6883
        %v6894 = vsel %vm6887, %v6890, %v6893
        %v6895 = vsel %vm6884, nan, %v6894
        %v6896 = vand.u32 2147483647, %v534
        %vm6897 = vcmp.le.f32.partialorder %v6896, 0.7853982
        %vm6898 = vcmp.lt.s32.totalorder %v534, 0
        %v6899 = vand.u32 %v534, 2139095040
        %v6900 = vshrl.u32 %v6899, 23
        %v6901 = vsub.s32 %v6900, 127
        %v6902 = vand.u32 2147483647, %v534
        %v6903 = vand.u32 %v6902, 8388607
        %v6904 = vor.u32 %v6903, 8388608
        %v6905 = vsub.s32 0, %v6904
        %v6906 = vadd.s32 %v6901, 1
        %vm6907 = vcmp.gt.s32.totalorder %v6906, 0
        %v6908 = vsel %vm6907, %v6906, 0
        %v6909 = vshrl.u32 %v6908, 5
        %v6910 = vand.u32 %v6908, 31
        %v6911 = vsub.s32 32, %v6910
        %v6912 = vshrl.u32 683565275, %v6911
        %v6913 = vshll.u32 683565275, %v6910
        %v6914 = vshrl.u32 2475754826, %v6911
        %v6915 = vor.u32 %v6913, %v6914
        %v6916 = vshll.u32 2475754826, %v6910
        %v6917 = vshrl.u32 2131351028, %v6911
        %v6918 = vor.u32 %v6916, %v6917
        %v6919 = vshll.u32 2131351028, %v6910
        %v6920 = vshrl.u32 2102212464, %v6911
        %v6921 = vor.u32 %v6919, %v6920
        %v6922 = vshll.u32 2102212464, %v6910
        %v6923 = vshrl.u32 920167782, %v6911
        %v6924 = vor.u32 %v6922, %v6923
        %v6925 = vshll.u32 920167782, %v6910
        %v6926 = vshrl.u32 1326507024, %v6911
        %v6927 = vor.u32 %v6925, %v6926
        %vm6928 = vcmp.lt.s32.totalorder %v6909, 1
        %vm6929 = vcmp.lt.s32.totalorder %v6909, 2
        %vm6930 = vcmp.lt.s32.totalorder %v6909, 3
        %vm6931 = vcmp.lt.s32.totalorder %v6909, 4
        %v6932 = vsel %vm6928, %v6912, %v6915
        %v6933 = vsel %vm6931, %v6921, 2102212464
        %v6934 = vsel %vm6930, %v6918, %v6933
        %v6935 = vsel %vm6929, %v6932, %v6934
        %v6936 = vsel %vm6928, %v6915, %v6918
        %v6937 = vsel %vm6931, %v6924, 920167782
        %v6938 = vsel %vm6930, %v6921, %v6937
        %v6939 = vsel %vm6929, %v6936, %v6938
        %v6940 = vsel %vm6928, %v6918, %v6921
        %v6941 = vsel %vm6931, %v6927, 1326507024
        %v6942 = vsel %vm6930, %v6924, %v6941
        %v6943 = vsel %vm6929, %v6940, %v6942
        %v6944 = vshll.u32 %v6904, 8
        %v6945 = vmul.u32.u64.compose %v6944, %v6943
        %v6946 = vextract.low.u32 %v6945
        %v6947 = vextract.high.u32 %v6945
        %v6948 = vmul.u32.u64.compose %v6944, %v6939
        %v6949 = vextract.low.u32 %v6948
        %v6950 = vextract.high.u32 %v6948
        %v6951 = vmul.u32 %v6944, %v6935
        %v6952 = vadd.s32 %v6947, %v6949
        %vm6953 = vc.u32 %v6947, %v6949
        %v6954 = vadd.s32 %v6950, 1
        %v6955 = vsel %vm6953, %v6954, %v6950
        %v6956 = vadd.s32 %v6951, %v6955
        %v6957 = vadd.s32 %v6956, 536870912
        %v6958 = vshrl.u32 %v6957, 30
        %v6959 = vshll.u32 %v6958, 30
        %v6960 = vsub.s32 %v6956, %v6959
        %vm6961 = vcmp.lt.s32.totalorder %v6960, 0
        %v6962 = vsub.s32 0, %v6960
        %v6963 = vsel %vm6961, %v6962, %v6960
        %v6964 = vclz %v6963
        %v6965 = vsub.s32 %v6964, 2
        %vm6966 = vcmp.gt.s32.totalorder 0, %v6965
        %v6967 = vsel %vm6966, 0, %v6965
        %v6968 = vsub.s32 32, %v6967
        %v6969 = vshll.u32 %v6960, %v6967
        %v6970 = vshrl.u32 %v6952, %v6968
        %v6971 = vor.u32 %v6969, %v6970
        %v6972 = vsub.s32 4294967266, %v6967
        %v6973 = vadd.s32 %v6972, 127
        %v6974 = vshll.u32 %v6973, 23
        %v6975 = vor.u32 4788187, %v6974
        %v6976 = vand.u32 2147483647, %v6975
        %v6978 = vcvt.s32.f32 %v6971
        %v6979 = vmul.f32 %v6978, %v6976
        %v6980 = vxor.u32 %v6979, 2147483648
        %v6981 = vsel %vm6898, %v6980, %v6979
        %v6982 = vsub.s32 4, %v6958
        %v6983 = vsel %vm6898, %v6982, %v6958
        %v6984 = vsel %vm6897, %v534, %v6981
        %v6985 = vsel %vm6897, 0, %v6983
        %v6986 = vcosq.f32.pop %v6984
        %v6987 = vsinq.f32.pop %v6984
        %vm6988 = vweird.f32 %v534
        %v6989 = vadd.s32 %v6985, 3
        %v6990 = vand.u32 %v6989, 3
        %vm6991 = vcmp.lt.s32.totalorder %v6990, 2
        %vm6992 = vcmp.eq.s32.totalorder %v6990, 0
        %v6993 = vxor.u32 %v6987, 2147483648
        %v6994 = vsel %vm6992, %v6986, %v6993
        %vm6995 = vcmp.eq.s32.totalorder %v6990, 2
        %v6996 = vxor.u32 %v6986, 2147483648
        %v6997 = vsel %vm6995, %v6996, %v6987
        %v6998 = vsel %vm6991, %v6994, %v6997
        %v6999 = vsel %vm6988, nan, %v6998
        %v7000 = vand.u32 2147483647, %v535
        %vm7001 = vcmp.le.f32.partialorder %v7000, 0.7853982
        %vm7002 = vcmp.lt.s32.totalorder %v535, 0
        %v7003 = vand.u32 %v535, 2139095040
        %v7004 = vshrl.u32 %v7003, 23
        %v7005 = vsub.s32 %v7004, 127
        %v7006 = vand.u32 2147483647, %v535
        %v7007 = vand.u32 %v7006, 8388607
        %v7008 = vor.u32 %v7007, 8388608
        %v7009 = vsub.s32 0, %v7008
        %v7010 = vadd.s32 %v7005, 1
        %vm7011 = vcmp.gt.s32.totalorder %v7010, 0
        %v7012 = vsel %vm7011, %v7010, 0
        %v7013 = vshrl.u32 %v7012, 5
        %v7014 = vand.u32 %v7012, 31
        %v7015 = vsub.s32 32, %v7014
        %v7016 = vshrl.u32 683565275, %v7015
        %v7017 = vshll.u32 683565275, %v7014
        %v7018 = vshrl.u32 2475754826, %v7015
        %v7019 = vor.u32 %v7017, %v7018
        %v7020 = vshll.u32 2475754826, %v7014
        %v7021 = vshrl.u32 2131351028, %v7015
        %v7022 = vor.u32 %v7020, %v7021
        %v7023 = vshll.u32 2131351028, %v7014
        %v7024 = vshrl.u32 2102212464, %v7015
        %v7025 = vor.u32 %v7023, %v7024
        %v7026 = vshll.u32 2102212464, %v7014
        %v7027 = vshrl.u32 920167782, %v7015
        %v7028 = vor.u32 %v7026, %v7027
        %v7029 = vshll.u32 920167782, %v7014
        %v7030 = vshrl.u32 1326507024, %v7015
        %v7031 = vor.u32 %v7029, %v7030
        %vm7032 = vcmp.lt.s32.totalorder %v7013, 1
        %vm7033 = vcmp.lt.s32.totalorder %v7013, 2
        %vm7034 = vcmp.lt.s32.totalorder %v7013, 3
        %vm7035 = vcmp.lt.s32.totalorder %v7013, 4
        %v7036 = vsel %vm7032, %v7016, %v7019
        %v7037 = vsel %vm7035, %v7025, 2102212464
        %v7038 = vsel %vm7034, %v7022, %v7037
        %v7039 = vsel %vm7033, %v7036, %v7038
        %v7040 = vsel %vm7032, %v7019, %v7022
        %v7041 = vsel %vm7035, %v7028, 920167782
        %v7042 = vsel %vm7034, %v7025, %v7041
        %v7043 = vsel %vm7033, %v7040, %v7042
        %v7044 = vsel %vm7032, %v7022, %v7025
        %v7045 = vsel %vm7035, %v7031, 1326507024
        %v7046 = vsel %vm7034, %v7028, %v7045
        %v7047 = vsel %vm7033, %v7044, %v7046
        %v7048 = vshll.u32 %v7008, 8
        %v7049 = vmul.u32.u64.compose %v7048, %v7047
        %v7050 = vextract.low.u32 %v7049
        %v7051 = vextract.high.u32 %v7049
        %v7052 = vmul.u32.u64.compose %v7048, %v7043
        %v7053 = vextract.low.u32 %v7052
        %v7054 = vextract.high.u32 %v7052
        %v7055 = vmul.u32 %v7048, %v7039
        %v7056 = vadd.s32 %v7051, %v7053
        %vm7057 = vc.u32 %v7051, %v7053
        %v7058 = vadd.s32 %v7054, 1
        %v7059 = vsel %vm7057, %v7058, %v7054
        %v7060 = vadd.s32 %v7055, %v7059
        %v7061 = vadd.s32 %v7060, 536870912
        %v7062 = vshrl.u32 %v7061, 30
        %v7063 = vshll.u32 %v7062, 30
        %v7064 = vsub.s32 %v7060, %v7063
        %vm7065 = vcmp.lt.s32.totalorder %v7064, 0
        %v7066 = vsub.s32 0, %v7064
        %v7067 = vsel %vm7065, %v7066, %v7064
        %v7068 = vclz %v7067
        %v7069 = vsub.s32 %v7068, 2
        %vm7070 = vcmp.gt.s32.totalorder 0, %v7069
        %v7071 = vsel %vm7070, 0, %v7069
        %v7072 = vsub.s32 32, %v7071
        %v7073 = vshll.u32 %v7064, %v7071
        %v7074 = vshrl.u32 %v7056, %v7072
        %v7075 = vor.u32 %v7073, %v7074
        %v7076 = vsub.s32 4294967266, %v7071
        %v7077 = vadd.s32 %v7076, 127
        %v7078 = vshll.u32 %v7077, 23
        %v7079 = vor.u32 4788187, %v7078
        %v7080 = vand.u32 2147483647, %v7079
        %v7082 = vcvt.s32.f32 %v7075
        %v7083 = vmul.f32 %v7082, %v7080
        %v7084 = vxor.u32 %v7083, 2147483648
        %v7085 = vsel %vm7002, %v7084, %v7083
        %v7086 = vsub.s32 4, %v7062
        %v7087 = vsel %vm7002, %v7086, %v7062
        %v7088 = vsel %vm7001, %v535, %v7085
        %v7089 = vsel %vm7001, 0, %v7087
        %v7090 = vcosq.f32.pop %v7088
        %v7091 = vsinq.f32.pop %v7088
        %vm7092 = vweird.f32 %v535
        %v7093 = vadd.s32 %v7089, 3
        %v7094 = vand.u32 %v7093, 3
        %vm7095 = vcmp.lt.s32.totalorder %v7094, 2
        %vm7096 = vcmp.eq.s32.totalorder %v7094, 0
        %v7097 = vxor.u32 %v7091, 2147483648
        %v7098 = vsel %vm7096, %v7090, %v7097
        %vm7099 = vcmp.eq.s32.totalorder %v7094, 2
        %v7100 = vxor.u32 %v7090, 2147483648
        %v7101 = vsel %vm7099, %v7100, %v7091
        %v7102 = vsel %vm7095, %v7098, %v7101
        %v7103 = vsel %vm7092, nan, %v7102
        %v7104 = vand.u32 2147483647, %v536
        %vm7105 = vcmp.le.f32.partialorder %v7104, 0.7853982
        %vm7106 = vcmp.lt.s32.totalorder %v536, 0
        %v7107 = vand.u32 %v536, 2139095040
        %v7108 = vshrl.u32 %v7107, 23
        %v7109 = vsub.s32 %v7108, 127
        %v7110 = vand.u32 2147483647, %v536
        %v7111 = vand.u32 %v7110, 8388607
        %v7112 = vor.u32 %v7111, 8388608
        %v7113 = vsub.s32 0, %v7112
        %v7114 = vadd.s32 %v7109, 1
        %vm7115 = vcmp.gt.s32.totalorder %v7114, 0
        %v7116 = vsel %vm7115, %v7114, 0
        %v7117 = vshrl.u32 %v7116, 5
        %v7118 = vand.u32 %v7116, 31
        %v7119 = vsub.s32 32, %v7118
        %v7120 = vshrl.u32 683565275, %v7119
        %v7121 = vshll.u32 683565275, %v7118
        %v7122 = vshrl.u32 2475754826, %v7119
        %v7123 = vor.u32 %v7121, %v7122
        %v7124 = vshll.u32 2475754826, %v7118
        %v7125 = vshrl.u32 2131351028, %v7119
        %v7126 = vor.u32 %v7124, %v7125
        %v7127 = vshll.u32 2131351028, %v7118
        %v7128 = vshrl.u32 2102212464, %v7119
        %v7129 = vor.u32 %v7127, %v7128
        %v7130 = vshll.u32 2102212464, %v7118
        %v7131 = vshrl.u32 920167782, %v7119
        %v7132 = vor.u32 %v7130, %v7131
        %v7133 = vshll.u32 920167782, %v7118
        %v7134 = vshrl.u32 1326507024, %v7119
        %v7135 = vor.u32 %v7133, %v7134
        %vm7136 = vcmp.lt.s32.totalorder %v7117, 1
        %vm7137 = vcmp.lt.s32.totalorder %v7117, 2
        %vm7138 = vcmp.lt.s32.totalorder %v7117, 3
        %vm7139 = vcmp.lt.s32.totalorder %v7117, 4
        %v7140 = vsel %vm7136, %v7120, %v7123
        %v7141 = vsel %vm7139, %v7129, 2102212464
        %v7142 = vsel %vm7138, %v7126, %v7141
        %v7143 = vsel %vm7137, %v7140, %v7142
        %v7144 = vsel %vm7136, %v7123, %v7126
        %v7145 = vsel %vm7139, %v7132, 920167782
        %v7146 = vsel %vm7138, %v7129, %v7145
        %v7147 = vsel %vm7137, %v7144, %v7146
        %v7148 = vsel %vm7136, %v7126, %v7129
        %v7149 = vsel %vm7139, %v7135, 1326507024
        %v7150 = vsel %vm7138, %v7132, %v7149
        %v7151 = vsel %vm7137, %v7148, %v7150
        %v7152 = vshll.u32 %v7112, 8
        %v7153 = vmul.u32.u64.compose %v7152, %v7151
        %v7154 = vextract.low.u32 %v7153
        %v7155 = vextract.high.u32 %v7153
        %v7156 = vmul.u32.u64.compose %v7152, %v7147
        %v7157 = vextract.low.u32 %v7156
        %v7158 = vextract.high.u32 %v7156
        %v7159 = vmul.u32 %v7152, %v7143
        %v7160 = vadd.s32 %v7155, %v7157
        %vm7161 = vc.u32 %v7155, %v7157
        %v7162 = vadd.s32 %v7158, 1
        %v7163 = vsel %vm7161, %v7162, %v7158
        %v7164 = vadd.s32 %v7159, %v7163
        %v7165 = vadd.s32 %v7164, 536870912
        %v7166 = vshrl.u32 %v7165, 30
        %v7167 = vshll.u32 %v7166, 30
        %v7168 = vsub.s32 %v7164, %v7167
        %vm7169 = vcmp.lt.s32.totalorder %v7168, 0
        %v7170 = vsub.s32 0, %v7168
        %v7171 = vsel %vm7169, %v7170, %v7168
        %v7172 = vclz %v7171
        %v7173 = vsub.s32 %v7172, 2
        %vm7174 = vcmp.gt.s32.totalorder 0, %v7173
        %v7175 = vsel %vm7174, 0, %v7173
        %v7176 = vsub.s32 32, %v7175
        %v7177 = vshll.u32 %v7168, %v7175
        %v7178 = vshrl.u32 %v7160, %v7176
        %v7179 = vor.u32 %v7177, %v7178
        %v7180 = vsub.s32 4294967266, %v7175
        %v7181 = vadd.s32 %v7180, 127
        %v7182 = vshll.u32 %v7181, 23
        %v7183 = vor.u32 4788187, %v7182
        %v7184 = vand.u32 2147483647, %v7183
        %v7186 = vcvt.s32.f32 %v7179
        %v7187 = vmul.f32 %v7186, %v7184
        %v7188 = vxor.u32 %v7187, 2147483648
        %v7189 = vsel %vm7106, %v7188, %v7187
        %v7190 = vsub.s32 4, %v7166
        %v7191 = vsel %vm7106, %v7190, %v7166
        %v7192 = vsel %vm7105, %v536, %v7189
        %v7193 = vsel %vm7105, 0, %v7191
        %v7194 = vcosq.f32.pop %v7192
        %v7195 = vsinq.f32.pop %v7192
        %vm7196 = vweird.f32 %v536
        %v7197 = vadd.s32 %v7193, 3
        %v7198 = vand.u32 %v7197, 3
        %vm7199 = vcmp.lt.s32.totalorder %v7198, 2
        %vm7200 = vcmp.eq.s32.totalorder %v7198, 0
        %v7201 = vxor.u32 %v7195, 2147483648
        %v7202 = vsel %vm7200, %v7194, %v7201
        %vm7203 = vcmp.eq.s32.totalorder %v7198, 2
        %v7204 = vxor.u32 %v7194, 2147483648
        %v7205 = vsel %vm7203, %v7204, %v7195
        %v7206 = vsel %vm7199, %v7202, %v7205
        %v7207 = vsel %vm7196, nan, %v7206
        %v7208 = vand.u32 2147483647, %v537
        %vm7209 = vcmp.le.f32.partialorder %v7208, 0.7853982
        %vm7210 = vcmp.lt.s32.totalorder %v537, 0
        %v7211 = vand.u32 %v537, 2139095040
        %v7212 = vshrl.u32 %v7211, 23
        %v7213 = vsub.s32 %v7212, 127
        %v7214 = vand.u32 2147483647, %v537
        %v7215 = vand.u32 %v7214, 8388607
        %v7216 = vor.u32 %v7215, 8388608
        %v7217 = vsub.s32 0, %v7216
        %v7218 = vadd.s32 %v7213, 1
        %vm7219 = vcmp.gt.s32.totalorder %v7218, 0
        %v7220 = vsel %vm7219, %v7218, 0
        %v7221 = vshrl.u32 %v7220, 5
        %v7222 = vand.u32 %v7220, 31
        %v7223 = vsub.s32 32, %v7222
        %v7224 = vshrl.u32 683565275, %v7223
        %v7225 = vshll.u32 683565275, %v7222
        %v7226 = vshrl.u32 2475754826, %v7223
        %v7227 = vor.u32 %v7225, %v7226
        %v7228 = vshll.u32 2475754826, %v7222
        %v7229 = vshrl.u32 2131351028, %v7223
        %v7230 = vor.u32 %v7228, %v7229
        %v7231 = vshll.u32 2131351028, %v7222
        %v7232 = vshrl.u32 2102212464, %v7223
        %v7233 = vor.u32 %v7231, %v7232
        %v7234 = vshll.u32 2102212464, %v7222
        %v7235 = vshrl.u32 920167782, %v7223
        %v7236 = vor.u32 %v7234, %v7235
        %v7237 = vshll.u32 920167782, %v7222
        %v7238 = vshrl.u32 1326507024, %v7223
        %v7239 = vor.u32 %v7237, %v7238
        %vm7240 = vcmp.lt.s32.totalorder %v7221, 1
        %vm7241 = vcmp.lt.s32.totalorder %v7221, 2
        %vm7242 = vcmp.lt.s32.totalorder %v7221, 3
        %vm7243 = vcmp.lt.s32.totalorder %v7221, 4
        %v7244 = vsel %vm7240, %v7224, %v7227
        %v7245 = vsel %vm7243, %v7233, 2102212464
        %v7246 = vsel %vm7242, %v7230, %v7245
        %v7247 = vsel %vm7241, %v7244, %v7246
        %v7248 = vsel %vm7240, %v7227, %v7230
        %v7249 = vsel %vm7243, %v7236, 920167782
        %v7250 = vsel %vm7242, %v7233, %v7249
        %v7251 = vsel %vm7241, %v7248, %v7250
        %v7252 = vsel %vm7240, %v7230, %v7233
        %v7253 = vsel %vm7243, %v7239, 1326507024
        %v7254 = vsel %vm7242, %v7236, %v7253
        %v7255 = vsel %vm7241, %v7252, %v7254
        %v7256 = vshll.u32 %v7216, 8
        %v7257 = vmul.u32.u64.compose %v7256, %v7255
        %v7258 = vextract.low.u32 %v7257
        %v7259 = vextract.high.u32 %v7257
        %v7260 = vmul.u32.u64.compose %v7256, %v7251
        %v7261 = vextract.low.u32 %v7260
        %v7262 = vextract.high.u32 %v7260
        %v7263 = vmul.u32 %v7256, %v7247
        %v7264 = vadd.s32 %v7259, %v7261
        %vm7265 = vc.u32 %v7259, %v7261
        %v7266 = vadd.s32 %v7262, 1
        %v7267 = vsel %vm7265, %v7266, %v7262
        %v7268 = vadd.s32 %v7263, %v7267
        %v7269 = vadd.s32 %v7268, 536870912
        %v7270 = vshrl.u32 %v7269, 30
        %v7271 = vshll.u32 %v7270, 30
        %v7272 = vsub.s32 %v7268, %v7271
        %vm7273 = vcmp.lt.s32.totalorder %v7272, 0
        %v7274 = vsub.s32 0, %v7272
        %v7275 = vsel %vm7273, %v7274, %v7272
        %v7276 = vclz %v7275
        %v7277 = vsub.s32 %v7276, 2
        %vm7278 = vcmp.gt.s32.totalorder 0, %v7277
        %v7279 = vsel %vm7278, 0, %v7277
        %v7280 = vsub.s32 32, %v7279
        %v7281 = vshll.u32 %v7272, %v7279
        %v7282 = vshrl.u32 %v7264, %v7280
        %v7283 = vor.u32 %v7281, %v7282
        %v7284 = vsub.s32 4294967266, %v7279
        %v7285 = vadd.s32 %v7284, 127
        %v7286 = vshll.u32 %v7285, 23
        %v7287 = vor.u32 4788187, %v7286
        %v7288 = vand.u32 2147483647, %v7287
        %v7290 = vcvt.s32.f32 %v7283
        %v7291 = vmul.f32 %v7290, %v7288
        %v7292 = vxor.u32 %v7291, 2147483648
        %v7293 = vsel %vm7210, %v7292, %v7291
        %v7294 = vsub.s32 4, %v7270
        %v7295 = vsel %vm7210, %v7294, %v7270
        %v7296 = vsel %vm7209, %v537, %v7293
        %v7297 = vsel %vm7209, 0, %v7295
        %v7298 = vcosq.f32.pop %v7296
        %v7299 = vsinq.f32.pop %v7296
        %vm7300 = vweird.f32 %v537
        %v7301 = vadd.s32 %v7297, 3
        %v7302 = vand.u32 %v7301, 3
        %vm7303 = vcmp.lt.s32.totalorder %v7302, 2
        %vm7304 = vcmp.eq.s32.totalorder %v7302, 0
        %v7305 = vxor.u32 %v7299, 2147483648
        %v7306 = vsel %vm7304, %v7298, %v7305
        %vm7307 = vcmp.eq.s32.totalorder %v7302, 2
        %v7308 = vxor.u32 %v7298, 2147483648
        %v7309 = vsel %vm7307, %v7308, %v7299
        %v7310 = vsel %vm7303, %v7306, %v7309
        %v7311 = vsel %vm7300, nan, %v7310
        %v7312 = vand.u32 2147483647, %v538
        %vm7313 = vcmp.le.f32.partialorder %v7312, 0.7853982
        %vm7314 = vcmp.lt.s32.totalorder %v538, 0
        %v7315 = vand.u32 %v538, 2139095040
        %v7316 = vshrl.u32 %v7315, 23
        %v7317 = vsub.s32 %v7316, 127
        %v7318 = vand.u32 2147483647, %v538
        %v7319 = vand.u32 %v7318, 8388607
        %v7320 = vor.u32 %v7319, 8388608
        %v7321 = vsub.s32 0, %v7320
        %v7322 = vadd.s32 %v7317, 1
        %vm7323 = vcmp.gt.s32.totalorder %v7322, 0
        %v7324 = vsel %vm7323, %v7322, 0
        %v7325 = vshrl.u32 %v7324, 5
        %v7326 = vand.u32 %v7324, 31
        %v7327 = vsub.s32 32, %v7326
        %v7328 = vshrl.u32 683565275, %v7327
        %v7329 = vshll.u32 683565275, %v7326
        %v7330 = vshrl.u32 2475754826, %v7327
        %v7331 = vor.u32 %v7329, %v7330
        %v7332 = vshll.u32 2475754826, %v7326
        %v7333 = vshrl.u32 2131351028, %v7327
        %v7334 = vor.u32 %v7332, %v7333
        %v7335 = vshll.u32 2131351028, %v7326
        %v7336 = vshrl.u32 2102212464, %v7327
        %v7337 = vor.u32 %v7335, %v7336
        %v7338 = vshll.u32 2102212464, %v7326
        %v7339 = vshrl.u32 920167782, %v7327
        %v7340 = vor.u32 %v7338, %v7339
        %v7341 = vshll.u32 920167782, %v7326
        %v7342 = vshrl.u32 1326507024, %v7327
        %v7343 = vor.u32 %v7341, %v7342
        %vm7344 = vcmp.lt.s32.totalorder %v7325, 1
        %vm7345 = vcmp.lt.s32.totalorder %v7325, 2
        %vm7346 = vcmp.lt.s32.totalorder %v7325, 3
        %vm7347 = vcmp.lt.s32.totalorder %v7325, 4
        %v7348 = vsel %vm7344, %v7328, %v7331
        %v7349 = vsel %vm7347, %v7337, 2102212464
        %v7350 = vsel %vm7346, %v7334, %v7349
        %v7351 = vsel %vm7345, %v7348, %v7350
        %v7352 = vsel %vm7344, %v7331, %v7334
        %v7353 = vsel %vm7347, %v7340, 920167782
        %v7354 = vsel %vm7346, %v7337, %v7353
        %v7355 = vsel %vm7345, %v7352, %v7354
        %v7356 = vsel %vm7344, %v7334, %v7337
        %v7357 = vsel %vm7347, %v7343, 1326507024
        %v7358 = vsel %vm7346, %v7340, %v7357
        %v7359 = vsel %vm7345, %v7356, %v7358
        %v7360 = vshll.u32 %v7320, 8
        %v7361 = vmul.u32.u64.compose %v7360, %v7359
        %v7362 = vextract.low.u32 %v7361
        %v7363 = vextract.high.u32 %v7361
        %v7364 = vmul.u32.u64.compose %v7360, %v7355
        %v7365 = vextract.low.u32 %v7364
        %v7366 = vextract.high.u32 %v7364
        %v7367 = vmul.u32 %v7360, %v7351
        %v7368 = vadd.s32 %v7363, %v7365
        %vm7369 = vc.u32 %v7363, %v7365
        %v7370 = vadd.s32 %v7366, 1
        %v7371 = vsel %vm7369, %v7370, %v7366
        %v7372 = vadd.s32 %v7367, %v7371
        %v7373 = vadd.s32 %v7372, 536870912
        %v7374 = vshrl.u32 %v7373, 30
        %v7375 = vshll.u32 %v7374, 30
        %v7376 = vsub.s32 %v7372, %v7375
        %vm7377 = vcmp.lt.s32.totalorder %v7376, 0
        %v7378 = vsub.s32 0, %v7376
        %v7379 = vsel %vm7377, %v7378, %v7376
        %v7380 = vclz %v7379
        %v7381 = vsub.s32 %v7380, 2
        %vm7382 = vcmp.gt.s32.totalorder 0, %v7381
        %v7383 = vsel %vm7382, 0, %v7381
        %v7384 = vsub.s32 32, %v7383
        %v7385 = vshll.u32 %v7376, %v7383
        %v7386 = vshrl.u32 %v7368, %v7384
        %v7387 = vor.u32 %v7385, %v7386
        %v7388 = vsub.s32 4294967266, %v7383
        %v7389 = vadd.s32 %v7388, 127
        %v7390 = vshll.u32 %v7389, 23
        %v7391 = vor.u32 4788187, %v7390
        %v7392 = vand.u32 2147483647, %v7391
        %v7394 = vcvt.s32.f32 %v7387
        %v7395 = vmul.f32 %v7394, %v7392
        %v7396 = vxor.u32 %v7395, 2147483648
        %v7397 = vsel %vm7314, %v7396, %v7395
        %v7398 = vsub.s32 4, %v7374
        %v7399 = vsel %vm7314, %v7398, %v7374
        %v7400 = vsel %vm7313, %v538, %v7397
        %v7401 = vsel %vm7313, 0, %v7399
        %v7402 = vcosq.f32.pop %v7400
        %v7403 = vsinq.f32.pop %v7400
        %vm7404 = vweird.f32 %v538
        %v7405 = vadd.s32 %v7401, 3
        %v7406 = vand.u32 %v7405, 3
        %vm7407 = vcmp.lt.s32.totalorder %v7406, 2
        %vm7408 = vcmp.eq.s32.totalorder %v7406, 0
        %v7409 = vxor.u32 %v7403, 2147483648
        %v7410 = vsel %vm7408, %v7402, %v7409
        %vm7411 = vcmp.eq.s32.totalorder %v7406, 2
        %v7412 = vxor.u32 %v7402, 2147483648
        %v7413 = vsel %vm7411, %v7412, %v7403
        %v7414 = vsel %vm7407, %v7410, %v7413
        %v7415 = vsel %vm7404, nan, %v7414
        %v7416 = vand.u32 2147483647, %v539
        %vm7417 = vcmp.le.f32.partialorder %v7416, 0.7853982
        %vm7418 = vcmp.lt.s32.totalorder %v539, 0
        %v7419 = vand.u32 %v539, 2139095040
        %v7420 = vshrl.u32 %v7419, 23
        %v7421 = vsub.s32 %v7420, 127
        %v7422 = vand.u32 2147483647, %v539
        %v7423 = vand.u32 %v7422, 8388607
        %v7424 = vor.u32 %v7423, 8388608
        %v7425 = vsub.s32 0, %v7424
        %v7426 = vadd.s32 %v7421, 1
        %vm7427 = vcmp.gt.s32.totalorder %v7426, 0
        %v7428 = vsel %vm7427, %v7426, 0
        %v7429 = vshrl.u32 %v7428, 5
        %v7430 = vand.u32 %v7428, 31
        %v7431 = vsub.s32 32, %v7430
        %v7432 = vshrl.u32 683565275, %v7431
        %v7433 = vshll.u32 683565275, %v7430
        %v7434 = vshrl.u32 2475754826, %v7431
        %v7435 = vor.u32 %v7433, %v7434
        %v7436 = vshll.u32 2475754826, %v7430
        %v7437 = vshrl.u32 2131351028, %v7431
        %v7438 = vor.u32 %v7436, %v7437
        %v7439 = vshll.u32 2131351028, %v7430
        %v7440 = vshrl.u32 2102212464, %v7431
        %v7441 = vor.u32 %v7439, %v7440
        %v7442 = vshll.u32 2102212464, %v7430
        %v7443 = vshrl.u32 920167782, %v7431
        %v7444 = vor.u32 %v7442, %v7443
        %v7445 = vshll.u32 920167782, %v7430
        %v7446 = vshrl.u32 1326507024, %v7431
        %v7447 = vor.u32 %v7445, %v7446
        %vm7448 = vcmp.lt.s32.totalorder %v7429, 1
        %vm7449 = vcmp.lt.s32.totalorder %v7429, 2
        %vm7450 = vcmp.lt.s32.totalorder %v7429, 3
        %vm7451 = vcmp.lt.s32.totalorder %v7429, 4
        %v7452 = vsel %vm7448, %v7432, %v7435
        %v7453 = vsel %vm7451, %v7441, 2102212464
        %v7454 = vsel %vm7450, %v7438, %v7453
        %v7455 = vsel %vm7449, %v7452, %v7454
        %v7456 = vsel %vm7448, %v7435, %v7438
        %v7457 = vsel %vm7451, %v7444, 920167782
        %v7458 = vsel %vm7450, %v7441, %v7457
        %v7459 = vsel %vm7449, %v7456, %v7458
        %v7460 = vsel %vm7448, %v7438, %v7441
        %v7461 = vsel %vm7451, %v7447, 1326507024
        %v7462 = vsel %vm7450, %v7444, %v7461
        %v7463 = vsel %vm7449, %v7460, %v7462
        %v7464 = vshll.u32 %v7424, 8
        %v7465 = vmul.u32.u64.compose %v7464, %v7463
        %v7466 = vextract.low.u32 %v7465
        %v7467 = vextract.high.u32 %v7465
        %v7468 = vmul.u32.u64.compose %v7464, %v7459
        %v7469 = vextract.low.u32 %v7468
        %v7470 = vextract.high.u32 %v7468
        %v7471 = vmul.u32 %v7464, %v7455
        %v7472 = vadd.s32 %v7467, %v7469
        %vm7473 = vc.u32 %v7467, %v7469
        %v7474 = vadd.s32 %v7470, 1
        %v7475 = vsel %vm7473, %v7474, %v7470
        %v7476 = vadd.s32 %v7471, %v7475
        %v7477 = vadd.s32 %v7476, 536870912
        %v7478 = vshrl.u32 %v7477, 30
        %v7479 = vshll.u32 %v7478, 30
        %v7480 = vsub.s32 %v7476, %v7479
        %vm7481 = vcmp.lt.s32.totalorder %v7480, 0
        %v7482 = vsub.s32 0, %v7480
        %v7483 = vsel %vm7481, %v7482, %v7480
        %v7484 = vclz %v7483
        %v7485 = vsub.s32 %v7484, 2
        %vm7486 = vcmp.gt.s32.totalorder 0, %v7485
        %v7487 = vsel %vm7486, 0, %v7485
        %v7488 = vsub.s32 32, %v7487
        %v7489 = vshll.u32 %v7480, %v7487
        %v7490 = vshrl.u32 %v7472, %v7488
        %v7491 = vor.u32 %v7489, %v7490
        %v7492 = vsub.s32 4294967266, %v7487
        %v7493 = vadd.s32 %v7492, 127
        %v7494 = vshll.u32 %v7493, 23
        %v7495 = vor.u32 4788187, %v7494
        %v7496 = vand.u32 2147483647, %v7495
        %v7498 = vcvt.s32.f32 %v7491
        %v7499 = vmul.f32 %v7498, %v7496
        %v7500 = vxor.u32 %v7499, 2147483648
        %v7501 = vsel %vm7418, %v7500, %v7499
        %v7502 = vsub.s32 4, %v7478
        %v7503 = vsel %vm7418, %v7502, %v7478
        %v7504 = vsel %vm7417, %v539, %v7501
        %v7505 = vsel %vm7417, 0, %v7503
        %v7506 = vcosq.f32.pop %v7504
        %v7507 = vsinq.f32.pop %v7504
        %vm7508 = vweird.f32 %v539
        %v7509 = vadd.s32 %v7505, 3
        %v7510 = vand.u32 %v7509, 3
        %vm7511 = vcmp.lt.s32.totalorder %v7510, 2
        %vm7512 = vcmp.eq.s32.totalorder %v7510, 0
        %v7513 = vxor.u32 %v7507, 2147483648
        %v7514 = vsel %vm7512, %v7506, %v7513
        %vm7515 = vcmp.eq.s32.totalorder %v7510, 2
        %v7516 = vxor.u32 %v7506, 2147483648
        %v7517 = vsel %vm7515, %v7516, %v7507
        %v7518 = vsel %vm7511, %v7514, %v7517
        %v7519 = vsel %vm7508, nan, %v7518
        %v7520 = vand.u32 2147483647, %v540
        %vm7521 = vcmp.le.f32.partialorder %v7520, 0.7853982
        %vm7522 = vcmp.lt.s32.totalorder %v540, 0
        %v7523 = vand.u32 %v540, 2139095040
        %v7524 = vshrl.u32 %v7523, 23
        %v7525 = vsub.s32 %v7524, 127
        %v7526 = vand.u32 2147483647, %v540
        %v7527 = vand.u32 %v7526, 8388607
        %v7528 = vor.u32 %v7527, 8388608
        %v7529 = vsub.s32 0, %v7528
        %v7530 = vadd.s32 %v7525, 1
        %vm7531 = vcmp.gt.s32.totalorder %v7530, 0
        %v7532 = vsel %vm7531, %v7530, 0
        %v7533 = vshrl.u32 %v7532, 5
        %v7534 = vand.u32 %v7532, 31
        %v7535 = vsub.s32 32, %v7534
        %v7536 = vshrl.u32 683565275, %v7535
        %v7537 = vshll.u32 683565275, %v7534
        %v7538 = vshrl.u32 2475754826, %v7535
        %v7539 = vor.u32 %v7537, %v7538
        %v7540 = vshll.u32 2475754826, %v7534
        %v7541 = vshrl.u32 2131351028, %v7535
        %v7542 = vor.u32 %v7540, %v7541
        %v7543 = vshll.u32 2131351028, %v7534
        %v7544 = vshrl.u32 2102212464, %v7535
        %v7545 = vor.u32 %v7543, %v7544
        %v7546 = vshll.u32 2102212464, %v7534
        %v7547 = vshrl.u32 920167782, %v7535
        %v7548 = vor.u32 %v7546, %v7547
        %v7549 = vshll.u32 920167782, %v7534
        %v7550 = vshrl.u32 1326507024, %v7535
        %v7551 = vor.u32 %v7549, %v7550
        %vm7552 = vcmp.lt.s32.totalorder %v7533, 1
        %vm7553 = vcmp.lt.s32.totalorder %v7533, 2
        %vm7554 = vcmp.lt.s32.totalorder %v7533, 3
        %vm7555 = vcmp.lt.s32.totalorder %v7533, 4
        %v7556 = vsel %vm7552, %v7536, %v7539
        %v7557 = vsel %vm7555, %v7545, 2102212464
        %v7558 = vsel %vm7554, %v7542, %v7557
        %v7559 = vsel %vm7553, %v7556, %v7558
        %v7560 = vsel %vm7552, %v7539, %v7542
        %v7561 = vsel %vm7555, %v7548, 920167782
        %v7562 = vsel %vm7554, %v7545, %v7561
        %v7563 = vsel %vm7553, %v7560, %v7562
        %v7564 = vsel %vm7552, %v7542, %v7545
        %v7565 = vsel %vm7555, %v7551, 1326507024
        %v7566 = vsel %vm7554, %v7548, %v7565
        %v7567 = vsel %vm7553, %v7564, %v7566
        %v7568 = vshll.u32 %v7528, 8
        %v7569 = vmul.u32.u64.compose %v7568, %v7567
        %v7570 = vextract.low.u32 %v7569
        %v7571 = vextract.high.u32 %v7569
        %v7572 = vmul.u32.u64.compose %v7568, %v7563
        %v7573 = vextract.low.u32 %v7572
        %v7574 = vextract.high.u32 %v7572
        %v7575 = vmul.u32 %v7568, %v7559
        %v7576 = vadd.s32 %v7571, %v7573
        %vm7577 = vc.u32 %v7571, %v7573
        %v7578 = vadd.s32 %v7574, 1
        %v7579 = vsel %vm7577, %v7578, %v7574
        %v7580 = vadd.s32 %v7575, %v7579
        %v7581 = vadd.s32 %v7580, 536870912
        %v7582 = vshrl.u32 %v7581, 30
        %v7583 = vshll.u32 %v7582, 30
        %v7584 = vsub.s32 %v7580, %v7583
        %vm7585 = vcmp.lt.s32.totalorder %v7584, 0
        %v7586 = vsub.s32 0, %v7584
        %v7587 = vsel %vm7585, %v7586, %v7584
        %v7588 = vclz %v7587
        %v7589 = vsub.s32 %v7588, 2
        %vm7590 = vcmp.gt.s32.totalorder 0, %v7589
        %v7591 = vsel %vm7590, 0, %v7589
        %v7592 = vsub.s32 32, %v7591
        %v7593 = vshll.u32 %v7584, %v7591
        %v7594 = vshrl.u32 %v7576, %v7592
        %v7595 = vor.u32 %v7593, %v7594
        %v7596 = vsub.s32 4294967266, %v7591
        %v7597 = vadd.s32 %v7596, 127
        %v7598 = vshll.u32 %v7597, 23
        %v7599 = vor.u32 4788187, %v7598
        %v7600 = vand.u32 2147483647, %v7599
        %v7602 = vcvt.s32.f32 %v7595
        %v7603 = vmul.f32 %v7602, %v7600
        %v7604 = vxor.u32 %v7603, 2147483648
        %v7605 = vsel %vm7522, %v7604, %v7603
        %v7606 = vsub.s32 4, %v7582
        %v7607 = vsel %vm7522, %v7606, %v7582
        %v7608 = vsel %vm7521, %v540, %v7605
        %v7609 = vsel %vm7521, 0, %v7607
        %v7610 = vcosq.f32.pop %v7608
        %v7611 = vsinq.f32.pop %v7608
        %vm7612 = vweird.f32 %v540
        %v7613 = vadd.s32 %v7609, 3
        %v7614 = vand.u32 %v7613, 3
        %vm7615 = vcmp.lt.s32.totalorder %v7614, 2
        %vm7616 = vcmp.eq.s32.totalorder %v7614, 0
        %v7617 = vxor.u32 %v7611, 2147483648
        %v7618 = vsel %vm7616, %v7610, %v7617
        %vm7619 = vcmp.eq.s32.totalorder %v7614, 2
        %v7620 = vxor.u32 %v7610, 2147483648
        %v7621 = vsel %vm7619, %v7620, %v7611
        %v7622 = vsel %vm7615, %v7618, %v7621
        %v7623 = vsel %vm7612, nan, %v7622
        %v7624 = vand.u32 2147483647, %v541
        %vm7625 = vcmp.le.f32.partialorder %v7624, 0.7853982
        %vm7626 = vcmp.lt.s32.totalorder %v541, 0
        %v7627 = vand.u32 %v541, 2139095040
        %v7628 = vshrl.u32 %v7627, 23
        %v7629 = vsub.s32 %v7628, 127
        %v7630 = vand.u32 2147483647, %v541
        %v7631 = vand.u32 %v7630, 8388607
        %v7632 = vor.u32 %v7631, 8388608
        %v7633 = vsub.s32 0, %v7632
        %v7634 = vadd.s32 %v7629, 1
        %vm7635 = vcmp.gt.s32.totalorder %v7634, 0
        %v7636 = vsel %vm7635, %v7634, 0
        %v7637 = vshrl.u32 %v7636, 5
        %v7638 = vand.u32 %v7636, 31
        %v7639 = vsub.s32 32, %v7638
        %v7640 = vshrl.u32 683565275, %v7639
        %v7641 = vshll.u32 683565275, %v7638
        %v7642 = vshrl.u32 2475754826, %v7639
        %v7643 = vor.u32 %v7641, %v7642
        %v7644 = vshll.u32 2475754826, %v7638
        %v7645 = vshrl.u32 2131351028, %v7639
        %v7646 = vor.u32 %v7644, %v7645
        %v7647 = vshll.u32 2131351028, %v7638
        %v7648 = vshrl.u32 2102212464, %v7639
        %v7649 = vor.u32 %v7647, %v7648
        %v7650 = vshll.u32 2102212464, %v7638
        %v7651 = vshrl.u32 920167782, %v7639
        %v7652 = vor.u32 %v7650, %v7651
        %v7653 = vshll.u32 920167782, %v7638
        %v7654 = vshrl.u32 1326507024, %v7639
        %v7655 = vor.u32 %v7653, %v7654
        %vm7656 = vcmp.lt.s32.totalorder %v7637, 1
        %vm7657 = vcmp.lt.s32.totalorder %v7637, 2
        %vm7658 = vcmp.lt.s32.totalorder %v7637, 3
        %vm7659 = vcmp.lt.s32.totalorder %v7637, 4
        %v7660 = vsel %vm7656, %v7640, %v7643
        %v7661 = vsel %vm7659, %v7649, 2102212464
        %v7662 = vsel %vm7658, %v7646, %v7661
        %v7663 = vsel %vm7657, %v7660, %v7662
        %v7664 = vsel %vm7656, %v7643, %v7646
        %v7665 = vsel %vm7659, %v7652, 920167782
        %v7666 = vsel %vm7658, %v7649, %v7665
        %v7667 = vsel %vm7657, %v7664, %v7666
        %v7668 = vsel %vm7656, %v7646, %v7649
        %v7669 = vsel %vm7659, %v7655, 1326507024
        %v7670 = vsel %vm7658, %v7652, %v7669
        %v7671 = vsel %vm7657, %v7668, %v7670
        %v7672 = vshll.u32 %v7632, 8
        %v7673 = vmul.u32.u64.compose %v7672, %v7671
        %v7674 = vextract.low.u32 %v7673
        %v7675 = vextract.high.u32 %v7673
        %v7676 = vmul.u32.u64.compose %v7672, %v7667
        %v7677 = vextract.low.u32 %v7676
        %v7678 = vextract.high.u32 %v7676
        %v7679 = vmul.u32 %v7672, %v7663
        %v7680 = vadd.s32 %v7675, %v7677
        %vm7681 = vc.u32 %v7675, %v7677
        %v7682 = vadd.s32 %v7678, 1
        %v7683 = vsel %vm7681, %v7682, %v7678
        %v7684 = vadd.s32 %v7679, %v7683
        %v7685 = vadd.s32 %v7684, 536870912
        %v7686 = vshrl.u32 %v7685, 30
        %v7687 = vshll.u32 %v7686, 30
        %v7688 = vsub.s32 %v7684, %v7687
        %vm7689 = vcmp.lt.s32.totalorder %v7688, 0
        %v7690 = vsub.s32 0, %v7688
        %v7691 = vsel %vm7689, %v7690, %v7688
        %v7692 = vclz %v7691
        %v7693 = vsub.s32 %v7692, 2
        %vm7694 = vcmp.gt.s32.totalorder 0, %v7693
        %v7695 = vsel %vm7694, 0, %v7693
        %v7696 = vsub.s32 32, %v7695
        %v7697 = vshll.u32 %v7688, %v7695
        %v7698 = vshrl.u32 %v7680, %v7696
        %v7699 = vor.u32 %v7697, %v7698
        %v7700 = vsub.s32 4294967266, %v7695
        %v7701 = vadd.s32 %v7700, 127
        %v7702 = vshll.u32 %v7701, 23
        %v7703 = vor.u32 4788187, %v7702
        %v7704 = vand.u32 2147483647, %v7703
        %v7706 = vcvt.s32.f32 %v7699
        %v7707 = vmul.f32 %v7706, %v7704
        %v7708 = vxor.u32 %v7707, 2147483648
        %v7709 = vsel %vm7626, %v7708, %v7707
        %v7710 = vsub.s32 4, %v7686
        %v7711 = vsel %vm7626, %v7710, %v7686
        %v7712 = vsel %vm7625, %v541, %v7709
        %v7713 = vsel %vm7625, 0, %v7711
        %v7714 = vcosq.f32.pop %v7712
        %v7715 = vsinq.f32.pop %v7712
        %vm7716 = vweird.f32 %v541
        %v7717 = vadd.s32 %v7713, 3
        %v7718 = vand.u32 %v7717, 3
        %vm7719 = vcmp.lt.s32.totalorder %v7718, 2
        %vm7720 = vcmp.eq.s32.totalorder %v7718, 0
        %v7721 = vxor.u32 %v7715, 2147483648
        %v7722 = vsel %vm7720, %v7714, %v7721
        %vm7723 = vcmp.eq.s32.totalorder %v7718, 2
        %v7724 = vxor.u32 %v7714, 2147483648
        %v7725 = vsel %vm7723, %v7724, %v7715
        %v7726 = vsel %vm7719, %v7722, %v7725
        %v7727 = vsel %vm7716, nan, %v7726
        %v7728 = vand.u32 2147483647, %v542
        %vm7729 = vcmp.le.f32.partialorder %v7728, 0.7853982
        %vm7730 = vcmp.lt.s32.totalorder %v542, 0
        %v7731 = vand.u32 %v542, 2139095040
        %v7732 = vshrl.u32 %v7731, 23
        %v7733 = vsub.s32 %v7732, 127
        %v7734 = vand.u32 2147483647, %v542
        %v7735 = vand.u32 %v7734, 8388607
        %v7736 = vor.u32 %v7735, 8388608
        %v7737 = vsub.s32 0, %v7736
        %v7738 = vadd.s32 %v7733, 1
        %vm7739 = vcmp.gt.s32.totalorder %v7738, 0
        %v7740 = vsel %vm7739, %v7738, 0
        %v7741 = vshrl.u32 %v7740, 5
        %v7742 = vand.u32 %v7740, 31
        %v7743 = vsub.s32 32, %v7742
        %v7744 = vshrl.u32 683565275, %v7743
        %v7745 = vshll.u32 683565275, %v7742
        %v7746 = vshrl.u32 2475754826, %v7743
        %v7747 = vor.u32 %v7745, %v7746
        %v7748 = vshll.u32 2475754826, %v7742
        %v7749 = vshrl.u32 2131351028, %v7743
        %v7750 = vor.u32 %v7748, %v7749
        %v7751 = vshll.u32 2131351028, %v7742
        %v7752 = vshrl.u32 2102212464, %v7743
        %v7753 = vor.u32 %v7751, %v7752
        %v7754 = vshll.u32 2102212464, %v7742
        %v7755 = vshrl.u32 920167782, %v7743
        %v7756 = vor.u32 %v7754, %v7755
        %v7757 = vshll.u32 920167782, %v7742
        %v7758 = vshrl.u32 1326507024, %v7743
        %v7759 = vor.u32 %v7757, %v7758
        %vm7760 = vcmp.lt.s32.totalorder %v7741, 1
        %vm7761 = vcmp.lt.s32.totalorder %v7741, 2
        %vm7762 = vcmp.lt.s32.totalorder %v7741, 3
        %vm7763 = vcmp.lt.s32.totalorder %v7741, 4
        %v7764 = vsel %vm7760, %v7744, %v7747
        %v7765 = vsel %vm7763, %v7753, 2102212464
        %v7766 = vsel %vm7762, %v7750, %v7765
        %v7767 = vsel %vm7761, %v7764, %v7766
        %v7768 = vsel %vm7760, %v7747, %v7750
        %v7769 = vsel %vm7763, %v7756, 920167782
        %v7770 = vsel %vm7762, %v7753, %v7769
        %v7771 = vsel %vm7761, %v7768, %v7770
        %v7772 = vsel %vm7760, %v7750, %v7753
        %v7773 = vsel %vm7763, %v7759, 1326507024
        %v7774 = vsel %vm7762, %v7756, %v7773
        %v7775 = vsel %vm7761, %v7772, %v7774
        %v7776 = vshll.u32 %v7736, 8
        %v7777 = vmul.u32.u64.compose %v7776, %v7775
        %v7778 = vextract.low.u32 %v7777
        %v7779 = vextract.high.u32 %v7777
        %v7780 = vmul.u32.u64.compose %v7776, %v7771
        %v7781 = vextract.low.u32 %v7780
        %v7782 = vextract.high.u32 %v7780
        %v7783 = vmul.u32 %v7776, %v7767
        %v7784 = vadd.s32 %v7779, %v7781
        %vm7785 = vc.u32 %v7779, %v7781
        %v7786 = vadd.s32 %v7782, 1
        %v7787 = vsel %vm7785, %v7786, %v7782
        %v7788 = vadd.s32 %v7783, %v7787
        %v7789 = vadd.s32 %v7788, 536870912
        %v7790 = vshrl.u32 %v7789, 30
        %v7791 = vshll.u32 %v7790, 30
        %v7792 = vsub.s32 %v7788, %v7791
        %vm7793 = vcmp.lt.s32.totalorder %v7792, 0
        %v7794 = vsub.s32 0, %v7792
        %v7795 = vsel %vm7793, %v7794, %v7792
        %v7796 = vclz %v7795
        %v7797 = vsub.s32 %v7796, 2
        %vm7798 = vcmp.gt.s32.totalorder 0, %v7797
        %v7799 = vsel %vm7798, 0, %v7797
        %v7800 = vsub.s32 32, %v7799
        %v7801 = vshll.u32 %v7792, %v7799
        %v7802 = vshrl.u32 %v7784, %v7800
        %v7803 = vor.u32 %v7801, %v7802
        %v7804 = vsub.s32 4294967266, %v7799
        %v7805 = vadd.s32 %v7804, 127
        %v7806 = vshll.u32 %v7805, 23
        %v7807 = vor.u32 4788187, %v7806
        %v7808 = vand.u32 2147483647, %v7807
        %v7810 = vcvt.s32.f32 %v7803
        %v7811 = vmul.f32 %v7810, %v7808
        %v7812 = vxor.u32 %v7811, 2147483648
        %v7813 = vsel %vm7730, %v7812, %v7811
        %v7814 = vsub.s32 4, %v7790
        %v7815 = vsel %vm7730, %v7814, %v7790
        %v7816 = vsel %vm7729, %v542, %v7813
        %v7817 = vsel %vm7729, 0, %v7815
        %v7818 = vcosq.f32.pop %v7816
        %v7819 = vsinq.f32.pop %v7816
        %vm7820 = vweird.f32 %v542
        %v7821 = vadd.s32 %v7817, 3
        %v7822 = vand.u32 %v7821, 3
        %vm7823 = vcmp.lt.s32.totalorder %v7822, 2
        %vm7824 = vcmp.eq.s32.totalorder %v7822, 0
        %v7825 = vxor.u32 %v7819, 2147483648
        %v7826 = vsel %vm7824, %v7818, %v7825
        %vm7827 = vcmp.eq.s32.totalorder %v7822, 2
        %v7828 = vxor.u32 %v7818, 2147483648
        %v7829 = vsel %vm7827, %v7828, %v7819
        %v7830 = vsel %vm7823, %v7826, %v7829
        %v7831 = vsel %vm7820, nan, %v7830
        %v7832 = vand.u32 2147483647, %v543
        %vm7833 = vcmp.le.f32.partialorder %v7832, 0.7853982
        %vm7834 = vcmp.lt.s32.totalorder %v543, 0
        %v7835 = vand.u32 %v543, 2139095040
        %v7836 = vshrl.u32 %v7835, 23
        %v7837 = vsub.s32 %v7836, 127
        %v7838 = vand.u32 2147483647, %v543
        %v7839 = vand.u32 %v7838, 8388607
        %v7840 = vor.u32 %v7839, 8388608
        %v7841 = vsub.s32 0, %v7840
        %v7842 = vadd.s32 %v7837, 1
        %vm7843 = vcmp.gt.s32.totalorder %v7842, 0
        %v7844 = vsel %vm7843, %v7842, 0
        %v7845 = vshrl.u32 %v7844, 5
        %v7846 = vand.u32 %v7844, 31
        %v7847 = vsub.s32 32, %v7846
        %v7848 = vshrl.u32 683565275, %v7847
        %v7849 = vshll.u32 683565275, %v7846
        %v7850 = vshrl.u32 2475754826, %v7847
        %v7851 = vor.u32 %v7849, %v7850
        %v7852 = vshll.u32 2475754826, %v7846
        %v7853 = vshrl.u32 2131351028, %v7847
        %v7854 = vor.u32 %v7852, %v7853
        %v7855 = vshll.u32 2131351028, %v7846
        %v7856 = vshrl.u32 2102212464, %v7847
        %v7857 = vor.u32 %v7855, %v7856
        %v7858 = vshll.u32 2102212464, %v7846
        %v7859 = vshrl.u32 920167782, %v7847
        %v7860 = vor.u32 %v7858, %v7859
        %v7861 = vshll.u32 920167782, %v7846
        %v7862 = vshrl.u32 1326507024, %v7847
        %v7863 = vor.u32 %v7861, %v7862
        %vm7864 = vcmp.lt.s32.totalorder %v7845, 1
        %vm7865 = vcmp.lt.s32.totalorder %v7845, 2
        %vm7866 = vcmp.lt.s32.totalorder %v7845, 3
        %vm7867 = vcmp.lt.s32.totalorder %v7845, 4
        %v7868 = vsel %vm7864, %v7848, %v7851
        %v7869 = vsel %vm7867, %v7857, 2102212464
        %v7870 = vsel %vm7866, %v7854, %v7869
        %v7871 = vsel %vm7865, %v7868, %v7870
        %v7872 = vsel %vm7864, %v7851, %v7854
        %v7873 = vsel %vm7867, %v7860, 920167782
        %v7874 = vsel %vm7866, %v7857, %v7873
        %v7875 = vsel %vm7865, %v7872, %v7874
        %v7876 = vsel %vm7864, %v7854, %v7857
        %v7877 = vsel %vm7867, %v7863, 1326507024
        %v7878 = vsel %vm7866, %v7860, %v7877
        %v7879 = vsel %vm7865, %v7876, %v7878
        %v7880 = vshll.u32 %v7840, 8
        %v7881 = vmul.u32.u64.compose %v7880, %v7879
        %v7882 = vextract.low.u32 %v7881
        %v7883 = vextract.high.u32 %v7881
        %v7884 = vmul.u32.u64.compose %v7880, %v7875
        %v7885 = vextract.low.u32 %v7884
        %v7886 = vextract.high.u32 %v7884
        %v7887 = vmul.u32 %v7880, %v7871
        %v7888 = vadd.s32 %v7883, %v7885
        %vm7889 = vc.u32 %v7883, %v7885
        %v7890 = vadd.s32 %v7886, 1
        %v7891 = vsel %vm7889, %v7890, %v7886
        %v7892 = vadd.s32 %v7887, %v7891
        %v7893 = vadd.s32 %v7892, 536870912
        %v7894 = vshrl.u32 %v7893, 30
        %v7895 = vshll.u32 %v7894, 30
        %v7896 = vsub.s32 %v7892, %v7895
        %vm7897 = vcmp.lt.s32.totalorder %v7896, 0
        %v7898 = vsub.s32 0, %v7896
        %v7899 = vsel %vm7897, %v7898, %v7896
        %v7900 = vclz %v7899
        %v7901 = vsub.s32 %v7900, 2
        %vm7902 = vcmp.gt.s32.totalorder 0, %v7901
        %v7903 = vsel %vm7902, 0, %v7901
        %v7904 = vsub.s32 32, %v7903
        %v7905 = vshll.u32 %v7896, %v7903
        %v7906 = vshrl.u32 %v7888, %v7904
        %v7907 = vor.u32 %v7905, %v7906
        %v7908 = vsub.s32 4294967266, %v7903
        %v7909 = vadd.s32 %v7908, 127
        %v7910 = vshll.u32 %v7909, 23
        %v7911 = vor.u32 4788187, %v7910
        %v7912 = vand.u32 2147483647, %v7911
        %v7914 = vcvt.s32.f32 %v7907
        %v7915 = vmul.f32 %v7914, %v7912
        %v7916 = vxor.u32 %v7915, 2147483648
        %v7917 = vsel %vm7834, %v7916, %v7915
        %v7918 = vsub.s32 4, %v7894
        %v7919 = vsel %vm7834, %v7918, %v7894
        %v7920 = vsel %vm7833, %v543, %v7917
        %v7921 = vsel %vm7833, 0, %v7919
        %v7922 = vcosq.f32.pop %v7920
        %v7923 = vsinq.f32.pop %v7920
        %vm7924 = vweird.f32 %v543
        %v7925 = vadd.s32 %v7921, 3
        %v7926 = vand.u32 %v7925, 3
        %vm7927 = vcmp.lt.s32.totalorder %v7926, 2
        %vm7928 = vcmp.eq.s32.totalorder %v7926, 0
        %v7929 = vxor.u32 %v7923, 2147483648
        %v7930 = vsel %vm7928, %v7922, %v7929
        %vm7931 = vcmp.eq.s32.totalorder %v7926, 2
        %v7932 = vxor.u32 %v7922, 2147483648
        %v7933 = vsel %vm7931, %v7932, %v7923
        %v7934 = vsel %vm7927, %v7930, %v7933
        %v7935 = vsel %vm7924, nan, %v7934
        %v7936 = vand.u32 2147483647, %v544
        %vm7937 = vcmp.le.f32.partialorder %v7936, 0.7853982
        %vm7938 = vcmp.lt.s32.totalorder %v544, 0
        %v7939 = vand.u32 %v544, 2139095040
        %v7940 = vshrl.u32 %v7939, 23
        %v7941 = vsub.s32 %v7940, 127
        %v7942 = vand.u32 2147483647, %v544
        %v7943 = vand.u32 %v7942, 8388607
        %v7944 = vor.u32 %v7943, 8388608
        %v7945 = vsub.s32 0, %v7944
        %v7946 = vadd.s32 %v7941, 1
        %vm7947 = vcmp.gt.s32.totalorder %v7946, 0
        %v7948 = vsel %vm7947, %v7946, 0
        %v7949 = vshrl.u32 %v7948, 5
        %v7950 = vand.u32 %v7948, 31
        %v7951 = vsub.s32 32, %v7950
        %v7952 = vshrl.u32 683565275, %v7951
        %v7953 = vshll.u32 683565275, %v7950
        %v7954 = vshrl.u32 2475754826, %v7951
        %v7955 = vor.u32 %v7953, %v7954
        %v7956 = vshll.u32 2475754826, %v7950
        %v7957 = vshrl.u32 2131351028, %v7951
        %v7958 = vor.u32 %v7956, %v7957
        %v7959 = vshll.u32 2131351028, %v7950
        %v7960 = vshrl.u32 2102212464, %v7951
        %v7961 = vor.u32 %v7959, %v7960
        %v7962 = vshll.u32 2102212464, %v7950
        %v7963 = vshrl.u32 920167782, %v7951
        %v7964 = vor.u32 %v7962, %v7963
        %v7965 = vshll.u32 920167782, %v7950
        %v7966 = vshrl.u32 1326507024, %v7951
        %v7967 = vor.u32 %v7965, %v7966
        %vm7968 = vcmp.lt.s32.totalorder %v7949, 1
        %vm7969 = vcmp.lt.s32.totalorder %v7949, 2
        %vm7970 = vcmp.lt.s32.totalorder %v7949, 3
        %vm7971 = vcmp.lt.s32.totalorder %v7949, 4
        %v7972 = vsel %vm7968, %v7952, %v7955
        %v7973 = vsel %vm7971, %v7961, 2102212464
        %v7974 = vsel %vm7970, %v7958, %v7973
        %v7975 = vsel %vm7969, %v7972, %v7974
        %v7976 = vsel %vm7968, %v7955, %v7958
        %v7977 = vsel %vm7971, %v7964, 920167782
        %v7978 = vsel %vm7970, %v7961, %v7977
        %v7979 = vsel %vm7969, %v7976, %v7978
        %v7980 = vsel %vm7968, %v7958, %v7961
        %v7981 = vsel %vm7971, %v7967, 1326507024
        %v7982 = vsel %vm7970, %v7964, %v7981
        %v7983 = vsel %vm7969, %v7980, %v7982
        %v7984 = vshll.u32 %v7944, 8
        %v7985 = vmul.u32.u64.compose %v7984, %v7983
        %v7986 = vextract.low.u32 %v7985
        %v7987 = vextract.high.u32 %v7985
        %v7988 = vmul.u32.u64.compose %v7984, %v7979
        %v7989 = vextract.low.u32 %v7988
        %v7990 = vextract.high.u32 %v7988
        %v7991 = vmul.u32 %v7984, %v7975
        %v7992 = vadd.s32 %v7987, %v7989
        %vm7993 = vc.u32 %v7987, %v7989
        %v7994 = vadd.s32 %v7990, 1
        %v7995 = vsel %vm7993, %v7994, %v7990
        %v7996 = vadd.s32 %v7991, %v7995
        %v7997 = vadd.s32 %v7996, 536870912
        %v7998 = vshrl.u32 %v7997, 30
        %v7999 = vshll.u32 %v7998, 30
        %v8000 = vsub.s32 %v7996, %v7999
        %vm8001 = vcmp.lt.s32.totalorder %v8000, 0
        %v8002 = vsub.s32 0, %v8000
        %v8003 = vsel %vm8001, %v8002, %v8000
        %v8004 = vclz %v8003
        %v8005 = vsub.s32 %v8004, 2
        %vm8006 = vcmp.gt.s32.totalorder 0, %v8005
        %v8007 = vsel %vm8006, 0, %v8005
        %v8008 = vsub.s32 32, %v8007
        %v8009 = vshll.u32 %v8000, %v8007
        %v8010 = vshrl.u32 %v7992, %v8008
        %v8011 = vor.u32 %v8009, %v8010
        %v8012 = vsub.s32 4294967266, %v8007
        %v8013 = vadd.s32 %v8012, 127
        %v8014 = vshll.u32 %v8013, 23
        %v8015 = vor.u32 4788187, %v8014
        %v8016 = vand.u32 2147483647, %v8015
        %v8018 = vcvt.s32.f32 %v8011
        %v8019 = vmul.f32 %v8018, %v8016
        %v8020 = vxor.u32 %v8019, 2147483648
        %v8021 = vsel %vm7938, %v8020, %v8019
        %v8022 = vsub.s32 4, %v7998
        %v8023 = vsel %vm7938, %v8022, %v7998
        %v8024 = vsel %vm7937, %v544, %v8021
        %v8025 = vsel %vm7937, 0, %v8023
        %v8026 = vcosq.f32.pop %v8024
        %v8027 = vsinq.f32.pop %v8024
        %vm8028 = vweird.f32 %v544
        %v8029 = vadd.s32 %v8025, 3
        %v8030 = vand.u32 %v8029, 3
        %vm8031 = vcmp.lt.s32.totalorder %v8030, 2
        %vm8032 = vcmp.eq.s32.totalorder %v8030, 0
        %v8033 = vxor.u32 %v8027, 2147483648
        %v8034 = vsel %vm8032, %v8026, %v8033
        %vm8035 = vcmp.eq.s32.totalorder %v8030, 2
        %v8036 = vxor.u32 %v8026, 2147483648
        %v8037 = vsel %vm8035, %v8036, %v8027
        %v8038 = vsel %vm8031, %v8034, %v8037
        %v8039 = vsel %vm8028, nan, %v8038
        %v8040 = vand.u32 2147483647, %v545
        %vm8041 = vcmp.le.f32.partialorder %v8040, 0.7853982
        %vm8042 = vcmp.lt.s32.totalorder %v545, 0
        %v8043 = vand.u32 %v545, 2139095040
        %v8044 = vshrl.u32 %v8043, 23
        %v8045 = vsub.s32 %v8044, 127
        %v8046 = vand.u32 2147483647, %v545
        %v8047 = vand.u32 %v8046, 8388607
        %v8048 = vor.u32 %v8047, 8388608
        %v8049 = vsub.s32 0, %v8048
        %v8050 = vadd.s32 %v8045, 1
        %vm8051 = vcmp.gt.s32.totalorder %v8050, 0
        %v8052 = vsel %vm8051, %v8050, 0
        %v8053 = vshrl.u32 %v8052, 5
        %v8054 = vand.u32 %v8052, 31
        %v8055 = vsub.s32 32, %v8054
        %v8056 = vshrl.u32 683565275, %v8055
        %v8057 = vshll.u32 683565275, %v8054
        %v8058 = vshrl.u32 2475754826, %v8055
        %v8059 = vor.u32 %v8057, %v8058
        %v8060 = vshll.u32 2475754826, %v8054
        %v8061 = vshrl.u32 2131351028, %v8055
        %v8062 = vor.u32 %v8060, %v8061
        %v8063 = vshll.u32 2131351028, %v8054
        %v8064 = vshrl.u32 2102212464, %v8055
        %v8065 = vor.u32 %v8063, %v8064
        %v8066 = vshll.u32 2102212464, %v8054
        %v8067 = vshrl.u32 920167782, %v8055
        %v8068 = vor.u32 %v8066, %v8067
        %v8069 = vshll.u32 920167782, %v8054
        %v8070 = vshrl.u32 1326507024, %v8055
        %v8071 = vor.u32 %v8069, %v8070
        %vm8072 = vcmp.lt.s32.totalorder %v8053, 1
        %vm8073 = vcmp.lt.s32.totalorder %v8053, 2
        %vm8074 = vcmp.lt.s32.totalorder %v8053, 3
        %vm8075 = vcmp.lt.s32.totalorder %v8053, 4
        %v8076 = vsel %vm8072, %v8056, %v8059
        %v8077 = vsel %vm8075, %v8065, 2102212464
        %v8078 = vsel %vm8074, %v8062, %v8077
        %v8079 = vsel %vm8073, %v8076, %v8078
        %v8080 = vsel %vm8072, %v8059, %v8062
        %v8081 = vsel %vm8075, %v8068, 920167782
        %v8082 = vsel %vm8074, %v8065, %v8081
        %v8083 = vsel %vm8073, %v8080, %v8082
        %v8084 = vsel %vm8072, %v8062, %v8065
        %v8085 = vsel %vm8075, %v8071, 1326507024
        %v8086 = vsel %vm8074, %v8068, %v8085
        %v8087 = vsel %vm8073, %v8084, %v8086
        %v8088 = vshll.u32 %v8048, 8
        %v8089 = vmul.u32.u64.compose %v8088, %v8087
        %v8090 = vextract.low.u32 %v8089
        %v8091 = vextract.high.u32 %v8089
        %v8092 = vmul.u32.u64.compose %v8088, %v8083
        %v8093 = vextract.low.u32 %v8092
        %v8094 = vextract.high.u32 %v8092
        %v8095 = vmul.u32 %v8088, %v8079
        %v8096 = vadd.s32 %v8091, %v8093
        %vm8097 = vc.u32 %v8091, %v8093
        %v8098 = vadd.s32 %v8094, 1
        %v8099 = vsel %vm8097, %v8098, %v8094
        %v8100 = vadd.s32 %v8095, %v8099
        %v8101 = vadd.s32 %v8100, 536870912
        %v8102 = vshrl.u32 %v8101, 30
        %v8103 = vshll.u32 %v8102, 30
        %v8104 = vsub.s32 %v8100, %v8103
        %vm8105 = vcmp.lt.s32.totalorder %v8104, 0
        %v8106 = vsub.s32 0, %v8104
        %v8107 = vsel %vm8105, %v8106, %v8104
        %v8108 = vclz %v8107
        %v8109 = vsub.s32 %v8108, 2
        %vm8110 = vcmp.gt.s32.totalorder 0, %v8109
        %v8111 = vsel %vm8110, 0, %v8109
        %v8112 = vsub.s32 32, %v8111
        %v8113 = vshll.u32 %v8104, %v8111
        %v8114 = vshrl.u32 %v8096, %v8112
        %v8115 = vor.u32 %v8113, %v8114
        %v8116 = vsub.s32 4294967266, %v8111
        %v8117 = vadd.s32 %v8116, 127
        %v8118 = vshll.u32 %v8117, 23
        %v8119 = vor.u32 4788187, %v8118
        %v8120 = vand.u32 2147483647, %v8119
        %v8122 = vcvt.s32.f32 %v8115
        %v8123 = vmul.f32 %v8122, %v8120
        %v8124 = vxor.u32 %v8123, 2147483648
        %v8125 = vsel %vm8042, %v8124, %v8123
        %v8126 = vsub.s32 4, %v8102
        %v8127 = vsel %vm8042, %v8126, %v8102
        %v8128 = vsel %vm8041, %v545, %v8125
        %v8129 = vsel %vm8041, 0, %v8127
        %v8130 = vcosq.f32.pop %v8128
        %v8131 = vsinq.f32.pop %v8128
        %vm8132 = vweird.f32 %v545
        %v8133 = vadd.s32 %v8129, 3
        %v8134 = vand.u32 %v8133, 3
        %vm8135 = vcmp.lt.s32.totalorder %v8134, 2
        %vm8136 = vcmp.eq.s32.totalorder %v8134, 0
        %v8137 = vxor.u32 %v8131, 2147483648
        %v8138 = vsel %vm8136, %v8130, %v8137
        %vm8139 = vcmp.eq.s32.totalorder %v8134, 2
        %v8140 = vxor.u32 %v8130, 2147483648
        %v8141 = vsel %vm8139, %v8140, %v8131
        %v8142 = vsel %vm8135, %v8138, %v8141
        %v8143 = vsel %vm8132, nan, %v8142
        %v8144 = vand.u32 2147483647, %v546
        %vm8145 = vcmp.le.f32.partialorder %v8144, 0.7853982
        %vm8146 = vcmp.lt.s32.totalorder %v546, 0
        %v8147 = vand.u32 %v546, 2139095040
        %v8148 = vshrl.u32 %v8147, 23
        %v8149 = vsub.s32 %v8148, 127
        %v8150 = vand.u32 2147483647, %v546
        %v8151 = vand.u32 %v8150, 8388607
        %v8152 = vor.u32 %v8151, 8388608
        %v8153 = vsub.s32 0, %v8152
        %v8154 = vadd.s32 %v8149, 1
        %vm8155 = vcmp.gt.s32.totalorder %v8154, 0
        %v8156 = vsel %vm8155, %v8154, 0
        %v8157 = vshrl.u32 %v8156, 5
        %v8158 = vand.u32 %v8156, 31
        %v8159 = vsub.s32 32, %v8158
        %v8160 = vshrl.u32 683565275, %v8159
        %v8161 = vshll.u32 683565275, %v8158
        %v8162 = vshrl.u32 2475754826, %v8159
        %v8163 = vor.u32 %v8161, %v8162
        %v8164 = vshll.u32 2475754826, %v8158
        %v8165 = vshrl.u32 2131351028, %v8159
        %v8166 = vor.u32 %v8164, %v8165
        %v8167 = vshll.u32 2131351028, %v8158
        %v8168 = vshrl.u32 2102212464, %v8159
        %v8169 = vor.u32 %v8167, %v8168
        %v8170 = vshll.u32 2102212464, %v8158
        %v8171 = vshrl.u32 920167782, %v8159
        %v8172 = vor.u32 %v8170, %v8171
        %v8173 = vshll.u32 920167782, %v8158
        %v8174 = vshrl.u32 1326507024, %v8159
        %v8175 = vor.u32 %v8173, %v8174
        %vm8176 = vcmp.lt.s32.totalorder %v8157, 1
        %vm8177 = vcmp.lt.s32.totalorder %v8157, 2
        %vm8178 = vcmp.lt.s32.totalorder %v8157, 3
        %vm8179 = vcmp.lt.s32.totalorder %v8157, 4
        %v8180 = vsel %vm8176, %v8160, %v8163
        %v8181 = vsel %vm8179, %v8169, 2102212464
        %v8182 = vsel %vm8178, %v8166, %v8181
        %v8183 = vsel %vm8177, %v8180, %v8182
        %v8184 = vsel %vm8176, %v8163, %v8166
        %v8185 = vsel %vm8179, %v8172, 920167782
        %v8186 = vsel %vm8178, %v8169, %v8185
        %v8187 = vsel %vm8177, %v8184, %v8186
        %v8188 = vsel %vm8176, %v8166, %v8169
        %v8189 = vsel %vm8179, %v8175, 1326507024
        %v8190 = vsel %vm8178, %v8172, %v8189
        %v8191 = vsel %vm8177, %v8188, %v8190
        %v8192 = vshll.u32 %v8152, 8
        %v8193 = vmul.u32.u64.compose %v8192, %v8191
        %v8194 = vextract.low.u32 %v8193
        %v8195 = vextract.high.u32 %v8193
        %v8196 = vmul.u32.u64.compose %v8192, %v8187
        %v8197 = vextract.low.u32 %v8196
        %v8198 = vextract.high.u32 %v8196
        %v8199 = vmul.u32 %v8192, %v8183
        %v8200 = vadd.s32 %v8195, %v8197
        %vm8201 = vc.u32 %v8195, %v8197
        %v8202 = vadd.s32 %v8198, 1
        %v8203 = vsel %vm8201, %v8202, %v8198
        %v8204 = vadd.s32 %v8199, %v8203
        %v8205 = vadd.s32 %v8204, 536870912
        %v8206 = vshrl.u32 %v8205, 30
        %v8207 = vshll.u32 %v8206, 30
        %v8208 = vsub.s32 %v8204, %v8207
        %vm8209 = vcmp.lt.s32.totalorder %v8208, 0
        %v8210 = vsub.s32 0, %v8208
        %v8211 = vsel %vm8209, %v8210, %v8208
        %v8212 = vclz %v8211
        %v8213 = vsub.s32 %v8212, 2
        %vm8214 = vcmp.gt.s32.totalorder 0, %v8213
        %v8215 = vsel %vm8214, 0, %v8213
        %v8216 = vsub.s32 32, %v8215
        %v8217 = vshll.u32 %v8208, %v8215
        %v8218 = vshrl.u32 %v8200, %v8216
        %v8219 = vor.u32 %v8217, %v8218
        %v8220 = vsub.s32 4294967266, %v8215
        %v8221 = vadd.s32 %v8220, 127
        %v8222 = vshll.u32 %v8221, 23
        %v8223 = vor.u32 4788187, %v8222
        %v8224 = vand.u32 2147483647, %v8223
        %v8226 = vcvt.s32.f32 %v8219
        %v8227 = vmul.f32 %v8226, %v8224
        %v8228 = vxor.u32 %v8227, 2147483648
        %v8229 = vsel %vm8146, %v8228, %v8227
        %v8230 = vsub.s32 4, %v8206
        %v8231 = vsel %vm8146, %v8230, %v8206
        %v8232 = vsel %vm8145, %v546, %v8229
        %v8233 = vsel %vm8145, 0, %v8231
        %v8234 = vcosq.f32.pop %v8232
        %v8235 = vsinq.f32.pop %v8232
        %vm8236 = vweird.f32 %v546
        %v8237 = vadd.s32 %v8233, 3
        %v8238 = vand.u32 %v8237, 3
        %vm8239 = vcmp.lt.s32.totalorder %v8238, 2
        %vm8240 = vcmp.eq.s32.totalorder %v8238, 0
        %v8241 = vxor.u32 %v8235, 2147483648
        %v8242 = vsel %vm8240, %v8234, %v8241
        %vm8243 = vcmp.eq.s32.totalorder %v8238, 2
        %v8244 = vxor.u32 %v8234, 2147483648
        %v8245 = vsel %vm8243, %v8244, %v8235
        %v8246 = vsel %vm8239, %v8242, %v8245
        %v8247 = vsel %vm8236, nan, %v8246
        %v8248 = vand.u32 2147483647, %v547
        %vm8249 = vcmp.le.f32.partialorder %v8248, 0.7853982
        %vm8250 = vcmp.lt.s32.totalorder %v547, 0
        %v8251 = vand.u32 %v547, 2139095040
        %v8252 = vshrl.u32 %v8251, 23
        %v8253 = vsub.s32 %v8252, 127
        %v8254 = vand.u32 2147483647, %v547
        %v8255 = vand.u32 %v8254, 8388607
        %v8256 = vor.u32 %v8255, 8388608
        %v8257 = vsub.s32 0, %v8256
        %v8258 = vadd.s32 %v8253, 1
        %vm8259 = vcmp.gt.s32.totalorder %v8258, 0
        %v8260 = vsel %vm8259, %v8258, 0
        %v8261 = vshrl.u32 %v8260, 5
        %v8262 = vand.u32 %v8260, 31
        %v8263 = vsub.s32 32, %v8262
        %v8264 = vshrl.u32 683565275, %v8263
        %v8265 = vshll.u32 683565275, %v8262
        %v8266 = vshrl.u32 2475754826, %v8263
        %v8267 = vor.u32 %v8265, %v8266
        %v8268 = vshll.u32 2475754826, %v8262
        %v8269 = vshrl.u32 2131351028, %v8263
        %v8270 = vor.u32 %v8268, %v8269
        %v8271 = vshll.u32 2131351028, %v8262
        %v8272 = vshrl.u32 2102212464, %v8263
        %v8273 = vor.u32 %v8271, %v8272
        %v8274 = vshll.u32 2102212464, %v8262
        %v8275 = vshrl.u32 920167782, %v8263
        %v8276 = vor.u32 %v8274, %v8275
        %v8277 = vshll.u32 920167782, %v8262
        %v8278 = vshrl.u32 1326507024, %v8263
        %v8279 = vor.u32 %v8277, %v8278
        %vm8280 = vcmp.lt.s32.totalorder %v8261, 1
        %vm8281 = vcmp.lt.s32.totalorder %v8261, 2
        %vm8282 = vcmp.lt.s32.totalorder %v8261, 3
        %vm8283 = vcmp.lt.s32.totalorder %v8261, 4
        %v8284 = vsel %vm8280, %v8264, %v8267
        %v8285 = vsel %vm8283, %v8273, 2102212464
        %v8286 = vsel %vm8282, %v8270, %v8285
        %v8287 = vsel %vm8281, %v8284, %v8286
        %v8288 = vsel %vm8280, %v8267, %v8270
        %v8289 = vsel %vm8283, %v8276, 920167782
        %v8290 = vsel %vm8282, %v8273, %v8289
        %v8291 = vsel %vm8281, %v8288, %v8290
        %v8292 = vsel %vm8280, %v8270, %v8273
        %v8293 = vsel %vm8283, %v8279, 1326507024
        %v8294 = vsel %vm8282, %v8276, %v8293
        %v8295 = vsel %vm8281, %v8292, %v8294
        %v8296 = vshll.u32 %v8256, 8
        %v8297 = vmul.u32.u64.compose %v8296, %v8295
        %v8298 = vextract.low.u32 %v8297
        %v8299 = vextract.high.u32 %v8297
        %v8300 = vmul.u32.u64.compose %v8296, %v8291
        %v8301 = vextract.low.u32 %v8300
        %v8302 = vextract.high.u32 %v8300
        %v8303 = vmul.u32 %v8296, %v8287
        %v8304 = vadd.s32 %v8299, %v8301
        %vm8305 = vc.u32 %v8299, %v8301
        %v8306 = vadd.s32 %v8302, 1
        %v8307 = vsel %vm8305, %v8306, %v8302
        %v8308 = vadd.s32 %v8303, %v8307
        %v8309 = vadd.s32 %v8308, 536870912
        %v8310 = vshrl.u32 %v8309, 30
        %v8311 = vshll.u32 %v8310, 30
        %v8312 = vsub.s32 %v8308, %v8311
        %vm8313 = vcmp.lt.s32.totalorder %v8312, 0
        %v8314 = vsub.s32 0, %v8312
        %v8315 = vsel %vm8313, %v8314, %v8312
        %v8316 = vclz %v8315
        %v8317 = vsub.s32 %v8316, 2
        %vm8318 = vcmp.gt.s32.totalorder 0, %v8317
        %v8319 = vsel %vm8318, 0, %v8317
        %v8320 = vsub.s32 32, %v8319
        %v8321 = vshll.u32 %v8312, %v8319
        %v8322 = vshrl.u32 %v8304, %v8320
        %v8323 = vor.u32 %v8321, %v8322
        %v8324 = vsub.s32 4294967266, %v8319
        %v8325 = vadd.s32 %v8324, 127
        %v8326 = vshll.u32 %v8325, 23
        %v8327 = vor.u32 4788187, %v8326
        %v8328 = vand.u32 2147483647, %v8327
        %v8330 = vcvt.s32.f32 %v8323
        %v8331 = vmul.f32 %v8330, %v8328
        %v8332 = vxor.u32 %v8331, 2147483648
        %v8333 = vsel %vm8250, %v8332, %v8331
        %v8334 = vsub.s32 4, %v8310
        %v8335 = vsel %vm8250, %v8334, %v8310
        %v8336 = vsel %vm8249, %v547, %v8333
        %v8337 = vsel %vm8249, 0, %v8335
        %v8338 = vcosq.f32.pop %v8336
        %v8339 = vsinq.f32.pop %v8336
        %vm8340 = vweird.f32 %v547
        %v8341 = vadd.s32 %v8337, 3
        %v8342 = vand.u32 %v8341, 3
        %vm8343 = vcmp.lt.s32.totalorder %v8342, 2
        %vm8344 = vcmp.eq.s32.totalorder %v8342, 0
        %v8345 = vxor.u32 %v8339, 2147483648
        %v8346 = vsel %vm8344, %v8338, %v8345
        %vm8347 = vcmp.eq.s32.totalorder %v8342, 2
        %v8348 = vxor.u32 %v8338, 2147483648
        %v8349 = vsel %vm8347, %v8348, %v8339
        %v8350 = vsel %vm8343, %v8346, %v8349
        %v8351 = vsel %vm8340, nan, %v8350
        %v8352 = vand.u32 2147483647, %v548
        %vm8353 = vcmp.le.f32.partialorder %v8352, 0.7853982
        %vm8354 = vcmp.lt.s32.totalorder %v548, 0
        %v8355 = vand.u32 %v548, 2139095040
        %v8356 = vshrl.u32 %v8355, 23
        %v8357 = vsub.s32 %v8356, 127
        %v8358 = vand.u32 2147483647, %v548
        %v8359 = vand.u32 %v8358, 8388607
        %v8360 = vor.u32 %v8359, 8388608
        %v8361 = vsub.s32 0, %v8360
        %v8362 = vadd.s32 %v8357, 1
        %vm8363 = vcmp.gt.s32.totalorder %v8362, 0
        %v8364 = vsel %vm8363, %v8362, 0
        %v8365 = vshrl.u32 %v8364, 5
        %v8366 = vand.u32 %v8364, 31
        %v8367 = vsub.s32 32, %v8366
        %v8368 = vshrl.u32 683565275, %v8367
        %v8369 = vshll.u32 683565275, %v8366
        %v8370 = vshrl.u32 2475754826, %v8367
        %v8371 = vor.u32 %v8369, %v8370
        %v8372 = vshll.u32 2475754826, %v8366
        %v8373 = vshrl.u32 2131351028, %v8367
        %v8374 = vor.u32 %v8372, %v8373
        %v8375 = vshll.u32 2131351028, %v8366
        %v8376 = vshrl.u32 2102212464, %v8367
        %v8377 = vor.u32 %v8375, %v8376
        %v8378 = vshll.u32 2102212464, %v8366
        %v8379 = vshrl.u32 920167782, %v8367
        %v8380 = vor.u32 %v8378, %v8379
        %v8381 = vshll.u32 920167782, %v8366
        %v8382 = vshrl.u32 1326507024, %v8367
        %v8383 = vor.u32 %v8381, %v8382
        %vm8384 = vcmp.lt.s32.totalorder %v8365, 1
        %vm8385 = vcmp.lt.s32.totalorder %v8365, 2
        %vm8386 = vcmp.lt.s32.totalorder %v8365, 3
        %vm8387 = vcmp.lt.s32.totalorder %v8365, 4
        %v8388 = vsel %vm8384, %v8368, %v8371
        %v8389 = vsel %vm8387, %v8377, 2102212464
        %v8390 = vsel %vm8386, %v8374, %v8389
        %v8391 = vsel %vm8385, %v8388, %v8390
        %v8392 = vsel %vm8384, %v8371, %v8374
        %v8393 = vsel %vm8387, %v8380, 920167782
        %v8394 = vsel %vm8386, %v8377, %v8393
        %v8395 = vsel %vm8385, %v8392, %v8394
        %v8396 = vsel %vm8384, %v8374, %v8377
        %v8397 = vsel %vm8387, %v8383, 1326507024
        %v8398 = vsel %vm8386, %v8380, %v8397
        %v8399 = vsel %vm8385, %v8396, %v8398
        %v8400 = vshll.u32 %v8360, 8
        %v8401 = vmul.u32.u64.compose %v8400, %v8399
        %v8402 = vextract.low.u32 %v8401
        %v8403 = vextract.high.u32 %v8401
        %v8404 = vmul.u32.u64.compose %v8400, %v8395
        %v8405 = vextract.low.u32 %v8404
        %v8406 = vextract.high.u32 %v8404
        %v8407 = vmul.u32 %v8400, %v8391
        %v8408 = vadd.s32 %v8403, %v8405
        %vm8409 = vc.u32 %v8403, %v8405
        %v8410 = vadd.s32 %v8406, 1
        %v8411 = vsel %vm8409, %v8410, %v8406
        %v8412 = vadd.s32 %v8407, %v8411
        %v8413 = vadd.s32 %v8412, 536870912
        %v8414 = vshrl.u32 %v8413, 30
        %v8415 = vshll.u32 %v8414, 30
        %v8416 = vsub.s32 %v8412, %v8415
        %vm8417 = vcmp.lt.s32.totalorder %v8416, 0
        %v8418 = vsub.s32 0, %v8416
        %v8419 = vsel %vm8417, %v8418, %v8416
        %v8420 = vclz %v8419
        %v8421 = vsub.s32 %v8420, 2
        %vm8422 = vcmp.gt.s32.totalorder 0, %v8421
        %v8423 = vsel %vm8422, 0, %v8421
        %v8424 = vsub.s32 32, %v8423
        %v8425 = vshll.u32 %v8416, %v8423
        %v8426 = vshrl.u32 %v8408, %v8424
        %v8427 = vor.u32 %v8425, %v8426
        %v8428 = vsub.s32 4294967266, %v8423
        %v8429 = vadd.s32 %v8428, 127
        %v8430 = vshll.u32 %v8429, 23
        %v8431 = vor.u32 4788187, %v8430
        %v8432 = vand.u32 2147483647, %v8431
        %v8434 = vcvt.s32.f32 %v8427
        %v8435 = vmul.f32 %v8434, %v8432
        %v8436 = vxor.u32 %v8435, 2147483648
        %v8437 = vsel %vm8354, %v8436, %v8435
        %v8438 = vsub.s32 4, %v8414
        %v8439 = vsel %vm8354, %v8438, %v8414
        %v8440 = vsel %vm8353, %v548, %v8437
        %v8441 = vsel %vm8353, 0, %v8439
        %v8442 = vcosq.f32.pop %v8440
        %v8443 = vsinq.f32.pop %v8440
        %vm8444 = vweird.f32 %v548
        %v8445 = vadd.s32 %v8441, 3
        %v8446 = vand.u32 %v8445, 3
        %vm8447 = vcmp.lt.s32.totalorder %v8446, 2
        %vm8448 = vcmp.eq.s32.totalorder %v8446, 0
        %v8449 = vxor.u32 %v8443, 2147483648
        %v8450 = vsel %vm8448, %v8442, %v8449
        %vm8451 = vcmp.eq.s32.totalorder %v8446, 2
        %v8452 = vxor.u32 %v8442, 2147483648
        %v8453 = vsel %vm8451, %v8452, %v8443
        %v8454 = vsel %vm8447, %v8450, %v8453
        %v8455 = vsel %vm8444, nan, %v8454
        %v8456 = vand.u32 2147483647, %v549
        %vm8457 = vcmp.le.f32.partialorder %v8456, 0.7853982
        %vm8458 = vcmp.lt.s32.totalorder %v549, 0
        %v8459 = vand.u32 %v549, 2139095040
        %v8460 = vshrl.u32 %v8459, 23
        %v8461 = vsub.s32 %v8460, 127
        %v8462 = vand.u32 2147483647, %v549
        %v8463 = vand.u32 %v8462, 8388607
        %v8464 = vor.u32 %v8463, 8388608
        %v8465 = vsub.s32 0, %v8464
        %v8466 = vadd.s32 %v8461, 1
        %vm8467 = vcmp.gt.s32.totalorder %v8466, 0
        %v8468 = vsel %vm8467, %v8466, 0
        %v8469 = vshrl.u32 %v8468, 5
        %v8470 = vand.u32 %v8468, 31
        %v8471 = vsub.s32 32, %v8470
        %v8472 = vshrl.u32 683565275, %v8471
        %v8473 = vshll.u32 683565275, %v8470
        %v8474 = vshrl.u32 2475754826, %v8471
        %v8475 = vor.u32 %v8473, %v8474
        %v8476 = vshll.u32 2475754826, %v8470
        %v8477 = vshrl.u32 2131351028, %v8471
        %v8478 = vor.u32 %v8476, %v8477
        %v8479 = vshll.u32 2131351028, %v8470
        %v8480 = vshrl.u32 2102212464, %v8471
        %v8481 = vor.u32 %v8479, %v8480
        %v8482 = vshll.u32 2102212464, %v8470
        %v8483 = vshrl.u32 920167782, %v8471
        %v8484 = vor.u32 %v8482, %v8483
        %v8485 = vshll.u32 920167782, %v8470
        %v8486 = vshrl.u32 1326507024, %v8471
        %v8487 = vor.u32 %v8485, %v8486
        %vm8488 = vcmp.lt.s32.totalorder %v8469, 1
        %vm8489 = vcmp.lt.s32.totalorder %v8469, 2
        %vm8490 = vcmp.lt.s32.totalorder %v8469, 3
        %vm8491 = vcmp.lt.s32.totalorder %v8469, 4
        %v8492 = vsel %vm8488, %v8472, %v8475
        %v8493 = vsel %vm8491, %v8481, 2102212464
        %v8494 = vsel %vm8490, %v8478, %v8493
        %v8495 = vsel %vm8489, %v8492, %v8494
        %v8496 = vsel %vm8488, %v8475, %v8478
        %v8497 = vsel %vm8491, %v8484, 920167782
        %v8498 = vsel %vm8490, %v8481, %v8497
        %v8499 = vsel %vm8489, %v8496, %v8498
        %v8500 = vsel %vm8488, %v8478, %v8481
        %v8501 = vsel %vm8491, %v8487, 1326507024
        %v8502 = vsel %vm8490, %v8484, %v8501
        %v8503 = vsel %vm8489, %v8500, %v8502
        %v8504 = vshll.u32 %v8464, 8
        %v8505 = vmul.u32.u64.compose %v8504, %v8503
        %v8506 = vextract.low.u32 %v8505
        %v8507 = vextract.high.u32 %v8505
        %v8508 = vmul.u32.u64.compose %v8504, %v8499
        %v8509 = vextract.low.u32 %v8508
        %v8510 = vextract.high.u32 %v8508
        %v8511 = vmul.u32 %v8504, %v8495
        %v8512 = vadd.s32 %v8507, %v8509
        %vm8513 = vc.u32 %v8507, %v8509
        %v8514 = vadd.s32 %v8510, 1
        %v8515 = vsel %vm8513, %v8514, %v8510
        %v8516 = vadd.s32 %v8511, %v8515
        %v8517 = vadd.s32 %v8516, 536870912
        %v8518 = vshrl.u32 %v8517, 30
        %v8519 = vshll.u32 %v8518, 30
        %v8520 = vsub.s32 %v8516, %v8519
        %vm8521 = vcmp.lt.s32.totalorder %v8520, 0
        %v8522 = vsub.s32 0, %v8520
        %v8523 = vsel %vm8521, %v8522, %v8520
        %v8524 = vclz %v8523
        %v8525 = vsub.s32 %v8524, 2
        %vm8526 = vcmp.gt.s32.totalorder 0, %v8525
        %v8527 = vsel %vm8526, 0, %v8525
        %v8528 = vsub.s32 32, %v8527
        %v8529 = vshll.u32 %v8520, %v8527
        %v8530 = vshrl.u32 %v8512, %v8528
        %v8531 = vor.u32 %v8529, %v8530
        %v8532 = vsub.s32 4294967266, %v8527
        %v8533 = vadd.s32 %v8532, 127
        %v8534 = vshll.u32 %v8533, 23
        %v8535 = vor.u32 4788187, %v8534
        %v8536 = vand.u32 2147483647, %v8535
        %v8538 = vcvt.s32.f32 %v8531
        %v8539 = vmul.f32 %v8538, %v8536
        %v8540 = vxor.u32 %v8539, 2147483648
        %v8541 = vsel %vm8458, %v8540, %v8539
        %v8542 = vsub.s32 4, %v8518
        %v8543 = vsel %vm8458, %v8542, %v8518
        %v8544 = vsel %vm8457, %v549, %v8541
        %v8545 = vsel %vm8457, 0, %v8543
        %v8546 = vcosq.f32.pop %v8544
        %v8547 = vsinq.f32.pop %v8544
        %vm8548 = vweird.f32 %v549
        %v8549 = vadd.s32 %v8545, 3
        %v8550 = vand.u32 %v8549, 3
        %vm8551 = vcmp.lt.s32.totalorder %v8550, 2
        %vm8552 = vcmp.eq.s32.totalorder %v8550, 0
        %v8553 = vxor.u32 %v8547, 2147483648
        %v8554 = vsel %vm8552, %v8546, %v8553
        %vm8555 = vcmp.eq.s32.totalorder %v8550, 2
        %v8556 = vxor.u32 %v8546, 2147483648
        %v8557 = vsel %vm8555, %v8556, %v8547
        %v8558 = vsel %vm8551, %v8554, %v8557
        %v8559 = vsel %vm8548, nan, %v8558
        %v8560 = vand.u32 2147483647, %v550
        %vm8561 = vcmp.le.f32.partialorder %v8560, 0.7853982
        %vm8562 = vcmp.lt.s32.totalorder %v550, 0
        %v8563 = vand.u32 %v550, 2139095040
        %v8564 = vshrl.u32 %v8563, 23
        %v8565 = vsub.s32 %v8564, 127
        %v8566 = vand.u32 2147483647, %v550
        %v8567 = vand.u32 %v8566, 8388607
        %v8568 = vor.u32 %v8567, 8388608
        %v8569 = vsub.s32 0, %v8568
        %v8570 = vadd.s32 %v8565, 1
        %vm8571 = vcmp.gt.s32.totalorder %v8570, 0
        %v8572 = vsel %vm8571, %v8570, 0
        %v8573 = vshrl.u32 %v8572, 5
        %v8574 = vand.u32 %v8572, 31
        %v8575 = vsub.s32 32, %v8574
        %v8576 = vshrl.u32 683565275, %v8575
        %v8577 = vshll.u32 683565275, %v8574
        %v8578 = vshrl.u32 2475754826, %v8575
        %v8579 = vor.u32 %v8577, %v8578
        %v8580 = vshll.u32 2475754826, %v8574
        %v8581 = vshrl.u32 2131351028, %v8575
        %v8582 = vor.u32 %v8580, %v8581
        %v8583 = vshll.u32 2131351028, %v8574
        %v8584 = vshrl.u32 2102212464, %v8575
        %v8585 = vor.u32 %v8583, %v8584
        %v8586 = vshll.u32 2102212464, %v8574
        %v8587 = vshrl.u32 920167782, %v8575
        %v8588 = vor.u32 %v8586, %v8587
        %v8589 = vshll.u32 920167782, %v8574
        %v8590 = vshrl.u32 1326507024, %v8575
        %v8591 = vor.u32 %v8589, %v8590
        %vm8592 = vcmp.lt.s32.totalorder %v8573, 1
        %vm8593 = vcmp.lt.s32.totalorder %v8573, 2
        %vm8594 = vcmp.lt.s32.totalorder %v8573, 3
        %vm8595 = vcmp.lt.s32.totalorder %v8573, 4
        %v8596 = vsel %vm8592, %v8576, %v8579
        %v8597 = vsel %vm8595, %v8585, 2102212464
        %v8598 = vsel %vm8594, %v8582, %v8597
        %v8599 = vsel %vm8593, %v8596, %v8598
        %v8600 = vsel %vm8592, %v8579, %v8582
        %v8601 = vsel %vm8595, %v8588, 920167782
        %v8602 = vsel %vm8594, %v8585, %v8601
        %v8603 = vsel %vm8593, %v8600, %v8602
        %v8604 = vsel %vm8592, %v8582, %v8585
        %v8605 = vsel %vm8595, %v8591, 1326507024
        %v8606 = vsel %vm8594, %v8588, %v8605
        %v8607 = vsel %vm8593, %v8604, %v8606
        %v8608 = vshll.u32 %v8568, 8
        %v8609 = vmul.u32.u64.compose %v8608, %v8607
        %v8610 = vextract.low.u32 %v8609
        %v8611 = vextract.high.u32 %v8609
        %v8612 = vmul.u32.u64.compose %v8608, %v8603
        %v8613 = vextract.low.u32 %v8612
        %v8614 = vextract.high.u32 %v8612
        %v8615 = vmul.u32 %v8608, %v8599
        %v8616 = vadd.s32 %v8611, %v8613
        %vm8617 = vc.u32 %v8611, %v8613
        %v8618 = vadd.s32 %v8614, 1
        %v8619 = vsel %vm8617, %v8618, %v8614
        %v8620 = vadd.s32 %v8615, %v8619
        %v8621 = vadd.s32 %v8620, 536870912
        %v8622 = vshrl.u32 %v8621, 30
        %v8623 = vshll.u32 %v8622, 30
        %v8624 = vsub.s32 %v8620, %v8623
        %vm8625 = vcmp.lt.s32.totalorder %v8624, 0
        %v8626 = vsub.s32 0, %v8624
        %v8627 = vsel %vm8625, %v8626, %v8624
        %v8628 = vclz %v8627
        %v8629 = vsub.s32 %v8628, 2
        %vm8630 = vcmp.gt.s32.totalorder 0, %v8629
        %v8631 = vsel %vm8630, 0, %v8629
        %v8632 = vsub.s32 32, %v8631
        %v8633 = vshll.u32 %v8624, %v8631
        %v8634 = vshrl.u32 %v8616, %v8632
        %v8635 = vor.u32 %v8633, %v8634
        %v8636 = vsub.s32 4294967266, %v8631
        %v8637 = vadd.s32 %v8636, 127
        %v8638 = vshll.u32 %v8637, 23
        %v8639 = vor.u32 4788187, %v8638
        %v8640 = vand.u32 2147483647, %v8639
        %v8642 = vcvt.s32.f32 %v8635
        %v8643 = vmul.f32 %v8642, %v8640
        %v8644 = vxor.u32 %v8643, 2147483648
        %v8645 = vsel %vm8562, %v8644, %v8643
        %v8646 = vsub.s32 4, %v8622
        %v8647 = vsel %vm8562, %v8646, %v8622
        %v8648 = vsel %vm8561, %v550, %v8645
        %v8649 = vsel %vm8561, 0, %v8647
        %v8650 = vcosq.f32.pop %v8648
        %v8651 = vsinq.f32.pop %v8648
        %vm8652 = vweird.f32 %v550
        %v8653 = vadd.s32 %v8649, 3
        %v8654 = vand.u32 %v8653, 3
        %vm8655 = vcmp.lt.s32.totalorder %v8654, 2
        %vm8656 = vcmp.eq.s32.totalorder %v8654, 0
        %v8657 = vxor.u32 %v8651, 2147483648
        %v8658 = vsel %vm8656, %v8650, %v8657
        %vm8659 = vcmp.eq.s32.totalorder %v8654, 2
        %v8660 = vxor.u32 %v8650, 2147483648
        %v8661 = vsel %vm8659, %v8660, %v8651
        %v8662 = vsel %vm8655, %v8658, %v8661
        %v8663 = vsel %vm8652, nan, %v8662
        %v8664 = vand.u32 2147483647, %v551
        %vm8665 = vcmp.le.f32.partialorder %v8664, 0.7853982
        %vm8666 = vcmp.lt.s32.totalorder %v551, 0
        %v8667 = vand.u32 %v551, 2139095040
        %v8668 = vshrl.u32 %v8667, 23
        %v8669 = vsub.s32 %v8668, 127
        %v8670 = vand.u32 2147483647, %v551
        %v8671 = vand.u32 %v8670, 8388607
        %v8672 = vor.u32 %v8671, 8388608
        %v8673 = vsub.s32 0, %v8672
        %v8674 = vadd.s32 %v8669, 1
        %vm8675 = vcmp.gt.s32.totalorder %v8674, 0
        %v8676 = vsel %vm8675, %v8674, 0
        %v8677 = vshrl.u32 %v8676, 5
        %v8678 = vand.u32 %v8676, 31
        %v8679 = vsub.s32 32, %v8678
        %v8680 = vshrl.u32 683565275, %v8679
        %v8681 = vshll.u32 683565275, %v8678
        %v8682 = vshrl.u32 2475754826, %v8679
        %v8683 = vor.u32 %v8681, %v8682
        %v8684 = vshll.u32 2475754826, %v8678
        %v8685 = vshrl.u32 2131351028, %v8679
        %v8686 = vor.u32 %v8684, %v8685
        %v8687 = vshll.u32 2131351028, %v8678
        %v8688 = vshrl.u32 2102212464, %v8679
        %v8689 = vor.u32 %v8687, %v8688
        %v8690 = vshll.u32 2102212464, %v8678
        %v8691 = vshrl.u32 920167782, %v8679
        %v8692 = vor.u32 %v8690, %v8691
        %v8693 = vshll.u32 920167782, %v8678
        %v8694 = vshrl.u32 1326507024, %v8679
        %v8695 = vor.u32 %v8693, %v8694
        %vm8696 = vcmp.lt.s32.totalorder %v8677, 1
        %vm8697 = vcmp.lt.s32.totalorder %v8677, 2
        %vm8698 = vcmp.lt.s32.totalorder %v8677, 3
        %vm8699 = vcmp.lt.s32.totalorder %v8677, 4
        %v8700 = vsel %vm8696, %v8680, %v8683
        %v8701 = vsel %vm8699, %v8689, 2102212464
        %v8702 = vsel %vm8698, %v8686, %v8701
        %v8703 = vsel %vm8697, %v8700, %v8702
        %v8704 = vsel %vm8696, %v8683, %v8686
        %v8705 = vsel %vm8699, %v8692, 920167782
        %v8706 = vsel %vm8698, %v8689, %v8705
        %v8707 = vsel %vm8697, %v8704, %v8706
        %v8708 = vsel %vm8696, %v8686, %v8689
        %v8709 = vsel %vm8699, %v8695, 1326507024
        %v8710 = vsel %vm8698, %v8692, %v8709
        %v8711 = vsel %vm8697, %v8708, %v8710
        %v8712 = vshll.u32 %v8672, 8
        %v8713 = vmul.u32.u64.compose %v8712, %v8711
        %v8714 = vextract.low.u32 %v8713
        %v8715 = vextract.high.u32 %v8713
        %v8716 = vmul.u32.u64.compose %v8712, %v8707
        %v8717 = vextract.low.u32 %v8716
        %v8718 = vextract.high.u32 %v8716
        %v8719 = vmul.u32 %v8712, %v8703
        %v8720 = vadd.s32 %v8715, %v8717
        %vm8721 = vc.u32 %v8715, %v8717
        %v8722 = vadd.s32 %v8718, 1
        %v8723 = vsel %vm8721, %v8722, %v8718
        %v8724 = vadd.s32 %v8719, %v8723
        %v8725 = vadd.s32 %v8724, 536870912
        %v8726 = vshrl.u32 %v8725, 30
        %v8727 = vshll.u32 %v8726, 30
        %v8728 = vsub.s32 %v8724, %v8727
        %vm8729 = vcmp.lt.s32.totalorder %v8728, 0
        %v8730 = vsub.s32 0, %v8728
        %v8731 = vsel %vm8729, %v8730, %v8728
        %v8732 = vclz %v8731
        %v8733 = vsub.s32 %v8732, 2
        %vm8734 = vcmp.gt.s32.totalorder 0, %v8733
        %v8735 = vsel %vm8734, 0, %v8733
        %v8736 = vsub.s32 32, %v8735
        %v8737 = vshll.u32 %v8728, %v8735
        %v8738 = vshrl.u32 %v8720, %v8736
        %v8739 = vor.u32 %v8737, %v8738
        %v8740 = vsub.s32 4294967266, %v8735
        %v8741 = vadd.s32 %v8740, 127
        %v8742 = vshll.u32 %v8741, 23
        %v8743 = vor.u32 4788187, %v8742
        %v8744 = vand.u32 2147483647, %v8743
        %v8746 = vcvt.s32.f32 %v8739
        %v8747 = vmul.f32 %v8746, %v8744
        %v8748 = vxor.u32 %v8747, 2147483648
        %v8749 = vsel %vm8666, %v8748, %v8747
        %v8750 = vsub.s32 4, %v8726
        %v8751 = vsel %vm8666, %v8750, %v8726
        %v8752 = vsel %vm8665, %v551, %v8749
        %v8753 = vsel %vm8665, 0, %v8751
        %v8754 = vcosq.f32.pop %v8752
        %v8755 = vsinq.f32.pop %v8752
        %vm8756 = vweird.f32 %v551
        %v8757 = vadd.s32 %v8753, 3
        %v8758 = vand.u32 %v8757, 3
        %vm8759 = vcmp.lt.s32.totalorder %v8758, 2
        %vm8760 = vcmp.eq.s32.totalorder %v8758, 0
        %v8761 = vxor.u32 %v8755, 2147483648
        %v8762 = vsel %vm8760, %v8754, %v8761
        %vm8763 = vcmp.eq.s32.totalorder %v8758, 2
        %v8764 = vxor.u32 %v8754, 2147483648
        %v8765 = vsel %vm8763, %v8764, %v8755
        %v8766 = vsel %vm8759, %v8762, %v8765
        %v8767 = vsel %vm8756, nan, %v8766
        %8768 = vst [vmem:[%s134] sm:$0xff] %v655
        %8769 = vst [vmem:[%s134 + $0x8] sm:$0xff] %v759
        %8770 = vst [vmem:[%s134 + $0x10] sm:$0xff] %v863
        %8771 = vst [vmem:[%s134 + $0x18] sm:$0xff] %v967
        %8772 = vst [vmem:[%s134 + $0x20] sm:$0xff] %v1071
        %8773 = vst [vmem:[%s134 + $0x28] sm:$0xff] %v1175
        %8774 = vst [vmem:[%s134 + $0x30] sm:$0xff] %v1279
        %8775 = vst [vmem:[%s134 + $0x38] sm:$0xff] %v1383
        %8776 = vst [vmem:[%s134 + $0x40] sm:$0xff] %v1487
        %8777 = vst [vmem:[%s134 + $0x48] sm:$0xff] %v1591
        %8778 = vst [vmem:[%s134 + $0x50] sm:$0xff] %v1695
        %8779 = vst [vmem:[%s134 + $0x58] sm:$0xff] %v1799
        %8780 = vst [vmem:[%s134 + $0x60] sm:$0xff] %v1903
        %8781 = vst [vmem:[%s134 + $0x68] sm:$0xff] %v2007
        %8782 = vst [vmem:[%s134 + $0x70] sm:$0xff] %v2111
        %8783 = vst [vmem:[%s134 + $0x78] sm:$0xff] %v2215
        %8784 = vst [vmem:[%s134 + $0x80] sm:$0xff] %v2319
        %8785 = vst [vmem:[%s134 + $0x88] sm:$0xff] %v2423
        %8786 = vst [vmem:[%s134 + $0x90] sm:$0xff] %v2527
        %8787 = vst [vmem:[%s134 + $0x98] sm:$0xff] %v2631
        %8788 = vst [vmem:[%s134 + $0xa0] sm:$0xff] %v2735
        %8789 = vst [vmem:[%s134 + $0xa8] sm:$0xff] %v2839
        %8790 = vst [vmem:[%s134 + $0xb0] sm:$0xff] %v2943
        %8791 = vst [vmem:[%s134 + $0xb8] sm:$0xff] %v3047
        %8792 = vst [vmem:[%s134 + $0xc0] sm:$0xff] %v3151
        %8793 = vst [vmem:[%s134 + $0xc8] sm:$0xff] %v3255
        %8794 = vst [vmem:[%s134 + $0xd0] sm:$0xff] %v3359
        %8795 = vst [vmem:[%s134 + $0xd8] sm:$0xff] %v3463
        %8796 = vst [vmem:[%s134 + $0xe0] sm:$0xff] %v3567
        %8797 = vst [vmem:[%s134 + $0xe8] sm:$0xff] %v3671
        %8798 = vst [vmem:[%s134 + $0xf0] sm:$0xff] %v3775
        %8799 = vst [vmem:[%s134 + $0xf8] sm:$0xff] %v3879
        %8800 = vst [vmem:[%s134 + $0x100] sm:$0xff] %v3983
        %8801 = vst [vmem:[%s134 + $0x108] sm:$0xff] %v4087
        %8802 = vst [vmem:[%s134 + $0x110] sm:$0xff] %v4191
        %8803 = vst [vmem:[%s134 + $0x118] sm:$0xff] %v4295
        %8804 = vst [vmem:[%s134 + $0x120] sm:$0xff] %v4399
        %8805 = vst [vmem:[%s134 + $0x128] sm:$0xff] %v4503
        %8806 = vst [vmem:[%s134 + $0x130] sm:$0xff] %v4607
        %8807 = vst [vmem:[%s134 + $0x138] sm:$0xff] %v4711
        %8808 = vst [vmem:[%s134 + $0x140] sm:$0xff] %v4815
        %8809 = vst [vmem:[%s134 + $0x148] sm:$0xff] %v4919
        %8810 = vst [vmem:[%s134 + $0x150] sm:$0xff] %v5023
        %8811 = vst [vmem:[%s134 + $0x158] sm:$0xff] %v5127
        %8812 = vst [vmem:[%s134 + $0x160] sm:$0xff] %v5231
        %8813 = vst [vmem:[%s134 + $0x168] sm:$0xff] %v5335
        %8814 = vst [vmem:[%s134 + $0x170] sm:$0xff] %v5439
        %8815 = vst [vmem:[%s134 + $0x178] sm:$0xff] %v5543
        %8816 = vst [vmem:[%s134 + $0x180] sm:$0xff] %v5647
        %8817 = vst [vmem:[%s134 + $0x188] sm:$0xff] %v5751
        %8818 = vst [vmem:[%s134 + $0x190] sm:$0xff] %v5855
        %8819 = vst [vmem:[%s134 + $0x198] sm:$0xff] %v5959
        %8820 = vst [vmem:[%s134 + $0x1a0] sm:$0xff] %v6063
        %8821 = vst [vmem:[%s134 + $0x1a8] sm:$0xff] %v6167
        %8822 = vst [vmem:[%s134 + $0x1b0] sm:$0xff] %v6271
        %8823 = vst [vmem:[%s134 + $0x1b8] sm:$0xff] %v6375
        %8824 = vst [vmem:[%s134 + $0x1c0] sm:$0xff] %v6479
        %8825 = vst [vmem:[%s134 + $0x1c8] sm:$0xff] %v6583
        %8826 = vst [vmem:[%s134 + $0x1d0] sm:$0xff] %v6687
        %8827 = vst [vmem:[%s134 + $0x1d8] sm:$0xff] %v6791
        %8828 = vst [vmem:[%s134 + $0x1e0] sm:$0xff] %v6895
        %8829 = vst [vmem:[%s134 + $0x1e8] sm:$0xff] %v6999
        %8830 = vst [vmem:[%s134 + $0x1f0] sm:$0xff] %v7103
        %8831 = vst [vmem:[%s134 + $0x1f8] sm:$0xff] %v7207
        %8832 = vst [vmem:[%s134 + $0x200] sm:$0xff] %v7311
        %8833 = vst [vmem:[%s134 + $0x208] sm:$0xff] %v7415
        %8834 = vst [vmem:[%s134 + $0x210] sm:$0xff] %v7519
        %8835 = vst [vmem:[%s134 + $0x218] sm:$0xff] %v7623
        %8836 = vst [vmem:[%s134 + $0x220] sm:$0xff] %v7727
        %8837 = vst [vmem:[%s134 + $0x228] sm:$0xff] %v7831
        %8838 = vst [vmem:[%s134 + $0x230] sm:$0xff] %v7935
        %8839 = vst [vmem:[%s134 + $0x238] sm:$0xff] %v8039
        %8840 = vst [vmem:[%s134 + $0x240] sm:$0xff] %v8143
        %8841 = vst [vmem:[%s134 + $0x248] sm:$0xff] %v8247
        %8842 = vst [vmem:[%s134 + $0x250] sm:$0xff] %v8351
        %8843 = vst [vmem:[%s134 + $0x258] sm:$0xff] %v8455
        %8844 = vst [vmem:[%s134 + $0x260] sm:$0xff] %v8559
        %8845 = vst [vmem:[%s134 + $0x268] sm:$0xff] %v8663
        %8846 = vst [vmem:[%s134 + $0x270] sm:$0xff] %v8767
        %s8847 = sand.u32 %s67, 1
        %s8848 = scalar_lea.sflag [#allocation4], %s8847
        %s8849 = sand.u32 %s67, 1
        %s8850 = smul.addr %s8849, 632
        %s8851 = scalar_lea.vmem [#allocation5], %s8850
        // Predicated region
        $region33: #{tpu_custom_call.1} parent=27 // pred_check
          %p8852 = pneg %p77
        $region34: #{tpu_custom_call.1} parent=27 // pred_check_branch
          %8854 = sbr.rel (%p8852) target = $region36
        $region35: #{tpu_custom_call.1} parent=27 // pred_region
          %s8855 = smul.u32 79, %s17
          %s8856 = ssub.s32 157, %s8855
          %p8857 = scmp.lt.s32.totalorder %s8856, 79
          %s8858 = scalar_select %p8857, %s8856, 79
          %s8859 = smul.u32 128, %s8858
          %s8861 = ssub.s32 10112, %s8859
          %8862 = vsyncadd %s8848, %s8861
          %p8863 = scmp.ne.s32.totalorder 0, %s8859
          %s8864 = smul.addr %s8855, 128
          %s8865 = scalar_lea.hbm %s2, %s8864
          %s8866 = smul.u32 8, %s8858
          %s8867 = sshll.u32 %s8851, 4
          %s8868 = int_to_ptr.vmem [resolvable:$true] %s8867
          %s8869 = sshll.u32 %s8866, 4
          %8873 = dma.vmem_to_hbm [thread:$0]  (%p8863), %s8868, %s8869, %s8865, %s8848, 128, 128, 8
        $region36: #{tpu_custom_call.1} parent=27 // pred_fallthru
          _
      $region28: #{tpu_custom_call.1} parent=5 // pred_fallthru
        _
      %p8874 = scmp.le.s32.totalorder 2, %s12
      // Predicated region
      $region37: #{tpu_custom_call.1} parent=5 // pred_check
        %p8875 = pneg %p8874
      $region38: #{tpu_custom_call.1} parent=5 // pred_check_branch
        %8877 = sbr.rel (%p8875) target = $region40
      $region39: #{tpu_custom_call.1} parent=5 // pred_region
        %s8878 = ssub.s32 %s12, 2
        // Predicated region
        $region41: #{tpu_custom_call.1} parent=39 // pred_check
          %p8879 = pneg %p83
        $region42: #{tpu_custom_call.1} parent=39 // pred_check_branch
          %8881 = sbr.rel (%p8879) target = $region44
        $region43: #{tpu_custom_call.1} parent=39 // pred_region
          %s8882 = sand.u32 %s68, 1
          %s8883 = scalar_lea.sflag [#allocation4], %s8882
          %s8884 = sand.u32 %s68, 1
          %s8885 = smul.addr %s8884, 632
          %s8886 = scalar_lea.vmem [#allocation5], %s8885
          %8887 = dma.done %s8883, 10112
        $region44: #{tpu_custom_call.1} parent=39 // pred_fallthru
          _
      $region40: #{tpu_custom_call.1} parent=5 // pred_fallthru
        _
    $region6: #{tpu_custom_call.1} parent=1 // loop_footer
      %s16 = sadd.s32 1, %s12
    $region7: #{tpu_custom_call.1} parent=1 // loop_footer_branch
      %11 = sbr.rel target = $region3
    $region8: #{tpu_custom_call.1} parent=1 // loop_exit
      _
    %8888 = vsyncpa [#allocation3], 1
    %s8889 = scalar_lea.sflag [#allocation3], 1
    %8890 = vsyncpa %s8889, 1
    %8891 = vsyncpa [#allocation4], 1
    %s8892 = scalar_lea.sflag [#allocation4], 1
    %8893 = vsyncpa %s8892, 1

</llo_original>
